<compile_context>
chip_gen: v7x
topology: tpu7x:2x2x1
jax: 0.10.0
libtpu: 0.0.40
codegen_flags: <defaults>
</compile_context>

<pallas_src>
import math

import jax
import jax.numpy as jnp
from jax import lax
from jax.experimental import pallas as pl
from jax.experimental.pallas import tpu as pltpu


RELU_GAIN = math.sqrt(2.0)  # nn.init.calculate_gain('relu')


# ----------------------------------------------------------------------------
# deterministic parameter construction (orthogonal weights, zero biases,
# LayerNorm gamma=1 / beta=0), packed into a few fused slabs.
# ----------------------------------------------------------------------------
def build_params(key, state_dim, obs_dim, n_embd, n_block):
    keys = iter(jax.random.split(key, 128))

    def ortho(din, dout, gain):
        return jax.nn.initializers.orthogonal(scale=gain)(
            next(keys), (din, dout), jnp.float32)

    E = n_embd
    z = jnp.zeros((E,), jnp.float32)
    o = jnp.ones((E,), jnp.float32)

    p = {}
    # state_encoder / obs_encoder: LayerNorm(d) -> Linear(d, E) -> GELU
    p["state_ln"] = jnp.stack([jnp.ones((state_dim,), jnp.float32),
                               jnp.zeros((state_dim,), jnp.float32)])   # (2, Ds)
    p["state_w"] = ortho(state_dim, E, RELU_GAIN)
    p["obs_ln"] = jnp.stack([jnp.ones((obs_dim,), jnp.float32),
                             jnp.zeros((obs_dim,), jnp.float32)])       # (2, Do)
    p["obs_w"] = ortho(obs_dim, E, RELU_GAIN)

    # per-block fused weight slab: [q, k, v, proj, mlp1, mlp2]
    blk_w = []
    for _ in range(n_block):
        blk_w.append(jnp.stack([
            ortho(E, E, 0.01),       # query
            ortho(E, E, 0.01),       # key
            ortho(E, E, 0.01),       # value
            ortho(E, E, 0.01),       # proj
            ortho(E, E, RELU_GAIN),  # mlp fc1 (activate=True)
            ortho(E, E, 0.01),       # mlp fc2
        ]))
    p["blk_w"] = jnp.stack(blk_w)                         # (n_block, 6, E, E)

    # per-block fused vector slab:
    # [bq, bk, bv, bproj, b_mlp1, b_mlp2, ln1_g, ln1_b, ln2_g, ln2_b]
    p["blk_v"] = jnp.stack(
        [jnp.stack([z, z, z, z, z, z, o, z, o, z]) for _ in range(n_block)])

    # value head: Linear(E,E)[relu gain] -> GELU -> LayerNorm(E) -> Linear(E,1)
    p["head_w1"] = ortho(E, E, RELU_GAIN)
    p["head_w2"] = ortho(E, 1, 0.01)                      # (E, 1)

    # misc vector slab (8, E):
    # [input-linear bias, enc.ln gamma, enc.ln beta,
    #  head fc1 bias, head ln gamma, head ln beta, head fc2 bias (lane 0), pad]
    p["misc_v"] = jnp.stack([z, o, z, z, o, z, z, z])
    return p


# ----------------------------------------------------------------------------
# Pallas kernel + wrapper
# ----------------------------------------------------------------------------
def encoder_forward(state, obs, params, *, n_embd, n_head, n_block, n_agent,
                    encode_state=False, tile_rows=128):
    """Encoder.forward(state, obs) -> (v_loc, rep)."""
    E = n_embd
    hd = E // n_head
    assert E % n_head == 0
    L = n_agent

    if encode_state:
        x_in, in_ln, in_w = state, params["state_ln"], params["state_w"]
    else:
        x_in, in_ln, in_w = obs, params["obs_ln"], params["obs_w"]

    B, L_in, d_in = x_in.shape
    assert L_in == L

    R = tile_rows                       # fused rows per grid step (TILE_B * L)
    assert R % L == 0
    tile_b = R // L
    pad_b = (-B) % tile_b               # pad batch to a whole number of tiles
    if pad_b:
        x_in = jnp.concatenate(
            [x_in, jnp.zeros((pad_b, L, d_in), x_in.dtype)], axis=0)
    Bp = B + pad_b
    rows = Bp * L
    num_tiles = rows // R
    x_flat = x_in.reshape(rows, d_in)

    # Block-diagonal additive attention-mask bias: agents of the same batch
    # element attend to each other (encoder attention is unmasked within the
    # L x L block), everything else gets -1e9.
    grp = jnp.arange(R, dtype=jnp.int32) // L
    mask_bias = jnp.where(grp[:, None] == grp[None, :], 0.0, -1e9
                          ).astype(jnp.float32)                     # (R, R)

    blk_w, blk_v = params["blk_w"], params["blk_v"]
    misc_v, head_w1, head_w2 = params["misc_v"], params["head_w1"], params["head_w2"]

    scale = 1.0 / math.sqrt(hd)

    def kernel(x_ref, mask_ref, in_ln_ref, in_w_ref, blk_w_ref, blk_v_ref,
               misc_ref, hw1_ref, hw2_ref, vloc_ref, rep_ref):

        def mm(a, b):
            return jnp.dot(a, b, preferred_element_type=jnp.float32)

        def layer_norm(x, g, b):
            mu = jnp.mean(x, axis=-1, keepdims=True)
            var = jnp.mean(jnp.square(x - mu), axis=-1, keepdims=True)
            return (x - mu) * lax.rsqrt(var + 1e-5) * g + b

        def gelu(x):
            # tanh-approx GELU: tanh runs on the EUP slot (VALU-friendly).
            c = math.sqrt(2.0 / math.pi)
            return 0.5 * x * (1.0 + jnp.tanh(c * (x + 0.044715 * x * x * x)))

        mask = mask_ref[...]                               # (R, R) additive bias

        def attention(x, w, vv):
            # w: (6, E, E) = [q, k, v, proj, mlp1, mlp2]; vv: (10, E)
            q = mm(x, w[0]) + vv[0:1]
            k = mm(x, w[1]) + vv[1:2]
            v = mm(x, w[2]) + vv[2:3]
            heads = []
            for h in range(n_head):                        # small static unroll
                sl = slice(h * hd, (h + 1) * hd)
                qh, kh, vh = q[:, sl], k[:, sl], v[:, sl]
                att = lax.dot_general(qh, kh, (((1,), (1,)), ((), ())),
                                      preferred_element_type=jnp.float32)
                att = att * scale + mask                   # (R, R) block-diag
                m = jnp.max(att, axis=-1, keepdims=True)
                e = jnp.exp(att - m)
                s = jnp.sum(e, axis=-1, keepdims=True)
                att = e * pl.reciprocal(s, approx=True)    # EUP reciprocal
                heads.append(mm(att, vh))
            y = jnp.concatenate(heads, axis=-1)
            return mm(y, w[3]) + vv[3:4]

        # ---- input encoder: LayerNorm -> Linear -> GELU ----
        x = x_ref[...]                                     # (R, d_in)
        x = layer_norm(x, in_ln_ref[0:1, :], in_ln_ref[1:2, :])
        x = gelu(mm(x, in_w_ref[...]) + misc_ref[0:1, :])
        # ---- encoder.ln ----
        x = layer_norm(x, misc_ref[1:2, :], misc_ref[2:3, :])

        # ---- EncodeBlocks ----
        # TODO(synk): switch to lax.fori_loop over the stacked weights if
        #             n_block is scaled up (keeps vreg live ranges bounded).
        for blk in range(n_block):
            w = blk_w_ref[blk]                             # (6, E, E)
            vv = blk_v_ref[blk]                            # (10, E)
            a = attention(x, w, vv)
            x = layer_norm(x + a, vv[6:7], vv[7:8])        # ln1
            h = gelu(mm(x, w[4]) + vv[4:5])
            h = mm(h, w[5]) + vv[5:6]
            x = layer_norm(x + h, vv[8:9], vv[9:10])       # ln2

        rep_ref[...] = x                                   # (R, E)

        # ---- value head ----
        h = gelu(mm(x, hw1_ref[...]) + misc_ref[3:4, :])
        h = layer_norm(h, misc_ref[4:5, :], misc_ref[5:6, :])
        vloc_ref[...] = mm(h, hw2_ref[...]) + misc_ref[6:7, 0:1]   # (R, 1)

    in_specs = [
        pl.BlockSpec((R, d_in), lambda t: (t, 0)),                     # x tile
        pl.BlockSpec((R, R), lambda t: (0, 0)),                        # mask
        pl.BlockSpec((2, d_in), lambda t: (0, 0)),                     # in_ln
        pl.BlockSpec((d_in, E), lambda t: (0, 0)),                     # in_w
        pl.BlockSpec((n_block, 6, E, E), lambda t: (0, 0, 0, 0)),      # blk_w
        pl.BlockSpec((n_block, 10, E), lambda t: (0, 0, 0)),           # blk_v
        pl.BlockSpec((8, E), lambda t: (0, 0)),                        # misc_v
        pl.BlockSpec((E, E), lambda t: (0, 0)),                        # head_w1
        pl.BlockSpec((E, 1), lambda t: (0, 0)),                        # head_w2
    ]
    out_specs = (
        pl.BlockSpec((R, 1), lambda t: (t, 0)),                        # v_loc
        pl.BlockSpec((R, E), lambda t: (t, 0)),                        # rep
    )
    out_shape = (
        jax.ShapeDtypeStruct((rows, 1), jnp.float32),
        jax.ShapeDtypeStruct((rows, E), jnp.float32),
    )

    # rough cost hint for the XLA scheduler
    flops_tile = (2 * R * d_in * E
                  + n_block * (8 * R * E * E + 4 * R * R * E + 4 * R * E * E)
                  + 2 * R * E * E + 2 * R * E)
    trans_tile = R * E * (n_block + 2) + n_block * n_head * 2 * R * R
    param_bytes = 4 * sum(a.size for a in (mask_bias, in_ln, in_w, blk_w,
                                           blk_v, misc_v, head_w1, head_w2))
    cost = pl.CostEstimate(
        flops=int(flops_tile * num_tiles),
        transcendentals=int(trans_tile * num_tiles),
        bytes_accessed=int(4 * (x_flat.size + rows * (E + 1))
                           + param_bytes * num_tiles),
    )

    fn = pl.pallas_call(
        kernel,
        grid=(num_tiles,),
        in_specs=in_specs,
        out_specs=out_specs,
        out_shape=out_shape,
        cost_estimate=cost,
        compiler_params=pltpu.CompilerParams(
            dimension_semantics=("parallel",)),
    )
    v_flat, rep_flat = fn(x_flat, mask_bias, in_ln, in_w, blk_w, blk_v,
                          misc_v, head_w1, head_w2)

    v_loc = v_flat.reshape(Bp, L, 1)[:B]
    rep = rep_flat.reshape(Bp, L, E)[:B]
    return v_loc, rep


# ----------------------------------------------------------------------------
if __name__ == "__main__":
    key = jax.random.PRNGKey(0)
    B, n_agent = 64, 4
    state_dim, obs_dim = 37, 24
    n_embd, n_head, n_block = 32, 2, 2

    k1, k2, k3 = jax.random.split(key, 3)
    state = jax.random.normal(k1, (B, n_agent, state_dim), jnp.float32)
    obs = jax.random.normal(k2, (B, n_agent, obs_dim), jnp.float32)
    params = build_params(k3, state_dim, obs_dim, n_embd, n_block)

    # encode_state=False path (obs_encoder), as in the typical MAT config.
    v_loc, rep = encoder_forward(
        state, obs, params,
        n_embd=n_embd, n_head=n_head, n_block=n_block, n_agent=n_agent,
        encode_state=False, tile_rows=128)   # 128 rows/tile (v5e-safe; 256 also fine on v6e/v7x)

    jax.block_until_ready((v_loc, rep))
    assert v_loc.shape == (B, n_agent, 1)
    assert rep.shape == (B, n_agent, n_embd)
    print("KERNEL_OK")
</pallas_src>

<mosaic_0001>
module attributes {stable_mosaic.version = 11 : i64} {
  func.func @kernel(%arg0: i32, %arg1: memref<128x24xf32, #tpu.memory_space<vmem>>, %arg2: memref<128x128xf32, #tpu.memory_space<vmem>>, %arg3: memref<2x24xf32, #tpu.memory_space<vmem>>, %arg4: memref<24x32xf32, #tpu.memory_space<vmem>>, %arg5: memref<2x6x32x32xf32, #tpu.memory_space<vmem>>, %arg6: memref<2x10x32xf32, #tpu.memory_space<vmem>>, %arg7: memref<8x32xf32, #tpu.memory_space<vmem>>, %arg8: memref<32x32xf32, #tpu.memory_space<vmem>>, %arg9: memref<32x1xf32, #tpu.memory_space<vmem>>, %arg10: memref<128x1xf32, #tpu.memory_space<vmem>>, %arg11: memref<128x32xf32, #tpu.memory_space<vmem>>) attributes {dimension_semantics = [#tpu.dimension_semantics<parallel>], iteration_bounds = array<i64: 2>, scalar_prefetch = 0 : i64, scratch_operands = 0 : i64, tpu.core_type = #tpu.core_type<tc>, window_params = [{transform_indices = @transform_0, window_bounds = array<i64: 128, 24>}, {pipeline_mode = #tpu.pipeline_mode<synchronous>, transform_indices = @transform_1, window_bounds = array<i64: 128, 128>}, {pipeline_mode = #tpu.pipeline_mode<synchronous>, transform_indices = @transform_2, window_bounds = array<i64: 2, 24>}, {pipeline_mode = #tpu.pipeline_mode<synchronous>, transform_indices = @transform_3, window_bounds = array<i64: 24, 32>}, {pipeline_mode = #tpu.pipeline_mode<synchronous>, transform_indices = @transform_4, window_bounds = array<i64: 2, 6, 32, 32>}, {pipeline_mode = #tpu.pipeline_mode<synchronous>, transform_indices = @transform_5, window_bounds = array<i64: 2, 10, 32>}, {pipeline_mode = #tpu.pipeline_mode<synchronous>, transform_indices = @transform_6, window_bounds = array<i64: 8, 32>}, {pipeline_mode = #tpu.pipeline_mode<synchronous>, transform_indices = @transform_7, window_bounds = array<i64: 32, 32>}, {pipeline_mode = #tpu.pipeline_mode<synchronous>, transform_indices = @transform_8, window_bounds = array<i64: 32, 1>}, {transform_indices = @transform_9, window_bounds = array<i64: 128, 1>}, {transform_indices = @transform_10, window_bounds = array<i64: 128, 32>}]} {
    %c0 = arith.constant 0 : index
    %c0_0 = arith.constant 0 : index
    %0 = vector.load %arg2[%c0, %c0_0] : memref<128x128xf32, #tpu.memory_space<vmem>>, vector<128x128xf32>
    %c0_1 = arith.constant 0 : index
    %c0_2 = arith.constant 0 : index
    %1 = vector.load %arg1[%c0_1, %c0_2] : memref<128x24xf32, #tpu.memory_space<vmem>>, vector<128x24xf32>
    %c0_3 = arith.constant 0 : index
    %c0_4 = arith.constant 0 : index
    %2 = vector.load %arg3[%c0_3, %c0_4] : memref<2x24xf32, #tpu.memory_space<vmem>>, vector<1x24xf32>
    %c1 = arith.constant 1 : index
    %c0_5 = arith.constant 0 : index
    %3 = vector.load %arg3[%c1, %c0_5] : memref<2x24xf32, #tpu.memory_space<vmem>>, vector<1x24xf32>
    %cst = arith.constant dense<0.000000e+00> : vector<128xf32>
    %4 = vector.multi_reduction <add>, %1, %cst [1] : vector<128x24xf32> to vector<128xf32>
    %5 = vector.shape_cast %4 : vector<128xf32> to vector<128x1xf32>
    %cst_6 = arith.constant 2.400000e+01 : f32
    %6 = vector.broadcast %cst_6 : f32 to vector<128x1xf32>
    %7 = arith.divf %5, %6 : vector<128x1xf32>
    %8 = vector.broadcast %7 : vector<128x1xf32> to vector<128x24xf32>
    %9 = arith.subf %1, %8 : vector<128x24xf32>
    %10 = arith.mulf %9, %9 : vector<128x24xf32>
    %cst_7 = arith.constant dense<0.000000e+00> : vector<128xf32>
    %11 = vector.multi_reduction <add>, %10, %cst_7 [1] : vector<128x24xf32> to vector<128xf32>
    %12 = vector.shape_cast %11 : vector<128xf32> to vector<128x1xf32>
    %cst_8 = arith.constant 2.400000e+01 : f32
    %13 = vector.broadcast %cst_8 : f32 to vector<128x1xf32>
    %14 = arith.divf %12, %13 : vector<128x1xf32>
    %15 = vector.broadcast %7 : vector<128x1xf32> to vector<128x24xf32>
    %16 = arith.subf %1, %15 : vector<128x24xf32>
    %cst_9 = arith.constant 9.99999974E-6 : f32
    %17 = vector.broadcast %cst_9 : f32 to vector<128x1xf32>
    %18 = arith.addf %14, %17 : vector<128x1xf32>
    %19 = math.rsqrt %18 : vector<128x1xf32>
    %20 = vector.broadcast %19 : vector<128x1xf32> to vector<128x24xf32>
    %21 = arith.mulf %16, %20 : vector<128x24xf32>
    %22 = vector.broadcast %2 : vector<1x24xf32> to vector<128x24xf32>
    %23 = arith.mulf %21, %22 : vector<128x24xf32>
    %24 = vector.broadcast %3 : vector<1x24xf32> to vector<128x24xf32>
    %25 = arith.addf %23, %24 : vector<128x24xf32>
    %c0_10 = arith.constant 0 : index
    %c0_11 = arith.constant 0 : index
    %26 = vector.load %arg4[%c0_10, %c0_11] : memref<24x32xf32, #tpu.memory_space<vmem>>, vector<24x32xf32>
    %cst_12 = arith.constant dense<0.000000e+00> : vector<128x32xf32>
    %27 = tpu.matmul %25, %26, %cst_12 {dimension_numbers = #tpu.dot_dimension_numbers<[1], [0], [0], [1], [0, 0, 1, 1], [], []>} : vector<128x24xf32>, vector<24x32xf32>, vector<128x32xf32> -> vector<128x32xf32>
    %c0_13 = arith.constant 0 : index
    %c0_14 = arith.constant 0 : index
    %28 = vector.load %arg7[%c0_13, %c0_14] : memref<8x32xf32, #tpu.memory_space<vmem>>, vector<1x32xf32>
    %29 = vector.broadcast %28 : vector<1x32xf32> to vector<128x32xf32>
    %30 = arith.addf %27, %29 : vector<128x32xf32>
    %cst_15 = arith.constant 5.000000e-01 : f32
    %31 = vector.broadcast %cst_15 : f32 to vector<128x32xf32>
    %32 = arith.mulf %31, %30 : vector<128x32xf32>
    %cst_16 = arith.constant 4.471500e-02 : f32
    %33 = vector.broadcast %cst_16 : f32 to vector<128x32xf32>
    %34 = arith.mulf %33, %30 : vector<128x32xf32>
    %35 = arith.mulf %34, %30 : vector<128x32xf32>
    %36 = arith.mulf %35, %30 : vector<128x32xf32>
    %37 = arith.addf %30, %36 : vector<128x32xf32>
    %cst_17 = arith.constant 0.797884583 : f32
    %38 = vector.broadcast %cst_17 : f32 to vector<128x32xf32>
    %39 = arith.mulf %38, %37 : vector<128x32xf32>
    %40 = math.tanh %39 : vector<128x32xf32>
    %cst_18 = arith.constant 1.000000e+00 : f32
    %41 = vector.broadcast %cst_18 : f32 to vector<128x32xf32>
    %42 = arith.addf %41, %40 : vector<128x32xf32>
    %43 = arith.mulf %32, %42 : vector<128x32xf32>
    %c1_19 = arith.constant 1 : index
    %c0_20 = arith.constant 0 : index
    %44 = vector.load %arg7[%c1_19, %c0_20] : memref<8x32xf32, #tpu.memory_space<vmem>>, vector<1x32xf32>
    %c2 = arith.constant 2 : index
    %c0_21 = arith.constant 0 : index
    %45 = vector.load %arg7[%c2, %c0_21] : memref<8x32xf32, #tpu.memory_space<vmem>>, vector<1x32xf32>
    %cst_22 = arith.constant dense<0.000000e+00> : vector<128xf32>
    %46 = vector.multi_reduction <add>, %43, %cst_22 [1] : vector<128x32xf32> to vector<128xf32>
    %47 = vector.shape_cast %46 : vector<128xf32> to vector<128x1xf32>
    %cst_23 = arith.constant 3.200000e+01 : f32
    %48 = vector.broadcast %cst_23 : f32 to vector<128x1xf32>
    %49 = arith.divf %47, %48 : vector<128x1xf32>
    %50 = vector.broadcast %49 : vector<128x1xf32> to vector<128x32xf32>
    %51 = arith.subf %43, %50 : vector<128x32xf32>
    %52 = arith.mulf %51, %51 : vector<128x32xf32>
    %cst_24 = arith.constant dense<0.000000e+00> : vector<128xf32>
    %53 = vector.multi_reduction <add>, %52, %cst_24 [1] : vector<128x32xf32> to vector<128xf32>
    %54 = vector.shape_cast %53 : vector<128xf32> to vector<128x1xf32>
    %cst_25 = arith.constant 3.200000e+01 : f32
    %55 = vector.broadcast %cst_25 : f32 to vector<128x1xf32>
    %56 = arith.divf %54, %55 : vector<128x1xf32>
    %57 = vector.broadcast %49 : vector<128x1xf32> to vector<128x32xf32>
    %58 = arith.subf %43, %57 : vector<128x32xf32>
    %cst_26 = arith.constant 9.99999974E-6 : f32
    %59 = vector.broadcast %cst_26 : f32 to vector<128x1xf32>
    %60 = arith.addf %56, %59 : vector<128x1xf32>
    %61 = math.rsqrt %60 : vector<128x1xf32>
    %62 = vector.broadcast %61 : vector<128x1xf32> to vector<128x32xf32>
    %63 = arith.mulf %58, %62 : vector<128x32xf32>
    %64 = vector.broadcast %44 : vector<1x32xf32> to vector<128x32xf32>
    %65 = arith.mulf %63, %64 : vector<128x32xf32>
    %66 = vector.broadcast %45 : vector<1x32xf32> to vector<128x32xf32>
    %67 = arith.addf %65, %66 : vector<128x32xf32>
    %c0_27 = arith.constant 0 : index
    %c0_28 = arith.constant 0 : index
    %c0_29 = arith.constant 0 : index
    %c0_30 = arith.constant 0 : index
    %68 = vector.load %arg5[%c0_27, %c0_28, %c0_29, %c0_30] : memref<2x6x32x32xf32, #tpu.memory_space<vmem>>, vector<1x6x32x32xf32>
    %69 = vector.shape_cast %68 : vector<1x6x32x32xf32> to vector<6x32x32xf32>
    %c0_31 = arith.constant 0 : index
    %c0_32 = arith.constant 0 : index
    %c0_33 = arith.constant 0 : index
    %70 = vector.load %arg6[%c0_31, %c0_32, %c0_33] : memref<2x10x32xf32, #tpu.memory_space<vmem>>, vector<1x10x32xf32>
    %71 = vector.shape_cast %70 : vector<1x10x32xf32> to vector<10x32xf32>
    %72 = vector.extract_strided_slice %69 {offsets = [0, 0, 0], sizes = [1, 32, 32], strides = [1, 1, 1]} : vector<6x32x32xf32> to vector<1x32x32xf32>
    %73 = vector.shape_cast %72 : vector<1x32x32xf32> to vector<32x32xf32>
    %cst_34 = arith.constant dense<0.000000e+00> : vector<128x32xf32>
    %74 = tpu.matmul %67, %73, %cst_34 {dimension_numbers = #tpu.dot_dimension_numbers<[1], [0], [0], [1], [0, 0, 1, 1], [], []>} : vector<128x32xf32>, vector<32x32xf32>, vector<128x32xf32> -> vector<128x32xf32>
    %75 = vector.extract_strided_slice %71 {offsets = [0, 0], sizes = [1, 32], strides = [1, 1]} : vector<10x32xf32> to vector<1x32xf32>
    %76 = vector.broadcast %75 : vector<1x32xf32> to vector<128x32xf32>
    %77 = arith.addf %74, %76 : vector<128x32xf32>
    %78 = vector.extract_strided_slice %69 {offsets = [1, 0, 0], sizes = [1, 32, 32], strides = [1, 1, 1]} : vector<6x32x32xf32> to vector<1x32x32xf32>
    %79 = vector.shape_cast %78 : vector<1x32x32xf32> to vector<32x32xf32>
    %cst_35 = arith.constant dense<0.000000e+00> : vector<128x32xf32>
    %80 = tpu.matmul %67, %79, %cst_35 {dimension_numbers = #tpu.dot_dimension_numbers<[1], [0], [0], [1], [0, 0, 1, 1], [], []>} : vector<128x32xf32>, vector<32x32xf32>, vector<128x32xf32> -> vector<128x32xf32>
    %81 = vector.extract_strided_slice %71 {offsets = [1, 0], sizes = [1, 32], strides = [1, 1]} : vector<10x32xf32> to vector<1x32xf32>
    %82 = vector.broadcast %81 : vector<1x32xf32> to vector<128x32xf32>
    %83 = arith.addf %80, %82 : vector<128x32xf32>
    %84 = vector.extract_strided_slice %69 {offsets = [2, 0, 0], sizes = [1, 32, 32], strides = [1, 1, 1]} : vector<6x32x32xf32> to vector<1x32x32xf32>
    %85 = vector.shape_cast %84 : vector<1x32x32xf32> to vector<32x32xf32>
    %cst_36 = arith.constant dense<0.000000e+00> : vector<128x32xf32>
    %86 = tpu.matmul %67, %85, %cst_36 {dimension_numbers = #tpu.dot_dimension_numbers<[1], [0], [0], [1], [0, 0, 1, 1], [], []>} : vector<128x32xf32>, vector<32x32xf32>, vector<128x32xf32> -> vector<128x32xf32>
    %87 = vector.extract_strided_slice %71 {offsets = [2, 0], sizes = [1, 32], strides = [1, 1]} : vector<10x32xf32> to vector<1x32xf32>
    %88 = vector.broadcast %87 : vector<1x32xf32> to vector<128x32xf32>
    %89 = arith.addf %86, %88 : vector<128x32xf32>
    %90 = vector.extract_strided_slice %77 {offsets = [0, 0], sizes = [128, 16], strides = [1, 1]} : vector<128x32xf32> to vector<128x16xf32>
    %91 = vector.extract_strided_slice %83 {offsets = [0, 0], sizes = [128, 16], strides = [1, 1]} : vector<128x32xf32> to vector<128x16xf32>
    %92 = vector.extract_strided_slice %89 {offsets = [0, 0], sizes = [128, 16], strides = [1, 1]} : vector<128x32xf32> to vector<128x16xf32>
    %cst_37 = arith.constant dense<0.000000e+00> : vector<128x128xf32>
    %93 = tpu.matmul %90, %91, %cst_37 {dimension_numbers = #tpu.dot_dimension_numbers<[1], [1], [0], [0], [0, 0, 1, 0], [], []>} : vector<128x16xf32>, vector<128x16xf32>, vector<128x128xf32> -> vector<128x128xf32>
    %cst_38 = arith.constant 2.500000e-01 : f32
    %94 = vector.broadcast %cst_38 : f32 to vector<128x128xf32>
    %95 = arith.mulf %93, %94 : vector<128x128xf32>
    %96 = arith.addf %95, %0 : vector<128x128xf32>
    %cst_39 = arith.constant dense<0xFF800000> : vector<128xf32>
    %97 = vector.multi_reduction <maximumf>, %96, %cst_39 [1] : vector<128x128xf32> to vector<128xf32>
    %98 = vector.shape_cast %97 : vector<128xf32> to vector<128x1xf32>
    %99 = vector.broadcast %98 : vector<128x1xf32> to vector<128x128xf32>
    %100 = arith.subf %96, %99 : vector<128x128xf32>
    %101 = math.exp %100 : vector<128x128xf32>
    %cst_40 = arith.constant dense<0.000000e+00> : vector<128xf32>
    %102 = vector.multi_reduction <add>, %101, %cst_40 [1] : vector<128x128xf32> to vector<128xf32>
    %103 = vector.shape_cast %102 : vector<128xf32> to vector<128x1xf32>
    %104 = tpu.reciprocal %103 {approx = true} : vector<128x1xf32> -> vector<128x1xf32>
    %105 = vector.broadcast %104 : vector<128x1xf32> to vector<128x128xf32>
    %106 = arith.mulf %101, %105 : vector<128x128xf32>
    %cst_41 = arith.constant dense<0.000000e+00> : vector<128x16xf32>
    %107 = tpu.matmul %106, %92, %cst_41 {dimension_numbers = #tpu.dot_dimension_numbers<[1], [0], [0], [1], [0, 0, 1, 1], [], []>} : vector<128x128xf32>, vector<128x16xf32>, vector<128x16xf32> -> vector<128x16xf32>
    %108 = vector.extract_strided_slice %77 {offsets = [0, 16], sizes = [128, 16], strides = [1, 1]} : vector<128x32xf32> to vector<128x16xf32>
    %109 = vector.extract_strided_slice %83 {offsets = [0, 16], sizes = [128, 16], strides = [1, 1]} : vector<128x32xf32> to vector<128x16xf32>
    %110 = vector.extract_strided_slice %89 {offsets = [0, 16], sizes = [128, 16], strides = [1, 1]} : vector<128x32xf32> to vector<128x16xf32>
    %cst_42 = arith.constant dense<0.000000e+00> : vector<128x128xf32>
    %111 = tpu.matmul %108, %109, %cst_42 {dimension_numbers = #tpu.dot_dimension_numbers<[1], [1], [0], [0], [0, 0, 1, 0], [], []>} : vector<128x16xf32>, vector<128x16xf32>, vector<128x128xf32> -> vector<128x128xf32>
    %cst_43 = arith.constant 2.500000e-01 : f32
    %112 = vector.broadcast %cst_43 : f32 to vector<128x128xf32>
    %113 = arith.mulf %111, %112 : vector<128x128xf32>
    %114 = arith.addf %113, %0 : vector<128x128xf32>
    %cst_44 = arith.constant dense<0xFF800000> : vector<128xf32>
    %115 = vector.multi_reduction <maximumf>, %114, %cst_44 [1] : vector<128x128xf32> to vector<128xf32>
    %116 = vector.shape_cast %115 : vector<128xf32> to vector<128x1xf32>
    %117 = vector.broadcast %116 : vector<128x1xf32> to vector<128x128xf32>
    %118 = arith.subf %114, %117 : vector<128x128xf32>
    %119 = math.exp %118 : vector<128x128xf32>
    %cst_45 = arith.constant dense<0.000000e+00> : vector<128xf32>
    %120 = vector.multi_reduction <add>, %119, %cst_45 [1] : vector<128x128xf32> to vector<128xf32>
    %121 = vector.shape_cast %120 : vector<128xf32> to vector<128x1xf32>
    %122 = tpu.reciprocal %121 {approx = true} : vector<128x1xf32> -> vector<128x1xf32>
    %123 = vector.broadcast %122 : vector<128x1xf32> to vector<128x128xf32>
    %124 = arith.mulf %119, %123 : vector<128x128xf32>
    %cst_46 = arith.constant dense<0.000000e+00> : vector<128x16xf32>
    %125 = tpu.matmul %124, %110, %cst_46 {dimension_numbers = #tpu.dot_dimension_numbers<[1], [0], [0], [1], [0, 0, 1, 1], [], []>} : vector<128x128xf32>, vector<128x16xf32>, vector<128x16xf32> -> vector<128x16xf32>
    %126 = tpu.concatenate %107, %125 in 1 : vector<128x16xf32>, vector<128x16xf32> -> vector<128x32xf32>
    %127 = vector.extract_strided_slice %69 {offsets = [3, 0, 0], sizes = [1, 32, 32], strides = [1, 1, 1]} : vector<6x32x32xf32> to vector<1x32x32xf32>
    %128 = vector.shape_cast %127 : vector<1x32x32xf32> to vector<32x32xf32>
    %cst_47 = arith.constant dense<0.000000e+00> : vector<128x32xf32>
    %129 = tpu.matmul %126, %128, %cst_47 {dimension_numbers = #tpu.dot_dimension_numbers<[1], [0], [0], [1], [0, 0, 1, 1], [], []>} : vector<128x32xf32>, vector<32x32xf32>, vector<128x32xf32> -> vector<128x32xf32>
    %130 = vector.extract_strided_slice %71 {offsets = [3, 0], sizes = [1, 32], strides = [1, 1]} : vector<10x32xf32> to vector<1x32xf32>
    %131 = vector.broadcast %130 : vector<1x32xf32> to vector<128x32xf32>
    %132 = arith.addf %129, %131 : vector<128x32xf32>
    %133 = arith.addf %67, %132 : vector<128x32xf32>
    %134 = vector.extract_strided_slice %71 {offsets = [6, 0], sizes = [1, 32], strides = [1, 1]} : vector<10x32xf32> to vector<1x32xf32>
    %135 = vector.extract_strided_slice %71 {offsets = [7, 0], sizes = [1, 32], strides = [1, 1]} : vector<10x32xf32> to vector<1x32xf32>
    %cst_48 = arith.constant dense<0.000000e+00> : vector<128xf32>
    %136 = vector.multi_reduction <add>, %133, %cst_48 [1] : vector<128x32xf32> to vector<128xf32>
    %137 = vector.shape_cast %136 : vector<128xf32> to vector<128x1xf32>
    %cst_49 = arith.constant 3.200000e+01 : f32
    %138 = vector.broadcast %cst_49 : f32 to vector<128x1xf32>
    %139 = arith.divf %137, %138 : vector<128x1xf32>
    %140 = vector.broadcast %139 : vector<128x1xf32> to vector<128x32xf32>
    %141 = arith.subf %133, %140 : vector<128x32xf32>
    %142 = arith.mulf %141, %141 : vector<128x32xf32>
    %cst_50 = arith.constant dense<0.000000e+00> : vector<128xf32>
    %143 = vector.multi_reduction <add>, %142, %cst_50 [1] : vector<128x32xf32> to vector<128xf32>
    %144 = vector.shape_cast %143 : vector<128xf32> to vector<128x1xf32>
    %cst_51 = arith.constant 3.200000e+01 : f32
    %145 = vector.broadcast %cst_51 : f32 to vector<128x1xf32>
    %146 = arith.divf %144, %145 : vector<128x1xf32>
    %147 = vector.broadcast %139 : vector<128x1xf32> to vector<128x32xf32>
    %148 = arith.subf %133, %147 : vector<128x32xf32>
    %cst_52 = arith.constant 9.99999974E-6 : f32
    %149 = vector.broadcast %cst_52 : f32 to vector<128x1xf32>
    %150 = arith.addf %146, %149 : vector<128x1xf32>
    %151 = math.rsqrt %150 : vector<128x1xf32>
    %152 = vector.broadcast %151 : vector<128x1xf32> to vector<128x32xf32>
    %153 = arith.mulf %148, %152 : vector<128x32xf32>
    %154 = vector.broadcast %134 : vector<1x32xf32> to vector<128x32xf32>
    %155 = arith.mulf %153, %154 : vector<128x32xf32>
    %156 = vector.broadcast %135 : vector<1x32xf32> to vector<128x32xf32>
    %157 = arith.addf %155, %156 : vector<128x32xf32>
    %158 = vector.extract_strided_slice %69 {offsets = [4, 0, 0], sizes = [1, 32, 32], strides = [1, 1, 1]} : vector<6x32x32xf32> to vector<1x32x32xf32>
    %159 = vector.shape_cast %158 : vector<1x32x32xf32> to vector<32x32xf32>
    %cst_53 = arith.constant dense<0.000000e+00> : vector<128x32xf32>
    %160 = tpu.matmul %157, %159, %cst_53 {dimension_numbers = #tpu.dot_dimension_numbers<[1], [0], [0], [1], [0, 0, 1, 1], [], []>} : vector<128x32xf32>, vector<32x32xf32>, vector<128x32xf32> -> vector<128x32xf32>
    %161 = vector.extract_strided_slice %71 {offsets = [4, 0], sizes = [1, 32], strides = [1, 1]} : vector<10x32xf32> to vector<1x32xf32>
    %162 = vector.broadcast %161 : vector<1x32xf32> to vector<128x32xf32>
    %163 = arith.addf %160, %162 : vector<128x32xf32>
    %cst_54 = arith.constant 5.000000e-01 : f32
    %164 = vector.broadcast %cst_54 : f32 to vector<128x32xf32>
    %165 = arith.mulf %164, %163 : vector<128x32xf32>
    %cst_55 = arith.constant 4.471500e-02 : f32
    %166 = vector.broadcast %cst_55 : f32 to vector<128x32xf32>
    %167 = arith.mulf %166, %163 : vector<128x32xf32>
    %168 = arith.mulf %167, %163 : vector<128x32xf32>
    %169 = arith.mulf %168, %163 : vector<128x32xf32>
    %170 = arith.addf %163, %169 : vector<128x32xf32>
    %cst_56 = arith.constant 0.797884583 : f32
    %171 = vector.broadcast %cst_56 : f32 to vector<128x32xf32>
    %172 = arith.mulf %171, %170 : vector<128x32xf32>
    %173 = math.tanh %172 : vector<128x32xf32>
    %cst_57 = arith.constant 1.000000e+00 : f32
    %174 = vector.broadcast %cst_57 : f32 to vector<128x32xf32>
    %175 = arith.addf %174, %173 : vector<128x32xf32>
    %176 = arith.mulf %165, %175 : vector<128x32xf32>
    %177 = vector.extract_strided_slice %69 {offsets = [5, 0, 0], sizes = [1, 32, 32], strides = [1, 1, 1]} : vector<6x32x32xf32> to vector<1x32x32xf32>
    %178 = vector.shape_cast %177 : vector<1x32x32xf32> to vector<32x32xf32>
    %cst_58 = arith.constant dense<0.000000e+00> : vector<128x32xf32>
    %179 = tpu.matmul %176, %178, %cst_58 {dimension_numbers = #tpu.dot_dimension_numbers<[1], [0], [0], [1], [0, 0, 1, 1], [], []>} : vector<128x32xf32>, vector<32x32xf32>, vector<128x32xf32> -> vector<128x32xf32>
    %180 = vector.extract_strided_slice %71 {offsets = [5, 0], sizes = [1, 32], strides = [1, 1]} : vector<10x32xf32> to vector<1x32xf32>
    %181 = vector.broadcast %180 : vector<1x32xf32> to vector<128x32xf32>
    %182 = arith.addf %179, %181 : vector<128x32xf32>
    %183 = arith.addf %157, %182 : vector<128x32xf32>
    %184 = vector.extract_strided_slice %71 {offsets = [8, 0], sizes = [1, 32], strides = [1, 1]} : vector<10x32xf32> to vector<1x32xf32>
    %185 = vector.extract_strided_slice %71 {offsets = [9, 0], sizes = [1, 32], strides = [1, 1]} : vector<10x32xf32> to vector<1x32xf32>
    %cst_59 = arith.constant dense<0.000000e+00> : vector<128xf32>
    %186 = vector.multi_reduction <add>, %183, %cst_59 [1] : vector<128x32xf32> to vector<128xf32>
    %187 = vector.shape_cast %186 : vector<128xf32> to vector<128x1xf32>
    %cst_60 = arith.constant 3.200000e+01 : f32
    %188 = vector.broadcast %cst_60 : f32 to vector<128x1xf32>
    %189 = arith.divf %187, %188 : vector<128x1xf32>
    %190 = vector.broadcast %189 : vector<128x1xf32> to vector<128x32xf32>
    %191 = arith.subf %183, %190 : vector<128x32xf32>
    %192 = arith.mulf %191, %191 : vector<128x32xf32>
    %cst_61 = arith.constant dense<0.000000e+00> : vector<128xf32>
    %193 = vector.multi_reduction <add>, %192, %cst_61 [1] : vector<128x32xf32> to vector<128xf32>
    %194 = vector.shape_cast %193 : vector<128xf32> to vector<128x1xf32>
    %cst_62 = arith.constant 3.200000e+01 : f32
    %195 = vector.broadcast %cst_62 : f32 to vector<128x1xf32>
    %196 = arith.divf %194, %195 : vector<128x1xf32>
    %197 = vector.broadcast %189 : vector<128x1xf32> to vector<128x32xf32>
    %198 = arith.subf %183, %197 : vector<128x32xf32>
    %cst_63 = arith.constant 9.99999974E-6 : f32
    %199 = vector.broadcast %cst_63 : f32 to vector<128x1xf32>
    %200 = arith.addf %196, %199 : vector<128x1xf32>
    %201 = math.rsqrt %200 : vector<128x1xf32>
    %202 = vector.broadcast %201 : vector<128x1xf32> to vector<128x32xf32>
    %203 = arith.mulf %198, %202 : vector<128x32xf32>
    %204 = vector.broadcast %184 : vector<1x32xf32> to vector<128x32xf32>
    %205 = arith.mulf %203, %204 : vector<128x32xf32>
    %206 = vector.broadcast %185 : vector<1x32xf32> to vector<128x32xf32>
    %207 = arith.addf %205, %206 : vector<128x32xf32>
    %c1_64 = arith.constant 1 : index
    %c0_65 = arith.constant 0 : index
    %c0_66 = arith.constant 0 : index
    %c0_67 = arith.constant 0 : index
    %208 = vector.load %arg5[%c1_64, %c0_65, %c0_66, %c0_67] : memref<2x6x32x32xf32, #tpu.memory_space<vmem>>, vector<1x6x32x32xf32>
    %209 = vector.shape_cast %208 : vector<1x6x32x32xf32> to vector<6x32x32xf32>
    %c1_68 = arith.constant 1 : index
    %c0_69 = arith.constant 0 : index
    %c0_70 = arith.constant 0 : index
    %210 = vector.load %arg6[%c1_68, %c0_69, %c0_70] : memref<2x10x32xf32, #tpu.memory_space<vmem>>, vector<1x10x32xf32>
    %211 = vector.shape_cast %210 : vector<1x10x32xf32> to vector<10x32xf32>
    %212 = vector.extract_strided_slice %209 {offsets = [0, 0, 0], sizes = [1, 32, 32], strides = [1, 1, 1]} : vector<6x32x32xf32> to vector<1x32x32xf32>
    %213 = vector.shape_cast %212 : vector<1x32x32xf32> to vector<32x32xf32>
    %cst_71 = arith.constant dense<0.000000e+00> : vector<128x32xf32>
    %214 = tpu.matmul %207, %213, %cst_71 {dimension_numbers = #tpu.dot_dimension_numbers<[1], [0], [0], [1], [0, 0, 1, 1], [], []>} : vector<128x32xf32>, vector<32x32xf32>, vector<128x32xf32> -> vector<128x32xf32>
    %215 = vector.extract_strided_slice %211 {offsets = [0, 0], sizes = [1, 32], strides = [1, 1]} : vector<10x32xf32> to vector<1x32xf32>
    %216 = vector.broadcast %215 : vector<1x32xf32> to vector<128x32xf32>
    %217 = arith.addf %214, %216 : vector<128x32xf32>
    %218 = vector.extract_strided_slice %209 {offsets = [1, 0, 0], sizes = [1, 32, 32], strides = [1, 1, 1]} : vector<6x32x32xf32> to vector<1x32x32xf32>
    %219 = vector.shape_cast %218 : vector<1x32x32xf32> to vector<32x32xf32>
    %cst_72 = arith.constant dense<0.000000e+00> : vector<128x32xf32>
    %220 = tpu.matmul %207, %219, %cst_72 {dimension_numbers = #tpu.dot_dimension_numbers<[1], [0], [0], [1], [0, 0, 1, 1], [], []>} : vector<128x32xf32>, vector<32x32xf32>, vector<128x32xf32> -> vector<128x32xf32>
    %221 = vector.extract_strided_slice %211 {offsets = [1, 0], sizes = [1, 32], strides = [1, 1]} : vector<10x32xf32> to vector<1x32xf32>
    %222 = vector.broadcast %221 : vector<1x32xf32> to vector<128x32xf32>
    %223 = arith.addf %220, %222 : vector<128x32xf32>
    %224 = vector.extract_strided_slice %209 {offsets = [2, 0, 0], sizes = [1, 32, 32], strides = [1, 1, 1]} : vector<6x32x32xf32> to vector<1x32x32xf32>
    %225 = vector.shape_cast %224 : vector<1x32x32xf32> to vector<32x32xf32>
    %cst_73 = arith.constant dense<0.000000e+00> : vector<128x32xf32>
    %226 = tpu.matmul %207, %225, %cst_73 {dimension_numbers = #tpu.dot_dimension_numbers<[1], [0], [0], [1], [0, 0, 1, 1], [], []>} : vector<128x32xf32>, vector<32x32xf32>, vector<128x32xf32> -> vector<128x32xf32>
    %227 = vector.extract_strided_slice %211 {offsets = [2, 0], sizes = [1, 32], strides = [1, 1]} : vector<10x32xf32> to vector<1x32xf32>
    %228 = vector.broadcast %227 : vector<1x32xf32> to vector<128x32xf32>
    %229 = arith.addf %226, %228 : vector<128x32xf32>
    %230 = vector.extract_strided_slice %217 {offsets = [0, 0], sizes = [128, 16], strides = [1, 1]} : vector<128x32xf32> to vector<128x16xf32>
    %231 = vector.extract_strided_slice %223 {offsets = [0, 0], sizes = [128, 16], strides = [1, 1]} : vector<128x32xf32> to vector<128x16xf32>
    %232 = vector.extract_strided_slice %229 {offsets = [0, 0], sizes = [128, 16], strides = [1, 1]} : vector<128x32xf32> to vector<128x16xf32>
    %cst_74 = arith.constant dense<0.000000e+00> : vector<128x128xf32>
    %233 = tpu.matmul %230, %231, %cst_74 {dimension_numbers = #tpu.dot_dimension_numbers<[1], [1], [0], [0], [0, 0, 1, 0], [], []>} : vector<128x16xf32>, vector<128x16xf32>, vector<128x128xf32> -> vector<128x128xf32>
    %cst_75 = arith.constant 2.500000e-01 : f32
    %234 = vector.broadcast %cst_75 : f32 to vector<128x128xf32>
    %235 = arith.mulf %233, %234 : vector<128x128xf32>
    %236 = arith.addf %235, %0 : vector<128x128xf32>
    %cst_76 = arith.constant dense<0xFF800000> : vector<128xf32>
    %237 = vector.multi_reduction <maximumf>, %236, %cst_76 [1] : vector<128x128xf32> to vector<128xf32>
    %238 = vector.shape_cast %237 : vector<128xf32> to vector<128x1xf32>
    %239 = vector.broadcast %238 : vector<128x1xf32> to vector<128x128xf32>
    %240 = arith.subf %236, %239 : vector<128x128xf32>
    %241 = math.exp %240 : vector<128x128xf32>
    %cst_77 = arith.constant dense<0.000000e+00> : vector<128xf32>
    %242 = vector.multi_reduction <add>, %241, %cst_77 [1] : vector<128x128xf32> to vector<128xf32>
    %243 = vector.shape_cast %242 : vector<128xf32> to vector<128x1xf32>
    %244 = tpu.reciprocal %243 {approx = true} : vector<128x1xf32> -> vector<128x1xf32>
    %245 = vector.broadcast %244 : vector<128x1xf32> to vector<128x128xf32>
    %246 = arith.mulf %241, %245 : vector<128x128xf32>
    %cst_78 = arith.constant dense<0.000000e+00> : vector<128x16xf32>
    %247 = tpu.matmul %246, %232, %cst_78 {dimension_numbers = #tpu.dot_dimension_numbers<[1], [0], [0], [1], [0, 0, 1, 1], [], []>} : vector<128x128xf32>, vector<128x16xf32>, vector<128x16xf32> -> vector<128x16xf32>
    %248 = vector.extract_strided_slice %217 {offsets = [0, 16], sizes = [128, 16], strides = [1, 1]} : vector<128x32xf32> to vector<128x16xf32>
    %249 = vector.extract_strided_slice %223 {offsets = [0, 16], sizes = [128, 16], strides = [1, 1]} : vector<128x32xf32> to vector<128x16xf32>
    %250 = vector.extract_strided_slice %229 {offsets = [0, 16], sizes = [128, 16], strides = [1, 1]} : vector<128x32xf32> to vector<128x16xf32>
    %cst_79 = arith.constant dense<0.000000e+00> : vector<128x128xf32>
    %251 = tpu.matmul %248, %249, %cst_79 {dimension_numbers = #tpu.dot_dimension_numbers<[1], [1], [0], [0], [0, 0, 1, 0], [], []>} : vector<128x16xf32>, vector<128x16xf32>, vector<128x128xf32> -> vector<128x128xf32>
    %cst_80 = arith.constant 2.500000e-01 : f32
    %252 = vector.broadcast %cst_80 : f32 to vector<128x128xf32>
    %253 = arith.mulf %251, %252 : vector<128x128xf32>
    %254 = arith.addf %253, %0 : vector<128x128xf32>
    %cst_81 = arith.constant dense<0xFF800000> : vector<128xf32>
    %255 = vector.multi_reduction <maximumf>, %254, %cst_81 [1] : vector<128x128xf32> to vector<128xf32>
    %256 = vector.shape_cast %255 : vector<128xf32> to vector<128x1xf32>
    %257 = vector.broadcast %256 : vector<128x1xf32> to vector<128x128xf32>
    %258 = arith.subf %254, %257 : vector<128x128xf32>
    %259 = math.exp %258 : vector<128x128xf32>
    %cst_82 = arith.constant dense<0.000000e+00> : vector<128xf32>
    %260 = vector.multi_reduction <add>, %259, %cst_82 [1] : vector<128x128xf32> to vector<128xf32>
    %261 = vector.shape_cast %260 : vector<128xf32> to vector<128x1xf32>
    %262 = tpu.reciprocal %261 {approx = true} : vector<128x1xf32> -> vector<128x1xf32>
    %263 = vector.broadcast %262 : vector<128x1xf32> to vector<128x128xf32>
    %264 = arith.mulf %259, %263 : vector<128x128xf32>
    %cst_83 = arith.constant dense<0.000000e+00> : vector<128x16xf32>
    %265 = tpu.matmul %264, %250, %cst_83 {dimension_numbers = #tpu.dot_dimension_numbers<[1], [0], [0], [1], [0, 0, 1, 1], [], []>} : vector<128x128xf32>, vector<128x16xf32>, vector<128x16xf32> -> vector<128x16xf32>
    %266 = tpu.concatenate %247, %265 in 1 : vector<128x16xf32>, vector<128x16xf32> -> vector<128x32xf32>
    %267 = vector.extract_strided_slice %209 {offsets = [3, 0, 0], sizes = [1, 32, 32], strides = [1, 1, 1]} : vector<6x32x32xf32> to vector<1x32x32xf32>
    %268 = vector.shape_cast %267 : vector<1x32x32xf32> to vector<32x32xf32>
    %cst_84 = arith.constant dense<0.000000e+00> : vector<128x32xf32>
    %269 = tpu.matmul %266, %268, %cst_84 {dimension_numbers = #tpu.dot_dimension_numbers<[1], [0], [0], [1], [0, 0, 1, 1], [], []>} : vector<128x32xf32>, vector<32x32xf32>, vector<128x32xf32> -> vector<128x32xf32>
    %270 = vector.extract_strided_slice %211 {offsets = [3, 0], sizes = [1, 32], strides = [1, 1]} : vector<10x32xf32> to vector<1x32xf32>
    %271 = vector.broadcast %270 : vector<1x32xf32> to vector<128x32xf32>
    %272 = arith.addf %269, %271 : vector<128x32xf32>
    %273 = arith.addf %207, %272 : vector<128x32xf32>
    %274 = vector.extract_strided_slice %211 {offsets = [6, 0], sizes = [1, 32], strides = [1, 1]} : vector<10x32xf32> to vector<1x32xf32>
    %275 = vector.extract_strided_slice %211 {offsets = [7, 0], sizes = [1, 32], strides = [1, 1]} : vector<10x32xf32> to vector<1x32xf32>
    %cst_85 = arith.constant dense<0.000000e+00> : vector<128xf32>
    %276 = vector.multi_reduction <add>, %273, %cst_85 [1] : vector<128x32xf32> to vector<128xf32>
    %277 = vector.shape_cast %276 : vector<128xf32> to vector<128x1xf32>
    %cst_86 = arith.constant 3.200000e+01 : f32
    %278 = vector.broadcast %cst_86 : f32 to vector<128x1xf32>
    %279 = arith.divf %277, %278 : vector<128x1xf32>
    %280 = vector.broadcast %279 : vector<128x1xf32> to vector<128x32xf32>
    %281 = arith.subf %273, %280 : vector<128x32xf32>
    %282 = arith.mulf %281, %281 : vector<128x32xf32>
    %cst_87 = arith.constant dense<0.000000e+00> : vector<128xf32>
    %283 = vector.multi_reduction <add>, %282, %cst_87 [1] : vector<128x32xf32> to vector<128xf32>
    %284 = vector.shape_cast %283 : vector<128xf32> to vector<128x1xf32>
    %cst_88 = arith.constant 3.200000e+01 : f32
    %285 = vector.broadcast %cst_88 : f32 to vector<128x1xf32>
    %286 = arith.divf %284, %285 : vector<128x1xf32>
    %287 = vector.broadcast %279 : vector<128x1xf32> to vector<128x32xf32>
    %288 = arith.subf %273, %287 : vector<128x32xf32>
    %cst_89 = arith.constant 9.99999974E-6 : f32
    %289 = vector.broadcast %cst_89 : f32 to vector<128x1xf32>
    %290 = arith.addf %286, %289 : vector<128x1xf32>
    %291 = math.rsqrt %290 : vector<128x1xf32>
    %292 = vector.broadcast %291 : vector<128x1xf32> to vector<128x32xf32>
    %293 = arith.mulf %288, %292 : vector<128x32xf32>
    %294 = vector.broadcast %274 : vector<1x32xf32> to vector<128x32xf32>
    %295 = arith.mulf %293, %294 : vector<128x32xf32>
    %296 = vector.broadcast %275 : vector<1x32xf32> to vector<128x32xf32>
    %297 = arith.addf %295, %296 : vector<128x32xf32>
    %298 = vector.extract_strided_slice %209 {offsets = [4, 0, 0], sizes = [1, 32, 32], strides = [1, 1, 1]} : vector<6x32x32xf32> to vector<1x32x32xf32>
    %299 = vector.shape_cast %298 : vector<1x32x32xf32> to vector<32x32xf32>
    %cst_90 = arith.constant dense<0.000000e+00> : vector<128x32xf32>
    %300 = tpu.matmul %297, %299, %cst_90 {dimension_numbers = #tpu.dot_dimension_numbers<[1], [0], [0], [1], [0, 0, 1, 1], [], []>} : vector<128x32xf32>, vector<32x32xf32>, vector<128x32xf32> -> vector<128x32xf32>
    %301 = vector.extract_strided_slice %211 {offsets = [4, 0], sizes = [1, 32], strides = [1, 1]} : vector<10x32xf32> to vector<1x32xf32>
    %302 = vector.broadcast %301 : vector<1x32xf32> to vector<128x32xf32>
    %303 = arith.addf %300, %302 : vector<128x32xf32>
    %cst_91 = arith.constant 5.000000e-01 : f32
    %304 = vector.broadcast %cst_91 : f32 to vector<128x32xf32>
    %305 = arith.mulf %304, %303 : vector<128x32xf32>
    %cst_92 = arith.constant 4.471500e-02 : f32
    %306 = vector.broadcast %cst_92 : f32 to vector<128x32xf32>
    %307 = arith.mulf %306, %303 : vector<128x32xf32>
    %308 = arith.mulf %307, %303 : vector<128x32xf32>
    %309 = arith.mulf %308, %303 : vector<128x32xf32>
    %310 = arith.addf %303, %309 : vector<128x32xf32>
    %cst_93 = arith.constant 0.797884583 : f32
    %311 = vector.broadcast %cst_93 : f32 to vector<128x32xf32>
    %312 = arith.mulf %311, %310 : vector<128x32xf32>
    %313 = math.tanh %312 : vector<128x32xf32>
    %cst_94 = arith.constant 1.000000e+00 : f32
    %314 = vector.broadcast %cst_94 : f32 to vector<128x32xf32>
    %315 = arith.addf %314, %313 : vector<128x32xf32>
    %316 = arith.mulf %305, %315 : vector<128x32xf32>
    %317 = vector.extract_strided_slice %209 {offsets = [5, 0, 0], sizes = [1, 32, 32], strides = [1, 1, 1]} : vector<6x32x32xf32> to vector<1x32x32xf32>
    %318 = vector.shape_cast %317 : vector<1x32x32xf32> to vector<32x32xf32>
    %cst_95 = arith.constant dense<0.000000e+00> : vector<128x32xf32>
    %319 = tpu.matmul %316, %318, %cst_95 {dimension_numbers = #tpu.dot_dimension_numbers<[1], [0], [0], [1], [0, 0, 1, 1], [], []>} : vector<128x32xf32>, vector<32x32xf32>, vector<128x32xf32> -> vector<128x32xf32>
    %320 = vector.extract_strided_slice %211 {offsets = [5, 0], sizes = [1, 32], strides = [1, 1]} : vector<10x32xf32> to vector<1x32xf32>
    %321 = vector.broadcast %320 : vector<1x32xf32> to vector<128x32xf32>
    %322 = arith.addf %319, %321 : vector<128x32xf32>
    %323 = arith.addf %297, %322 : vector<128x32xf32>
    %324 = vector.extract_strided_slice %211 {offsets = [8, 0], sizes = [1, 32], strides = [1, 1]} : vector<10x32xf32> to vector<1x32xf32>
    %325 = vector.extract_strided_slice %211 {offsets = [9, 0], sizes = [1, 32], strides = [1, 1]} : vector<10x32xf32> to vector<1x32xf32>
    %cst_96 = arith.constant dense<0.000000e+00> : vector<128xf32>
    %326 = vector.multi_reduction <add>, %323, %cst_96 [1] : vector<128x32xf32> to vector<128xf32>
    %327 = vector.shape_cast %326 : vector<128xf32> to vector<128x1xf32>
    %cst_97 = arith.constant 3.200000e+01 : f32
    %328 = vector.broadcast %cst_97 : f32 to vector<128x1xf32>
    %329 = arith.divf %327, %328 : vector<128x1xf32>
    %330 = vector.broadcast %329 : vector<128x1xf32> to vector<128x32xf32>
    %331 = arith.subf %323, %330 : vector<128x32xf32>
    %332 = arith.mulf %331, %331 : vector<128x32xf32>
    %cst_98 = arith.constant dense<0.000000e+00> : vector<128xf32>
    %333 = vector.multi_reduction <add>, %332, %cst_98 [1] : vector<128x32xf32> to vector<128xf32>
    %334 = vector.shape_cast %333 : vector<128xf32> to vector<128x1xf32>
    %cst_99 = arith.constant 3.200000e+01 : f32
    %335 = vector.broadcast %cst_99 : f32 to vector<128x1xf32>
    %336 = arith.divf %334, %335 : vector<128x1xf32>
    %337 = vector.broadcast %329 : vector<128x1xf32> to vector<128x32xf32>
    %338 = arith.subf %323, %337 : vector<128x32xf32>
    %cst_100 = arith.constant 9.99999974E-6 : f32
    %339 = vector.broadcast %cst_100 : f32 to vector<128x1xf32>
    %340 = arith.addf %336, %339 : vector<128x1xf32>
    %341 = math.rsqrt %340 : vector<128x1xf32>
    %342 = vector.broadcast %341 : vector<128x1xf32> to vector<128x32xf32>
    %343 = arith.mulf %338, %342 : vector<128x32xf32>
    %344 = vector.broadcast %324 : vector<1x32xf32> to vector<128x32xf32>
    %345 = arith.mulf %343, %344 : vector<128x32xf32>
    %346 = vector.broadcast %325 : vector<1x32xf32> to vector<128x32xf32>
    %347 = arith.addf %345, %346 : vector<128x32xf32>
    %c0_101 = arith.constant 0 : index
    %c0_102 = arith.constant 0 : index
    %348 = vector.load %arg11[%c0_101, %c0_102] : memref<128x32xf32, #tpu.memory_space<vmem>>, vector<128x32xf32>
    tpu.vector_store %arg11[%c0_101, %c0_102], %347 {strides = array<i32>} : memref<128x32xf32, #tpu.memory_space<vmem>>, vector<128x32xf32>,
    %c0_103 = arith.constant 0 : index
    %c0_104 = arith.constant 0 : index
    %349 = vector.load %arg8[%c0_103, %c0_104] : memref<32x32xf32, #tpu.memory_space<vmem>>, vector<32x32xf32>
    %cst_105 = arith.constant dense<0.000000e+00> : vector<128x32xf32>
    %350 = tpu.matmul %347, %349, %cst_105 {dimension_numbers = #tpu.dot_dimension_numbers<[1], [0], [0], [1], [0, 0, 1, 1], [], []>} : vector<128x32xf32>, vector<32x32xf32>, vector<128x32xf32> -> vector<128x32xf32>
    %c3 = arith.constant 3 : index
    %c0_106 = arith.constant 0 : index
    %351 = vector.load %arg7[%c3, %c0_106] : memref<8x32xf32, #tpu.memory_space<vmem>>, vector<1x32xf32>
    %352 = vector.broadcast %351 : vector<1x32xf32> to vector<128x32xf32>
    %353 = arith.addf %350, %352 : vector<128x32xf32>
    %cst_107 = arith.constant 5.000000e-01 : f32
    %354 = vector.broadcast %cst_107 : f32 to vector<128x32xf32>
    %355 = arith.mulf %354, %353 : vector<128x32xf32>
    %cst_108 = arith.constant 4.471500e-02 : f32
    %356 = vector.broadcast %cst_108 : f32 to vector<128x32xf32>
    %357 = arith.mulf %356, %353 : vector<128x32xf32>
    %358 = arith.mulf %357, %353 : vector<128x32xf32>
    %359 = arith.mulf %358, %353 : vector<128x32xf32>
    %360 = arith.addf %353, %359 : vector<128x32xf32>
    %cst_109 = arith.constant 0.797884583 : f32
    %361 = vector.broadcast %cst_109 : f32 to vector<128x32xf32>
    %362 = arith.mulf %361, %360 : vector<128x32xf32>
    %363 = math.tanh %362 : vector<128x32xf32>
    %cst_110 = arith.constant 1.000000e+00 : f32
    %364 = vector.broadcast %cst_110 : f32 to vector<128x32xf32>
    %365 = arith.addf %364, %363 : vector<128x32xf32>
    %366 = arith.mulf %355, %365 : vector<128x32xf32>
    %c4 = arith.constant 4 : index
    %c0_111 = arith.constant 0 : index
    %367 = vector.load %arg7[%c4, %c0_111] : memref<8x32xf32, #tpu.memory_space<vmem>>, vector<1x32xf32>
    %c5 = arith.constant 5 : index
    %c0_112 = arith.constant 0 : index
    %368 = vector.load %arg7[%c5, %c0_112] : memref<8x32xf32, #tpu.memory_space<vmem>>, vector<1x32xf32>
    %cst_113 = arith.constant dense<0.000000e+00> : vector<128xf32>
    %369 = vector.multi_reduction <add>, %366, %cst_113 [1] : vector<128x32xf32> to vector<128xf32>
    %370 = vector.shape_cast %369 : vector<128xf32> to vector<128x1xf32>
    %cst_114 = arith.constant 3.200000e+01 : f32
    %371 = vector.broadcast %cst_114 : f32 to vector<128x1xf32>
    %372 = arith.divf %370, %371 : vector<128x1xf32>
    %373 = vector.broadcast %372 : vector<128x1xf32> to vector<128x32xf32>
    %374 = arith.subf %366, %373 : vector<128x32xf32>
    %375 = arith.mulf %374, %374 : vector<128x32xf32>
    %cst_115 = arith.constant dense<0.000000e+00> : vector<128xf32>
    %376 = vector.multi_reduction <add>, %375, %cst_115 [1] : vector<128x32xf32> to vector<128xf32>
    %377 = vector.shape_cast %376 : vector<128xf32> to vector<128x1xf32>
    %cst_116 = arith.constant 3.200000e+01 : f32
    %378 = vector.broadcast %cst_116 : f32 to vector<128x1xf32>
    %379 = arith.divf %377, %378 : vector<128x1xf32>
    %380 = vector.broadcast %372 : vector<128x1xf32> to vector<128x32xf32>
    %381 = arith.subf %366, %380 : vector<128x32xf32>
    %cst_117 = arith.constant 9.99999974E-6 : f32
    %382 = vector.broadcast %cst_117 : f32 to vector<128x1xf32>
    %383 = arith.addf %379, %382 : vector<128x1xf32>
    %384 = math.rsqrt %383 : vector<128x1xf32>
    %385 = vector.broadcast %384 : vector<128x1xf32> to vector<128x32xf32>
    %386 = arith.mulf %381, %385 : vector<128x32xf32>
    %387 = vector.broadcast %367 : vector<1x32xf32> to vector<128x32xf32>
    %388 = arith.mulf %386, %387 : vector<128x32xf32>
    %389 = vector.broadcast %368 : vector<1x32xf32> to vector<128x32xf32>
    %390 = arith.addf %388, %389 : vector<128x32xf32>
    %c0_118 = arith.constant 0 : index
    %c0_119 = arith.constant 0 : index
    %391 = vector.load %arg9[%c0_118, %c0_119] : memref<32x1xf32, #tpu.memory_space<vmem>>, vector<32x1xf32>
    %cst_120 = arith.constant dense<0.000000e+00> : vector<128x1xf32>
    %392 = tpu.matmul %390, %391, %cst_120 {dimension_numbers = #tpu.dot_dimension_numbers<[1], [0], [0], [1], [0, 0, 1, 1], [], []>} : vector<128x32xf32>, vector<32x1xf32>, vector<128x1xf32> -> vector<128x1xf32>
    %c6 = arith.constant 6 : index
    %c0_121 = arith.constant 0 : index
    %393 = vector.load %arg7[%c6, %c0_121] : memref<8x32xf32, #tpu.memory_space<vmem>>, vector<1x1xf32>
    %394 = vector.broadcast %393 : vector<1x1xf32> to vector<128x1xf32>
    %395 = arith.addf %392, %394 : vector<128x1xf32>
    %c0_122 = arith.constant 0 : index
    %c0_123 = arith.constant 0 : index
    %396 = vector.load %arg10[%c0_122, %c0_123] : memref<128x1xf32, #tpu.memory_space<vmem>>, vector<128x1xf32>
    tpu.vector_store %arg10[%c0_122, %c0_123], %395 {strides = array<i32>} : memref<128x1xf32, #tpu.memory_space<vmem>>, vector<128x1xf32>,
    return
  }
  func.func @transform_0(%arg0: i32) -> (i32, i32) {
    %c0_i32 = arith.constant 0 : i32
    %c0_i32_0 = arith.constant 0 : i32
    return %arg0, %c0_i32 : i32, i32
  }
  func.func @transform_1(%arg0: i32) -> (i32, i32) {
    %c0_i32 = arith.constant 0 : i32
    %c0_i32_0 = arith.constant 0 : i32
    %c0_i32_1 = arith.constant 0 : i32
    return %c0_i32, %c0_i32_0 : i32, i32
  }
  func.func @transform_2(%arg0: i32) -> (i32, i32) {
    %c0_i32 = arith.constant 0 : i32
    %c0_i32_0 = arith.constant 0 : i32
    %c0_i32_1 = arith.constant 0 : i32
    return %c0_i32, %c0_i32_0 : i32, i32
  }
  func.func @transform_3(%arg0: i32) -> (i32, i32) {
    %c0_i32 = arith.constant 0 : i32
    %c0_i32_0 = arith.constant 0 : i32
    %c0_i32_1 = arith.constant 0 : i32
    return %c0_i32, %c0_i32_0 : i32, i32
  }
  func.func @transform_4(%arg0: i32) -> (i32, i32, i32, i32) {
    %c0_i32 = arith.constant 0 : i32
    %c0_i32_0 = arith.constant 0 : i32
    %c0_i32_1 = arith.constant 0 : i32
    %c0_i32_2 = arith.constant 0 : i32
    %c0_i32_3 = arith.constant 0 : i32
    return %c0_i32, %c0_i32_0, %c0_i32_1, %c0_i32_2 : i32, i32, i32, i32
  }
  func.func @transform_5(%arg0: i32) -> (i32, i32, i32) {
    %c0_i32 = arith.constant 0 : i32
    %c0_i32_0 = arith.constant 0 : i32
    %c0_i32_1 = arith.constant 0 : i32
    %c0_i32_2 = arith.constant 0 : i32
    return %c0_i32, %c0_i32_0, %c0_i32_1 : i32, i32, i32
  }
  func.func @transform_6(%arg0: i32) -> (i32, i32) {
    %c0_i32 = arith.constant 0 : i32
    %c0_i32_0 = arith.constant 0 : i32
    %c0_i32_1 = arith.constant 0 : i32
    return %c0_i32, %c0_i32_0 : i32, i32
  }
  func.func @transform_7(%arg0: i32) -> (i32, i32) {
    %c0_i32 = arith.constant 0 : i32
    %c0_i32_0 = arith.constant 0 : i32
    %c0_i32_1 = arith.constant 0 : i32
    return %c0_i32, %c0_i32_0 : i32, i32
  }
  func.func @transform_8(%arg0: i32) -> (i32, i32) {
    %c0_i32 = arith.constant 0 : i32
    %c0_i32_0 = arith.constant 0 : i32
    %c0_i32_1 = arith.constant 0 : i32
    return %c0_i32, %c0_i32_0 : i32, i32
  }
  func.func @transform_9(%arg0: i32) -> (i32, i32) {
    %c0_i32 = arith.constant 0 : i32
    %c0_i32_0 = arith.constant 0 : i32
    return %arg0, %c0_i32 : i32, i32
  }
  func.func @transform_10(%arg0: i32) -> (i32, i32) {
    %c0_i32 = arith.constant 0 : i32
    %c0_i32_0 = arith.constant 0 : i32
    return %arg0, %c0_i32 : i32, i32
  }
}

</mosaic_0001>

<llo_original>
// kernel: tpu_custom_call.1
$region0: #{tpu_custom_call.1}
  #allocation0 [shape = 'u32[]', space=smem, size = 0x4, offset = 0x4, fixed_abs, tag = 'smem constant byte address 0x4 - core index']
  #allocation1 [shape = 'u32[144,128]{1,0:T(1,128)}', space=vmem, size = 0x12000, scoped, tag = 'internal scratch']
  %s0 = inlined_call_operand.vmem [shape: f32[256,24], index: 0, kind: input, shape index: {}]
  %s1 = inlined_call_operand.vmem [shape: f32[128,128], index: 1, kind: input, shape index: {}]
  %s2 = inlined_call_operand.vmem [shape: f32[2,24], index: 2, kind: input, shape index: {}]
  %s3 = inlined_call_operand.vmem [shape: f32[24,32], index: 3, kind: input, shape index: {}]
  %s4 = inlined_call_operand.hbm [shape: f32[2,6,32,32], index: 4, kind: input, shape index: {}]
  %s5 = inlined_call_operand.vmem [shape: f32[2,10,32], index: 5, kind: input, shape index: {}]
  %s6 = inlined_call_operand.vmem [shape: f32[8,32], index: 6, kind: input, shape index: {}]
  %s7 = inlined_call_operand.vmem [shape: f32[32,32], index: 7, kind: input, shape index: {}]
  %s8 = inlined_call_operand.vmem [shape: f32[32,1], index: 8, kind: input, shape index: {}]
  %s9 = inlined_call_operand.vmem [shape: f32[256,1], index: 9, kind: output, shape index: {0}]
  %s10 = inlined_call_operand.vmem [shape: f32[256,32], index: 10, kind: output, shape index: {1}]
  %11 = xla_tuple %s9, %s10
  %s12 = sld [smem:[#allocation0]]
  $region81: #{tpu_custom_call.1} parent=0
    _
  %s14 = ssub.s32 1, %s12
  %s15 = scalar_select 0, %s14, %s12
  $region1: #{tpu_custom_call.1} parent=0
    #allocation2 [shape = 'u8[196608]{0}', space=vmem, size = 0x30000, scoped, tag = 'input window, operand 4, single buffered']
    #allocation3 [shape = 's32[2]{0}', space=sflag, size = 0x8, scoped, tag = 'scoped memory for tpu_custom_call.1']
    %16 = vsyncpa [#allocation3], 0
    loop: start=0, step=1, limit=4
    $region2: #{tpu_custom_call.1} parent=1 // loop_pre_header
      _
    $region3: #{tpu_custom_call.1} parent=1 // loop_header
      %s18 = sphi 0, %s22
      %p19 = scmp.ge.s32.totalorder %s18, 4
      %s28 = sphi 0, %s30
      %s31 = sphi 0, %s28
      %s32 = sphi 0, %s31
      %s48 = sphi 0, %s32
      %s52 = sphi 0, %s52
      %s54 = sphi 0, %s52
      %s55 = sphi 0, %s54
      %s69 = sphi 0, %s55
      %s73 = sphi 0, %s73
      %s75 = sphi 0, %s73
      %s76 = sphi 0, %s75
      %s90 = sphi 0, %s76
      %s94 = sphi 0, %s94
      %s96 = sphi 0, %s94
      %s97 = sphi 0, %s96
      %s111 = sphi 0, %s97
      %s115 = sphi 0, %s115
      %s117 = sphi 0, %s115
      %s118 = sphi 0, %s117
      %s132 = sphi 0, %s118
      %s136 = sphi 0, %s136
      %s138 = sphi 0, %s136
      %s139 = sphi 0, %s138
      %s153 = sphi 0, %s139
      %s157 = sphi 0, %s157
      %s159 = sphi 0, %s157
      %s160 = sphi 0, %s159
      %s174 = sphi 0, %s160
      %s178 = sphi 0, %s178
      %s180 = sphi 0, %s178
      %s181 = sphi 0, %s180
      %s195 = sphi 0, %s181
      %s199 = sphi 0, %s199
      %s201 = sphi 0, %s199
      %s202 = sphi 0, %s201
      %s216 = sphi 0, %s202
      %s222 = sphi 0, %s224
      %s225 = sphi 0, %s222
      %s226 = sphi 0, %s225
      %s242 = sphi 0, %s226
      %s248 = sphi 0, %s250
      %s251 = sphi 0, %s248
      %s252 = sphi 0, %s251
      %s268 = sphi 0, %s252
    $region4: #{tpu_custom_call.1} parent=1 // loop_header_branch
      %21 = sbr.rel (%p19) target = $region8
    $region5: #{tpu_custom_call.1} parent=1 // loop_body
      %s23 = ssub.s32 %s18, 1
      %s24 = ssub.s32 %s18, 2
      %s25 = sadd.s32 %s18, 1
      %s26 = ssub.s32 %s18, %s25
      %p27 = scmp.eq.s32.totalorder %s26, 0
      %s29 = sadd.s32 %s28, 1
      %s30 = scalar_select %p27, %s28, %s29
      %p33 = pneg %p27
      %p34 = scmp.eq.s32.totalorder %s18, 1
      %p35 = por %p33, %p34
      %p36 = scmp.ne.s32.totalorder %s28, %s31
      %p37 = scmp.eq.s32.totalorder %s18, 0
      %p38 = por %p36, %p37
      %p39 = scmp.ne.s32.totalorder %s28, %s31
      %p40 = scmp.eq.s32.totalorder %s23, 1
      %p41 = por %p39, %p40
      %p42 = scmp.ne.s32.totalorder %s31, %s32
      %p43 = scmp.eq.s32.totalorder %s23, 0
      %p44 = por %p42, %p43
      %p45 = scmp.ne.s32.totalorder %s31, %s32
      %p46 = scmp.eq.s32.totalorder %s24, 1
      %p47 = por %p45, %p46
      %p49 = scmp.ne.s32.totalorder %s32, %s48
      %p50 = scmp.eq.s32.totalorder %s24, 0
      %p51 = por %p49, %p50
      %s53 = sadd.s32 %s52, 1
      %p56 = scmp.eq.s32.totalorder %s18, 1
      %p57 = scmp.ne.s32.totalorder %s52, %s54
      %p58 = scmp.eq.s32.totalorder %s18, 0
      %p59 = por %p57, %p58
      %p60 = scmp.ne.s32.totalorder %s52, %s54
      %p61 = scmp.eq.s32.totalorder %s23, 1
      %p62 = por %p60, %p61
      %p63 = scmp.ne.s32.totalorder %s54, %s55
      %p64 = scmp.eq.s32.totalorder %s23, 0
      %p65 = por %p63, %p64
      %p66 = scmp.ne.s32.totalorder %s54, %s55
      %p67 = scmp.eq.s32.totalorder %s24, 1
      %p68 = por %p66, %p67
      %p70 = scmp.ne.s32.totalorder %s55, %s69
      %p71 = scmp.eq.s32.totalorder %s24, 0
      %p72 = por %p70, %p71
      %s74 = sadd.s32 %s73, 1
      %p77 = scmp.eq.s32.totalorder %s18, 1
      %p78 = scmp.ne.s32.totalorder %s73, %s75
      %p79 = scmp.eq.s32.totalorder %s18, 0
      %p80 = por %p78, %p79
      %p81 = scmp.ne.s32.totalorder %s73, %s75
      %p82 = scmp.eq.s32.totalorder %s23, 1
      %p83 = por %p81, %p82
      %p84 = scmp.ne.s32.totalorder %s75, %s76
      %p85 = scmp.eq.s32.totalorder %s23, 0
      %p86 = por %p84, %p85
      %p87 = scmp.ne.s32.totalorder %s75, %s76
      %p88 = scmp.eq.s32.totalorder %s24, 1
      %p89 = por %p87, %p88
      %p91 = scmp.ne.s32.totalorder %s76, %s90
      %p92 = scmp.eq.s32.totalorder %s24, 0
      %p93 = por %p91, %p92
      %s95 = sadd.s32 %s94, 1
      %p98 = scmp.eq.s32.totalorder %s18, 1
      %p99 = scmp.ne.s32.totalorder %s94, %s96
      %p100 = scmp.eq.s32.totalorder %s18, 0
      %p101 = por %p99, %p100
      %p102 = scmp.ne.s32.totalorder %s94, %s96
      %p103 = scmp.eq.s32.totalorder %s23, 1
      %p104 = por %p102, %p103
      %p105 = scmp.ne.s32.totalorder %s96, %s97
      %p106 = scmp.eq.s32.totalorder %s23, 0
      %p107 = por %p105, %p106
      %p108 = scmp.ne.s32.totalorder %s96, %s97
      %p109 = scmp.eq.s32.totalorder %s24, 1
      %p110 = por %p108, %p109
      %p112 = scmp.ne.s32.totalorder %s97, %s111
      %p113 = scmp.eq.s32.totalorder %s24, 0
      %p114 = por %p112, %p113
      %s116 = sadd.s32 %s115, 1
      %p119 = scmp.eq.s32.totalorder %s18, 1
      %p120 = scmp.ne.s32.totalorder %s115, %s117
      %p121 = scmp.eq.s32.totalorder %s18, 0
      %p122 = por %p120, %p121
      %p123 = scmp.ne.s32.totalorder %s115, %s117
      %p124 = scmp.eq.s32.totalorder %s23, 1
      %p125 = por %p123, %p124
      %p126 = scmp.ne.s32.totalorder %s117, %s118
      %p127 = scmp.eq.s32.totalorder %s23, 0
      %p128 = por %p126, %p127
      %p129 = scmp.ne.s32.totalorder %s117, %s118
      %p130 = scmp.eq.s32.totalorder %s24, 1
      %p131 = por %p129, %p130
      %p133 = scmp.ne.s32.totalorder %s118, %s132
      %p134 = scmp.eq.s32.totalorder %s24, 0
      %p135 = por %p133, %p134
      %s137 = sadd.s32 %s136, 1
      %p140 = scmp.eq.s32.totalorder %s18, 1
      %p141 = scmp.ne.s32.totalorder %s136, %s138
      %p142 = scmp.eq.s32.totalorder %s18, 0
      %p143 = por %p141, %p142
      %p144 = scmp.ne.s32.totalorder %s136, %s138
      %p145 = scmp.eq.s32.totalorder %s23, 1
      %p146 = por %p144, %p145
      %p147 = scmp.ne.s32.totalorder %s138, %s139
      %p148 = scmp.eq.s32.totalorder %s23, 0
      %p149 = por %p147, %p148
      %p150 = scmp.ne.s32.totalorder %s138, %s139
      %p151 = scmp.eq.s32.totalorder %s24, 1
      %p152 = por %p150, %p151
      %p154 = scmp.ne.s32.totalorder %s139, %s153
      %p155 = scmp.eq.s32.totalorder %s24, 0
      %p156 = por %p154, %p155
      %s158 = sadd.s32 %s157, 1
      %p161 = scmp.eq.s32.totalorder %s18, 1
      %p162 = scmp.ne.s32.totalorder %s157, %s159
      %p163 = scmp.eq.s32.totalorder %s18, 0
      %p164 = por %p162, %p163
      %p165 = scmp.ne.s32.totalorder %s157, %s159
      %p166 = scmp.eq.s32.totalorder %s23, 1
      %p167 = por %p165, %p166
      %p168 = scmp.ne.s32.totalorder %s159, %s160
      %p169 = scmp.eq.s32.totalorder %s23, 0
      %p170 = por %p168, %p169
      %p171 = scmp.ne.s32.totalorder %s159, %s160
      %p172 = scmp.eq.s32.totalorder %s24, 1
      %p173 = por %p171, %p172
      %p175 = scmp.ne.s32.totalorder %s160, %s174
      %p176 = scmp.eq.s32.totalorder %s24, 0
      %p177 = por %p175, %p176
      %s179 = sadd.s32 %s178, 1
      %p182 = scmp.eq.s32.totalorder %s18, 1
      %p183 = scmp.ne.s32.totalorder %s178, %s180
      %p184 = scmp.eq.s32.totalorder %s18, 0
      %p185 = por %p183, %p184
      %p186 = scmp.ne.s32.totalorder %s178, %s180
      %p187 = scmp.eq.s32.totalorder %s23, 1
      %p188 = por %p186, %p187
      %p189 = scmp.ne.s32.totalorder %s180, %s181
      %p190 = scmp.eq.s32.totalorder %s23, 0
      %p191 = por %p189, %p190
      %p192 = scmp.ne.s32.totalorder %s180, %s181
      %p193 = scmp.eq.s32.totalorder %s24, 1
      %p194 = por %p192, %p193
      %p196 = scmp.ne.s32.totalorder %s181, %s195
      %p197 = scmp.eq.s32.totalorder %s24, 0
      %p198 = por %p196, %p197
      %s200 = sadd.s32 %s199, 1
      %p203 = scmp.eq.s32.totalorder %s18, 1
      %p204 = scmp.ne.s32.totalorder %s199, %s201
      %p205 = scmp.eq.s32.totalorder %s18, 0
      %p206 = por %p204, %p205
      %p207 = scmp.ne.s32.totalorder %s199, %s201
      %p208 = scmp.eq.s32.totalorder %s23, 1
      %p209 = por %p207, %p208
      %p210 = scmp.ne.s32.totalorder %s201, %s202
      %p211 = scmp.eq.s32.totalorder %s23, 0
      %p212 = por %p210, %p211
      %p213 = scmp.ne.s32.totalorder %s201, %s202
      %p214 = scmp.eq.s32.totalorder %s24, 1
      %p215 = por %p213, %p214
      %p217 = scmp.ne.s32.totalorder %s202, %s216
      %p218 = scmp.eq.s32.totalorder %s24, 0
      %p219 = por %p217, %p218
      %s220 = ssub.s32 %s18, %s25
      %p221 = scmp.eq.s32.totalorder %s220, 0
      %s223 = sadd.s32 %s222, 1
      %s224 = scalar_select %p221, %s222, %s223
      %p227 = pneg %p221
      %p228 = scmp.eq.s32.totalorder %s18, 1
      %p229 = por %p227, %p228
      %p230 = scmp.ne.s32.totalorder %s222, %s225
      %p231 = scmp.eq.s32.totalorder %s18, 0
      %p232 = por %p230, %p231
      %p233 = scmp.ne.s32.totalorder %s222, %s225
      %p234 = scmp.eq.s32.totalorder %s23, 1
      %p235 = por %p233, %p234
      %p236 = scmp.ne.s32.totalorder %s225, %s226
      %p237 = scmp.eq.s32.totalorder %s23, 0
      %p238 = por %p236, %p237
      %p239 = scmp.ne.s32.totalorder %s225, %s226
      %p240 = scmp.eq.s32.totalorder %s24, 1
      %p241 = por %p239, %p240
      %p243 = scmp.ne.s32.totalorder %s226, %s242
      %p244 = scmp.eq.s32.totalorder %s24, 0
      %p245 = por %p243, %p244
      %s246 = ssub.s32 %s18, %s25
      %p247 = scmp.eq.s32.totalorder %s246, 0
      %s249 = sadd.s32 %s248, 1
      %s250 = scalar_select %p247, %s248, %s249
      %p253 = pneg %p247
      %p254 = scmp.eq.s32.totalorder %s18, 1
      %p255 = por %p253, %p254
      %p256 = scmp.ne.s32.totalorder %s248, %s251
      %p257 = scmp.eq.s32.totalorder %s18, 0
      %p258 = por %p256, %p257
      %p259 = scmp.ne.s32.totalorder %s248, %s251
      %p260 = scmp.eq.s32.totalorder %s23, 1
      %p261 = por %p259, %p260
      %p262 = scmp.ne.s32.totalorder %s251, %s252
      %p263 = scmp.eq.s32.totalorder %s23, 0
      %p264 = por %p262, %p263
      %p265 = scmp.ne.s32.totalorder %s251, %s252
      %p266 = scmp.eq.s32.totalorder %s24, 1
      %p267 = por %p265, %p266
      %p269 = scmp.ne.s32.totalorder %s252, %s268
      %p270 = scmp.eq.s32.totalorder %s24, 0
      %p271 = por %p269, %p270
      %p272 = scmp.le.s32.totalorder 1, %s18
      %p273 = scmp.lt.s32.totalorder %s18, 3
      %p274 = pnand %p272, %p273
      %p275 = pneg %p274
      // Predicated region
      $region9: #{tpu_custom_call.1} parent=5 // pred_check
        _
      $region10: #{tpu_custom_call.1} parent=5 // pred_check_branch
        %277 = sbr.rel (%p274) target = $region12
      $region11: #{tpu_custom_call.1} parent=5 // pred_region
        %s278 = ssub.s32 %s18, 1
        // Predicated region
        $region13: #{tpu_custom_call.1} parent=11 // pred_check
          %p279 = pneg %p65
        $region14: #{tpu_custom_call.1} parent=11 // pred_check_branch
          %281 = sbr.rel (%p279) target = $region16
        $region15: #{tpu_custom_call.1} parent=11 // pred_region
          _
        $region16: #{tpu_custom_call.1} parent=11 // pred_fallthru
          _
        // Predicated region
        $region17: #{tpu_custom_call.1} parent=11 // pred_check
          %p282 = pneg %p86
        $region18: #{tpu_custom_call.1} parent=11 // pred_check_branch
          %284 = sbr.rel (%p282) target = $region20
        $region19: #{tpu_custom_call.1} parent=11 // pred_region
          _
        $region20: #{tpu_custom_call.1} parent=11 // pred_fallthru
          _
        // Predicated region
        $region21: #{tpu_custom_call.1} parent=11 // pred_check
          %p285 = pneg %p107
        $region22: #{tpu_custom_call.1} parent=11 // pred_check_branch
          %287 = sbr.rel (%p285) target = $region24
        $region23: #{tpu_custom_call.1} parent=11 // pred_region
          _
        $region24: #{tpu_custom_call.1} parent=11 // pred_fallthru
          _
        // Predicated region
        $region25: #{tpu_custom_call.1} parent=11 // pred_check
          %p288 = pneg %p128
        $region26: #{tpu_custom_call.1} parent=11 // pred_check_branch
          %290 = sbr.rel (%p288) target = $region28
        $region27: #{tpu_custom_call.1} parent=11 // pred_region
          %s292 = ssub.s32 6144, 6144
          %293 = vsyncadd [#allocation3], %s292
          %s294 = sshll.u32 [#allocation2], 4
          %s295 = int_to_ptr.vmem [resolvable:$true] %s294
          %300 = dma.hbm_to_vmem [thread:$0]  %s4, 6144, %s295, [#allocation3], 128, 128, 8
        $region28: #{tpu_custom_call.1} parent=11 // pred_fallthru
          _
        // Predicated region
        $region29: #{tpu_custom_call.1} parent=11 // pred_check
          %p301 = pneg %p149
        $region30: #{tpu_custom_call.1} parent=11 // pred_check_branch
          %303 = sbr.rel (%p301) target = $region32
        $region31: #{tpu_custom_call.1} parent=11 // pred_region
          _
        $region32: #{tpu_custom_call.1} parent=11 // pred_fallthru
          _
        // Predicated region
        $region33: #{tpu_custom_call.1} parent=11 // pred_check
          %p304 = pneg %p170
        $region34: #{tpu_custom_call.1} parent=11 // pred_check_branch
          %306 = sbr.rel (%p304) target = $region36
        $region35: #{tpu_custom_call.1} parent=11 // pred_region
          _
        $region36: #{tpu_custom_call.1} parent=11 // pred_fallthru
          _
        // Predicated region
        $region37: #{tpu_custom_call.1} parent=11 // pred_check
          %p307 = pneg %p191
        $region38: #{tpu_custom_call.1} parent=11 // pred_check_branch
          %309 = sbr.rel (%p307) target = $region40
        $region39: #{tpu_custom_call.1} parent=11 // pred_region
          _
        $region40: #{tpu_custom_call.1} parent=11 // pred_fallthru
          _
        // Predicated region
        $region41: #{tpu_custom_call.1} parent=11 // pred_check
          %p310 = pneg %p212
        $region42: #{tpu_custom_call.1} parent=11 // pred_check_branch
          %312 = sbr.rel (%p310) target = $region44
        $region43: #{tpu_custom_call.1} parent=11 // pred_region
          _
        $region44: #{tpu_custom_call.1} parent=11 // pred_fallthru
          _
      $region12: #{tpu_custom_call.1} parent=5 // pred_fallthru
        _
      %p313 = scmp.lt.s32.totalorder %s18, 2
      // Predicated region
      $region45: #{tpu_custom_call.1} parent=5 // pred_check
        %p314 = pneg %p313
      $region46: #{tpu_custom_call.1} parent=5 // pred_check_branch
        %316 = sbr.rel (%p314) target = $region48
      $region47: #{tpu_custom_call.1} parent=5 // pred_region
        // Predicated region
        $region49: #{tpu_custom_call.1} parent=47 // pred_check
          %p317 = pneg %p38
        $region50: #{tpu_custom_call.1} parent=47 // pred_check_branch
          %319 = sbr.rel (%p317) target = $region52
        $region51: #{tpu_custom_call.1} parent=47 // pred_region
          %s320 = smul.u32 16, %s18
          %p321 = scmp.lt.s32.totalorder %s320, 31
          %s322 = scalar_select %p321, %s320, 31
          %s323 = smul.addr %s322, 8
          %s324 = scalar_lea.vmem %s0, %s323
          %s325 = smul.u32 16, %s18
        $region52: #{tpu_custom_call.1} parent=47 // pred_fallthru
          _
      $region48: #{tpu_custom_call.1} parent=5 // pred_fallthru
        _
      %p326 = scmp.le.s32.totalorder 1, %s18
      %p327 = scmp.lt.s32.totalorder %s18, 3
      %p328 = pnand %p326, %p327
      %p329 = pneg %p328
      // Predicated region
      $region53: #{tpu_custom_call.1} parent=5 // pred_check
        _
      $region54: #{tpu_custom_call.1} parent=5 // pred_check_branch
        %331 = sbr.rel (%p328) target = $region56
      $region55: #{tpu_custom_call.1} parent=5 // pred_region
        %s332 = ssub.s32 %s18, 1
        // Predicated region
        $region57: #{tpu_custom_call.1} parent=55 // pred_check
          %p333 = pneg %p128
        $region58: #{tpu_custom_call.1} parent=55 // pred_check_branch
          %335 = sbr.rel (%p333) target = $region60
        $region59: #{tpu_custom_call.1} parent=55 // pred_region
          %336 = dma.done [#allocation3], 6144
        $region60: #{tpu_custom_call.1} parent=55 // pred_fallthru
          _
        %s337 = smul.u32 16, %s23
        %p338 = scmp.lt.s32.totalorder %s337, 31
        %s339 = scalar_select %p338, %s337, 31
        %s340 = smul.addr %s339, 8
        %s341 = scalar_lea.vmem %s0, %s340
        %p342 = pneg %p44
        %p343 = pneg %p41
        %p344 = pneg %p65
        %p345 = pneg %p62
        %p346 = pneg %p86
        %p347 = pneg %p83
        %p348 = pneg %p107
        %p349 = pneg %p104
        %p350 = pneg %p128
        %p351 = pneg %p125
        %p352 = pneg %p149
        %p353 = pneg %p146
        %p354 = pneg %p170
        %p355 = pneg %p167
        %p356 = pneg %p191
        %p357 = pneg %p188
        %p358 = pneg %p212
        %p359 = pneg %p209
        %p360 = pneg %p238
        %p361 = pneg %p235
        %s362 = smul.u32 16, %s23
        %p363 = scmp.lt.s32.totalorder %s362, 31
        %s364 = scalar_select %p363, %s362, 31
        %s365 = smul.addr %s364, 8
        %s366 = scalar_lea.vmem %s9, %s365
        %p367 = pneg %p264
        %p368 = pneg %p261
        %s369 = smul.u32 16, %s23
        %p370 = scmp.lt.s32.totalorder %s369, 31
        %s371 = scalar_select %p370, %s369, 31
        %s372 = smul.addr %s371, 8
        %s373 = scalar_lea.vmem %s10, %s372
        %s374 = smul.u32 16, %s23
        %p375 = scmp.lt.s32.totalorder %s374, 31
        %s376 = scalar_select %p375, %s374, 31
        %s377 = smul.addr %s376, 8
        %s378 = scalar_lea.vmem %s0, %s377
        %s379 = smul.u32 16, %s23
        %s380 = smul.u32 16, %s23
        %p381 = scmp.lt.s32.totalorder %s380, 31
        %s382 = scalar_select %p381, %s380, 31
        %s383 = smul.addr %s382, 8
        %s384 = scalar_lea.vmem %s9, %s383
        %s385 = smul.u32 16, %s23
        %s386 = smul.u32 16, %s23
        %p387 = scmp.lt.s32.totalorder %s386, 31
        %s388 = scalar_select %p387, %s386, 31
        %s389 = smul.addr %s388, 8
        %s390 = scalar_lea.vmem %s10, %s389
        %s391 = smul.u32 16, %s23
        %v392 = vld [vmem:[%s1] sm:$0xff]
        %v393 = vld [vmem:[%s1 + $0x8] sm:$0xff]
        %v394 = vld [vmem:[%s1 + $0x10] sm:$0xff]
        %v395 = vld [vmem:[%s1 + $0x18] sm:$0xff]
        %v396 = vld [vmem:[%s1 + $0x20] sm:$0xff]
        %v397 = vld [vmem:[%s1 + $0x28] sm:$0xff]
        %v398 = vld [vmem:[%s1 + $0x30] sm:$0xff]
        %v399 = vld [vmem:[%s1 + $0x38] sm:$0xff]
        %v400 = vld [vmem:[%s1 + $0x40] sm:$0xff]
        %v401 = vld [vmem:[%s1 + $0x48] sm:$0xff]
        %v402 = vld [vmem:[%s1 + $0x50] sm:$0xff]
        %v403 = vld [vmem:[%s1 + $0x58] sm:$0xff]
        %v404 = vld [vmem:[%s1 + $0x60] sm:$0xff]
        %v405 = vld [vmem:[%s1 + $0x68] sm:$0xff]
        %v406 = vld [vmem:[%s1 + $0x70] sm:$0xff]
        %v407 = vld [vmem:[%s1 + $0x78] sm:$0xff]
        %v408 = vld [vmem:[%s378] sm:$0xff]
        %v409 = vld [vmem:[%s378 + $0x8] sm:$0xff]
        %v410 = vld [vmem:[%s378 + $0x10] sm:$0xff]
        %v411 = vld [vmem:[%s378 + $0x18] sm:$0xff]
        %v412 = vld [vmem:[%s378 + $0x20] sm:$0xff]
        %v413 = vld [vmem:[%s378 + $0x28] sm:$0xff]
        %v414 = vld [vmem:[%s378 + $0x30] sm:$0xff]
        %v415 = vld [vmem:[%s378 + $0x38] sm:$0xff]
        %v416 = vld [vmem:[%s378 + $0x40] sm:$0xff]
        %v417 = vld [vmem:[%s378 + $0x48] sm:$0xff]
        %v418 = vld [vmem:[%s378 + $0x50] sm:$0xff]
        %v419 = vld [vmem:[%s378 + $0x58] sm:$0xff]
        %v420 = vld [vmem:[%s378 + $0x60] sm:$0xff]
        %v421 = vld [vmem:[%s378 + $0x68] sm:$0xff]
        %v422 = vld [vmem:[%s378 + $0x70] sm:$0xff]
        %v423 = vld [vmem:[%s378 + $0x78] sm:$0xff]
        %v424 = vld [vmem:[%s2] sm:$0x1]
        %v425 = vld [vmem:[%s2 + $0x1] sm:$0x1]
        %vm426 = vcmask 195584
        %v427 = vsel %vm426, %v408, 0.0
        %428 = vadd.xlane.f32.xlu0 %v427
        %v429 = vpop.xlane.xlu0 %428
        %v430 = vsel %vm426, %v409, 0.0
        %431 = vadd.xlane.f32.xlu0 %v430
        %v432 = vpop.xlane.xlu0 %431
        %v433 = vsel %vm426, %v410, 0.0
        %434 = vadd.xlane.f32.xlu0 %v433
        %v435 = vpop.xlane.xlu0 %434
        %v436 = vsel %vm426, %v411, 0.0
        %437 = vadd.xlane.f32.xlu0 %v436
        %v438 = vpop.xlane.xlu0 %437
        %v439 = vsel %vm426, %v412, 0.0
        %440 = vadd.xlane.f32.xlu0 %v439
        %v441 = vpop.xlane.xlu0 %440
        %v442 = vsel %vm426, %v413, 0.0
        %443 = vadd.xlane.f32.xlu0 %v442
        %v444 = vpop.xlane.xlu0 %443
        %v445 = vsel %vm426, %v414, 0.0
        %446 = vadd.xlane.f32.xlu0 %v445
        %v447 = vpop.xlane.xlu0 %446
        %v448 = vsel %vm426, %v415, 0.0
        %449 = vadd.xlane.f32.xlu0 %v448
        %v450 = vpop.xlane.xlu0 %449
        %v451 = vsel %vm426, %v416, 0.0
        %452 = vadd.xlane.f32.xlu0 %v451
        %v453 = vpop.xlane.xlu0 %452
        %v454 = vsel %vm426, %v417, 0.0
        %455 = vadd.xlane.f32.xlu0 %v454
        %v456 = vpop.xlane.xlu0 %455
        %v457 = vsel %vm426, %v418, 0.0
        %458 = vadd.xlane.f32.xlu0 %v457
        %v459 = vpop.xlane.xlu0 %458
        %v460 = vsel %vm426, %v419, 0.0
        %461 = vadd.xlane.f32.xlu0 %v460
        %v462 = vpop.xlane.xlu0 %461
        %v463 = vsel %vm426, %v420, 0.0
        %464 = vadd.xlane.f32.xlu0 %v463
        %v465 = vpop.xlane.xlu0 %464
        %v466 = vsel %vm426, %v421, 0.0
        %467 = vadd.xlane.f32.xlu0 %v466
        %v468 = vpop.xlane.xlu0 %467
        %v469 = vsel %vm426, %v422, 0.0
        %470 = vadd.xlane.f32.xlu0 %v469
        %v471 = vpop.xlane.xlu0 %470
        %v472 = vsel %vm426, %v423, 0.0
        %473 = vadd.xlane.f32.xlu0 %v472
        %v474 = vpop.xlane.xlu0 %473
        %v475 = vrcp.pop 24.0
        %v476 = vmul.f32 %v429, %v475
        %v477 = vmul.f32 %v432, %v475
        %v478 = vmul.f32 %v435, %v475
        %v479 = vmul.f32 %v438, %v475
        %v480 = vmul.f32 %v441, %v475
        %v481 = vmul.f32 %v444, %v475
        %v482 = vmul.f32 %v447, %v475
        %v483 = vmul.f32 %v450, %v475
        %v484 = vmul.f32 %v453, %v475
        %v485 = vmul.f32 %v456, %v475
        %v486 = vmul.f32 %v459, %v475
        %v487 = vmul.f32 %v462, %v475
        %v488 = vmul.f32 %v465, %v475
        %v489 = vmul.f32 %v468, %v475
        %v490 = vmul.f32 %v471, %v475
        %v491 = vmul.f32 %v474, %v475
        %v492 = vsub.f32 %v408, %v476
        %v493 = vsub.f32 %v409, %v477
        %v494 = vsub.f32 %v410, %v478
        %v495 = vsub.f32 %v411, %v479
        %v496 = vsub.f32 %v412, %v480
        %v497 = vsub.f32 %v413, %v481
        %v498 = vsub.f32 %v414, %v482
        %v499 = vsub.f32 %v415, %v483
        %v500 = vsub.f32 %v416, %v484
        %v501 = vsub.f32 %v417, %v485
        %v502 = vsub.f32 %v418, %v486
        %v503 = vsub.f32 %v419, %v487
        %v504 = vsub.f32 %v420, %v488
        %v505 = vsub.f32 %v421, %v489
        %v506 = vsub.f32 %v422, %v490
        %v507 = vsub.f32 %v423, %v491
        %v508 = vmul.f32 %v492, %v492
        %v509 = vmul.f32 %v493, %v493
        %v510 = vmul.f32 %v494, %v494
        %v511 = vmul.f32 %v495, %v495
        %v512 = vmul.f32 %v496, %v496
        %v513 = vmul.f32 %v497, %v497
        %v514 = vmul.f32 %v498, %v498
        %v515 = vmul.f32 %v499, %v499
        %v516 = vmul.f32 %v500, %v500
        %v517 = vmul.f32 %v501, %v501
        %v518 = vmul.f32 %v502, %v502
        %v519 = vmul.f32 %v503, %v503
        %v520 = vmul.f32 %v504, %v504
        %v521 = vmul.f32 %v505, %v505
        %v522 = vmul.f32 %v506, %v506
        %v523 = vmul.f32 %v507, %v507
        %v524 = vsel %vm426, %v508, 0.0
        %525 = vadd.xlane.f32.xlu0 %v524
        %v526 = vpop.xlane.xlu0 %525
        %v527 = vsel %vm426, %v509, 0.0
        %528 = vadd.xlane.f32.xlu0 %v527
        %v529 = vpop.xlane.xlu0 %528
        %v530 = vsel %vm426, %v510, 0.0
        %531 = vadd.xlane.f32.xlu0 %v530
        %v532 = vpop.xlane.xlu0 %531
        %v533 = vsel %vm426, %v511, 0.0
        %534 = vadd.xlane.f32.xlu0 %v533
        %v535 = vpop.xlane.xlu0 %534
        %v536 = vsel %vm426, %v512, 0.0
        %537 = vadd.xlane.f32.xlu0 %v536
        %v538 = vpop.xlane.xlu0 %537
        %v539 = vsel %vm426, %v513, 0.0
        %540 = vadd.xlane.f32.xlu0 %v539
        %v541 = vpop.xlane.xlu0 %540
        %v542 = vsel %vm426, %v514, 0.0
        %543 = vadd.xlane.f32.xlu0 %v542
        %v544 = vpop.xlane.xlu0 %543
        %v545 = vsel %vm426, %v515, 0.0
        %546 = vadd.xlane.f32.xlu0 %v545
        %v547 = vpop.xlane.xlu0 %546
        %v548 = vsel %vm426, %v516, 0.0
        %549 = vadd.xlane.f32.xlu0 %v548
        %v550 = vpop.xlane.xlu0 %549
        %v551 = vsel %vm426, %v517, 0.0
        %552 = vadd.xlane.f32.xlu0 %v551
        %v553 = vpop.xlane.xlu0 %552
        %v554 = vsel %vm426, %v518, 0.0
        %555 = vadd.xlane.f32.xlu0 %v554
        %v556 = vpop.xlane.xlu0 %555
        %v557 = vsel %vm426, %v519, 0.0
        %558 = vadd.xlane.f32.xlu0 %v557
        %v559 = vpop.xlane.xlu0 %558
        %v560 = vsel %vm426, %v520, 0.0
        %561 = vadd.xlane.f32.xlu0 %v560
        %v562 = vpop.xlane.xlu0 %561
        %v563 = vsel %vm426, %v521, 0.0
        %564 = vadd.xlane.f32.xlu0 %v563
        %v565 = vpop.xlane.xlu0 %564
        %v566 = vsel %vm426, %v522, 0.0
        %567 = vadd.xlane.f32.xlu0 %v566
        %v568 = vpop.xlane.xlu0 %567
        %v569 = vsel %vm426, %v523, 0.0
        %570 = vadd.xlane.f32.xlu0 %v569
        %v571 = vpop.xlane.xlu0 %570
        %v572 = vmul.f32 %v526, %v475
        %v573 = vmul.f32 %v529, %v475
        %v574 = vmul.f32 %v532, %v475
        %v575 = vmul.f32 %v535, %v475
        %v576 = vmul.f32 %v538, %v475
        %v577 = vmul.f32 %v541, %v475
        %v578 = vmul.f32 %v544, %v475
        %v579 = vmul.f32 %v547, %v475
        %v580 = vmul.f32 %v550, %v475
        %v581 = vmul.f32 %v553, %v475
        %v582 = vmul.f32 %v556, %v475
        %v583 = vmul.f32 %v559, %v475
        %v584 = vmul.f32 %v562, %v475
        %v585 = vmul.f32 %v565, %v475
        %v586 = vmul.f32 %v568, %v475
        %v587 = vmul.f32 %v571, %v475
        %v588 = vadd.f32 %v572, 1e-05
        %v589 = vadd.f32 %v573, 1e-05
        %v590 = vadd.f32 %v574, 1e-05
        %v591 = vadd.f32 %v575, 1e-05
        %v592 = vadd.f32 %v576, 1e-05
        %v593 = vadd.f32 %v577, 1e-05
        %v594 = vadd.f32 %v578, 1e-05
        %v595 = vadd.f32 %v579, 1e-05
        %v596 = vadd.f32 %v580, 1e-05
        %v597 = vadd.f32 %v581, 1e-05
        %v598 = vadd.f32 %v582, 1e-05
        %v599 = vadd.f32 %v583, 1e-05
        %v600 = vadd.f32 %v584, 1e-05
        %v601 = vadd.f32 %v585, 1e-05
        %v602 = vadd.f32 %v586, 1e-05
        %v603 = vadd.f32 %v587, 1e-05
        %v604 = vrsqrt.pop %v588
        %v605 = vrsqrt.pop %v589
        %v606 = vrsqrt.pop %v590
        %v607 = vrsqrt.pop %v591
        %v608 = vrsqrt.pop %v592
        %v609 = vrsqrt.pop %v593
        %v610 = vrsqrt.pop %v594
        %v611 = vrsqrt.pop %v595
        %v612 = vrsqrt.pop %v596
        %v613 = vrsqrt.pop %v597
        %v614 = vrsqrt.pop %v598
        %v615 = vrsqrt.pop %v599
        %v616 = vrsqrt.pop %v600
        %v617 = vrsqrt.pop %v601
        %v618 = vrsqrt.pop %v602
        %v619 = vrsqrt.pop %v603
        %v620 = vmul.f32 %v492, %v604
        %v621 = vmul.f32 %v493, %v605
        %v622 = vmul.f32 %v494, %v606
        %v623 = vmul.f32 %v495, %v607
        %v624 = vmul.f32 %v496, %v608
        %v625 = vmul.f32 %v497, %v609
        %v626 = vmul.f32 %v498, %v610
        %v627 = vmul.f32 %v499, %v611
        %v628 = vmul.f32 %v500, %v612
        %v629 = vmul.f32 %v501, %v613
        %v630 = vmul.f32 %v502, %v614
        %v631 = vmul.f32 %v503, %v615
        %v632 = vmul.f32 %v504, %v616
        %v633 = vmul.f32 %v505, %v617
        %v634 = vmul.f32 %v506, %v618
        %v635 = vmul.f32 %v507, %v619
        %v636 = vlaneseq
        %v637 = vshrl.u32 %v636, 7
        %v638 = vsub.s32 0, %v637
        %v639 = vrot.slane %v424, %v638
        %v640 = vmul.f32 %v620, %v639
        %v641 = vmul.f32 %v621, %v639
        %v642 = vmul.f32 %v622, %v639
        %v643 = vmul.f32 %v623, %v639
        %v644 = vmul.f32 %v624, %v639
        %v645 = vmul.f32 %v625, %v639
        %v646 = vmul.f32 %v626, %v639
        %v647 = vmul.f32 %v627, %v639
        %v648 = vmul.f32 %v628, %v639
        %v649 = vmul.f32 %v629, %v639
        %v650 = vmul.f32 %v630, %v639
        %v651 = vmul.f32 %v631, %v639
        %v652 = vmul.f32 %v632, %v639
        %v653 = vmul.f32 %v633, %v639
        %v654 = vmul.f32 %v634, %v639
        %v655 = vmul.f32 %v635, %v639
        %v656 = vlaneseq
        %v657 = vshrl.u32 %v656, 7
        %v658 = vsub.s32 0, %v657
        %v659 = vrot.slane %v425, %v658
        %v660 = vadd.f32 %v640, %v659
        %v661 = vadd.f32 %v641, %v659
        %v662 = vadd.f32 %v642, %v659
        %v663 = vadd.f32 %v643, %v659
        %v664 = vadd.f32 %v644, %v659
        %v665 = vadd.f32 %v645, %v659
        %v666 = vadd.f32 %v646, %v659
        %v667 = vadd.f32 %v647, %v659
        %v668 = vadd.f32 %v648, %v659
        %v669 = vadd.f32 %v649, %v659
        %v670 = vadd.f32 %v650, %v659
        %v671 = vadd.f32 %v651, %v659
        %v672 = vadd.f32 %v652, %v659
        %v673 = vadd.f32 %v653, %v659
        %v674 = vadd.f32 %v654, %v659
        %v675 = vadd.f32 %v655, %v659
        %v676 = vld [vmem:[%s3] sm:$0xff]
        %v677 = vld [vmem:[%s3 + $0x8] sm:$0xff]
        %v678 = vld [vmem:[%s3 + $0x10] sm:$0xff]
        %v679 = vld [vmem:[%s6] sm:$0x1]
        %v680 = vlaneseq
        %v681 = vshrl.u32 %v680, 7
        %v682 = vsub.s32 0, %v681
        %v683 = vrot.slane %v679, %v682
        %v685 = vsel %vm426, %v660, 0
        %v688 = vsel %vm426, %v661, 0
        %v691 = vsel %vm426, %v662, 0
        %v694 = vsel %vm426, %v663, 0
        %v697 = vsel %vm426, %v664, 0
        %v700 = vsel %vm426, %v665, 0
        %v703 = vsel %vm426, %v666, 0
        %v706 = vsel %vm426, %v667, 0
        %v709 = vsel %vm426, %v668, 0
        %v712 = vsel %vm426, %v669, 0
        %v715 = vsel %vm426, %v670, 0
        %v718 = vsel %vm426, %v671, 0
        %v721 = vsel %vm426, %v672, 0
        %v724 = vsel %vm426, %v673, 0
        %v727 = vsel %vm426, %v674, 0
        %v730 = vsel %vm426, %v675, 0
        %732 = vmatprep.subr.mxu0 0.0
        %733 = vmatpush1.msra.mxu0 %v676
        %734 = vmatprep.subr.mxu0 0.0
        %735 = vmatpush1.msra.mxu0 %v677
        %736 = vmatprep.subr.mxu0 0.0
        %737 = vmatpush1.msra.mxu0 %v678
        %738 = vmatprep.subr.mxu0 0.0
        %739 = vmatpush1.msra.mxu0 0.0
        %740 = vmatprep.subr.mxu0 0.0
        %741 = vmatpush1.msra.mxu0 0.0
        %742 = vmatprep.subr.mxu0 0.0
        %743 = vmatpush1.msra.mxu0 0.0
        %744 = vmatprep.subr.mxu0 0.0
        %745 = vmatpush1.msra.mxu0 0.0
        %746 = vmatprep.subr.mxu0 0.0
        %747 = vmatpush1.msra.mxu0 0.0
        %748 = vmatprep.subr.mxu0 0.0
        %749 = vmatpush1.msra.mxu0 0.0
        %750 = vmatprep.subr.mxu0 0.0
        %751 = vmatpush1.msra.mxu0 0.0
        %752 = vmatprep.subr.mxu0 0.0
        %753 = vmatpush1.msra.mxu0 0.0
        %754 = vmatprep.subr.mxu0 0.0
        %755 = vmatpush1.msra.mxu0 0.0
        %756 = vmatprep.subr.mxu0 0.0
        %757 = vmatpush1.msra.mxu0 0.0
        %758 = vmatprep.subr.mxu0 0.0
        %759 = vmatpush1.msra.mxu0 0.0
        %760 = vmatprep.subr.mxu0 0.0
        %761 = vmatpush1.msra.mxu0 0.0
        %762 = vmatprep.subr.mxu0 0.0
        %763 = vmatpush1.msra.mxu0 0.0
        %764 = vmatprep.subr.mxu0 0.0
        %765 = vmatpush1.msra.mxu0 0.0
        %766 = vmatprep.subr.mxu0 0.0
        %767 = vmatpush1.msra.mxu0 0.0
        %768 = vmatprep.subr.mxu0 0.0
        %769 = vmatpush1.msra.mxu0 0.0
        %770 = vmatprep.subr.mxu0 0.0
        %771 = vmatpush1.msra.mxu0 0.0
        %772 = vmatprep.subr.mxu0 0.0
        %773 = vmatpush1.msra.mxu0 0.0
        %774 = vmatprep.subr.mxu0 0.0
        %775 = vmatpush1.msra.mxu0 0.0
        %776 = vmatprep.subr.mxu0 0.0
        %777 = vmatpush1.msra.mxu0 0.0
        %778 = vmatprep.subr.mxu0 0.0
        %779 = vmatpush1.msra.mxu0 0.0
        %780 = vmatprep.subr.mxu0 0.0
        %781 = vmatpush1.msra.mxu0 0.0
        %782 = vmatprep.subr.mxu0 0.0
        %783 = vmatpush1.msra.mxu0 0.0
        %784 = vmatprep.subr.mxu0 0.0
        %785 = vmatpush1.msra.mxu0 0.0
        %786 = vmatprep.subr.mxu0 0.0
        %787 = vmatpush1.msra.mxu0 0.0
        %788 = vmatprep.subr.mxu0 0.0
        %789 = vmatpush1.msra.mxu0 0.0
        %790 = vmatprep.subr.mxu0 0.0
        %791 = vmatpush1.msra.mxu0 0.0
        %792 = vmatprep.subr.mxu0 0.0
        %793 = vmatpush1.msra.mxu0 0.0
        %794 = vmatprep.subr.mxu0 0.0
        %795 = vmatpush1.msra.mxu0 0.0
        %796 = vmatprep.mubr.f32.mxu0 0.0
        %797 = vmatmul.mubr.f32.gmra.mrb[0].mxu0 %v685
        %v798 = vpop.f32.mrb[0].mxu0
        %v799 = vadd.f32 %v683, %v798
        %v800 = vpop.f32.mrb[0].mxu0
        %801 = vmatprep.mubr.f32.mxu0 0.0
        %802 = vmatmul.mubr.f32.gmra.mrb[0].mxu0 %v688
        %v803 = vpop.f32.mrb[0].mxu0
        %v804 = vadd.f32 %v683, %v803
        %v805 = vpop.f32.mrb[0].mxu0
        %806 = vmatprep.mubr.f32.mxu0 0.0
        %807 = vmatmul.mubr.f32.gmra.mrb[0].mxu0 %v691
        %v808 = vpop.f32.mrb[0].mxu0
        %v809 = vadd.f32 %v683, %v808
        %v810 = vpop.f32.mrb[0].mxu0
        %811 = vmatprep.mubr.f32.mxu0 0.0
        %812 = vmatmul.mubr.f32.gmra.mrb[0].mxu0 %v694
        %v813 = vpop.f32.mrb[0].mxu0
        %v814 = vadd.f32 %v683, %v813
        %v815 = vpop.f32.mrb[0].mxu0
        %816 = vmatprep.mubr.f32.mxu0 0.0
        %817 = vmatmul.mubr.f32.gmra.mrb[0].mxu0 %v697
        %v818 = vpop.f32.mrb[0].mxu0
        %v819 = vadd.f32 %v683, %v818
        %v820 = vpop.f32.mrb[0].mxu0
        %821 = vmatprep.mubr.f32.mxu0 0.0
        %822 = vmatmul.mubr.f32.gmra.mrb[0].mxu0 %v700
        %v823 = vpop.f32.mrb[0].mxu0
        %v824 = vadd.f32 %v683, %v823
        %v825 = vpop.f32.mrb[0].mxu0
        %826 = vmatprep.mubr.f32.mxu0 0.0
        %827 = vmatmul.mubr.f32.gmra.mrb[0].mxu0 %v703
        %v828 = vpop.f32.mrb[0].mxu0
        %v829 = vadd.f32 %v683, %v828
        %v830 = vpop.f32.mrb[0].mxu0
        %831 = vmatprep.mubr.f32.mxu0 0.0
        %832 = vmatmul.mubr.f32.gmra.mrb[0].mxu0 %v706
        %v833 = vpop.f32.mrb[0].mxu0
        %v834 = vadd.f32 %v683, %v833
        %v835 = vpop.f32.mrb[0].mxu0
        %836 = vmatprep.mubr.f32.mxu0 0.0
        %837 = vmatmul.mubr.f32.gmra.mrb[0].mxu0 %v709
        %v838 = vpop.f32.mrb[0].mxu0
        %v839 = vadd.f32 %v683, %v838
        %v840 = vpop.f32.mrb[0].mxu0
        %841 = vmatprep.mubr.f32.mxu0 0.0
        %842 = vmatmul.mubr.f32.gmra.mrb[0].mxu0 %v712
        %v843 = vpop.f32.mrb[0].mxu0
        %v844 = vadd.f32 %v683, %v843
        %v845 = vpop.f32.mrb[0].mxu0
        %846 = vmatprep.mubr.f32.mxu0 0.0
        %847 = vmatmul.mubr.f32.gmra.mrb[0].mxu0 %v715
        %v848 = vpop.f32.mrb[0].mxu0
        %v849 = vadd.f32 %v683, %v848
        %v850 = vpop.f32.mrb[0].mxu0
        %851 = vmatprep.mubr.f32.mxu0 0.0
        %852 = vmatmul.mubr.f32.gmra.mrb[0].mxu0 %v718
        %v853 = vpop.f32.mrb[0].mxu0
        %v854 = vadd.f32 %v683, %v853
        %v855 = vpop.f32.mrb[0].mxu0
        %856 = vmatprep.mubr.f32.mxu0 0.0
        %857 = vmatmul.mubr.f32.gmra.mrb[0].mxu0 %v721
        %v858 = vpop.f32.mrb[0].mxu0
        %v859 = vadd.f32 %v683, %v858
        %v860 = vpop.f32.mrb[0].mxu0
        %861 = vmatprep.mubr.f32.mxu0 0.0
        %862 = vmatmul.mubr.f32.gmra.mrb[0].mxu0 %v724
        %v863 = vpop.f32.mrb[0].mxu0
        %v864 = vadd.f32 %v683, %v863
        %v865 = vpop.f32.mrb[0].mxu0
        %866 = vmatprep.mubr.f32.mxu0 0.0
        %867 = vmatmul.mubr.f32.gmra.mrb[0].mxu0 %v727
        %v868 = vpop.f32.mrb[0].mxu0
        %v869 = vadd.f32 %v683, %v868
        %v870 = vpop.f32.mrb[0].mxu0
        %871 = vmatprep.mubr.f32.mxu0 0.0
        %872 = vmatmul.mubr.f32.gmra.mrb[0].mxu0 %v730
        %v873 = vpop.f32.mrb[0].mxu0
        %v874 = vadd.f32 %v683, %v873
        %v875 = vpop.f32.mrb[0].mxu0
        %876 = vdwg.mxu0
        %v877 = vmul.f32 %v799, 0.5
        %v878 = vmul.f32 %v804, 0.5
        %v879 = vmul.f32 %v809, 0.5
        %v880 = vmul.f32 %v814, 0.5
        %v881 = vmul.f32 %v819, 0.5
        %v882 = vmul.f32 %v824, 0.5
        %v883 = vmul.f32 %v829, 0.5
        %v884 = vmul.f32 %v834, 0.5
        %v885 = vmul.f32 %v839, 0.5
        %v886 = vmul.f32 %v844, 0.5
        %v887 = vmul.f32 %v849, 0.5
        %v888 = vmul.f32 %v854, 0.5
        %v889 = vmul.f32 %v859, 0.5
        %v890 = vmul.f32 %v864, 0.5
        %v891 = vmul.f32 %v869, 0.5
        %v892 = vmul.f32 %v874, 0.5
        %v893 = vmul.f32 %v799, 0.044715
        %v894 = vmul.f32 %v804, 0.044715
        %v895 = vmul.f32 %v809, 0.044715
        %v896 = vmul.f32 %v814, 0.044715
        %v897 = vmul.f32 %v819, 0.044715
        %v898 = vmul.f32 %v824, 0.044715
        %v899 = vmul.f32 %v829, 0.044715
        %v900 = vmul.f32 %v834, 0.044715
        %v901 = vmul.f32 %v839, 0.044715
        %v902 = vmul.f32 %v844, 0.044715
        %v903 = vmul.f32 %v849, 0.044715
        %v904 = vmul.f32 %v854, 0.044715
        %v905 = vmul.f32 %v859, 0.044715
        %v906 = vmul.f32 %v864, 0.044715
        %v907 = vmul.f32 %v869, 0.044715
        %v908 = vmul.f32 %v874, 0.044715
        %v909 = vmul.f32 %v893, %v799
        %v910 = vmul.f32 %v894, %v804
        %v911 = vmul.f32 %v895, %v809
        %v912 = vmul.f32 %v896, %v814
        %v913 = vmul.f32 %v897, %v819
        %v914 = vmul.f32 %v898, %v824
        %v915 = vmul.f32 %v899, %v829
        %v916 = vmul.f32 %v900, %v834
        %v917 = vmul.f32 %v901, %v839
        %v918 = vmul.f32 %v902, %v844
        %v919 = vmul.f32 %v903, %v849
        %v920 = vmul.f32 %v904, %v854
        %v921 = vmul.f32 %v905, %v859
        %v922 = vmul.f32 %v906, %v864
        %v923 = vmul.f32 %v907, %v869
        %v924 = vmul.f32 %v908, %v874
        %v925 = vmul.f32 %v909, %v799
        %v926 = vmul.f32 %v910, %v804
        %v927 = vmul.f32 %v911, %v809
        %v928 = vmul.f32 %v912, %v814
        %v929 = vmul.f32 %v913, %v819
        %v930 = vmul.f32 %v914, %v824
        %v931 = vmul.f32 %v915, %v829
        %v932 = vmul.f32 %v916, %v834
        %v933 = vmul.f32 %v917, %v839
        %v934 = vmul.f32 %v918, %v844
        %v935 = vmul.f32 %v919, %v849
        %v936 = vmul.f32 %v920, %v854
        %v937 = vmul.f32 %v921, %v859
        %v938 = vmul.f32 %v922, %v864
        %v939 = vmul.f32 %v923, %v869
        %v940 = vmul.f32 %v924, %v874
        %v941 = vadd.f32 %v799, %v925
        %v942 = vadd.f32 %v804, %v926
        %v943 = vadd.f32 %v809, %v927
        %v944 = vadd.f32 %v814, %v928
        %v945 = vadd.f32 %v819, %v929
        %v946 = vadd.f32 %v824, %v930
        %v947 = vadd.f32 %v829, %v931
        %v948 = vadd.f32 %v834, %v932
        %v949 = vadd.f32 %v839, %v933
        %v950 = vadd.f32 %v844, %v934
        %v951 = vadd.f32 %v849, %v935
        %v952 = vadd.f32 %v854, %v936
        %v953 = vadd.f32 %v859, %v937
        %v954 = vadd.f32 %v864, %v938
        %v955 = vadd.f32 %v869, %v939
        %v956 = vadd.f32 %v874, %v940
        %v957 = vmul.f32 %v941, 0.7978846
        %v958 = vmul.f32 %v942, 0.7978846
        %v959 = vmul.f32 %v943, 0.7978846
        %v960 = vmul.f32 %v944, 0.7978846
        %v961 = vmul.f32 %v945, 0.7978846
        %v962 = vmul.f32 %v946, 0.7978846
        %v963 = vmul.f32 %v947, 0.7978846
        %v964 = vmul.f32 %v948, 0.7978846
        %v965 = vmul.f32 %v949, 0.7978846
        %v966 = vmul.f32 %v950, 0.7978846
        %v967 = vmul.f32 %v951, 0.7978846
        %v968 = vmul.f32 %v952, 0.7978846
        %v969 = vmul.f32 %v953, 0.7978846
        %v970 = vmul.f32 %v954, 0.7978846
        %v971 = vmul.f32 %v955, 0.7978846
        %v972 = vmul.f32 %v956, 0.7978846
        %v973 = vtanh.pop %v957
        %v974 = vtanh.pop %v958
        %v975 = vtanh.pop %v959
        %v976 = vtanh.pop %v960
        %v977 = vtanh.pop %v961
        %v978 = vtanh.pop %v962
        %v979 = vtanh.pop %v963
        %v980 = vtanh.pop %v964
        %v981 = vtanh.pop %v965
        %v982 = vtanh.pop %v966
        %v983 = vtanh.pop %v967
        %v984 = vtanh.pop %v968
        %v985 = vtanh.pop %v969
        %v986 = vtanh.pop %v970
        %v987 = vtanh.pop %v971
        %v988 = vtanh.pop %v972
        %v989 = vadd.f32 %v973, 1.0
        %v990 = vadd.f32 %v974, 1.0
        %v991 = vadd.f32 %v975, 1.0
        %v992 = vadd.f32 %v976, 1.0
        %v993 = vadd.f32 %v977, 1.0
        %v994 = vadd.f32 %v978, 1.0
        %v995 = vadd.f32 %v979, 1.0
        %v996 = vadd.f32 %v980, 1.0
        %v997 = vadd.f32 %v981, 1.0
        %v998 = vadd.f32 %v982, 1.0
        %v999 = vadd.f32 %v983, 1.0
        %v1000 = vadd.f32 %v984, 1.0
        %v1001 = vadd.f32 %v985, 1.0
        %v1002 = vadd.f32 %v986, 1.0
        %v1003 = vadd.f32 %v987, 1.0
        %v1004 = vadd.f32 %v988, 1.0
        %v1005 = vmul.f32 %v877, %v989
        %v1006 = vmul.f32 %v878, %v990
        %v1007 = vmul.f32 %v879, %v991
        %v1008 = vmul.f32 %v880, %v992
        %v1009 = vmul.f32 %v881, %v993
        %v1010 = vmul.f32 %v882, %v994
        %v1011 = vmul.f32 %v883, %v995
        %v1012 = vmul.f32 %v884, %v996
        %v1013 = vmul.f32 %v885, %v997
        %v1014 = vmul.f32 %v886, %v998
        %v1015 = vmul.f32 %v887, %v999
        %v1016 = vmul.f32 %v888, %v1000
        %v1017 = vmul.f32 %v889, %v1001
        %v1018 = vmul.f32 %v890, %v1002
        %v1019 = vmul.f32 %v891, %v1003
        %v1020 = vmul.f32 %v892, %v1004
        %v1021 = vld [vmem:[%s6 + $0x1] sm:$0x1]
        %v1022 = vld [vmem:[%s6 + $0x2] sm:$0x1]
        %vm1023 = vcmask 261120
        %v1024 = vsel %vm1023, %v1005, 0.0
        %1025 = vadd.xlane.f32.xlu0 %v1024
        %v1026 = vpop.xlane.xlu0 %1025
        %v1027 = vsel %vm1023, %v1006, 0.0
        %1028 = vadd.xlane.f32.xlu0 %v1027
        %v1029 = vpop.xlane.xlu0 %1028
        %v1030 = vsel %vm1023, %v1007, 0.0
        %1031 = vadd.xlane.f32.xlu0 %v1030
        %v1032 = vpop.xlane.xlu0 %1031
        %v1033 = vsel %vm1023, %v1008, 0.0
        %1034 = vadd.xlane.f32.xlu0 %v1033
        %v1035 = vpop.xlane.xlu0 %1034
        %v1036 = vsel %vm1023, %v1009, 0.0
        %1037 = vadd.xlane.f32.xlu0 %v1036
        %v1038 = vpop.xlane.xlu0 %1037
        %v1039 = vsel %vm1023, %v1010, 0.0
        %1040 = vadd.xlane.f32.xlu0 %v1039
        %v1041 = vpop.xlane.xlu0 %1040
        %v1042 = vsel %vm1023, %v1011, 0.0
        %1043 = vadd.xlane.f32.xlu0 %v1042
        %v1044 = vpop.xlane.xlu0 %1043
        %v1045 = vsel %vm1023, %v1012, 0.0
        %1046 = vadd.xlane.f32.xlu0 %v1045
        %v1047 = vpop.xlane.xlu0 %1046
        %v1048 = vsel %vm1023, %v1013, 0.0
        %1049 = vadd.xlane.f32.xlu0 %v1048
        %v1050 = vpop.xlane.xlu0 %1049
        %v1051 = vsel %vm1023, %v1014, 0.0
        %1052 = vadd.xlane.f32.xlu0 %v1051
        %v1053 = vpop.xlane.xlu0 %1052
        %v1054 = vsel %vm1023, %v1015, 0.0
        %1055 = vadd.xlane.f32.xlu0 %v1054
        %v1056 = vpop.xlane.xlu0 %1055
        %v1057 = vsel %vm1023, %v1016, 0.0
        %1058 = vadd.xlane.f32.xlu0 %v1057
        %v1059 = vpop.xlane.xlu0 %1058
        %v1060 = vsel %vm1023, %v1017, 0.0
        %1061 = vadd.xlane.f32.xlu0 %v1060
        %v1062 = vpop.xlane.xlu0 %1061
        %v1063 = vsel %vm1023, %v1018, 0.0
        %1064 = vadd.xlane.f32.xlu0 %v1063
        %v1065 = vpop.xlane.xlu0 %1064
        %v1066 = vsel %vm1023, %v1019, 0.0
        %1067 = vadd.xlane.f32.xlu0 %v1066
        %v1068 = vpop.xlane.xlu0 %1067
        %v1069 = vsel %vm1023, %v1020, 0.0
        %1070 = vadd.xlane.f32.xlu0 %v1069
        %v1071 = vpop.xlane.xlu0 %1070
        %v1072 = vrcp.pop 32.0
        %v1073 = vmul.f32 %v1026, %v1072
        %v1074 = vmul.f32 %v1029, %v1072
        %v1075 = vmul.f32 %v1032, %v1072
        %v1076 = vmul.f32 %v1035, %v1072
        %v1077 = vmul.f32 %v1038, %v1072
        %v1078 = vmul.f32 %v1041, %v1072
        %v1079 = vmul.f32 %v1044, %v1072
        %v1080 = vmul.f32 %v1047, %v1072
        %v1081 = vmul.f32 %v1050, %v1072
        %v1082 = vmul.f32 %v1053, %v1072
        %v1083 = vmul.f32 %v1056, %v1072
        %v1084 = vmul.f32 %v1059, %v1072
        %v1085 = vmul.f32 %v1062, %v1072
        %v1086 = vmul.f32 %v1065, %v1072
        %v1087 = vmul.f32 %v1068, %v1072
        %v1088 = vmul.f32 %v1071, %v1072
        %v1089 = vsub.f32 %v1005, %v1073
        %v1090 = vsub.f32 %v1006, %v1074
        %v1091 = vsub.f32 %v1007, %v1075
        %v1092 = vsub.f32 %v1008, %v1076
        %v1093 = vsub.f32 %v1009, %v1077
        %v1094 = vsub.f32 %v1010, %v1078
        %v1095 = vsub.f32 %v1011, %v1079
        %v1096 = vsub.f32 %v1012, %v1080
        %v1097 = vsub.f32 %v1013, %v1081
        %v1098 = vsub.f32 %v1014, %v1082
        %v1099 = vsub.f32 %v1015, %v1083
        %v1100 = vsub.f32 %v1016, %v1084
        %v1101 = vsub.f32 %v1017, %v1085
        %v1102 = vsub.f32 %v1018, %v1086
        %v1103 = vsub.f32 %v1019, %v1087
        %v1104 = vsub.f32 %v1020, %v1088
        %v1105 = vmul.f32 %v1089, %v1089
        %v1106 = vmul.f32 %v1090, %v1090
        %v1107 = vmul.f32 %v1091, %v1091
        %v1108 = vmul.f32 %v1092, %v1092
        %v1109 = vmul.f32 %v1093, %v1093
        %v1110 = vmul.f32 %v1094, %v1094
        %v1111 = vmul.f32 %v1095, %v1095
        %v1112 = vmul.f32 %v1096, %v1096
        %v1113 = vmul.f32 %v1097, %v1097
        %v1114 = vmul.f32 %v1098, %v1098
        %v1115 = vmul.f32 %v1099, %v1099
        %v1116 = vmul.f32 %v1100, %v1100
        %v1117 = vmul.f32 %v1101, %v1101
        %v1118 = vmul.f32 %v1102, %v1102
        %v1119 = vmul.f32 %v1103, %v1103
        %v1120 = vmul.f32 %v1104, %v1104
        %v1121 = vsel %vm1023, %v1105, 0.0
        %1122 = vadd.xlane.f32.xlu0 %v1121
        %v1123 = vpop.xlane.xlu0 %1122
        %v1124 = vsel %vm1023, %v1106, 0.0
        %1125 = vadd.xlane.f32.xlu0 %v1124
        %v1126 = vpop.xlane.xlu0 %1125
        %v1127 = vsel %vm1023, %v1107, 0.0
        %1128 = vadd.xlane.f32.xlu0 %v1127
        %v1129 = vpop.xlane.xlu0 %1128
        %v1130 = vsel %vm1023, %v1108, 0.0
        %1131 = vadd.xlane.f32.xlu0 %v1130
        %v1132 = vpop.xlane.xlu0 %1131
        %v1133 = vsel %vm1023, %v1109, 0.0
        %1134 = vadd.xlane.f32.xlu0 %v1133
        %v1135 = vpop.xlane.xlu0 %1134
        %v1136 = vsel %vm1023, %v1110, 0.0
        %1137 = vadd.xlane.f32.xlu0 %v1136
        %v1138 = vpop.xlane.xlu0 %1137
        %v1139 = vsel %vm1023, %v1111, 0.0
        %1140 = vadd.xlane.f32.xlu0 %v1139
        %v1141 = vpop.xlane.xlu0 %1140
        %v1142 = vsel %vm1023, %v1112, 0.0
        %1143 = vadd.xlane.f32.xlu0 %v1142
        %v1144 = vpop.xlane.xlu0 %1143
        %v1145 = vsel %vm1023, %v1113, 0.0
        %1146 = vadd.xlane.f32.xlu0 %v1145
        %v1147 = vpop.xlane.xlu0 %1146
        %v1148 = vsel %vm1023, %v1114, 0.0
        %1149 = vadd.xlane.f32.xlu0 %v1148
        %v1150 = vpop.xlane.xlu0 %1149
        %v1151 = vsel %vm1023, %v1115, 0.0
        %1152 = vadd.xlane.f32.xlu0 %v1151
        %v1153 = vpop.xlane.xlu0 %1152
        %v1154 = vsel %vm1023, %v1116, 0.0
        %1155 = vadd.xlane.f32.xlu0 %v1154
        %v1156 = vpop.xlane.xlu0 %1155
        %v1157 = vsel %vm1023, %v1117, 0.0
        %1158 = vadd.xlane.f32.xlu0 %v1157
        %v1159 = vpop.xlane.xlu0 %1158
        %v1160 = vsel %vm1023, %v1118, 0.0
        %1161 = vadd.xlane.f32.xlu0 %v1160
        %v1162 = vpop.xlane.xlu0 %1161
        %v1163 = vsel %vm1023, %v1119, 0.0
        %1164 = vadd.xlane.f32.xlu0 %v1163
        %v1165 = vpop.xlane.xlu0 %1164
        %v1166 = vsel %vm1023, %v1120, 0.0
        %1167 = vadd.xlane.f32.xlu0 %v1166
        %v1168 = vpop.xlane.xlu0 %1167
        %v1169 = vmul.f32 %v1123, %v1072
        %v1170 = vmul.f32 %v1126, %v1072
        %v1171 = vmul.f32 %v1129, %v1072
        %v1172 = vmul.f32 %v1132, %v1072
        %v1173 = vmul.f32 %v1135, %v1072
        %v1174 = vmul.f32 %v1138, %v1072
        %v1175 = vmul.f32 %v1141, %v1072
        %v1176 = vmul.f32 %v1144, %v1072
        %v1177 = vmul.f32 %v1147, %v1072
        %v1178 = vmul.f32 %v1150, %v1072
        %v1179 = vmul.f32 %v1153, %v1072
        %v1180 = vmul.f32 %v1156, %v1072
        %v1181 = vmul.f32 %v1159, %v1072
        %v1182 = vmul.f32 %v1162, %v1072
        %v1183 = vmul.f32 %v1165, %v1072
        %v1184 = vmul.f32 %v1168, %v1072
        %v1185 = vadd.f32 %v1169, 1e-05
        %v1186 = vadd.f32 %v1170, 1e-05
        %v1187 = vadd.f32 %v1171, 1e-05
        %v1188 = vadd.f32 %v1172, 1e-05
        %v1189 = vadd.f32 %v1173, 1e-05
        %v1190 = vadd.f32 %v1174, 1e-05
        %v1191 = vadd.f32 %v1175, 1e-05
        %v1192 = vadd.f32 %v1176, 1e-05
        %v1193 = vadd.f32 %v1177, 1e-05
        %v1194 = vadd.f32 %v1178, 1e-05
        %v1195 = vadd.f32 %v1179, 1e-05
        %v1196 = vadd.f32 %v1180, 1e-05
        %v1197 = vadd.f32 %v1181, 1e-05
        %v1198 = vadd.f32 %v1182, 1e-05
        %v1199 = vadd.f32 %v1183, 1e-05
        %v1200 = vadd.f32 %v1184, 1e-05
        %v1201 = vrsqrt.pop %v1185
        %v1202 = vrsqrt.pop %v1186
        %v1203 = vrsqrt.pop %v1187
        %v1204 = vrsqrt.pop %v1188
        %v1205 = vrsqrt.pop %v1189
        %v1206 = vrsqrt.pop %v1190
        %v1207 = vrsqrt.pop %v1191
        %v1208 = vrsqrt.pop %v1192
        %v1209 = vrsqrt.pop %v1193
        %v1210 = vrsqrt.pop %v1194
        %v1211 = vrsqrt.pop %v1195
        %v1212 = vrsqrt.pop %v1196
        %v1213 = vrsqrt.pop %v1197
        %v1214 = vrsqrt.pop %v1198
        %v1215 = vrsqrt.pop %v1199
        %v1216 = vrsqrt.pop %v1200
        %v1217 = vmul.f32 %v1089, %v1201
        %v1218 = vmul.f32 %v1090, %v1202
        %v1219 = vmul.f32 %v1091, %v1203
        %v1220 = vmul.f32 %v1092, %v1204
        %v1221 = vmul.f32 %v1093, %v1205
        %v1222 = vmul.f32 %v1094, %v1206
        %v1223 = vmul.f32 %v1095, %v1207
        %v1224 = vmul.f32 %v1096, %v1208
        %v1225 = vmul.f32 %v1097, %v1209
        %v1226 = vmul.f32 %v1098, %v1210
        %v1227 = vmul.f32 %v1099, %v1211
        %v1228 = vmul.f32 %v1100, %v1212
        %v1229 = vmul.f32 %v1101, %v1213
        %v1230 = vmul.f32 %v1102, %v1214
        %v1231 = vmul.f32 %v1103, %v1215
        %v1232 = vmul.f32 %v1104, %v1216
        %v1233 = vlaneseq
        %v1234 = vshrl.u32 %v1233, 7
        %v1235 = vsub.s32 0, %v1234
        %v1236 = vrot.slane %v1021, %v1235
        %v1237 = vmul.f32 %v1217, %v1236
        %v1238 = vmul.f32 %v1218, %v1236
        %v1239 = vmul.f32 %v1219, %v1236
        %v1240 = vmul.f32 %v1220, %v1236
        %v1241 = vmul.f32 %v1221, %v1236
        %v1242 = vmul.f32 %v1222, %v1236
        %v1243 = vmul.f32 %v1223, %v1236
        %v1244 = vmul.f32 %v1224, %v1236
        %v1245 = vmul.f32 %v1225, %v1236
        %v1246 = vmul.f32 %v1226, %v1236
        %v1247 = vmul.f32 %v1227, %v1236
        %v1248 = vmul.f32 %v1228, %v1236
        %v1249 = vmul.f32 %v1229, %v1236
        %v1250 = vmul.f32 %v1230, %v1236
        %v1251 = vmul.f32 %v1231, %v1236
        %v1252 = vmul.f32 %v1232, %v1236
        %v1253 = vlaneseq
        %v1254 = vshrl.u32 %v1253, 7
        %v1255 = vsub.s32 0, %v1254
        %v1256 = vrot.slane %v1022, %v1255
        %v1257 = vadd.f32 %v1237, %v1256
        %v1258 = vadd.f32 %v1238, %v1256
        %v1259 = vadd.f32 %v1239, %v1256
        %v1260 = vadd.f32 %v1240, %v1256
        %v1261 = vadd.f32 %v1241, %v1256
        %v1262 = vadd.f32 %v1242, %v1256
        %v1263 = vadd.f32 %v1243, %v1256
        %v1264 = vadd.f32 %v1244, %v1256
        %v1265 = vadd.f32 %v1245, %v1256
        %v1266 = vadd.f32 %v1246, %v1256
        %v1267 = vadd.f32 %v1247, %v1256
        %v1268 = vadd.f32 %v1248, %v1256
        %v1269 = vadd.f32 %v1249, %v1256
        %v1270 = vadd.f32 %v1250, %v1256
        %v1271 = vadd.f32 %v1251, %v1256
        %v1272 = vadd.f32 %v1252, %v1256
        %v1273 = vld [vmem:[#allocation2] sm:$0xff]
        %v1274 = vld [vmem:[#allocation2 + $0x8] sm:$0xff]
        %v1275 = vld [vmem:[#allocation2 + $0x10] sm:$0xff]
        %v1276 = vld [vmem:[#allocation2 + $0x18] sm:$0xff]
        %v1277 = vld [vmem:[#allocation2 + $0x20] sm:$0xff]
        %v1278 = vld [vmem:[#allocation2 + $0x28] sm:$0xff]
        %v1279 = vld [vmem:[#allocation2 + $0x30] sm:$0xff]
        %v1280 = vld [vmem:[#allocation2 + $0x38] sm:$0xff]
        %v1281 = vld [vmem:[#allocation2 + $0x40] sm:$0xff]
        %v1282 = vld [vmem:[#allocation2 + $0x48] sm:$0xff]
        %v1283 = vld [vmem:[#allocation2 + $0x50] sm:$0xff]
        %v1284 = vld [vmem:[#allocation2 + $0x58] sm:$0xff]
        %v1285 = vld [vmem:[#allocation2 + $0x60] sm:$0xff]
        %v1286 = vld [vmem:[#allocation2 + $0x68] sm:$0xff]
        %v1287 = vld [vmem:[#allocation2 + $0x70] sm:$0xff]
        %v1288 = vld [vmem:[#allocation2 + $0x78] sm:$0xff]
        %v1289 = vld [vmem:[#allocation2 + $0x80] sm:$0xff]
        %v1290 = vld [vmem:[#allocation2 + $0x88] sm:$0xff]
        %v1291 = vld [vmem:[#allocation2 + $0x90] sm:$0xff]
        %v1292 = vld [vmem:[#allocation2 + $0x98] sm:$0xff]
        %v1293 = vld [vmem:[#allocation2 + $0xa0] sm:$0xff]
        %v1294 = vld [vmem:[#allocation2 + $0xa8] sm:$0xff]
        %v1295 = vld [vmem:[#allocation2 + $0xb0] sm:$0xff]
        %v1296 = vld [vmem:[#allocation2 + $0xb8] sm:$0xff]
        %v1297 = vld [vmem:[%s5] sm:$0xff]
        %v1298 = vld [vmem:[%s5 + $0x8] sm:$0x3]
        %v1299 = vlaneseq
        %v1300 = vshrl.u32 %v1299, 7
        %v1301 = vsub.s32 0, %v1300
        %v1302 = vrot.slane %v1297, %v1301
        %v1304 = vsel %vm1023, %v1257, 0
        %v1307 = vsel %vm1023, %v1258, 0
        %v1310 = vsel %vm1023, %v1259, 0
        %v1313 = vsel %vm1023, %v1260, 0
        %v1316 = vsel %vm1023, %v1261, 0
        %v1319 = vsel %vm1023, %v1262, 0
        %v1322 = vsel %vm1023, %v1263, 0
        %v1325 = vsel %vm1023, %v1264, 0
        %v1328 = vsel %vm1023, %v1265, 0
        %v1331 = vsel %vm1023, %v1266, 0
        %v1334 = vsel %vm1023, %v1267, 0
        %v1337 = vsel %vm1023, %v1268, 0
        %v1340 = vsel %vm1023, %v1269, 0
        %v1343 = vsel %vm1023, %v1270, 0
        %v1346 = vsel %vm1023, %v1271, 0
        %v1349 = vsel %vm1023, %v1272, 0
        %1351 = vmatprep.subr.mxu0 0.0
        %1352 = vmatpush1.msra.mxu0 %v1273
        %1353 = vmatprep.subr.mxu0 0.0
        %1354 = vmatpush1.msra.mxu0 %v1274
        %1355 = vmatprep.subr.mxu0 0.0
        %1356 = vmatpush1.msra.mxu0 %v1275
        %1357 = vmatprep.subr.mxu0 0.0
        %1358 = vmatpush1.msra.mxu0 %v1276
        %1359 = vmatprep.subr.mxu0 0.0
        %1360 = vmatpush1.msra.mxu0 0.0
        %1361 = vmatprep.subr.mxu0 0.0
        %1362 = vmatpush1.msra.mxu0 0.0
        %1363 = vmatprep.subr.mxu0 0.0
        %1364 = vmatpush1.msra.mxu0 0.0
        %1365 = vmatprep.subr.mxu0 0.0
        %1366 = vmatpush1.msra.mxu0 0.0
        %1367 = vmatprep.subr.mxu0 0.0
        %1368 = vmatpush1.msra.mxu0 0.0
        %1369 = vmatprep.subr.mxu0 0.0
        %1370 = vmatpush1.msra.mxu0 0.0
        %1371 = vmatprep.subr.mxu0 0.0
        %1372 = vmatpush1.msra.mxu0 0.0
        %1373 = vmatprep.subr.mxu0 0.0
        %1374 = vmatpush1.msra.mxu0 0.0
        %1375 = vmatprep.subr.mxu0 0.0
        %1376 = vmatpush1.msra.mxu0 0.0
        %1377 = vmatprep.subr.mxu0 0.0
        %1378 = vmatpush1.msra.mxu0 0.0
        %1379 = vmatprep.subr.mxu0 0.0
        %1380 = vmatpush1.msra.mxu0 0.0
        %1381 = vmatprep.subr.mxu0 0.0
        %1382 = vmatpush1.msra.mxu0 0.0
        %1383 = vmatprep.subr.mxu0 0.0
        %1384 = vmatpush1.msra.mxu0 0.0
        %1385 = vmatprep.subr.mxu0 0.0
        %1386 = vmatpush1.msra.mxu0 0.0
        %1387 = vmatprep.subr.mxu0 0.0
        %1388 = vmatpush1.msra.mxu0 0.0
        %1389 = vmatprep.subr.mxu0 0.0
        %1390 = vmatpush1.msra.mxu0 0.0
        %1391 = vmatprep.subr.mxu0 0.0
        %1392 = vmatpush1.msra.mxu0 0.0
        %1393 = vmatprep.subr.mxu0 0.0
        %1394 = vmatpush1.msra.mxu0 0.0
        %1395 = vmatprep.subr.mxu0 0.0
        %1396 = vmatpush1.msra.mxu0 0.0
        %1397 = vmatprep.subr.mxu0 0.0
        %1398 = vmatpush1.msra.mxu0 0.0
        %1399 = vmatprep.subr.mxu0 0.0
        %1400 = vmatpush1.msra.mxu0 0.0
        %1401 = vmatprep.subr.mxu0 0.0
        %1402 = vmatpush1.msra.mxu0 0.0
        %1403 = vmatprep.subr.mxu0 0.0
        %1404 = vmatpush1.msra.mxu0 0.0
        %1405 = vmatprep.subr.mxu0 0.0
        %1406 = vmatpush1.msra.mxu0 0.0
        %1407 = vmatprep.subr.mxu0 0.0
        %1408 = vmatpush1.msra.mxu0 0.0
        %1409 = vmatprep.subr.mxu0 0.0
        %1410 = vmatpush1.msra.mxu0 0.0
        %1411 = vmatprep.subr.mxu0 0.0
        %1412 = vmatpush1.msra.mxu0 0.0
        %1413 = vmatprep.subr.mxu0 0.0
        %1414 = vmatpush1.msra.mxu0 0.0
        %1415 = vmatprep.mubr.f32.mxu0 0.0
        %1416 = vmatmul.mubr.f32.gmra.mrb[0].mxu0 %v1304
        %v1417 = vpop.f32.mrb[0].mxu0
        %v1418 = vadd.f32 %v1302, %v1417
        %v1419 = vpop.f32.mrb[0].mxu0
        %1420 = vmatprep.mubr.f32.mxu0 0.0
        %1421 = vmatmul.mubr.f32.gmra.mrb[0].mxu0 %v1307
        %v1422 = vpop.f32.mrb[0].mxu0
        %v1423 = vadd.f32 %v1302, %v1422
        %v1424 = vpop.f32.mrb[0].mxu0
        %1425 = vmatprep.mubr.f32.mxu0 0.0
        %1426 = vmatmul.mubr.f32.gmra.mrb[0].mxu0 %v1310
        %v1427 = vpop.f32.mrb[0].mxu0
        %v1428 = vadd.f32 %v1302, %v1427
        %v1429 = vpop.f32.mrb[0].mxu0
        %1430 = vmatprep.mubr.f32.mxu0 0.0
        %1431 = vmatmul.mubr.f32.gmra.mrb[0].mxu0 %v1313
        %v1432 = vpop.f32.mrb[0].mxu0
        %v1433 = vadd.f32 %v1302, %v1432
        %v1434 = vpop.f32.mrb[0].mxu0
        %1435 = vmatprep.mubr.f32.mxu0 0.0
        %1436 = vmatmul.mubr.f32.gmra.mrb[0].mxu0 %v1316
        %v1437 = vpop.f32.mrb[0].mxu0
        %v1438 = vadd.f32 %v1302, %v1437
        %v1439 = vpop.f32.mrb[0].mxu0
        %1440 = vmatprep.mubr.f32.mxu0 0.0
        %1441 = vmatmul.mubr.f32.gmra.mrb[0].mxu0 %v1319
        %v1442 = vpop.f32.mrb[0].mxu0
        %v1443 = vadd.f32 %v1302, %v1442
        %v1444 = vpop.f32.mrb[0].mxu0
        %1445 = vmatprep.mubr.f32.mxu0 0.0
        %1446 = vmatmul.mubr.f32.gmra.mrb[0].mxu0 %v1322
        %v1447 = vpop.f32.mrb[0].mxu0
        %v1448 = vadd.f32 %v1302, %v1447
        %v1449 = vpop.f32.mrb[0].mxu0
        %1450 = vmatprep.mubr.f32.mxu0 0.0
        %1451 = vmatmul.mubr.f32.gmra.mrb[0].mxu0 %v1325
        %v1452 = vpop.f32.mrb[0].mxu0
        %v1453 = vadd.f32 %v1302, %v1452
        %v1454 = vpop.f32.mrb[0].mxu0
        %1455 = vmatprep.mubr.f32.mxu0 0.0
        %1456 = vmatmul.mubr.f32.gmra.mrb[0].mxu0 %v1328
        %v1457 = vpop.f32.mrb[0].mxu0
        %v1458 = vadd.f32 %v1302, %v1457
        %v1459 = vpop.f32.mrb[0].mxu0
        %1460 = vmatprep.mubr.f32.mxu0 0.0
        %1461 = vmatmul.mubr.f32.gmra.mrb[0].mxu0 %v1331
        %v1462 = vpop.f32.mrb[0].mxu0
        %v1463 = vadd.f32 %v1302, %v1462
        %v1464 = vpop.f32.mrb[0].mxu0
        %1465 = vmatprep.mubr.f32.mxu0 0.0
        %1466 = vmatmul.mubr.f32.gmra.mrb[0].mxu0 %v1334
        %v1467 = vpop.f32.mrb[0].mxu0
        %v1468 = vadd.f32 %v1302, %v1467
        %v1469 = vpop.f32.mrb[0].mxu0
        %1470 = vmatprep.mubr.f32.mxu0 0.0
        %1471 = vmatmul.mubr.f32.gmra.mrb[0].mxu0 %v1337
        %v1472 = vpop.f32.mrb[0].mxu0
        %v1473 = vadd.f32 %v1302, %v1472
        %v1474 = vpop.f32.mrb[0].mxu0
        %1475 = vmatprep.mubr.f32.mxu0 0.0
        %1476 = vmatmul.mubr.f32.gmra.mrb[0].mxu0 %v1340
        %v1477 = vpop.f32.mrb[0].mxu0
        %v1478 = vadd.f32 %v1302, %v1477
        %v1479 = vpop.f32.mrb[0].mxu0
        %1480 = vmatprep.mubr.f32.mxu0 0.0
        %1481 = vmatmul.mubr.f32.gmra.mrb[0].mxu0 %v1343
        %v1482 = vpop.f32.mrb[0].mxu0
        %v1483 = vadd.f32 %v1302, %v1482
        %v1484 = vpop.f32.mrb[0].mxu0
        %1485 = vmatprep.mubr.f32.mxu0 0.0
        %1486 = vmatmul.mubr.f32.gmra.mrb[0].mxu0 %v1346
        %v1487 = vpop.f32.mrb[0].mxu0
        %v1488 = vadd.f32 %v1302, %v1487
        %v1489 = vpop.f32.mrb[0].mxu0
        %1490 = vmatprep.mubr.f32.mxu0 0.0
        %1491 = vmatmul.mubr.f32.gmra.mrb[0].mxu0 %v1349
        %v1492 = vpop.f32.mrb[0].mxu0
        %v1493 = vadd.f32 %v1302, %v1492
        %v1494 = vpop.f32.mrb[0].mxu0
        %1495 = vdwg.mxu0
        %v1496 = vlaneseq
        %v1497 = vshrl.u32 %v1496, 7
        %v1498 = vsub.s32 1, %v1497
        %v1499 = vrot.slane %v1297, %v1498
        %1500 = vmatprep.subr.mxu0 0.0
        %1501 = vmatpush1.msra.mxu0 %v1277
        %1502 = vmatprep.subr.mxu0 0.0
        %1503 = vmatpush1.msra.mxu0 %v1278
        %1504 = vmatprep.subr.mxu0 0.0
        %1505 = vmatpush1.msra.mxu0 %v1279
        %1506 = vmatprep.subr.mxu0 0.0
        %1507 = vmatpush1.msra.mxu0 %v1280
        %1508 = vmatprep.subr.mxu0 0.0
        %1509 = vmatpush1.msra.mxu0 0.0
        %1510 = vmatprep.subr.mxu0 0.0
        %1511 = vmatpush1.msra.mxu0 0.0
        %1512 = vmatprep.subr.mxu0 0.0
        %1513 = vmatpush1.msra.mxu0 0.0
        %1514 = vmatprep.subr.mxu0 0.0
        %1515 = vmatpush1.msra.mxu0 0.0
        %1516 = vmatprep.subr.mxu0 0.0
        %1517 = vmatpush1.msra.mxu0 0.0
        %1518 = vmatprep.subr.mxu0 0.0
        %1519 = vmatpush1.msra.mxu0 0.0
        %1520 = vmatprep.subr.mxu0 0.0
        %1521 = vmatpush1.msra.mxu0 0.0
        %1522 = vmatprep.subr.mxu0 0.0
        %1523 = vmatpush1.msra.mxu0 0.0
        %1524 = vmatprep.subr.mxu0 0.0
        %1525 = vmatpush1.msra.mxu0 0.0
        %1526 = vmatprep.subr.mxu0 0.0
        %1527 = vmatpush1.msra.mxu0 0.0
        %1528 = vmatprep.subr.mxu0 0.0
        %1529 = vmatpush1.msra.mxu0 0.0
        %1530 = vmatprep.subr.mxu0 0.0
        %1531 = vmatpush1.msra.mxu0 0.0
        %1532 = vmatprep.subr.mxu0 0.0
        %1533 = vmatpush1.msra.mxu0 0.0
        %1534 = vmatprep.subr.mxu0 0.0
        %1535 = vmatpush1.msra.mxu0 0.0
        %1536 = vmatprep.subr.mxu0 0.0
        %1537 = vmatpush1.msra.mxu0 0.0
        %1538 = vmatprep.subr.mxu0 0.0
        %1539 = vmatpush1.msra.mxu0 0.0
        %1540 = vmatprep.subr.mxu0 0.0
        %1541 = vmatpush1.msra.mxu0 0.0
        %1542 = vmatprep.subr.mxu0 0.0
        %1543 = vmatpush1.msra.mxu0 0.0
        %1544 = vmatprep.subr.mxu0 0.0
        %1545 = vmatpush1.msra.mxu0 0.0
        %1546 = vmatprep.subr.mxu0 0.0
        %1547 = vmatpush1.msra.mxu0 0.0
        %1548 = vmatprep.subr.mxu0 0.0
        %1549 = vmatpush1.msra.mxu0 0.0
        %1550 = vmatprep.subr.mxu0 0.0
        %1551 = vmatpush1.msra.mxu0 0.0
        %1552 = vmatprep.subr.mxu0 0.0
        %1553 = vmatpush1.msra.mxu0 0.0
        %1554 = vmatprep.subr.mxu0 0.0
        %1555 = vmatpush1.msra.mxu0 0.0
        %1556 = vmatprep.subr.mxu0 0.0
        %1557 = vmatpush1.msra.mxu0 0.0
        %1558 = vmatprep.subr.mxu0 0.0
        %1559 = vmatpush1.msra.mxu0 0.0
        %1560 = vmatprep.subr.mxu0 0.0
        %1561 = vmatpush1.msra.mxu0 0.0
        %1562 = vmatprep.subr.mxu0 0.0
        %1563 = vmatpush1.msra.mxu0 0.0
        %1564 = vmatprep.mubr.f32.mxu0 0.0
        %1565 = vmatmul.mubr.f32.gmra.mrb[0].mxu0 %v1304
        %v1566 = vpop.f32.mrb[0].mxu0
        %v1567 = vadd.f32 %v1499, %v1566
        %v1568 = vpop.f32.mrb[0].mxu0
        %1569 = vmatprep.mubr.f32.mxu0 0.0
        %1570 = vmatmul.mubr.f32.gmra.mrb[0].mxu0 %v1307
        %v1571 = vpop.f32.mrb[0].mxu0
        %v1572 = vadd.f32 %v1499, %v1571
        %v1573 = vpop.f32.mrb[0].mxu0
        %1574 = vmatprep.mubr.f32.mxu0 0.0
        %1575 = vmatmul.mubr.f32.gmra.mrb[0].mxu0 %v1310
        %v1576 = vpop.f32.mrb[0].mxu0
        %v1577 = vadd.f32 %v1499, %v1576
        %v1578 = vpop.f32.mrb[0].mxu0
        %1579 = vmatprep.mubr.f32.mxu0 0.0
        %1580 = vmatmul.mubr.f32.gmra.mrb[0].mxu0 %v1313
        %v1581 = vpop.f32.mrb[0].mxu0
        %v1582 = vadd.f32 %v1499, %v1581
        %v1583 = vpop.f32.mrb[0].mxu0
        %1584 = vmatprep.mubr.f32.mxu0 0.0
        %1585 = vmatmul.mubr.f32.gmra.mrb[0].mxu0 %v1316
        %v1586 = vpop.f32.mrb[0].mxu0
        %v1587 = vadd.f32 %v1499, %v1586
        %v1588 = vpop.f32.mrb[0].mxu0
        %1589 = vmatprep.mubr.f32.mxu0 0.0
        %1590 = vmatmul.mubr.f32.gmra.mrb[0].mxu0 %v1319
        %v1591 = vpop.f32.mrb[0].mxu0
        %v1592 = vadd.f32 %v1499, %v1591
        %v1593 = vpop.f32.mrb[0].mxu0
        %1594 = vmatprep.mubr.f32.mxu0 0.0
        %1595 = vmatmul.mubr.f32.gmra.mrb[0].mxu0 %v1322
        %v1596 = vpop.f32.mrb[0].mxu0
        %v1597 = vadd.f32 %v1499, %v1596
        %v1598 = vpop.f32.mrb[0].mxu0
        %1599 = vmatprep.mubr.f32.mxu0 0.0
        %1600 = vmatmul.mubr.f32.gmra.mrb[0].mxu0 %v1325
        %v1601 = vpop.f32.mrb[0].mxu0
        %v1602 = vadd.f32 %v1499, %v1601
        %v1603 = vpop.f32.mrb[0].mxu0
        %1604 = vmatprep.mubr.f32.mxu0 0.0
        %1605 = vmatmul.mubr.f32.gmra.mrb[0].mxu0 %v1328
        %v1606 = vpop.f32.mrb[0].mxu0
        %v1607 = vadd.f32 %v1499, %v1606
        %v1608 = vpop.f32.mrb[0].mxu0
        %1609 = vmatprep.mubr.f32.mxu0 0.0
        %1610 = vmatmul.mubr.f32.gmra.mrb[0].mxu0 %v1331
        %v1611 = vpop.f32.mrb[0].mxu0
        %v1612 = vadd.f32 %v1499, %v1611
        %v1613 = vpop.f32.mrb[0].mxu0
        %1614 = vmatprep.mubr.f32.mxu0 0.0
        %1615 = vmatmul.mubr.f32.gmra.mrb[0].mxu0 %v1334
        %v1616 = vpop.f32.mrb[0].mxu0
        %v1617 = vadd.f32 %v1499, %v1616
        %v1618 = vpop.f32.mrb[0].mxu0
        %1619 = vmatprep.mubr.f32.mxu0 0.0
        %1620 = vmatmul.mubr.f32.gmra.mrb[0].mxu0 %v1337
        %v1621 = vpop.f32.mrb[0].mxu0
        %v1622 = vadd.f32 %v1499, %v1621
        %v1623 = vpop.f32.mrb[0].mxu0
        %1624 = vmatprep.mubr.f32.mxu0 0.0
        %1625 = vmatmul.mubr.f32.gmra.mrb[0].mxu0 %v1340
        %v1626 = vpop.f32.mrb[0].mxu0
        %v1627 = vadd.f32 %v1499, %v1626
        %v1628 = vpop.f32.mrb[0].mxu0
        %1629 = vmatprep.mubr.f32.mxu0 0.0
        %1630 = vmatmul.mubr.f32.gmra.mrb[0].mxu0 %v1343
        %v1631 = vpop.f32.mrb[0].mxu0
        %v1632 = vadd.f32 %v1499, %v1631
        %v1633 = vpop.f32.mrb[0].mxu0
        %1634 = vmatprep.mubr.f32.mxu0 0.0
        %1635 = vmatmul.mubr.f32.gmra.mrb[0].mxu0 %v1346
        %v1636 = vpop.f32.mrb[0].mxu0
        %v1637 = vadd.f32 %v1499, %v1636
        %v1638 = vpop.f32.mrb[0].mxu0
        %1639 = vmatprep.mubr.f32.mxu0 0.0
        %1640 = vmatmul.mubr.f32.gmra.mrb[0].mxu0 %v1349
        %v1641 = vpop.f32.mrb[0].mxu0
        %v1642 = vadd.f32 %v1499, %v1641
        %v1643 = vpop.f32.mrb[0].mxu0
        %1644 = vdwg.mxu0
        %v1645 = vlaneseq
        %v1646 = vshrl.u32 %v1645, 7
        %v1647 = vsub.s32 2, %v1646
        %v1648 = vrot.slane %v1297, %v1647
        %1649 = vmatprep.subr.mxu0 0.0
        %1650 = vmatpush1.msra.mxu0 %v1281
        %1651 = vmatprep.subr.mxu0 0.0
        %1652 = vmatpush1.msra.mxu0 %v1282
        %1653 = vmatprep.subr.mxu0 0.0
        %1654 = vmatpush1.msra.mxu0 %v1283
        %1655 = vmatprep.subr.mxu0 0.0
        %1656 = vmatpush1.msra.mxu0 %v1284
        %1657 = vmatprep.subr.mxu0 0.0
        %1658 = vmatpush1.msra.mxu0 0.0
        %1659 = vmatprep.subr.mxu0 0.0
        %1660 = vmatpush1.msra.mxu0 0.0
        %1661 = vmatprep.subr.mxu0 0.0
        %1662 = vmatpush1.msra.mxu0 0.0
        %1663 = vmatprep.subr.mxu0 0.0
        %1664 = vmatpush1.msra.mxu0 0.0
        %1665 = vmatprep.subr.mxu0 0.0
        %1666 = vmatpush1.msra.mxu0 0.0
        %1667 = vmatprep.subr.mxu0 0.0
        %1668 = vmatpush1.msra.mxu0 0.0
        %1669 = vmatprep.subr.mxu0 0.0
        %1670 = vmatpush1.msra.mxu0 0.0
        %1671 = vmatprep.subr.mxu0 0.0
        %1672 = vmatpush1.msra.mxu0 0.0
        %1673 = vmatprep.subr.mxu0 0.0
        %1674 = vmatpush1.msra.mxu0 0.0
        %1675 = vmatprep.subr.mxu0 0.0
        %1676 = vmatpush1.msra.mxu0 0.0
        %1677 = vmatprep.subr.mxu0 0.0
        %1678 = vmatpush1.msra.mxu0 0.0
        %1679 = vmatprep.subr.mxu0 0.0
        %1680 = vmatpush1.msra.mxu0 0.0
        %1681 = vmatprep.subr.mxu0 0.0
        %1682 = vmatpush1.msra.mxu0 0.0
        %1683 = vmatprep.subr.mxu0 0.0
        %1684 = vmatpush1.msra.mxu0 0.0
        %1685 = vmatprep.subr.mxu0 0.0
        %1686 = vmatpush1.msra.mxu0 0.0
        %1687 = vmatprep.subr.mxu0 0.0
        %1688 = vmatpush1.msra.mxu0 0.0
        %1689 = vmatprep.subr.mxu0 0.0
        %1690 = vmatpush1.msra.mxu0 0.0
        %1691 = vmatprep.subr.mxu0 0.0
        %1692 = vmatpush1.msra.mxu0 0.0
        %1693 = vmatprep.subr.mxu0 0.0
        %1694 = vmatpush1.msra.mxu0 0.0
        %1695 = vmatprep.subr.mxu0 0.0
        %1696 = vmatpush1.msra.mxu0 0.0
        %1697 = vmatprep.subr.mxu0 0.0
        %1698 = vmatpush1.msra.mxu0 0.0
        %1699 = vmatprep.subr.mxu0 0.0
        %1700 = vmatpush1.msra.mxu0 0.0
        %1701 = vmatprep.subr.mxu0 0.0
        %1702 = vmatpush1.msra.mxu0 0.0
        %1703 = vmatprep.subr.mxu0 0.0
        %1704 = vmatpush1.msra.mxu0 0.0
        %1705 = vmatprep.subr.mxu0 0.0
        %1706 = vmatpush1.msra.mxu0 0.0
        %1707 = vmatprep.subr.mxu0 0.0
        %1708 = vmatpush1.msra.mxu0 0.0
        %1709 = vmatprep.subr.mxu0 0.0
        %1710 = vmatpush1.msra.mxu0 0.0
        %1711 = vmatprep.subr.mxu0 0.0
        %1712 = vmatpush1.msra.mxu0 0.0
        %1713 = vmatprep.mubr.f32.mxu0 0.0
        %1714 = vmatmul.mubr.f32.gmra.mrb[0].mxu0 %v1304
        %v1715 = vpop.f32.mrb[0].mxu0
        %v1716 = vadd.f32 %v1648, %v1715
        %v1717 = vpop.f32.mrb[0].mxu0
        %1718 = vmatprep.mubr.f32.mxu0 0.0
        %1719 = vmatmul.mubr.f32.gmra.mrb[0].mxu0 %v1307
        %v1720 = vpop.f32.mrb[0].mxu0
        %v1721 = vadd.f32 %v1648, %v1720
        %v1722 = vpop.f32.mrb[0].mxu0
        %1723 = vmatprep.mubr.f32.mxu0 0.0
        %1724 = vmatmul.mubr.f32.gmra.mrb[0].mxu0 %v1310
        %v1725 = vpop.f32.mrb[0].mxu0
        %v1726 = vadd.f32 %v1648, %v1725
        %v1727 = vpop.f32.mrb[0].mxu0
        %1728 = vmatprep.mubr.f32.mxu0 0.0
        %1729 = vmatmul.mubr.f32.gmra.mrb[0].mxu0 %v1313
        %v1730 = vpop.f32.mrb[0].mxu0
        %v1731 = vadd.f32 %v1648, %v1730
        %v1732 = vpop.f32.mrb[0].mxu0
        %1733 = vmatprep.mubr.f32.mxu0 0.0
        %1734 = vmatmul.mubr.f32.gmra.mrb[0].mxu0 %v1316
        %v1735 = vpop.f32.mrb[0].mxu0
        %v1736 = vadd.f32 %v1648, %v1735
        %v1737 = vpop.f32.mrb[0].mxu0
        %1738 = vmatprep.mubr.f32.mxu0 0.0
        %1739 = vmatmul.mubr.f32.gmra.mrb[0].mxu0 %v1319
        %v1740 = vpop.f32.mrb[0].mxu0
        %v1741 = vadd.f32 %v1648, %v1740
        %v1742 = vpop.f32.mrb[0].mxu0
        %1743 = vmatprep.mubr.f32.mxu0 0.0
        %1744 = vmatmul.mubr.f32.gmra.mrb[0].mxu0 %v1322
        %v1745 = vpop.f32.mrb[0].mxu0
        %v1746 = vadd.f32 %v1648, %v1745
        %v1747 = vpop.f32.mrb[0].mxu0
        %1748 = vmatprep.mubr.f32.mxu0 0.0
        %1749 = vmatmul.mubr.f32.gmra.mrb[0].mxu0 %v1325
        %v1750 = vpop.f32.mrb[0].mxu0
        %v1751 = vadd.f32 %v1648, %v1750
        %v1752 = vpop.f32.mrb[0].mxu0
        %1753 = vmatprep.mubr.f32.mxu0 0.0
        %1754 = vmatmul.mubr.f32.gmra.mrb[0].mxu0 %v1328
        %v1755 = vpop.f32.mrb[0].mxu0
        %v1756 = vadd.f32 %v1648, %v1755
        %v1757 = vpop.f32.mrb[0].mxu0
        %1758 = vmatprep.mubr.f32.mxu0 0.0
        %1759 = vmatmul.mubr.f32.gmra.mrb[0].mxu0 %v1331
        %v1760 = vpop.f32.mrb[0].mxu0
        %v1761 = vadd.f32 %v1648, %v1760
        %v1762 = vpop.f32.mrb[0].mxu0
        %1763 = vmatprep.mubr.f32.mxu0 0.0
        %1764 = vmatmul.mubr.f32.gmra.mrb[0].mxu0 %v1334
        %v1765 = vpop.f32.mrb[0].mxu0
        %v1766 = vadd.f32 %v1648, %v1765
        %v1767 = vpop.f32.mrb[0].mxu0
        %1768 = vmatprep.mubr.f32.mxu0 0.0
        %1769 = vmatmul.mubr.f32.gmra.mrb[0].mxu0 %v1337
        %v1770 = vpop.f32.mrb[0].mxu0
        %v1771 = vadd.f32 %v1648, %v1770
        %v1772 = vpop.f32.mrb[0].mxu0
        %1773 = vmatprep.mubr.f32.mxu0 0.0
        %1774 = vmatmul.mubr.f32.gmra.mrb[0].mxu0 %v1340
        %v1775 = vpop.f32.mrb[0].mxu0
        %v1776 = vadd.f32 %v1648, %v1775
        %v1777 = vpop.f32.mrb[0].mxu0
        %1778 = vmatprep.mubr.f32.mxu0 0.0
        %1779 = vmatmul.mubr.f32.gmra.mrb[0].mxu0 %v1343
        %v1780 = vpop.f32.mrb[0].mxu0
        %v1781 = vadd.f32 %v1648, %v1780
        %v1782 = vpop.f32.mrb[0].mxu0
        %1783 = vmatprep.mubr.f32.mxu0 0.0
        %1784 = vmatmul.mubr.f32.gmra.mrb[0].mxu0 %v1346
        %v1785 = vpop.f32.mrb[0].mxu0
        %v1786 = vadd.f32 %v1648, %v1785
        %v1787 = vpop.f32.mrb[0].mxu0
        %1788 = vmatprep.mubr.f32.mxu0 0.0
        %1789 = vmatmul.mubr.f32.gmra.mrb[0].mxu0 %v1349
        %v1790 = vpop.f32.mrb[0].mxu0
        %v1791 = vadd.f32 %v1648, %v1790
        %v1792 = vpop.f32.mrb[0].mxu0
        %1793 = vdwg.mxu0
        %vm1794 = vcmask 130048
        %v1796 = vsel %vm1794, %v1418, 0
        %v1799 = vsel %vm1794, %v1423, 0
        %v1802 = vsel %vm1794, %v1428, 0
        %v1805 = vsel %vm1794, %v1433, 0
        %v1808 = vsel %vm1794, %v1438, 0
        %v1811 = vsel %vm1794, %v1443, 0
        %v1814 = vsel %vm1794, %v1448, 0
        %v1817 = vsel %vm1794, %v1453, 0
        %v1820 = vsel %vm1794, %v1458, 0
        %v1823 = vsel %vm1794, %v1463, 0
        %v1826 = vsel %vm1794, %v1468, 0
        %v1829 = vsel %vm1794, %v1473, 0
        %v1832 = vsel %vm1794, %v1478, 0
        %v1835 = vsel %vm1794, %v1483, 0
        %v1838 = vsel %vm1794, %v1488, 0
        %v1841 = vsel %vm1794, %v1493, 0
        %v1844 = vsel %vm1794, %v1567, 0
        %v1847 = vsel %vm1794, %v1572, 0
        %v1850 = vsel %vm1794, %v1577, 0
        %v1853 = vsel %vm1794, %v1582, 0
        %v1856 = vsel %vm1794, %v1587, 0
        %v1859 = vsel %vm1794, %v1592, 0
        %v1862 = vsel %vm1794, %v1597, 0
        %v1865 = vsel %vm1794, %v1602, 0
        %v1868 = vsel %vm1794, %v1607, 0
        %v1871 = vsel %vm1794, %v1612, 0
        %v1874 = vsel %vm1794, %v1617, 0
        %v1877 = vsel %vm1794, %v1622, 0
        %v1880 = vsel %vm1794, %v1627, 0
        %v1883 = vsel %vm1794, %v1632, 0
        %v1886 = vsel %vm1794, %v1637, 0
        %v1889 = vsel %vm1794, %v1642, 0
        %1891 = vmatprep.subr.mxu0 0.0
        %1892 = vmatpush1.xpose.msra.mxu0 %v1844
        %1893 = vmatprep.subr.mxu0 0.0
        %1894 = vmatpush1.xpose.msra.mxu0 %v1847
        %1895 = vmatprep.subr.mxu0 0.0
        %1896 = vmatpush1.xpose.msra.mxu0 %v1850
        %1897 = vmatprep.subr.mxu0 0.0
        %1898 = vmatpush1.xpose.msra.mxu0 %v1853
        %1899 = vmatprep.subr.mxu0 0.0
        %1900 = vmatpush1.xpose.msra.mxu0 %v1856
        %1901 = vmatprep.subr.mxu0 0.0
        %1902 = vmatpush1.xpose.msra.mxu0 %v1859
        %1903 = vmatprep.subr.mxu0 0.0
        %1904 = vmatpush1.xpose.msra.mxu0 %v1862
        %1905 = vmatprep.subr.mxu0 0.0
        %1906 = vmatpush1.xpose.msra.mxu0 %v1865
        %1907 = vmatprep.subr.mxu0 0.0
        %1908 = vmatpush1.xpose.msra.mxu0 %v1868
        %1909 = vmatprep.subr.mxu0 0.0
        %1910 = vmatpush1.xpose.msra.mxu0 %v1871
        %1911 = vmatprep.subr.mxu0 0.0
        %1912 = vmatpush1.xpose.msra.mxu0 %v1874
        %1913 = vmatprep.subr.mxu0 0.0
        %1914 = vmatpush1.xpose.msra.mxu0 %v1877
        %1915 = vmatprep.subr.mxu0 0.0
        %1916 = vmatpush1.xpose.msra.mxu0 %v1880
        %1917 = vmatprep.subr.mxu0 0.0
        %1918 = vmatpush1.xpose.msra.mxu0 %v1883
        %1919 = vmatprep.subr.mxu0 0.0
        %1920 = vmatpush1.xpose.msra.mxu0 %v1886
        %1921 = vmatprep.subr.mxu0 0.0
        %1922 = vmatpush1.xpose.msra.mxu0 %v1889
        %1923 = vmatprep.subr.mxu0 0.0
        %1924 = vmatpush1.xpose.msra.mxu0 0.0
        %1925 = vmatprep.subr.mxu0 0.0
        %1926 = vmatpush1.xpose.msra.mxu0 0.0
        %1927 = vmatprep.subr.mxu0 0.0
        %1928 = vmatpush1.xpose.msra.mxu0 0.0
        %1929 = vmatprep.subr.mxu0 0.0
        %1930 = vmatpush1.xpose.msra.mxu0 0.0
        %1931 = vmatprep.subr.mxu0 0.0
        %1932 = vmatpush1.xpose.msra.mxu0 0.0
        %1933 = vmatprep.subr.mxu0 0.0
        %1934 = vmatpush1.xpose.msra.mxu0 0.0
        %1935 = vmatprep.subr.mxu0 0.0
        %1936 = vmatpush1.xpose.msra.mxu0 0.0
        %1937 = vmatprep.subr.mxu0 0.0
        %1938 = vmatpush1.xpose.msra.mxu0 0.0
        %1939 = vmatprep.subr.mxu0 0.0
        %1940 = vmatpush1.xpose.msra.mxu0 0.0
        %1941 = vmatprep.subr.mxu0 0.0
        %1942 = vmatpush1.xpose.msra.mxu0 0.0
        %1943 = vmatprep.subr.mxu0 0.0
        %1944 = vmatpush1.xpose.msra.mxu0 0.0
        %1945 = vmatprep.subr.mxu0 0.0
        %1946 = vmatpush1.xpose.msra.mxu0 0.0
        %1947 = vmatprep.subr.mxu0 0.0
        %1948 = vmatpush1.xpose.msra.mxu0 0.0
        %1949 = vmatprep.subr.mxu0 0.0
        %1950 = vmatpush1.xpose.msra.mxu0 0.0
        %1951 = vmatprep.subr.mxu0 0.0
        %1952 = vmatpush1.xpose.msra.mxu0 0.0
        %1953 = vmatprep.subr.mxu0 0.0
        %1954 = vmatpush1.xpose.msra.mxu0 0.0
        %1955 = vmatprep.mubr.f32.mxu0 0.0
        %1956 = vmatmul.mubr.f32.gmra.mrb[0].mxu0 %v1796
        %v1957 = vpop.f32.mrb[0].mxu0
        %v1958 = vadd.f32 0.0, %v1957
        %v1959 = vpop.f32.mrb[0].mxu0
        %1960 = vmatprep.mubr.f32.mxu0 0.0
        %1961 = vmatmul.mubr.f32.gmra.mrb[0].mxu0 %v1799
        %v1962 = vpop.f32.mrb[0].mxu0
        %v1963 = vadd.f32 0.0, %v1962
        %v1964 = vpop.f32.mrb[0].mxu0
        %1965 = vmatprep.mubr.f32.mxu0 0.0
        %1966 = vmatmul.mubr.f32.gmra.mrb[0].mxu0 %v1802
        %v1967 = vpop.f32.mrb[0].mxu0
        %v1968 = vadd.f32 0.0, %v1967
        %v1969 = vpop.f32.mrb[0].mxu0
        %1970 = vmatprep.mubr.f32.mxu0 0.0
        %1971 = vmatmul.mubr.f32.gmra.mrb[0].mxu0 %v1805
        %v1972 = vpop.f32.mrb[0].mxu0
        %v1973 = vadd.f32 0.0, %v1972
        %v1974 = vpop.f32.mrb[0].mxu0
        %1975 = vmatprep.mubr.f32.mxu0 0.0
        %1976 = vmatmul.mubr.f32.gmra.mrb[0].mxu0 %v1808
        %v1977 = vpop.f32.mrb[0].mxu0
        %v1978 = vadd.f32 0.0, %v1977
        %v1979 = vpop.f32.mrb[0].mxu0
        %1980 = vmatprep.mubr.f32.mxu0 0.0
        %1981 = vmatmul.mubr.f32.gmra.mrb[0].mxu0 %v1811
        %v1982 = vpop.f32.mrb[0].mxu0
        %v1983 = vadd.f32 0.0, %v1982
        %v1984 = vpop.f32.mrb[0].mxu0
        %1985 = vmatprep.mubr.f32.mxu0 0.0
        %1986 = vmatmul.mubr.f32.gmra.mrb[0].mxu0 %v1814
        %v1987 = vpop.f32.mrb[0].mxu0
        %v1988 = vadd.f32 0.0, %v1987
        %v1989 = vpop.f32.mrb[0].mxu0
        %1990 = vmatprep.mubr.f32.mxu0 0.0
        %1991 = vmatmul.mubr.f32.gmra.mrb[0].mxu0 %v1817
        %v1992 = vpop.f32.mrb[0].mxu0
        %v1993 = vadd.f32 0.0, %v1992
        %v1994 = vpop.f32.mrb[0].mxu0
        %1995 = vmatprep.mubr.f32.mxu0 0.0
        %1996 = vmatmul.mubr.f32.gmra.mrb[0].mxu0 %v1820
        %v1997 = vpop.f32.mrb[0].mxu0
        %v1998 = vadd.f32 0.0, %v1997
        %v1999 = vpop.f32.mrb[0].mxu0
        %2000 = vmatprep.mubr.f32.mxu0 0.0
        %2001 = vmatmul.mubr.f32.gmra.mrb[0].mxu0 %v1823
        %v2002 = vpop.f32.mrb[0].mxu0
        %v2003 = vadd.f32 0.0, %v2002
        %v2004 = vpop.f32.mrb[0].mxu0
        %2005 = vmatprep.mubr.f32.mxu0 0.0
        %2006 = vmatmul.mubr.f32.gmra.mrb[0].mxu0 %v1826
        %v2007 = vpop.f32.mrb[0].mxu0
        %v2008 = vadd.f32 0.0, %v2007
        %v2009 = vpop.f32.mrb[0].mxu0
        %2010 = vmatprep.mubr.f32.mxu0 0.0
        %2011 = vmatmul.mubr.f32.gmra.mrb[0].mxu0 %v1829
        %v2012 = vpop.f32.mrb[0].mxu0
        %v2013 = vadd.f32 0.0, %v2012
        %v2014 = vpop.f32.mrb[0].mxu0
        %2015 = vmatprep.mubr.f32.mxu0 0.0
        %2016 = vmatmul.mubr.f32.gmra.mrb[0].mxu0 %v1832
        %v2017 = vpop.f32.mrb[0].mxu0
        %v2018 = vadd.f32 0.0, %v2017
        %v2019 = vpop.f32.mrb[0].mxu0
        %2020 = vmatprep.mubr.f32.mxu0 0.0
        %2021 = vmatmul.mubr.f32.gmra.mrb[0].mxu0 %v1835
        %v2022 = vpop.f32.mrb[0].mxu0
        %v2023 = vadd.f32 0.0, %v2022
        %v2024 = vpop.f32.mrb[0].mxu0
        %2025 = vmatprep.mubr.f32.mxu0 0.0
        %2026 = vmatmul.mubr.f32.gmra.mrb[0].mxu0 %v1838
        %v2027 = vpop.f32.mrb[0].mxu0
        %v2028 = vadd.f32 0.0, %v2027
        %v2029 = vpop.f32.mrb[0].mxu0
        %2030 = vmatprep.mubr.f32.mxu0 0.0
        %2031 = vmatmul.mubr.f32.gmra.mrb[0].mxu0 %v1841
        %v2032 = vpop.f32.mrb[0].mxu0
        %v2033 = vadd.f32 0.0, %v2032
        %v2034 = vpop.f32.mrb[0].mxu0
        %2035 = vdwg.mxu0
        %v2036 = vmul.f32 %v1958, 0.25
        %v2037 = vmul.f32 %v1963, 0.25
        %v2038 = vmul.f32 %v1968, 0.25
        %v2039 = vmul.f32 %v1973, 0.25
        %v2040 = vmul.f32 %v1978, 0.25
        %v2041 = vmul.f32 %v1983, 0.25
        %v2042 = vmul.f32 %v1988, 0.25
        %v2043 = vmul.f32 %v1993, 0.25
        %v2044 = vmul.f32 %v1998, 0.25
        %v2045 = vmul.f32 %v2003, 0.25
        %v2046 = vmul.f32 %v2008, 0.25
        %v2047 = vmul.f32 %v2013, 0.25
        %v2048 = vmul.f32 %v2018, 0.25
        %v2049 = vmul.f32 %v2023, 0.25
        %v2050 = vmul.f32 %v2028, 0.25
        %v2051 = vmul.f32 %v2033, 0.25
        %v2052 = vadd.f32 %v2036, %v392
        %v2053 = vadd.f32 %v2037, %v393
        %v2054 = vadd.f32 %v2038, %v394
        %v2055 = vadd.f32 %v2039, %v395
        %v2056 = vadd.f32 %v2040, %v396
        %v2057 = vadd.f32 %v2041, %v397
        %v2058 = vadd.f32 %v2042, %v398
        %v2059 = vadd.f32 %v2043, %v399
        %v2060 = vadd.f32 %v2044, %v400
        %v2061 = vadd.f32 %v2045, %v401
        %v2062 = vadd.f32 %v2046, %v402
        %v2063 = vadd.f32 %v2047, %v403
        %v2064 = vadd.f32 %v2048, %v404
        %v2065 = vadd.f32 %v2049, %v405
        %v2066 = vadd.f32 %v2050, %v406
        %v2067 = vadd.f32 %v2051, %v407
        %2068 = vmax.xlane.f32.xlu0 %v2052
        %v2069 = vpop.xlane.xlu0 %2068
        %2070 = vmax.xlane.f32.xlu0 %v2053
        %v2071 = vpop.xlane.xlu0 %2070
        %2072 = vmax.xlane.f32.xlu0 %v2054
        %v2073 = vpop.xlane.xlu0 %2072
        %2074 = vmax.xlane.f32.xlu0 %v2055
        %v2075 = vpop.xlane.xlu0 %2074
        %2076 = vmax.xlane.f32.xlu0 %v2056
        %v2077 = vpop.xlane.xlu0 %2076
        %2078 = vmax.xlane.f32.xlu0 %v2057
        %v2079 = vpop.xlane.xlu0 %2078
        %2080 = vmax.xlane.f32.xlu0 %v2058
        %v2081 = vpop.xlane.xlu0 %2080
        %2082 = vmax.xlane.f32.xlu0 %v2059
        %v2083 = vpop.xlane.xlu0 %2082
        %2084 = vmax.xlane.f32.xlu0 %v2060
        %v2085 = vpop.xlane.xlu0 %2084
        %2086 = vmax.xlane.f32.xlu0 %v2061
        %v2087 = vpop.xlane.xlu0 %2086
        %2088 = vmax.xlane.f32.xlu0 %v2062
        %v2089 = vpop.xlane.xlu0 %2088
        %2090 = vmax.xlane.f32.xlu0 %v2063
        %v2091 = vpop.xlane.xlu0 %2090
        %2092 = vmax.xlane.f32.xlu0 %v2064
        %v2093 = vpop.xlane.xlu0 %2092
        %2094 = vmax.xlane.f32.xlu0 %v2065
        %v2095 = vpop.xlane.xlu0 %2094
        %2096 = vmax.xlane.f32.xlu0 %v2066
        %v2097 = vpop.xlane.xlu0 %2096
        %2098 = vmax.xlane.f32.xlu0 %v2067
        %v2099 = vpop.xlane.xlu0 %2098
        %v2100 = vsub.f32 %v2052, %v2069
        %v2101 = vsub.f32 %v2053, %v2071
        %v2102 = vsub.f32 %v2054, %v2073
        %v2103 = vsub.f32 %v2055, %v2075
        %v2104 = vsub.f32 %v2056, %v2077
        %v2105 = vsub.f32 %v2057, %v2079
        %v2106 = vsub.f32 %v2058, %v2081
        %v2107 = vsub.f32 %v2059, %v2083
        %v2108 = vsub.f32 %v2060, %v2085
        %v2109 = vsub.f32 %v2061, %v2087
        %v2110 = vsub.f32 %v2062, %v2089
        %v2111 = vsub.f32 %v2063, %v2091
        %v2112 = vsub.f32 %v2064, %v2093
        %v2113 = vsub.f32 %v2065, %v2095
        %v2114 = vsub.f32 %v2066, %v2097
        %v2115 = vsub.f32 %v2067, %v2099
        %v2116 = vmul.f32 %v2100, 1.442695
        %v2117 = vpow.pop %v2116
        %v2118 = vmul.f32 %v2101, 1.442695
        %v2119 = vpow.pop %v2118
        %v2120 = vmul.f32 %v2102, 1.442695
        %v2121 = vpow.pop %v2120
        %v2122 = vmul.f32 %v2103, 1.442695
        %v2123 = vpow.pop %v2122
        %v2124 = vmul.f32 %v2104, 1.442695
        %v2125 = vpow.pop %v2124
        %v2126 = vmul.f32 %v2105, 1.442695
        %v2127 = vpow.pop %v2126
        %v2128 = vmul.f32 %v2106, 1.442695
        %v2129 = vpow.pop %v2128
        %v2130 = vmul.f32 %v2107, 1.442695
        %v2131 = vpow.pop %v2130
        %v2132 = vmul.f32 %v2108, 1.442695
        %v2133 = vpow.pop %v2132
        %v2134 = vmul.f32 %v2109, 1.442695
        %v2135 = vpow.pop %v2134
        %v2136 = vmul.f32 %v2110, 1.442695
        %v2137 = vpow.pop %v2136
        %v2138 = vmul.f32 %v2111, 1.442695
        %v2139 = vpow.pop %v2138
        %v2140 = vmul.f32 %v2112, 1.442695
        %v2141 = vpow.pop %v2140
        %v2142 = vmul.f32 %v2113, 1.442695
        %v2143 = vpow.pop %v2142
        %v2144 = vmul.f32 %v2114, 1.442695
        %v2145 = vpow.pop %v2144
        %v2146 = vmul.f32 %v2115, 1.442695
        %v2147 = vpow.pop %v2146
        %2148 = vadd.xlane.f32.xlu0 %v2117
        %v2149 = vpop.xlane.xlu0 %2148
        %2150 = vadd.xlane.f32.xlu0 %v2119
        %v2151 = vpop.xlane.xlu0 %2150
        %2152 = vadd.xlane.f32.xlu0 %v2121
        %v2153 = vpop.xlane.xlu0 %2152
        %2154 = vadd.xlane.f32.xlu0 %v2123
        %v2155 = vpop.xlane.xlu0 %2154
        %2156 = vadd.xlane.f32.xlu0 %v2125
        %v2157 = vpop.xlane.xlu0 %2156
        %2158 = vadd.xlane.f32.xlu0 %v2127
        %v2159 = vpop.xlane.xlu0 %2158
        %2160 = vadd.xlane.f32.xlu0 %v2129
        %v2161 = vpop.xlane.xlu0 %2160
        %2162 = vadd.xlane.f32.xlu0 %v2131
        %v2163 = vpop.xlane.xlu0 %2162
        %2164 = vadd.xlane.f32.xlu0 %v2133
        %v2165 = vpop.xlane.xlu0 %2164
        %2166 = vadd.xlane.f32.xlu0 %v2135
        %v2167 = vpop.xlane.xlu0 %2166
        %2168 = vadd.xlane.f32.xlu0 %v2137
        %v2169 = vpop.xlane.xlu0 %2168
        %2170 = vadd.xlane.f32.xlu0 %v2139
        %v2171 = vpop.xlane.xlu0 %2170
        %2172 = vadd.xlane.f32.xlu0 %v2141
        %v2173 = vpop.xlane.xlu0 %2172
        %2174 = vadd.xlane.f32.xlu0 %v2143
        %v2175 = vpop.xlane.xlu0 %2174
        %2176 = vadd.xlane.f32.xlu0 %v2145
        %v2177 = vpop.xlane.xlu0 %2176
        %2178 = vadd.xlane.f32.xlu0 %v2147
        %v2179 = vpop.xlane.xlu0 %2178
        %v2180 = vrcp.pop %v2149
        %v2181 = vrcp.pop %v2151
        %v2182 = vrcp.pop %v2153
        %v2183 = vrcp.pop %v2155
        %v2184 = vrcp.pop %v2157
        %v2185 = vrcp.pop %v2159
        %v2186 = vrcp.pop %v2161
        %v2187 = vrcp.pop %v2163
        %v2188 = vrcp.pop %v2165
        %v2189 = vrcp.pop %v2167
        %v2190 = vrcp.pop %v2169
        %v2191 = vrcp.pop %v2171
        %v2192 = vrcp.pop %v2173
        %v2193 = vrcp.pop %v2175
        %v2194 = vrcp.pop %v2177
        %v2195 = vrcp.pop %v2179
        %v2196 = vmul.f32 %v2117, %v2180
        %v2197 = vmul.f32 %v2119, %v2181
        %v2198 = vmul.f32 %v2121, %v2182
        %v2199 = vmul.f32 %v2123, %v2183
        %v2200 = vmul.f32 %v2125, %v2184
        %v2201 = vmul.f32 %v2127, %v2185
        %v2202 = vmul.f32 %v2129, %v2186
        %v2203 = vmul.f32 %v2131, %v2187
        %v2204 = vmul.f32 %v2133, %v2188
        %v2205 = vmul.f32 %v2135, %v2189
        %v2206 = vmul.f32 %v2137, %v2190
        %v2207 = vmul.f32 %v2139, %v2191
        %v2208 = vmul.f32 %v2141, %v2192
        %v2209 = vmul.f32 %v2143, %v2193
        %v2210 = vmul.f32 %v2145, %v2194
        %v2211 = vmul.f32 %v2147, %v2195
        %2212 = vmatprep.subr.mxu0 0.0
        %2213 = vmatpush1.msra.mxu0 %v1716
        %2214 = vmatprep.subr.mxu0 0.0
        %2215 = vmatpush1.msra.mxu0 %v1721
        %2216 = vmatprep.subr.mxu0 0.0
        %2217 = vmatpush1.msra.mxu0 %v1726
        %2218 = vmatprep.subr.mxu0 0.0
        %2219 = vmatpush1.msra.mxu0 %v1731
        %2220 = vmatprep.subr.mxu0 0.0
        %2221 = vmatpush1.msra.mxu0 %v1736
        %2222 = vmatprep.subr.mxu0 0.0
        %2223 = vmatpush1.msra.mxu0 %v1741
        %2224 = vmatprep.subr.mxu0 0.0
        %2225 = vmatpush1.msra.mxu0 %v1746
        %2226 = vmatprep.subr.mxu0 0.0
        %2227 = vmatpush1.msra.mxu0 %v1751
        %2228 = vmatprep.subr.mxu0 0.0
        %2229 = vmatpush1.msra.mxu0 %v1756
        %2230 = vmatprep.subr.mxu0 0.0
        %2231 = vmatpush1.msra.mxu0 %v1761
        %2232 = vmatprep.subr.mxu0 0.0
        %2233 = vmatpush1.msra.mxu0 %v1766
        %2234 = vmatprep.subr.mxu0 0.0
        %2235 = vmatpush1.msra.mxu0 %v1771
        %2236 = vmatprep.subr.mxu0 0.0
        %2237 = vmatpush1.msra.mxu0 %v1776
        %2238 = vmatprep.subr.mxu0 0.0
        %2239 = vmatpush1.msra.mxu0 %v1781
        %2240 = vmatprep.subr.mxu0 0.0
        %2241 = vmatpush1.msra.mxu0 %v1786
        %2242 = vmatprep.subr.mxu0 0.0
        %2243 = vmatpush1.msra.mxu0 %v1791
        %2244 = vmatprep.subr.mxu0 0.0
        %2245 = vmatpush1.msra.mxu0 0.0
        %2246 = vmatprep.subr.mxu0 0.0
        %2247 = vmatpush1.msra.mxu0 0.0
        %2248 = vmatprep.subr.mxu0 0.0
        %2249 = vmatpush1.msra.mxu0 0.0
        %2250 = vmatprep.subr.mxu0 0.0
        %2251 = vmatpush1.msra.mxu0 0.0
        %2252 = vmatprep.subr.mxu0 0.0
        %2253 = vmatpush1.msra.mxu0 0.0
        %2254 = vmatprep.subr.mxu0 0.0
        %2255 = vmatpush1.msra.mxu0 0.0
        %2256 = vmatprep.subr.mxu0 0.0
        %2257 = vmatpush1.msra.mxu0 0.0
        %2258 = vmatprep.subr.mxu0 0.0
        %2259 = vmatpush1.msra.mxu0 0.0
        %2260 = vmatprep.subr.mxu0 0.0
        %2261 = vmatpush1.msra.mxu0 0.0
        %2262 = vmatprep.subr.mxu0 0.0
        %2263 = vmatpush1.msra.mxu0 0.0
        %2264 = vmatprep.subr.mxu0 0.0
        %2265 = vmatpush1.msra.mxu0 0.0
        %2266 = vmatprep.subr.mxu0 0.0
        %2267 = vmatpush1.msra.mxu0 0.0
        %2268 = vmatprep.subr.mxu0 0.0
        %2269 = vmatpush1.msra.mxu0 0.0
        %2270 = vmatprep.subr.mxu0 0.0
        %2271 = vmatpush1.msra.mxu0 0.0
        %2272 = vmatprep.subr.mxu0 0.0
        %2273 = vmatpush1.msra.mxu0 0.0
        %2274 = vmatprep.subr.mxu0 0.0
        %2275 = vmatpush1.msra.mxu0 0.0
        %2276 = vmatprep.mubr.f32.mxu0 0.0
        %2277 = vmatmul.mubr.f32.gmra.mrb[0].mxu0 %v2196
        %v2278 = vpop.f32.mrb[0].mxu0
        %v2279 = vadd.f32 0.0, %v2278
        %v2280 = vpop.f32.mrb[0].mxu0
        %2281 = vmatprep.mubr.f32.mxu0 0.0
        %2282 = vmatmul.mubr.f32.gmra.mrb[0].mxu0 %v2197
        %v2283 = vpop.f32.mrb[0].mxu0
        %v2284 = vadd.f32 0.0, %v2283
        %v2285 = vpop.f32.mrb[0].mxu0
        %2286 = vmatprep.mubr.f32.mxu0 0.0
        %2287 = vmatmul.mubr.f32.gmra.mrb[0].mxu0 %v2198
        %v2288 = vpop.f32.mrb[0].mxu0
        %v2289 = vadd.f32 0.0, %v2288
        %v2290 = vpop.f32.mrb[0].mxu0
        %2291 = vmatprep.mubr.f32.mxu0 0.0
        %2292 = vmatmul.mubr.f32.gmra.mrb[0].mxu0 %v2199
        %v2293 = vpop.f32.mrb[0].mxu0
        %v2294 = vadd.f32 0.0, %v2293
        %v2295 = vpop.f32.mrb[0].mxu0
        %2296 = vmatprep.mubr.f32.mxu0 0.0
        %2297 = vmatmul.mubr.f32.gmra.mrb[0].mxu0 %v2200
        %v2298 = vpop.f32.mrb[0].mxu0
        %v2299 = vadd.f32 0.0, %v2298
        %v2300 = vpop.f32.mrb[0].mxu0
        %2301 = vmatprep.mubr.f32.mxu0 0.0
        %2302 = vmatmul.mubr.f32.gmra.mrb[0].mxu0 %v2201
        %v2303 = vpop.f32.mrb[0].mxu0
        %v2304 = vadd.f32 0.0, %v2303
        %v2305 = vpop.f32.mrb[0].mxu0
        %2306 = vmatprep.mubr.f32.mxu0 0.0
        %2307 = vmatmul.mubr.f32.gmra.mrb[0].mxu0 %v2202
        %v2308 = vpop.f32.mrb[0].mxu0
        %v2309 = vadd.f32 0.0, %v2308
        %v2310 = vpop.f32.mrb[0].mxu0
        %2311 = vmatprep.mubr.f32.mxu0 0.0
        %2312 = vmatmul.mubr.f32.gmra.mrb[0].mxu0 %v2203
        %v2313 = vpop.f32.mrb[0].mxu0
        %v2314 = vadd.f32 0.0, %v2313
        %v2315 = vpop.f32.mrb[0].mxu0
        %2316 = vmatprep.mubr.f32.mxu0 0.0
        %2317 = vmatmul.mubr.f32.gmra.mrb[0].mxu0 %v2204
        %v2318 = vpop.f32.mrb[0].mxu0
        %v2319 = vadd.f32 0.0, %v2318
        %v2320 = vpop.f32.mrb[0].mxu0
        %2321 = vmatprep.mubr.f32.mxu0 0.0
        %2322 = vmatmul.mubr.f32.gmra.mrb[0].mxu0 %v2205
        %v2323 = vpop.f32.mrb[0].mxu0
        %v2324 = vadd.f32 0.0, %v2323
        %v2325 = vpop.f32.mrb[0].mxu0
        %2326 = vmatprep.mubr.f32.mxu0 0.0
        %2327 = vmatmul.mubr.f32.gmra.mrb[0].mxu0 %v2206
        %v2328 = vpop.f32.mrb[0].mxu0
        %v2329 = vadd.f32 0.0, %v2328
        %v2330 = vpop.f32.mrb[0].mxu0
        %2331 = vmatprep.mubr.f32.mxu0 0.0
        %2332 = vmatmul.mubr.f32.gmra.mrb[0].mxu0 %v2207
        %v2333 = vpop.f32.mrb[0].mxu0
        %v2334 = vadd.f32 0.0, %v2333
        %v2335 = vpop.f32.mrb[0].mxu0
        %2336 = vmatprep.mubr.f32.mxu0 0.0
        %2337 = vmatmul.mubr.f32.gmra.mrb[0].mxu0 %v2208
        %v2338 = vpop.f32.mrb[0].mxu0
        %v2339 = vadd.f32 0.0, %v2338
        %v2340 = vpop.f32.mrb[0].mxu0
        %2341 = vmatprep.mubr.f32.mxu0 0.0
        %2342 = vmatmul.mubr.f32.gmra.mrb[0].mxu0 %v2209
        %v2343 = vpop.f32.mrb[0].mxu0
        %v2344 = vadd.f32 0.0, %v2343
        %v2345 = vpop.f32.mrb[0].mxu0
        %2346 = vmatprep.mubr.f32.mxu0 0.0
        %2347 = vmatmul.mubr.f32.gmra.mrb[0].mxu0 %v2210
        %v2348 = vpop.f32.mrb[0].mxu0
        %v2349 = vadd.f32 0.0, %v2348
        %v2350 = vpop.f32.mrb[0].mxu0
        %2351 = vmatprep.mubr.f32.mxu0 0.0
        %2352 = vmatmul.mubr.f32.gmra.mrb[0].mxu0 %v2211
        %v2353 = vpop.f32.mrb[0].mxu0
        %v2354 = vadd.f32 0.0, %v2353
        %v2355 = vpop.f32.mrb[0].mxu0
        %2356 = vdwg.mxu0
        %2357 = vrot.lane.b32.xlu0 %v1418, 112
        %v2358 = vpop.permute.xlu0 %2357
        %2359 = vrot.lane.b32.xlu0 %v1423, 112
        %v2360 = vpop.permute.xlu0 %2359
        %2361 = vrot.lane.b32.xlu0 %v1428, 112
        %v2362 = vpop.permute.xlu0 %2361
        %2363 = vrot.lane.b32.xlu0 %v1433, 112
        %v2364 = vpop.permute.xlu0 %2363
        %2365 = vrot.lane.b32.xlu0 %v1438, 112
        %v2366 = vpop.permute.xlu0 %2365
        %2367 = vrot.lane.b32.xlu0 %v1443, 112
        %v2368 = vpop.permute.xlu0 %2367
        %2369 = vrot.lane.b32.xlu0 %v1448, 112
        %v2370 = vpop.permute.xlu0 %2369
        %2371 = vrot.lane.b32.xlu0 %v1453, 112
        %v2372 = vpop.permute.xlu0 %2371
        %2373 = vrot.lane.b32.xlu0 %v1458, 112
        %v2374 = vpop.permute.xlu0 %2373
        %2375 = vrot.lane.b32.xlu0 %v1463, 112
        %v2376 = vpop.permute.xlu0 %2375
        %2377 = vrot.lane.b32.xlu0 %v1468, 112
        %v2378 = vpop.permute.xlu0 %2377
        %2379 = vrot.lane.b32.xlu0 %v1473, 112
        %v2380 = vpop.permute.xlu0 %2379
        %2381 = vrot.lane.b32.xlu0 %v1478, 112
        %v2382 = vpop.permute.xlu0 %2381
        %2383 = vrot.lane.b32.xlu0 %v1483, 112
        %v2384 = vpop.permute.xlu0 %2383
        %2385 = vrot.lane.b32.xlu0 %v1488, 112
        %v2386 = vpop.permute.xlu0 %2385
        %2387 = vrot.lane.b32.xlu0 %v1493, 112
        %v2388 = vpop.permute.xlu0 %2387
        %2389 = vrot.lane.b32.xlu0 %v1567, 112
        %v2390 = vpop.permute.xlu0 %2389
        %2391 = vrot.lane.b32.xlu0 %v1572, 112
        %v2392 = vpop.permute.xlu0 %2391
        %2393 = vrot.lane.b32.xlu0 %v1577, 112
        %v2394 = vpop.permute.xlu0 %2393
        %2395 = vrot.lane.b32.xlu0 %v1582, 112
        %v2396 = vpop.permute.xlu0 %2395
        %2397 = vrot.lane.b32.xlu0 %v1587, 112
        %v2398 = vpop.permute.xlu0 %2397
        %2399 = vrot.lane.b32.xlu0 %v1592, 112
        %v2400 = vpop.permute.xlu0 %2399
        %2401 = vrot.lane.b32.xlu0 %v1597, 112
        %v2402 = vpop.permute.xlu0 %2401
        %2403 = vrot.lane.b32.xlu0 %v1602, 112
        %v2404 = vpop.permute.xlu0 %2403
        %2405 = vrot.lane.b32.xlu0 %v1607, 112
        %v2406 = vpop.permute.xlu0 %2405
        %2407 = vrot.lane.b32.xlu0 %v1612, 112
        %v2408 = vpop.permute.xlu0 %2407
        %2409 = vrot.lane.b32.xlu0 %v1617, 112
        %v2410 = vpop.permute.xlu0 %2409
        %2411 = vrot.lane.b32.xlu0 %v1622, 112
        %v2412 = vpop.permute.xlu0 %2411
        %2413 = vrot.lane.b32.xlu0 %v1627, 112
        %v2414 = vpop.permute.xlu0 %2413
        %2415 = vrot.lane.b32.xlu0 %v1632, 112
        %v2416 = vpop.permute.xlu0 %2415
        %2417 = vrot.lane.b32.xlu0 %v1637, 112
        %v2418 = vpop.permute.xlu0 %2417
        %2419 = vrot.lane.b32.xlu0 %v1642, 112
        %v2420 = vpop.permute.xlu0 %2419
        %v2421 = vsel %vm1794, %v2358, 0
        %v2423 = vsel %vm1794, %v2360, 0
        %v2425 = vsel %vm1794, %v2362, 0
        %v2427 = vsel %vm1794, %v2364, 0
        %v2429 = vsel %vm1794, %v2366, 0
        %v2431 = vsel %vm1794, %v2368, 0
        %v2433 = vsel %vm1794, %v2370, 0
        %v2435 = vsel %vm1794, %v2372, 0
        %v2437 = vsel %vm1794, %v2374, 0
        %v2439 = vsel %vm1794, %v2376, 0
        %v2441 = vsel %vm1794, %v2378, 0
        %v2443 = vsel %vm1794, %v2380, 0
        %v2445 = vsel %vm1794, %v2382, 0
        %v2447 = vsel %vm1794, %v2384, 0
        %v2449 = vsel %vm1794, %v2386, 0
        %v2451 = vsel %vm1794, %v2388, 0
        %v2453 = vsel %vm1794, %v2390, 0
        %v2455 = vsel %vm1794, %v2392, 0
        %v2457 = vsel %vm1794, %v2394, 0
        %v2459 = vsel %vm1794, %v2396, 0
        %v2461 = vsel %vm1794, %v2398, 0
        %v2463 = vsel %vm1794, %v2400, 0
        %v2465 = vsel %vm1794, %v2402, 0
        %v2467 = vsel %vm1794, %v2404, 0
        %v2469 = vsel %vm1794, %v2406, 0
        %v2471 = vsel %vm1794, %v2408, 0
        %v2473 = vsel %vm1794, %v2410, 0
        %v2475 = vsel %vm1794, %v2412, 0
        %v2477 = vsel %vm1794, %v2414, 0
        %v2479 = vsel %vm1794, %v2416, 0
        %v2481 = vsel %vm1794, %v2418, 0
        %v2483 = vsel %vm1794, %v2420, 0
        %2485 = vmatprep.subr.mxu0 0.0
        %2486 = vmatpush1.xpose.msra.mxu0 %v2453
        %2487 = vmatprep.subr.mxu0 0.0
        %2488 = vmatpush1.xpose.msra.mxu0 %v2455
        %2489 = vmatprep.subr.mxu0 0.0
        %2490 = vmatpush1.xpose.msra.mxu0 %v2457
        %2491 = vmatprep.subr.mxu0 0.0
        %2492 = vmatpush1.xpose.msra.mxu0 %v2459
        %2493 = vmatprep.subr.mxu0 0.0
        %2494 = vmatpush1.xpose.msra.mxu0 %v2461
        %2495 = vmatprep.subr.mxu0 0.0
        %2496 = vmatpush1.xpose.msra.mxu0 %v2463
        %2497 = vmatprep.subr.mxu0 0.0
        %2498 = vmatpush1.xpose.msra.mxu0 %v2465
        %2499 = vmatprep.subr.mxu0 0.0
        %2500 = vmatpush1.xpose.msra.mxu0 %v2467
        %2501 = vmatprep.subr.mxu0 0.0
        %2502 = vmatpush1.xpose.msra.mxu0 %v2469
        %2503 = vmatprep.subr.mxu0 0.0
        %2504 = vmatpush1.xpose.msra.mxu0 %v2471
        %2505 = vmatprep.subr.mxu0 0.0
        %2506 = vmatpush1.xpose.msra.mxu0 %v2473
        %2507 = vmatprep.subr.mxu0 0.0
        %2508 = vmatpush1.xpose.msra.mxu0 %v2475
        %2509 = vmatprep.subr.mxu0 0.0
        %2510 = vmatpush1.xpose.msra.mxu0 %v2477
        %2511 = vmatprep.subr.mxu0 0.0
        %2512 = vmatpush1.xpose.msra.mxu0 %v2479
        %2513 = vmatprep.subr.mxu0 0.0
        %2514 = vmatpush1.xpose.msra.mxu0 %v2481
        %2515 = vmatprep.subr.mxu0 0.0
        %2516 = vmatpush1.xpose.msra.mxu0 %v2483
        %2517 = vmatprep.subr.mxu0 0.0
        %2518 = vmatpush1.xpose.msra.mxu0 0.0
        %2519 = vmatprep.subr.mxu0 0.0
        %2520 = vmatpush1.xpose.msra.mxu0 0.0
        %2521 = vmatprep.subr.mxu0 0.0
        %2522 = vmatpush1.xpose.msra.mxu0 0.0
        %2523 = vmatprep.subr.mxu0 0.0
        %2524 = vmatpush1.xpose.msra.mxu0 0.0
        %2525 = vmatprep.subr.mxu0 0.0
        %2526 = vmatpush1.xpose.msra.mxu0 0.0
        %2527 = vmatprep.subr.mxu0 0.0
        %2528 = vmatpush1.xpose.msra.mxu0 0.0
        %2529 = vmatprep.subr.mxu0 0.0
        %2530 = vmatpush1.xpose.msra.mxu0 0.0
        %2531 = vmatprep.subr.mxu0 0.0
        %2532 = vmatpush1.xpose.msra.mxu0 0.0
        %2533 = vmatprep.subr.mxu0 0.0
        %2534 = vmatpush1.xpose.msra.mxu0 0.0
        %2535 = vmatprep.subr.mxu0 0.0
        %2536 = vmatpush1.xpose.msra.mxu0 0.0
        %2537 = vmatprep.subr.mxu0 0.0
        %2538 = vmatpush1.xpose.msra.mxu0 0.0
        %2539 = vmatprep.subr.mxu0 0.0
        %2540 = vmatpush1.xpose.msra.mxu0 0.0
        %2541 = vmatprep.subr.mxu0 0.0
        %2542 = vmatpush1.xpose.msra.mxu0 0.0
        %2543 = vmatprep.subr.mxu0 0.0
        %2544 = vmatpush1.xpose.msra.mxu0 0.0
        %2545 = vmatprep.subr.mxu0 0.0
        %2546 = vmatpush1.xpose.msra.mxu0 0.0
        %2547 = vmatprep.subr.mxu0 0.0
        %2548 = vmatpush1.xpose.msra.mxu0 0.0
        %2549 = vmatprep.mubr.f32.mxu0 0.0
        %2550 = vmatmul.mubr.f32.gmra.mrb[0].mxu0 %v2421
        %v2551 = vpop.f32.mrb[0].mxu0
        %v2552 = vadd.f32 0.0, %v2551
        %v2553 = vpop.f32.mrb[0].mxu0
        %2554 = vmatprep.mubr.f32.mxu0 0.0
        %2555 = vmatmul.mubr.f32.gmra.mrb[0].mxu0 %v2423
        %v2556 = vpop.f32.mrb[0].mxu0
        %v2557 = vadd.f32 0.0, %v2556
        %v2558 = vpop.f32.mrb[0].mxu0
        %2559 = vmatprep.mubr.f32.mxu0 0.0
        %2560 = vmatmul.mubr.f32.gmra.mrb[0].mxu0 %v2425
        %v2561 = vpop.f32.mrb[0].mxu0
        %v2562 = vadd.f32 0.0, %v2561
        %v2563 = vpop.f32.mrb[0].mxu0
        %2564 = vmatprep.mubr.f32.mxu0 0.0
        %2565 = vmatmul.mubr.f32.gmra.mrb[0].mxu0 %v2427
        %v2566 = vpop.f32.mrb[0].mxu0
        %v2567 = vadd.f32 0.0, %v2566
        %v2568 = vpop.f32.mrb[0].mxu0
        %2569 = vmatprep.mubr.f32.mxu0 0.0
        %2570 = vmatmul.mubr.f32.gmra.mrb[0].mxu0 %v2429
        %v2571 = vpop.f32.mrb[0].mxu0
        %v2572 = vadd.f32 0.0, %v2571
        %v2573 = vpop.f32.mrb[0].mxu0
        %2574 = vmatprep.mubr.f32.mxu0 0.0
        %2575 = vmatmul.mubr.f32.gmra.mrb[0].mxu0 %v2431
        %v2576 = vpop.f32.mrb[0].mxu0
        %v2577 = vadd.f32 0.0, %v2576
        %v2578 = vpop.f32.mrb[0].mxu0
        %2579 = vmatprep.mubr.f32.mxu0 0.0
        %2580 = vmatmul.mubr.f32.gmra.mrb[0].mxu0 %v2433
        %v2581 = vpop.f32.mrb[0].mxu0
        %v2582 = vadd.f32 0.0, %v2581
        %v2583 = vpop.f32.mrb[0].mxu0
        %2584 = vmatprep.mubr.f32.mxu0 0.0
        %2585 = vmatmul.mubr.f32.gmra.mrb[0].mxu0 %v2435
        %v2586 = vpop.f32.mrb[0].mxu0
        %v2587 = vadd.f32 0.0, %v2586
        %v2588 = vpop.f32.mrb[0].mxu0
        %2589 = vmatprep.mubr.f32.mxu0 0.0
        %2590 = vmatmul.mubr.f32.gmra.mrb[0].mxu0 %v2437
        %v2591 = vpop.f32.mrb[0].mxu0
        %v2592 = vadd.f32 0.0, %v2591
        %v2593 = vpop.f32.mrb[0].mxu0
        %2594 = vmatprep.mubr.f32.mxu0 0.0
        %2595 = vmatmul.mubr.f32.gmra.mrb[0].mxu0 %v2439
        %v2596 = vpop.f32.mrb[0].mxu0
        %v2597 = vadd.f32 0.0, %v2596
        %v2598 = vpop.f32.mrb[0].mxu0
        %2599 = vmatprep.mubr.f32.mxu0 0.0
        %2600 = vmatmul.mubr.f32.gmra.mrb[0].mxu0 %v2441
        %v2601 = vpop.f32.mrb[0].mxu0
        %v2602 = vadd.f32 0.0, %v2601
        %v2603 = vpop.f32.mrb[0].mxu0
        %2604 = vmatprep.mubr.f32.mxu0 0.0
        %2605 = vmatmul.mubr.f32.gmra.mrb[0].mxu0 %v2443
        %v2606 = vpop.f32.mrb[0].mxu0
        %v2607 = vadd.f32 0.0, %v2606
        %v2608 = vpop.f32.mrb[0].mxu0
        %2609 = vmatprep.mubr.f32.mxu0 0.0
        %2610 = vmatmul.mubr.f32.gmra.mrb[0].mxu0 %v2445
        %v2611 = vpop.f32.mrb[0].mxu0
        %v2612 = vadd.f32 0.0, %v2611
        %v2613 = vpop.f32.mrb[0].mxu0
        %2614 = vmatprep.mubr.f32.mxu0 0.0
        %2615 = vmatmul.mubr.f32.gmra.mrb[0].mxu0 %v2447
        %v2616 = vpop.f32.mrb[0].mxu0
        %v2617 = vadd.f32 0.0, %v2616
        %v2618 = vpop.f32.mrb[0].mxu0
        %2619 = vmatprep.mubr.f32.mxu0 0.0
        %2620 = vmatmul.mubr.f32.gmra.mrb[0].mxu0 %v2449
        %v2621 = vpop.f32.mrb[0].mxu0
        %v2622 = vadd.f32 0.0, %v2621
        %v2623 = vpop.f32.mrb[0].mxu0
        %2624 = vmatprep.mubr.f32.mxu0 0.0
        %2625 = vmatmul.mubr.f32.gmra.mrb[0].mxu0 %v2451
        %v2626 = vpop.f32.mrb[0].mxu0
        %v2627 = vadd.f32 0.0, %v2626
        %v2628 = vpop.f32.mrb[0].mxu0
        %2629 = vdwg.mxu0
        %v2630 = vmul.f32 %v2552, 0.25
        %v2631 = vmul.f32 %v2557, 0.25
        %v2632 = vmul.f32 %v2562, 0.25
        %v2633 = vmul.f32 %v2567, 0.25
        %v2634 = vmul.f32 %v2572, 0.25
        %v2635 = vmul.f32 %v2577, 0.25
        %v2636 = vmul.f32 %v2582, 0.25
        %v2637 = vmul.f32 %v2587, 0.25
        %v2638 = vmul.f32 %v2592, 0.25
        %v2639 = vmul.f32 %v2597, 0.25
        %v2640 = vmul.f32 %v2602, 0.25
        %v2641 = vmul.f32 %v2607, 0.25
        %v2642 = vmul.f32 %v2612, 0.25
        %v2643 = vmul.f32 %v2617, 0.25
        %v2644 = vmul.f32 %v2622, 0.25
        %v2645 = vmul.f32 %v2627, 0.25
        %v2646 = vadd.f32 %v2630, %v392
        %v2647 = vadd.f32 %v2631, %v393
        %v2648 = vadd.f32 %v2632, %v394
        %v2649 = vadd.f32 %v2633, %v395
        %v2650 = vadd.f32 %v2634, %v396
        %v2651 = vadd.f32 %v2635, %v397
        %v2652 = vadd.f32 %v2636, %v398
        %v2653 = vadd.f32 %v2637, %v399
        %v2654 = vadd.f32 %v2638, %v400
        %v2655 = vadd.f32 %v2639, %v401
        %v2656 = vadd.f32 %v2640, %v402
        %v2657 = vadd.f32 %v2641, %v403
        %v2658 = vadd.f32 %v2642, %v404
        %v2659 = vadd.f32 %v2643, %v405
        %v2660 = vadd.f32 %v2644, %v406
        %v2661 = vadd.f32 %v2645, %v407
        %2662 = vmax.xlane.f32.xlu0 %v2646
        %v2663 = vpop.xlane.xlu0 %2662
        %2664 = vmax.xlane.f32.xlu0 %v2647
        %v2665 = vpop.xlane.xlu0 %2664
        %2666 = vmax.xlane.f32.xlu0 %v2648
        %v2667 = vpop.xlane.xlu0 %2666
        %2668 = vmax.xlane.f32.xlu0 %v2649
        %v2669 = vpop.xlane.xlu0 %2668
        %2670 = vmax.xlane.f32.xlu0 %v2650
        %v2671 = vpop.xlane.xlu0 %2670
        %2672 = vmax.xlane.f32.xlu0 %v2651
        %v2673 = vpop.xlane.xlu0 %2672
        %2674 = vmax.xlane.f32.xlu0 %v2652
        %v2675 = vpop.xlane.xlu0 %2674
        %2676 = vmax.xlane.f32.xlu0 %v2653
        %v2677 = vpop.xlane.xlu0 %2676
        %2678 = vmax.xlane.f32.xlu0 %v2654
        %v2679 = vpop.xlane.xlu0 %2678
        %2680 = vmax.xlane.f32.xlu0 %v2655
        %v2681 = vpop.xlane.xlu0 %2680
        %2682 = vmax.xlane.f32.xlu0 %v2656
        %v2683 = vpop.xlane.xlu0 %2682
        %2684 = vmax.xlane.f32.xlu0 %v2657
        %v2685 = vpop.xlane.xlu0 %2684
        %2686 = vmax.xlane.f32.xlu0 %v2658
        %v2687 = vpop.xlane.xlu0 %2686
        %2688 = vmax.xlane.f32.xlu0 %v2659
        %v2689 = vpop.xlane.xlu0 %2688
        %2690 = vmax.xlane.f32.xlu0 %v2660
        %v2691 = vpop.xlane.xlu0 %2690
        %2692 = vmax.xlane.f32.xlu0 %v2661
        %v2693 = vpop.xlane.xlu0 %2692
        %v2694 = vsub.f32 %v2646, %v2663
        %v2695 = vsub.f32 %v2647, %v2665
        %v2696 = vsub.f32 %v2648, %v2667
        %v2697 = vsub.f32 %v2649, %v2669
        %v2698 = vsub.f32 %v2650, %v2671
        %v2699 = vsub.f32 %v2651, %v2673
        %v2700 = vsub.f32 %v2652, %v2675
        %v2701 = vsub.f32 %v2653, %v2677
        %v2702 = vsub.f32 %v2654, %v2679
        %v2703 = vsub.f32 %v2655, %v2681
        %v2704 = vsub.f32 %v2656, %v2683
        %v2705 = vsub.f32 %v2657, %v2685
        %v2706 = vsub.f32 %v2658, %v2687
        %v2707 = vsub.f32 %v2659, %v2689
        %v2708 = vsub.f32 %v2660, %v2691
        %v2709 = vsub.f32 %v2661, %v2693
        %v2710 = vmul.f32 %v2694, 1.442695
        %v2711 = vpow.pop %v2710
        %v2712 = vmul.f32 %v2695, 1.442695
        %v2713 = vpow.pop %v2712
        %v2714 = vmul.f32 %v2696, 1.442695
        %v2715 = vpow.pop %v2714
        %v2716 = vmul.f32 %v2697, 1.442695
        %v2717 = vpow.pop %v2716
        %v2718 = vmul.f32 %v2698, 1.442695
        %v2719 = vpow.pop %v2718
        %v2720 = vmul.f32 %v2699, 1.442695
        %v2721 = vpow.pop %v2720
        %v2722 = vmul.f32 %v2700, 1.442695
        %v2723 = vpow.pop %v2722
        %v2724 = vmul.f32 %v2701, 1.442695
        %v2725 = vpow.pop %v2724
        %v2726 = vmul.f32 %v2702, 1.442695
        %v2727 = vpow.pop %v2726
        %v2728 = vmul.f32 %v2703, 1.442695
        %v2729 = vpow.pop %v2728
        %v2730 = vmul.f32 %v2704, 1.442695
        %v2731 = vpow.pop %v2730
        %v2732 = vmul.f32 %v2705, 1.442695
        %v2733 = vpow.pop %v2732
        %v2734 = vmul.f32 %v2706, 1.442695
        %v2735 = vpow.pop %v2734
        %v2736 = vmul.f32 %v2707, 1.442695
        %v2737 = vpow.pop %v2736
        %v2738 = vmul.f32 %v2708, 1.442695
        %v2739 = vpow.pop %v2738
        %v2740 = vmul.f32 %v2709, 1.442695
        %v2741 = vpow.pop %v2740
        %2742 = vadd.xlane.f32.xlu0 %v2711
        %v2743 = vpop.xlane.xlu0 %2742
        %2744 = vadd.xlane.f32.xlu0 %v2713
        %v2745 = vpop.xlane.xlu0 %2744
        %2746 = vadd.xlane.f32.xlu0 %v2715
        %v2747 = vpop.xlane.xlu0 %2746
        %2748 = vadd.xlane.f32.xlu0 %v2717
        %v2749 = vpop.xlane.xlu0 %2748
        %2750 = vadd.xlane.f32.xlu0 %v2719
        %v2751 = vpop.xlane.xlu0 %2750
        %2752 = vadd.xlane.f32.xlu0 %v2721
        %v2753 = vpop.xlane.xlu0 %2752
        %2754 = vadd.xlane.f32.xlu0 %v2723
        %v2755 = vpop.xlane.xlu0 %2754
        %2756 = vadd.xlane.f32.xlu0 %v2725
        %v2757 = vpop.xlane.xlu0 %2756
        %2758 = vadd.xlane.f32.xlu0 %v2727
        %v2759 = vpop.xlane.xlu0 %2758
        %2760 = vadd.xlane.f32.xlu0 %v2729
        %v2761 = vpop.xlane.xlu0 %2760
        %2762 = vadd.xlane.f32.xlu0 %v2731
        %v2763 = vpop.xlane.xlu0 %2762
        %2764 = vadd.xlane.f32.xlu0 %v2733
        %v2765 = vpop.xlane.xlu0 %2764
        %2766 = vadd.xlane.f32.xlu0 %v2735
        %v2767 = vpop.xlane.xlu0 %2766
        %2768 = vadd.xlane.f32.xlu0 %v2737
        %v2769 = vpop.xlane.xlu0 %2768
        %2770 = vadd.xlane.f32.xlu0 %v2739
        %v2771 = vpop.xlane.xlu0 %2770
        %2772 = vadd.xlane.f32.xlu0 %v2741
        %v2773 = vpop.xlane.xlu0 %2772
        %v2774 = vrcp.pop %v2743
        %v2775 = vrcp.pop %v2745
        %v2776 = vrcp.pop %v2747
        %v2777 = vrcp.pop %v2749
        %v2778 = vrcp.pop %v2751
        %v2779 = vrcp.pop %v2753
        %v2780 = vrcp.pop %v2755
        %v2781 = vrcp.pop %v2757
        %v2782 = vrcp.pop %v2759
        %v2783 = vrcp.pop %v2761
        %v2784 = vrcp.pop %v2763
        %v2785 = vrcp.pop %v2765
        %v2786 = vrcp.pop %v2767
        %v2787 = vrcp.pop %v2769
        %v2788 = vrcp.pop %v2771
        %v2789 = vrcp.pop %v2773
        %v2790 = vmul.f32 %v2711, %v2774
        %v2791 = vmul.f32 %v2713, %v2775
        %v2792 = vmul.f32 %v2715, %v2776
        %v2793 = vmul.f32 %v2717, %v2777
        %v2794 = vmul.f32 %v2719, %v2778
        %v2795 = vmul.f32 %v2721, %v2779
        %v2796 = vmul.f32 %v2723, %v2780
        %v2797 = vmul.f32 %v2725, %v2781
        %v2798 = vmul.f32 %v2727, %v2782
        %v2799 = vmul.f32 %v2729, %v2783
        %v2800 = vmul.f32 %v2731, %v2784
        %v2801 = vmul.f32 %v2733, %v2785
        %v2802 = vmul.f32 %v2735, %v2786
        %v2803 = vmul.f32 %v2737, %v2787
        %v2804 = vmul.f32 %v2739, %v2788
        %v2805 = vmul.f32 %v2741, %v2789
        %2822 = vrot.lane.b32.xlu0 %v1716, 112
        %v2823 = vpop.permute.xlu0 %2822
        %2824 = vrot.lane.b32.xlu0 %v1721, 112
        %v2825 = vpop.permute.xlu0 %2824
        %2826 = vrot.lane.b32.xlu0 %v1726, 112
        %v2827 = vpop.permute.xlu0 %2826
        %2828 = vrot.lane.b32.xlu0 %v1731, 112
        %v2829 = vpop.permute.xlu0 %2828
        %2830 = vrot.lane.b32.xlu0 %v1736, 112
        %v2831 = vpop.permute.xlu0 %2830
        %2832 = vrot.lane.b32.xlu0 %v1741, 112
        %v2833 = vpop.permute.xlu0 %2832
        %2834 = vrot.lane.b32.xlu0 %v1746, 112
        %v2835 = vpop.permute.xlu0 %2834
        %2836 = vrot.lane.b32.xlu0 %v1751, 112
        %v2837 = vpop.permute.xlu0 %2836
        %2838 = vrot.lane.b32.xlu0 %v1756, 112
        %v2839 = vpop.permute.xlu0 %2838
        %2840 = vrot.lane.b32.xlu0 %v1761, 112
        %v2841 = vpop.permute.xlu0 %2840
        %2842 = vrot.lane.b32.xlu0 %v1766, 112
        %v2843 = vpop.permute.xlu0 %2842
        %2844 = vrot.lane.b32.xlu0 %v1771, 112
        %v2845 = vpop.permute.xlu0 %2844
        %2846 = vrot.lane.b32.xlu0 %v1776, 112
        %v2847 = vpop.permute.xlu0 %2846
        %2848 = vrot.lane.b32.xlu0 %v1781, 112
        %v2849 = vpop.permute.xlu0 %2848
        %2850 = vrot.lane.b32.xlu0 %v1786, 112
        %v2851 = vpop.permute.xlu0 %2850
        %2852 = vrot.lane.b32.xlu0 %v1791, 112
        %v2853 = vpop.permute.xlu0 %2852
        %2870 = vmatprep.subr.mxu0 0.0
        %2871 = vmatpush1.msra.mxu0 %v2823
        %2872 = vmatprep.subr.mxu0 0.0
        %2873 = vmatpush1.msra.mxu0 %v2825
        %2874 = vmatprep.subr.mxu0 0.0
        %2875 = vmatpush1.msra.mxu0 %v2827
        %2876 = vmatprep.subr.mxu0 0.0
        %2877 = vmatpush1.msra.mxu0 %v2829
        %2878 = vmatprep.subr.mxu0 0.0
        %2879 = vmatpush1.msra.mxu0 %v2831
        %2880 = vmatprep.subr.mxu0 0.0
        %2881 = vmatpush1.msra.mxu0 %v2833
        %2882 = vmatprep.subr.mxu0 0.0
        %2883 = vmatpush1.msra.mxu0 %v2835
        %2884 = vmatprep.subr.mxu0 0.0
        %2885 = vmatpush1.msra.mxu0 %v2837
        %2886 = vmatprep.subr.mxu0 0.0
        %2887 = vmatpush1.msra.mxu0 %v2839
        %2888 = vmatprep.subr.mxu0 0.0
        %2889 = vmatpush1.msra.mxu0 %v2841
        %2890 = vmatprep.subr.mxu0 0.0
        %2891 = vmatpush1.msra.mxu0 %v2843
        %2892 = vmatprep.subr.mxu0 0.0
        %2893 = vmatpush1.msra.mxu0 %v2845
        %2894 = vmatprep.subr.mxu0 0.0
        %2895 = vmatpush1.msra.mxu0 %v2847
        %2896 = vmatprep.subr.mxu0 0.0
        %2897 = vmatpush1.msra.mxu0 %v2849
        %2898 = vmatprep.subr.mxu0 0.0
        %2899 = vmatpush1.msra.mxu0 %v2851
        %2900 = vmatprep.subr.mxu0 0.0
        %2901 = vmatpush1.msra.mxu0 %v2853
        %2902 = vmatprep.subr.mxu0 0.0
        %2903 = vmatpush1.msra.mxu0 0.0
        %2904 = vmatprep.subr.mxu0 0.0
        %2905 = vmatpush1.msra.mxu0 0.0
        %2906 = vmatprep.subr.mxu0 0.0
        %2907 = vmatpush1.msra.mxu0 0.0
        %2908 = vmatprep.subr.mxu0 0.0
        %2909 = vmatpush1.msra.mxu0 0.0
        %2910 = vmatprep.subr.mxu0 0.0
        %2911 = vmatpush1.msra.mxu0 0.0
        %2912 = vmatprep.subr.mxu0 0.0
        %2913 = vmatpush1.msra.mxu0 0.0
        %2914 = vmatprep.subr.mxu0 0.0
        %2915 = vmatpush1.msra.mxu0 0.0
        %2916 = vmatprep.subr.mxu0 0.0
        %2917 = vmatpush1.msra.mxu0 0.0
        %2918 = vmatprep.subr.mxu0 0.0
        %2919 = vmatpush1.msra.mxu0 0.0
        %2920 = vmatprep.subr.mxu0 0.0
        %2921 = vmatpush1.msra.mxu0 0.0
        %2922 = vmatprep.subr.mxu0 0.0
        %2923 = vmatpush1.msra.mxu0 0.0
        %2924 = vmatprep.subr.mxu0 0.0
        %2925 = vmatpush1.msra.mxu0 0.0
        %2926 = vmatprep.subr.mxu0 0.0
        %2927 = vmatpush1.msra.mxu0 0.0
        %2928 = vmatprep.subr.mxu0 0.0
        %2929 = vmatpush1.msra.mxu0 0.0
        %2930 = vmatprep.subr.mxu0 0.0
        %2931 = vmatpush1.msra.mxu0 0.0
        %2932 = vmatprep.subr.mxu0 0.0
        %2933 = vmatpush1.msra.mxu0 0.0
        %2934 = vmatprep.mubr.f32.mxu0 0.0
        %2935 = vmatmul.mubr.f32.gmra.mrb[0].mxu0 %v2790
        %v2936 = vpop.f32.mrb[0].mxu0
        %v2937 = vadd.f32 0.0, %v2936
        %v2938 = vpop.f32.mrb[0].mxu0
        %2939 = vmatprep.mubr.f32.mxu0 0.0
        %2940 = vmatmul.mubr.f32.gmra.mrb[0].mxu0 %v2791
        %v2941 = vpop.f32.mrb[0].mxu0
        %v2942 = vadd.f32 0.0, %v2941
        %v2943 = vpop.f32.mrb[0].mxu0
        %2944 = vmatprep.mubr.f32.mxu0 0.0
        %2945 = vmatmul.mubr.f32.gmra.mrb[0].mxu0 %v2792
        %v2946 = vpop.f32.mrb[0].mxu0
        %v2947 = vadd.f32 0.0, %v2946
        %v2948 = vpop.f32.mrb[0].mxu0
        %2949 = vmatprep.mubr.f32.mxu0 0.0
        %2950 = vmatmul.mubr.f32.gmra.mrb[0].mxu0 %v2793
        %v2951 = vpop.f32.mrb[0].mxu0
        %v2952 = vadd.f32 0.0, %v2951
        %v2953 = vpop.f32.mrb[0].mxu0
        %2954 = vmatprep.mubr.f32.mxu0 0.0
        %2955 = vmatmul.mubr.f32.gmra.mrb[0].mxu0 %v2794
        %v2956 = vpop.f32.mrb[0].mxu0
        %v2957 = vadd.f32 0.0, %v2956
        %v2958 = vpop.f32.mrb[0].mxu0
        %2959 = vmatprep.mubr.f32.mxu0 0.0
        %2960 = vmatmul.mubr.f32.gmra.mrb[0].mxu0 %v2795
        %v2961 = vpop.f32.mrb[0].mxu0
        %v2962 = vadd.f32 0.0, %v2961
        %v2963 = vpop.f32.mrb[0].mxu0
        %2964 = vmatprep.mubr.f32.mxu0 0.0
        %2965 = vmatmul.mubr.f32.gmra.mrb[0].mxu0 %v2796
        %v2966 = vpop.f32.mrb[0].mxu0
        %v2967 = vadd.f32 0.0, %v2966
        %v2968 = vpop.f32.mrb[0].mxu0
        %2969 = vmatprep.mubr.f32.mxu0 0.0
        %2970 = vmatmul.mubr.f32.gmra.mrb[0].mxu0 %v2797
        %v2971 = vpop.f32.mrb[0].mxu0
        %v2972 = vadd.f32 0.0, %v2971
        %v2973 = vpop.f32.mrb[0].mxu0
        %2974 = vmatprep.mubr.f32.mxu0 0.0
        %2975 = vmatmul.mubr.f32.gmra.mrb[0].mxu0 %v2798
        %v2976 = vpop.f32.mrb[0].mxu0
        %v2977 = vadd.f32 0.0, %v2976
        %v2978 = vpop.f32.mrb[0].mxu0
        %2979 = vmatprep.mubr.f32.mxu0 0.0
        %2980 = vmatmul.mubr.f32.gmra.mrb[0].mxu0 %v2799
        %v2981 = vpop.f32.mrb[0].mxu0
        %v2982 = vadd.f32 0.0, %v2981
        %v2983 = vpop.f32.mrb[0].mxu0
        %2984 = vmatprep.mubr.f32.mxu0 0.0
        %2985 = vmatmul.mubr.f32.gmra.mrb[0].mxu0 %v2800
        %v2986 = vpop.f32.mrb[0].mxu0
        %v2987 = vadd.f32 0.0, %v2986
        %v2988 = vpop.f32.mrb[0].mxu0
        %2989 = vmatprep.mubr.f32.mxu0 0.0
        %2990 = vmatmul.mubr.f32.gmra.mrb[0].mxu0 %v2801
        %v2991 = vpop.f32.mrb[0].mxu0
        %v2992 = vadd.f32 0.0, %v2991
        %v2993 = vpop.f32.mrb[0].mxu0
        %2994 = vmatprep.mubr.f32.mxu0 0.0
        %2995 = vmatmul.mubr.f32.gmra.mrb[0].mxu0 %v2802
        %v2996 = vpop.f32.mrb[0].mxu0
        %v2997 = vadd.f32 0.0, %v2996
        %v2998 = vpop.f32.mrb[0].mxu0
        %2999 = vmatprep.mubr.f32.mxu0 0.0
        %3000 = vmatmul.mubr.f32.gmra.mrb[0].mxu0 %v2803
        %v3001 = vpop.f32.mrb[0].mxu0
        %v3002 = vadd.f32 0.0, %v3001
        %v3003 = vpop.f32.mrb[0].mxu0
        %3004 = vmatprep.mubr.f32.mxu0 0.0
        %3005 = vmatmul.mubr.f32.gmra.mrb[0].mxu0 %v2804
        %v3006 = vpop.f32.mrb[0].mxu0
        %v3007 = vadd.f32 0.0, %v3006
        %v3008 = vpop.f32.mrb[0].mxu0
        %3009 = vmatprep.mubr.f32.mxu0 0.0
        %3010 = vmatmul.mubr.f32.gmra.mrb[0].mxu0 %v2805
        %v3011 = vpop.f32.mrb[0].mxu0
        %v3012 = vadd.f32 0.0, %v3011
        %v3013 = vpop.f32.mrb[0].mxu0
        %3014 = vdwg.mxu0
        %3031 = vrot.lane.b32.xlu0 %v2937, 16
        %v3032 = vpop.permute.xlu0 %3031
        %3033 = vrot.lane.b32.xlu0 %v2942, 16
        %v3034 = vpop.permute.xlu0 %3033
        %3035 = vrot.lane.b32.xlu0 %v2947, 16
        %v3036 = vpop.permute.xlu0 %3035
        %3037 = vrot.lane.b32.xlu0 %v2952, 16
        %v3038 = vpop.permute.xlu0 %3037
        %3039 = vrot.lane.b32.xlu0 %v2957, 16
        %v3040 = vpop.permute.xlu0 %3039
        %3041 = vrot.lane.b32.xlu0 %v2962, 16
        %v3042 = vpop.permute.xlu0 %3041
        %3043 = vrot.lane.b32.xlu0 %v2967, 16
        %v3044 = vpop.permute.xlu0 %3043
        %3045 = vrot.lane.b32.xlu0 %v2972, 16
        %v3046 = vpop.permute.xlu0 %3045
        %3047 = vrot.lane.b32.xlu0 %v2977, 16
        %v3048 = vpop.permute.xlu0 %3047
        %3049 = vrot.lane.b32.xlu0 %v2982, 16
        %v3050 = vpop.permute.xlu0 %3049
        %3051 = vrot.lane.b32.xlu0 %v2987, 16
        %v3052 = vpop.permute.xlu0 %3051
        %3053 = vrot.lane.b32.xlu0 %v2992, 16
        %v3054 = vpop.permute.xlu0 %3053
        %3055 = vrot.lane.b32.xlu0 %v2997, 16
        %v3056 = vpop.permute.xlu0 %3055
        %3057 = vrot.lane.b32.xlu0 %v3002, 16
        %v3058 = vpop.permute.xlu0 %3057
        %3059 = vrot.lane.b32.xlu0 %v3007, 16
        %v3060 = vpop.permute.xlu0 %3059
        %3061 = vrot.lane.b32.xlu0 %v3012, 16
        %v3062 = vpop.permute.xlu0 %3061
        %v3079 = vsel %vm1794, %v2279, %v3032
        %v3080 = vsel %vm1794, %v2284, %v3034
        %v3081 = vsel %vm1794, %v2289, %v3036
        %v3082 = vsel %vm1794, %v2294, %v3038
        %v3083 = vsel %vm1794, %v2299, %v3040
        %v3084 = vsel %vm1794, %v2304, %v3042
        %v3085 = vsel %vm1794, %v2309, %v3044
        %v3086 = vsel %vm1794, %v2314, %v3046
        %v3087 = vsel %vm1794, %v2319, %v3048
        %v3088 = vsel %vm1794, %v2324, %v3050
        %v3089 = vsel %vm1794, %v2329, %v3052
        %v3090 = vsel %vm1794, %v2334, %v3054
        %v3091 = vsel %vm1794, %v2339, %v3056
        %v3092 = vsel %vm1794, %v2344, %v3058
        %v3093 = vsel %vm1794, %v2349, %v3060
        %v3094 = vsel %vm1794, %v2354, %v3062
        %v3095 = vlaneseq
        %v3096 = vshrl.u32 %v3095, 7
        %v3097 = vsub.s32 3, %v3096
        %v3098 = vrot.slane %v1297, %v3097
        %v3100 = vsel %vm1023, %v3079, 0
        %v3103 = vsel %vm1023, %v3080, 0
        %v3106 = vsel %vm1023, %v3081, 0
        %v3109 = vsel %vm1023, %v3082, 0
        %v3112 = vsel %vm1023, %v3083, 0
        %v3115 = vsel %vm1023, %v3084, 0
        %v3118 = vsel %vm1023, %v3085, 0
        %v3121 = vsel %vm1023, %v3086, 0
        %v3124 = vsel %vm1023, %v3087, 0
        %v3127 = vsel %vm1023, %v3088, 0
        %v3130 = vsel %vm1023, %v3089, 0
        %v3133 = vsel %vm1023, %v3090, 0
        %v3136 = vsel %vm1023, %v3091, 0
        %v3139 = vsel %vm1023, %v3092, 0
        %v3142 = vsel %vm1023, %v3093, 0
        %v3145 = vsel %vm1023, %v3094, 0
        %3147 = vmatprep.subr.mxu0 0.0
        %3148 = vmatpush1.msra.mxu0 %v1285
        %3149 = vmatprep.subr.mxu0 0.0
        %3150 = vmatpush1.msra.mxu0 %v1286
        %3151 = vmatprep.subr.mxu0 0.0
        %3152 = vmatpush1.msra.mxu0 %v1287
        %3153 = vmatprep.subr.mxu0 0.0
        %3154 = vmatpush1.msra.mxu0 %v1288
        %3155 = vmatprep.subr.mxu0 0.0
        %3156 = vmatpush1.msra.mxu0 0.0
        %3157 = vmatprep.subr.mxu0 0.0
        %3158 = vmatpush1.msra.mxu0 0.0
        %3159 = vmatprep.subr.mxu0 0.0
        %3160 = vmatpush1.msra.mxu0 0.0
        %3161 = vmatprep.subr.mxu0 0.0
        %3162 = vmatpush1.msra.mxu0 0.0
        %3163 = vmatprep.subr.mxu0 0.0
        %3164 = vmatpush1.msra.mxu0 0.0
        %3165 = vmatprep.subr.mxu0 0.0
        %3166 = vmatpush1.msra.mxu0 0.0
        %3167 = vmatprep.subr.mxu0 0.0
        %3168 = vmatpush1.msra.mxu0 0.0
        %3169 = vmatprep.subr.mxu0 0.0
        %3170 = vmatpush1.msra.mxu0 0.0
        %3171 = vmatprep.subr.mxu0 0.0
        %3172 = vmatpush1.msra.mxu0 0.0
        %3173 = vmatprep.subr.mxu0 0.0
        %3174 = vmatpush1.msra.mxu0 0.0
        %3175 = vmatprep.subr.mxu0 0.0
        %3176 = vmatpush1.msra.mxu0 0.0
        %3177 = vmatprep.subr.mxu0 0.0
        %3178 = vmatpush1.msra.mxu0 0.0
        %3179 = vmatprep.subr.mxu0 0.0
        %3180 = vmatpush1.msra.mxu0 0.0
        %3181 = vmatprep.subr.mxu0 0.0
        %3182 = vmatpush1.msra.mxu0 0.0
        %3183 = vmatprep.subr.mxu0 0.0
        %3184 = vmatpush1.msra.mxu0 0.0
        %3185 = vmatprep.subr.mxu0 0.0
        %3186 = vmatpush1.msra.mxu0 0.0
        %3187 = vmatprep.subr.mxu0 0.0
        %3188 = vmatpush1.msra.mxu0 0.0
        %3189 = vmatprep.subr.mxu0 0.0
        %3190 = vmatpush1.msra.mxu0 0.0
        %3191 = vmatprep.subr.mxu0 0.0
        %3192 = vmatpush1.msra.mxu0 0.0
        %3193 = vmatprep.subr.mxu0 0.0
        %3194 = vmatpush1.msra.mxu0 0.0
        %3195 = vmatprep.subr.mxu0 0.0
        %3196 = vmatpush1.msra.mxu0 0.0
        %3197 = vmatprep.subr.mxu0 0.0
        %3198 = vmatpush1.msra.mxu0 0.0
        %3199 = vmatprep.subr.mxu0 0.0
        %3200 = vmatpush1.msra.mxu0 0.0
        %3201 = vmatprep.subr.mxu0 0.0
        %3202 = vmatpush1.msra.mxu0 0.0
        %3203 = vmatprep.subr.mxu0 0.0
        %3204 = vmatpush1.msra.mxu0 0.0
        %3205 = vmatprep.subr.mxu0 0.0
        %3206 = vmatpush1.msra.mxu0 0.0
        %3207 = vmatprep.subr.mxu0 0.0
        %3208 = vmatpush1.msra.mxu0 0.0
        %3209 = vmatprep.subr.mxu0 0.0
        %3210 = vmatpush1.msra.mxu0 0.0
        %3211 = vmatprep.mubr.f32.mxu0 0.0
        %3212 = vmatmul.mubr.f32.gmra.mrb[0].mxu0 %v3100
        %v3213 = vpop.f32.mrb[0].mxu0
        %v3214 = vadd.f32 %v3098, %v3213
        %v3215 = vpop.f32.mrb[0].mxu0
        %3216 = vmatprep.mubr.f32.mxu0 0.0
        %3217 = vmatmul.mubr.f32.gmra.mrb[0].mxu0 %v3103
        %v3218 = vpop.f32.mrb[0].mxu0
        %v3219 = vadd.f32 %v3098, %v3218
        %v3220 = vpop.f32.mrb[0].mxu0
        %3221 = vmatprep.mubr.f32.mxu0 0.0
        %3222 = vmatmul.mubr.f32.gmra.mrb[0].mxu0 %v3106
        %v3223 = vpop.f32.mrb[0].mxu0
        %v3224 = vadd.f32 %v3098, %v3223
        %v3225 = vpop.f32.mrb[0].mxu0
        %3226 = vmatprep.mubr.f32.mxu0 0.0
        %3227 = vmatmul.mubr.f32.gmra.mrb[0].mxu0 %v3109
        %v3228 = vpop.f32.mrb[0].mxu0
        %v3229 = vadd.f32 %v3098, %v3228
        %v3230 = vpop.f32.mrb[0].mxu0
        %3231 = vmatprep.mubr.f32.mxu0 0.0
        %3232 = vmatmul.mubr.f32.gmra.mrb[0].mxu0 %v3112
        %v3233 = vpop.f32.mrb[0].mxu0
        %v3234 = vadd.f32 %v3098, %v3233
        %v3235 = vpop.f32.mrb[0].mxu0
        %3236 = vmatprep.mubr.f32.mxu0 0.0
        %3237 = vmatmul.mubr.f32.gmra.mrb[0].mxu0 %v3115
        %v3238 = vpop.f32.mrb[0].mxu0
        %v3239 = vadd.f32 %v3098, %v3238
        %v3240 = vpop.f32.mrb[0].mxu0
        %3241 = vmatprep.mubr.f32.mxu0 0.0
        %3242 = vmatmul.mubr.f32.gmra.mrb[0].mxu0 %v3118
        %v3243 = vpop.f32.mrb[0].mxu0
        %v3244 = vadd.f32 %v3098, %v3243
        %v3245 = vpop.f32.mrb[0].mxu0
        %3246 = vmatprep.mubr.f32.mxu0 0.0
        %3247 = vmatmul.mubr.f32.gmra.mrb[0].mxu0 %v3121
        %v3248 = vpop.f32.mrb[0].mxu0
        %v3249 = vadd.f32 %v3098, %v3248
        %v3250 = vpop.f32.mrb[0].mxu0
        %3251 = vmatprep.mubr.f32.mxu0 0.0
        %3252 = vmatmul.mubr.f32.gmra.mrb[0].mxu0 %v3124
        %v3253 = vpop.f32.mrb[0].mxu0
        %v3254 = vadd.f32 %v3098, %v3253
        %v3255 = vpop.f32.mrb[0].mxu0
        %3256 = vmatprep.mubr.f32.mxu0 0.0
        %3257 = vmatmul.mubr.f32.gmra.mrb[0].mxu0 %v3127
        %v3258 = vpop.f32.mrb[0].mxu0
        %v3259 = vadd.f32 %v3098, %v3258
        %v3260 = vpop.f32.mrb[0].mxu0
        %3261 = vmatprep.mubr.f32.mxu0 0.0
        %3262 = vmatmul.mubr.f32.gmra.mrb[0].mxu0 %v3130
        %v3263 = vpop.f32.mrb[0].mxu0
        %v3264 = vadd.f32 %v3098, %v3263
        %v3265 = vpop.f32.mrb[0].mxu0
        %3266 = vmatprep.mubr.f32.mxu0 0.0
        %3267 = vmatmul.mubr.f32.gmra.mrb[0].mxu0 %v3133
        %v3268 = vpop.f32.mrb[0].mxu0
        %v3269 = vadd.f32 %v3098, %v3268
        %v3270 = vpop.f32.mrb[0].mxu0
        %3271 = vmatprep.mubr.f32.mxu0 0.0
        %3272 = vmatmul.mubr.f32.gmra.mrb[0].mxu0 %v3136
        %v3273 = vpop.f32.mrb[0].mxu0
        %v3274 = vadd.f32 %v3098, %v3273
        %v3275 = vpop.f32.mrb[0].mxu0
        %3276 = vmatprep.mubr.f32.mxu0 0.0
        %3277 = vmatmul.mubr.f32.gmra.mrb[0].mxu0 %v3139
        %v3278 = vpop.f32.mrb[0].mxu0
        %v3279 = vadd.f32 %v3098, %v3278
        %v3280 = vpop.f32.mrb[0].mxu0
        %3281 = vmatprep.mubr.f32.mxu0 0.0
        %3282 = vmatmul.mubr.f32.gmra.mrb[0].mxu0 %v3142
        %v3283 = vpop.f32.mrb[0].mxu0
        %v3284 = vadd.f32 %v3098, %v3283
        %v3285 = vpop.f32.mrb[0].mxu0
        %3286 = vmatprep.mubr.f32.mxu0 0.0
        %3287 = vmatmul.mubr.f32.gmra.mrb[0].mxu0 %v3145
        %v3288 = vpop.f32.mrb[0].mxu0
        %v3289 = vadd.f32 %v3098, %v3288
        %v3290 = vpop.f32.mrb[0].mxu0
        %3291 = vdwg.mxu0
        %v3292 = vadd.f32 %v1257, %v3214
        %v3293 = vadd.f32 %v1258, %v3219
        %v3294 = vadd.f32 %v1259, %v3224
        %v3295 = vadd.f32 %v1260, %v3229
        %v3296 = vadd.f32 %v1261, %v3234
        %v3297 = vadd.f32 %v1262, %v3239
        %v3298 = vadd.f32 %v1263, %v3244
        %v3299 = vadd.f32 %v1264, %v3249
        %v3300 = vadd.f32 %v1265, %v3254
        %v3301 = vadd.f32 %v1266, %v3259
        %v3302 = vadd.f32 %v1267, %v3264
        %v3303 = vadd.f32 %v1268, %v3269
        %v3304 = vadd.f32 %v1269, %v3274
        %v3305 = vadd.f32 %v1270, %v3279
        %v3306 = vadd.f32 %v1271, %v3284
        %v3307 = vadd.f32 %v1272, %v3289
        %v3308 = vsel %vm1023, %v3292, 0.0
        %3309 = vadd.xlane.f32.xlu0 %v3308
        %v3310 = vpop.xlane.xlu0 %3309
        %v3311 = vsel %vm1023, %v3293, 0.0
        %3312 = vadd.xlane.f32.xlu0 %v3311
        %v3313 = vpop.xlane.xlu0 %3312
        %v3314 = vsel %vm1023, %v3294, 0.0
        %3315 = vadd.xlane.f32.xlu0 %v3314
        %v3316 = vpop.xlane.xlu0 %3315
        %v3317 = vsel %vm1023, %v3295, 0.0
        %3318 = vadd.xlane.f32.xlu0 %v3317
        %v3319 = vpop.xlane.xlu0 %3318
        %v3320 = vsel %vm1023, %v3296, 0.0
        %3321 = vadd.xlane.f32.xlu0 %v3320
        %v3322 = vpop.xlane.xlu0 %3321
        %v3323 = vsel %vm1023, %v3297, 0.0
        %3324 = vadd.xlane.f32.xlu0 %v3323
        %v3325 = vpop.xlane.xlu0 %3324
        %v3326 = vsel %vm1023, %v3298, 0.0
        %3327 = vadd.xlane.f32.xlu0 %v3326
        %v3328 = vpop.xlane.xlu0 %3327
        %v3329 = vsel %vm1023, %v3299, 0.0
        %3330 = vadd.xlane.f32.xlu0 %v3329
        %v3331 = vpop.xlane.xlu0 %3330
        %v3332 = vsel %vm1023, %v3300, 0.0
        %3333 = vadd.xlane.f32.xlu0 %v3332
        %v3334 = vpop.xlane.xlu0 %3333
        %v3335 = vsel %vm1023, %v3301, 0.0
        %3336 = vadd.xlane.f32.xlu0 %v3335
        %v3337 = vpop.xlane.xlu0 %3336
        %v3338 = vsel %vm1023, %v3302, 0.0
        %3339 = vadd.xlane.f32.xlu0 %v3338
        %v3340 = vpop.xlane.xlu0 %3339
        %v3341 = vsel %vm1023, %v3303, 0.0
        %3342 = vadd.xlane.f32.xlu0 %v3341
        %v3343 = vpop.xlane.xlu0 %3342
        %v3344 = vsel %vm1023, %v3304, 0.0
        %3345 = vadd.xlane.f32.xlu0 %v3344
        %v3346 = vpop.xlane.xlu0 %3345
        %v3347 = vsel %vm1023, %v3305, 0.0
        %3348 = vadd.xlane.f32.xlu0 %v3347
        %v3349 = vpop.xlane.xlu0 %3348
        %v3350 = vsel %vm1023, %v3306, 0.0
        %3351 = vadd.xlane.f32.xlu0 %v3350
        %v3352 = vpop.xlane.xlu0 %3351
        %v3353 = vsel %vm1023, %v3307, 0.0
        %3354 = vadd.xlane.f32.xlu0 %v3353
        %v3355 = vpop.xlane.xlu0 %3354
        %v3356 = vmul.f32 %v3310, %v1072
        %v3357 = vmul.f32 %v3313, %v1072
        %v3358 = vmul.f32 %v3316, %v1072
        %v3359 = vmul.f32 %v3319, %v1072
        %v3360 = vmul.f32 %v3322, %v1072
        %v3361 = vmul.f32 %v3325, %v1072
        %v3362 = vmul.f32 %v3328, %v1072
        %v3363 = vmul.f32 %v3331, %v1072
        %v3364 = vmul.f32 %v3334, %v1072
        %v3365 = vmul.f32 %v3337, %v1072
        %v3366 = vmul.f32 %v3340, %v1072
        %v3367 = vmul.f32 %v3343, %v1072
        %v3368 = vmul.f32 %v3346, %v1072
        %v3369 = vmul.f32 %v3349, %v1072
        %v3370 = vmul.f32 %v3352, %v1072
        %v3371 = vmul.f32 %v3355, %v1072
        %v3372 = vsub.f32 %v3292, %v3356
        %v3373 = vsub.f32 %v3293, %v3357
        %v3374 = vsub.f32 %v3294, %v3358
        %v3375 = vsub.f32 %v3295, %v3359
        %v3376 = vsub.f32 %v3296, %v3360
        %v3377 = vsub.f32 %v3297, %v3361
        %v3378 = vsub.f32 %v3298, %v3362
        %v3379 = vsub.f32 %v3299, %v3363
        %v3380 = vsub.f32 %v3300, %v3364
        %v3381 = vsub.f32 %v3301, %v3365
        %v3382 = vsub.f32 %v3302, %v3366
        %v3383 = vsub.f32 %v3303, %v3367
        %v3384 = vsub.f32 %v3304, %v3368
        %v3385 = vsub.f32 %v3305, %v3369
        %v3386 = vsub.f32 %v3306, %v3370
        %v3387 = vsub.f32 %v3307, %v3371
        %v3388 = vmul.f32 %v3372, %v3372
        %v3389 = vmul.f32 %v3373, %v3373
        %v3390 = vmul.f32 %v3374, %v3374
        %v3391 = vmul.f32 %v3375, %v3375
        %v3392 = vmul.f32 %v3376, %v3376
        %v3393 = vmul.f32 %v3377, %v3377
        %v3394 = vmul.f32 %v3378, %v3378
        %v3395 = vmul.f32 %v3379, %v3379
        %v3396 = vmul.f32 %v3380, %v3380
        %v3397 = vmul.f32 %v3381, %v3381
        %v3398 = vmul.f32 %v3382, %v3382
        %v3399 = vmul.f32 %v3383, %v3383
        %v3400 = vmul.f32 %v3384, %v3384
        %v3401 = vmul.f32 %v3385, %v3385
        %v3402 = vmul.f32 %v3386, %v3386
        %v3403 = vmul.f32 %v3387, %v3387
        %v3404 = vsel %vm1023, %v3388, 0.0
        %3405 = vadd.xlane.f32.xlu0 %v3404
        %v3406 = vpop.xlane.xlu0 %3405
        %v3407 = vsel %vm1023, %v3389, 0.0
        %3408 = vadd.xlane.f32.xlu0 %v3407
        %v3409 = vpop.xlane.xlu0 %3408
        %v3410 = vsel %vm1023, %v3390, 0.0
        %3411 = vadd.xlane.f32.xlu0 %v3410
        %v3412 = vpop.xlane.xlu0 %3411
        %v3413 = vsel %vm1023, %v3391, 0.0
        %3414 = vadd.xlane.f32.xlu0 %v3413
        %v3415 = vpop.xlane.xlu0 %3414
        %v3416 = vsel %vm1023, %v3392, 0.0
        %3417 = vadd.xlane.f32.xlu0 %v3416
        %v3418 = vpop.xlane.xlu0 %3417
        %v3419 = vsel %vm1023, %v3393, 0.0
        %3420 = vadd.xlane.f32.xlu0 %v3419
        %v3421 = vpop.xlane.xlu0 %3420
        %v3422 = vsel %vm1023, %v3394, 0.0
        %3423 = vadd.xlane.f32.xlu0 %v3422
        %v3424 = vpop.xlane.xlu0 %3423
        %v3425 = vsel %vm1023, %v3395, 0.0
        %3426 = vadd.xlane.f32.xlu0 %v3425
        %v3427 = vpop.xlane.xlu0 %3426
        %v3428 = vsel %vm1023, %v3396, 0.0
        %3429 = vadd.xlane.f32.xlu0 %v3428
        %v3430 = vpop.xlane.xlu0 %3429
        %v3431 = vsel %vm1023, %v3397, 0.0
        %3432 = vadd.xlane.f32.xlu0 %v3431
        %v3433 = vpop.xlane.xlu0 %3432
        %v3434 = vsel %vm1023, %v3398, 0.0
        %3435 = vadd.xlane.f32.xlu0 %v3434
        %v3436 = vpop.xlane.xlu0 %3435
        %v3437 = vsel %vm1023, %v3399, 0.0
        %3438 = vadd.xlane.f32.xlu0 %v3437
        %v3439 = vpop.xlane.xlu0 %3438
        %v3440 = vsel %vm1023, %v3400, 0.0
        %3441 = vadd.xlane.f32.xlu0 %v3440
        %v3442 = vpop.xlane.xlu0 %3441
        %v3443 = vsel %vm1023, %v3401, 0.0
        %3444 = vadd.xlane.f32.xlu0 %v3443
        %v3445 = vpop.xlane.xlu0 %3444
        %v3446 = vsel %vm1023, %v3402, 0.0
        %3447 = vadd.xlane.f32.xlu0 %v3446
        %v3448 = vpop.xlane.xlu0 %3447
        %v3449 = vsel %vm1023, %v3403, 0.0
        %3450 = vadd.xlane.f32.xlu0 %v3449
        %v3451 = vpop.xlane.xlu0 %3450
        %v3452 = vmul.f32 %v3406, %v1072
        %v3453 = vmul.f32 %v3409, %v1072
        %v3454 = vmul.f32 %v3412, %v1072
        %v3455 = vmul.f32 %v3415, %v1072
        %v3456 = vmul.f32 %v3418, %v1072
        %v3457 = vmul.f32 %v3421, %v1072
        %v3458 = vmul.f32 %v3424, %v1072
        %v3459 = vmul.f32 %v3427, %v1072
        %v3460 = vmul.f32 %v3430, %v1072
        %v3461 = vmul.f32 %v3433, %v1072
        %v3462 = vmul.f32 %v3436, %v1072
        %v3463 = vmul.f32 %v3439, %v1072
        %v3464 = vmul.f32 %v3442, %v1072
        %v3465 = vmul.f32 %v3445, %v1072
        %v3466 = vmul.f32 %v3448, %v1072
        %v3467 = vmul.f32 %v3451, %v1072
        %v3468 = vadd.f32 %v3452, 1e-05
        %v3469 = vadd.f32 %v3453, 1e-05
        %v3470 = vadd.f32 %v3454, 1e-05
        %v3471 = vadd.f32 %v3455, 1e-05
        %v3472 = vadd.f32 %v3456, 1e-05
        %v3473 = vadd.f32 %v3457, 1e-05
        %v3474 = vadd.f32 %v3458, 1e-05
        %v3475 = vadd.f32 %v3459, 1e-05
        %v3476 = vadd.f32 %v3460, 1e-05
        %v3477 = vadd.f32 %v3461, 1e-05
        %v3478 = vadd.f32 %v3462, 1e-05
        %v3479 = vadd.f32 %v3463, 1e-05
        %v3480 = vadd.f32 %v3464, 1e-05
        %v3481 = vadd.f32 %v3465, 1e-05
        %v3482 = vadd.f32 %v3466, 1e-05
        %v3483 = vadd.f32 %v3467, 1e-05
        %v3484 = vrsqrt.pop %v3468
        %v3485 = vrsqrt.pop %v3469
        %v3486 = vrsqrt.pop %v3470
        %v3487 = vrsqrt.pop %v3471
        %v3488 = vrsqrt.pop %v3472
        %v3489 = vrsqrt.pop %v3473
        %v3490 = vrsqrt.pop %v3474
        %v3491 = vrsqrt.pop %v3475
        %v3492 = vrsqrt.pop %v3476
        %v3493 = vrsqrt.pop %v3477
        %v3494 = vrsqrt.pop %v3478
        %v3495 = vrsqrt.pop %v3479
        %v3496 = vrsqrt.pop %v3480
        %v3497 = vrsqrt.pop %v3481
        %v3498 = vrsqrt.pop %v3482
        %v3499 = vrsqrt.pop %v3483
        %v3500 = vmul.f32 %v3372, %v3484
        %v3501 = vmul.f32 %v3373, %v3485
        %v3502 = vmul.f32 %v3374, %v3486
        %v3503 = vmul.f32 %v3375, %v3487
        %v3504 = vmul.f32 %v3376, %v3488
        %v3505 = vmul.f32 %v3377, %v3489
        %v3506 = vmul.f32 %v3378, %v3490
        %v3507 = vmul.f32 %v3379, %v3491
        %v3508 = vmul.f32 %v3380, %v3492
        %v3509 = vmul.f32 %v3381, %v3493
        %v3510 = vmul.f32 %v3382, %v3494
        %v3511 = vmul.f32 %v3383, %v3495
        %v3512 = vmul.f32 %v3384, %v3496
        %v3513 = vmul.f32 %v3385, %v3497
        %v3514 = vmul.f32 %v3386, %v3498
        %v3515 = vmul.f32 %v3387, %v3499
        %v3516 = vlaneseq
        %v3517 = vshrl.u32 %v3516, 7
        %v3518 = vsub.s32 6, %v3517
        %v3519 = vrot.slane %v1297, %v3518
        %v3520 = vmul.f32 %v3500, %v3519
        %v3521 = vmul.f32 %v3501, %v3519
        %v3522 = vmul.f32 %v3502, %v3519
        %v3523 = vmul.f32 %v3503, %v3519
        %v3524 = vmul.f32 %v3504, %v3519
        %v3525 = vmul.f32 %v3505, %v3519
        %v3526 = vmul.f32 %v3506, %v3519
        %v3527 = vmul.f32 %v3507, %v3519
        %v3528 = vmul.f32 %v3508, %v3519
        %v3529 = vmul.f32 %v3509, %v3519
        %v3530 = vmul.f32 %v3510, %v3519
        %v3531 = vmul.f32 %v3511, %v3519
        %v3532 = vmul.f32 %v3512, %v3519
        %v3533 = vmul.f32 %v3513, %v3519
        %v3534 = vmul.f32 %v3514, %v3519
        %v3535 = vmul.f32 %v3515, %v3519
        %v3536 = vlaneseq
        %v3537 = vshrl.u32 %v3536, 7
        %v3538 = vsub.s32 7, %v3537
        %v3539 = vrot.slane %v1297, %v3538
        %v3540 = vadd.f32 %v3520, %v3539
        %v3541 = vadd.f32 %v3521, %v3539
        %v3542 = vadd.f32 %v3522, %v3539
        %v3543 = vadd.f32 %v3523, %v3539
        %v3544 = vadd.f32 %v3524, %v3539
        %v3545 = vadd.f32 %v3525, %v3539
        %v3546 = vadd.f32 %v3526, %v3539
        %v3547 = vadd.f32 %v3527, %v3539
        %v3548 = vadd.f32 %v3528, %v3539
        %v3549 = vadd.f32 %v3529, %v3539
        %v3550 = vadd.f32 %v3530, %v3539
        %v3551 = vadd.f32 %v3531, %v3539
        %v3552 = vadd.f32 %v3532, %v3539
        %v3553 = vadd.f32 %v3533, %v3539
        %v3554 = vadd.f32 %v3534, %v3539
        %v3555 = vadd.f32 %v3535, %v3539
        %v3556 = vlaneseq
        %v3557 = vshrl.u32 %v3556, 7
        %v3558 = vsub.s32 4, %v3557
        %v3559 = vrot.slane %v1297, %v3558
        %v3561 = vsel %vm1023, %v3540, 0
        %v3564 = vsel %vm1023, %v3541, 0
        %v3567 = vsel %vm1023, %v3542, 0
        %v3570 = vsel %vm1023, %v3543, 0
        %v3573 = vsel %vm1023, %v3544, 0
        %v3576 = vsel %vm1023, %v3545, 0
        %v3579 = vsel %vm1023, %v3546, 0
        %v3582 = vsel %vm1023, %v3547, 0
        %v3585 = vsel %vm1023, %v3548, 0
        %v3588 = vsel %vm1023, %v3549, 0
        %v3591 = vsel %vm1023, %v3550, 0
        %v3594 = vsel %vm1023, %v3551, 0
        %v3597 = vsel %vm1023, %v3552, 0
        %v3600 = vsel %vm1023, %v3553, 0
        %v3603 = vsel %vm1023, %v3554, 0
        %v3606 = vsel %vm1023, %v3555, 0
        %3608 = vmatprep.subr.mxu0 0.0
        %3609 = vmatpush1.msra.mxu0 %v1289
        %3610 = vmatprep.subr.mxu0 0.0
        %3611 = vmatpush1.msra.mxu0 %v1290
        %3612 = vmatprep.subr.mxu0 0.0
        %3613 = vmatpush1.msra.mxu0 %v1291
        %3614 = vmatprep.subr.mxu0 0.0
        %3615 = vmatpush1.msra.mxu0 %v1292
        %3616 = vmatprep.subr.mxu0 0.0
        %3617 = vmatpush1.msra.mxu0 0.0
        %3618 = vmatprep.subr.mxu0 0.0
        %3619 = vmatpush1.msra.mxu0 0.0
        %3620 = vmatprep.subr.mxu0 0.0
        %3621 = vmatpush1.msra.mxu0 0.0
        %3622 = vmatprep.subr.mxu0 0.0
        %3623 = vmatpush1.msra.mxu0 0.0
        %3624 = vmatprep.subr.mxu0 0.0
        %3625 = vmatpush1.msra.mxu0 0.0
        %3626 = vmatprep.subr.mxu0 0.0
        %3627 = vmatpush1.msra.mxu0 0.0
        %3628 = vmatprep.subr.mxu0 0.0
        %3629 = vmatpush1.msra.mxu0 0.0
        %3630 = vmatprep.subr.mxu0 0.0
        %3631 = vmatpush1.msra.mxu0 0.0
        %3632 = vmatprep.subr.mxu0 0.0
        %3633 = vmatpush1.msra.mxu0 0.0
        %3634 = vmatprep.subr.mxu0 0.0
        %3635 = vmatpush1.msra.mxu0 0.0
        %3636 = vmatprep.subr.mxu0 0.0
        %3637 = vmatpush1.msra.mxu0 0.0
        %3638 = vmatprep.subr.mxu0 0.0
        %3639 = vmatpush1.msra.mxu0 0.0
        %3640 = vmatprep.subr.mxu0 0.0
        %3641 = vmatpush1.msra.mxu0 0.0
        %3642 = vmatprep.subr.mxu0 0.0
        %3643 = vmatpush1.msra.mxu0 0.0
        %3644 = vmatprep.subr.mxu0 0.0
        %3645 = vmatpush1.msra.mxu0 0.0
        %3646 = vmatprep.subr.mxu0 0.0
        %3647 = vmatpush1.msra.mxu0 0.0
        %3648 = vmatprep.subr.mxu0 0.0
        %3649 = vmatpush1.msra.mxu0 0.0
        %3650 = vmatprep.subr.mxu0 0.0
        %3651 = vmatpush1.msra.mxu0 0.0
        %3652 = vmatprep.subr.mxu0 0.0
        %3653 = vmatpush1.msra.mxu0 0.0
        %3654 = vmatprep.subr.mxu0 0.0
        %3655 = vmatpush1.msra.mxu0 0.0
        %3656 = vmatprep.subr.mxu0 0.0
        %3657 = vmatpush1.msra.mxu0 0.0
        %3658 = vmatprep.subr.mxu0 0.0
        %3659 = vmatpush1.msra.mxu0 0.0
        %3660 = vmatprep.subr.mxu0 0.0
        %3661 = vmatpush1.msra.mxu0 0.0
        %3662 = vmatprep.subr.mxu0 0.0
        %3663 = vmatpush1.msra.mxu0 0.0
        %3664 = vmatprep.subr.mxu0 0.0
        %3665 = vmatpush1.msra.mxu0 0.0
        %3666 = vmatprep.subr.mxu0 0.0
        %3667 = vmatpush1.msra.mxu0 0.0
        %3668 = vmatprep.subr.mxu0 0.0
        %3669 = vmatpush1.msra.mxu0 0.0
        %3670 = vmatprep.subr.mxu0 0.0
        %3671 = vmatpush1.msra.mxu0 0.0
        %3672 = vmatprep.mubr.f32.mxu0 0.0
        %3673 = vmatmul.mubr.f32.gmra.mrb[0].mxu0 %v3561
        %v3674 = vpop.f32.mrb[0].mxu0
        %v3675 = vadd.f32 %v3559, %v3674
        %v3676 = vpop.f32.mrb[0].mxu0
        %3677 = vmatprep.mubr.f32.mxu0 0.0
        %3678 = vmatmul.mubr.f32.gmra.mrb[0].mxu0 %v3564
        %v3679 = vpop.f32.mrb[0].mxu0
        %v3680 = vadd.f32 %v3559, %v3679
        %v3681 = vpop.f32.mrb[0].mxu0
        %3682 = vmatprep.mubr.f32.mxu0 0.0
        %3683 = vmatmul.mubr.f32.gmra.mrb[0].mxu0 %v3567
        %v3684 = vpop.f32.mrb[0].mxu0
        %v3685 = vadd.f32 %v3559, %v3684
        %v3686 = vpop.f32.mrb[0].mxu0
        %3687 = vmatprep.mubr.f32.mxu0 0.0
        %3688 = vmatmul.mubr.f32.gmra.mrb[0].mxu0 %v3570
        %v3689 = vpop.f32.mrb[0].mxu0
        %v3690 = vadd.f32 %v3559, %v3689
        %v3691 = vpop.f32.mrb[0].mxu0
        %3692 = vmatprep.mubr.f32.mxu0 0.0
        %3693 = vmatmul.mubr.f32.gmra.mrb[0].mxu0 %v3573
        %v3694 = vpop.f32.mrb[0].mxu0
        %v3695 = vadd.f32 %v3559, %v3694
        %v3696 = vpop.f32.mrb[0].mxu0
        %3697 = vmatprep.mubr.f32.mxu0 0.0
        %3698 = vmatmul.mubr.f32.gmra.mrb[0].mxu0 %v3576
        %v3699 = vpop.f32.mrb[0].mxu0
        %v3700 = vadd.f32 %v3559, %v3699
        %v3701 = vpop.f32.mrb[0].mxu0
        %3702 = vmatprep.mubr.f32.mxu0 0.0
        %3703 = vmatmul.mubr.f32.gmra.mrb[0].mxu0 %v3579
        %v3704 = vpop.f32.mrb[0].mxu0
        %v3705 = vadd.f32 %v3559, %v3704
        %v3706 = vpop.f32.mrb[0].mxu0
        %3707 = vmatprep.mubr.f32.mxu0 0.0
        %3708 = vmatmul.mubr.f32.gmra.mrb[0].mxu0 %v3582
        %v3709 = vpop.f32.mrb[0].mxu0
        %v3710 = vadd.f32 %v3559, %v3709
        %v3711 = vpop.f32.mrb[0].mxu0
        %3712 = vmatprep.mubr.f32.mxu0 0.0
        %3713 = vmatmul.mubr.f32.gmra.mrb[0].mxu0 %v3585
        %v3714 = vpop.f32.mrb[0].mxu0
        %v3715 = vadd.f32 %v3559, %v3714
        %v3716 = vpop.f32.mrb[0].mxu0
        %3717 = vmatprep.mubr.f32.mxu0 0.0
        %3718 = vmatmul.mubr.f32.gmra.mrb[0].mxu0 %v3588
        %v3719 = vpop.f32.mrb[0].mxu0
        %v3720 = vadd.f32 %v3559, %v3719
        %v3721 = vpop.f32.mrb[0].mxu0
        %3722 = vmatprep.mubr.f32.mxu0 0.0
        %3723 = vmatmul.mubr.f32.gmra.mrb[0].mxu0 %v3591
        %v3724 = vpop.f32.mrb[0].mxu0
        %v3725 = vadd.f32 %v3559, %v3724
        %v3726 = vpop.f32.mrb[0].mxu0
        %3727 = vmatprep.mubr.f32.mxu0 0.0
        %3728 = vmatmul.mubr.f32.gmra.mrb[0].mxu0 %v3594
        %v3729 = vpop.f32.mrb[0].mxu0
        %v3730 = vadd.f32 %v3559, %v3729
        %v3731 = vpop.f32.mrb[0].mxu0
        %3732 = vmatprep.mubr.f32.mxu0 0.0
        %3733 = vmatmul.mubr.f32.gmra.mrb[0].mxu0 %v3597
        %v3734 = vpop.f32.mrb[0].mxu0
        %v3735 = vadd.f32 %v3559, %v3734
        %v3736 = vpop.f32.mrb[0].mxu0
        %3737 = vmatprep.mubr.f32.mxu0 0.0
        %3738 = vmatmul.mubr.f32.gmra.mrb[0].mxu0 %v3600
        %v3739 = vpop.f32.mrb[0].mxu0
        %v3740 = vadd.f32 %v3559, %v3739
        %v3741 = vpop.f32.mrb[0].mxu0
        %3742 = vmatprep.mubr.f32.mxu0 0.0
        %3743 = vmatmul.mubr.f32.gmra.mrb[0].mxu0 %v3603
        %v3744 = vpop.f32.mrb[0].mxu0
        %v3745 = vadd.f32 %v3559, %v3744
        %v3746 = vpop.f32.mrb[0].mxu0
        %3747 = vmatprep.mubr.f32.mxu0 0.0
        %3748 = vmatmul.mubr.f32.gmra.mrb[0].mxu0 %v3606
        %v3749 = vpop.f32.mrb[0].mxu0
        %v3750 = vadd.f32 %v3559, %v3749
        %v3751 = vpop.f32.mrb[0].mxu0
        %3752 = vdwg.mxu0
        %v3753 = vmul.f32 %v3675, 0.5
        %v3754 = vmul.f32 %v3680, 0.5
        %v3755 = vmul.f32 %v3685, 0.5
        %v3756 = vmul.f32 %v3690, 0.5
        %v3757 = vmul.f32 %v3695, 0.5
        %v3758 = vmul.f32 %v3700, 0.5
        %v3759 = vmul.f32 %v3705, 0.5
        %v3760 = vmul.f32 %v3710, 0.5
        %v3761 = vmul.f32 %v3715, 0.5
        %v3762 = vmul.f32 %v3720, 0.5
        %v3763 = vmul.f32 %v3725, 0.5
        %v3764 = vmul.f32 %v3730, 0.5
        %v3765 = vmul.f32 %v3735, 0.5
        %v3766 = vmul.f32 %v3740, 0.5
        %v3767 = vmul.f32 %v3745, 0.5
        %v3768 = vmul.f32 %v3750, 0.5
        %v3769 = vmul.f32 %v3675, 0.044715
        %v3770 = vmul.f32 %v3680, 0.044715
        %v3771 = vmul.f32 %v3685, 0.044715
        %v3772 = vmul.f32 %v3690, 0.044715
        %v3773 = vmul.f32 %v3695, 0.044715
        %v3774 = vmul.f32 %v3700, 0.044715
        %v3775 = vmul.f32 %v3705, 0.044715
        %v3776 = vmul.f32 %v3710, 0.044715
        %v3777 = vmul.f32 %v3715, 0.044715
        %v3778 = vmul.f32 %v3720, 0.044715
        %v3779 = vmul.f32 %v3725, 0.044715
        %v3780 = vmul.f32 %v3730, 0.044715
        %v3781 = vmul.f32 %v3735, 0.044715
        %v3782 = vmul.f32 %v3740, 0.044715
        %v3783 = vmul.f32 %v3745, 0.044715
        %v3784 = vmul.f32 %v3750, 0.044715
        %v3785 = vmul.f32 %v3769, %v3675
        %v3786 = vmul.f32 %v3770, %v3680
        %v3787 = vmul.f32 %v3771, %v3685
        %v3788 = vmul.f32 %v3772, %v3690
        %v3789 = vmul.f32 %v3773, %v3695
        %v3790 = vmul.f32 %v3774, %v3700
        %v3791 = vmul.f32 %v3775, %v3705
        %v3792 = vmul.f32 %v3776, %v3710
        %v3793 = vmul.f32 %v3777, %v3715
        %v3794 = vmul.f32 %v3778, %v3720
        %v3795 = vmul.f32 %v3779, %v3725
        %v3796 = vmul.f32 %v3780, %v3730
        %v3797 = vmul.f32 %v3781, %v3735
        %v3798 = vmul.f32 %v3782, %v3740
        %v3799 = vmul.f32 %v3783, %v3745
        %v3800 = vmul.f32 %v3784, %v3750
        %v3801 = vmul.f32 %v3785, %v3675
        %v3802 = vmul.f32 %v3786, %v3680
        %v3803 = vmul.f32 %v3787, %v3685
        %v3804 = vmul.f32 %v3788, %v3690
        %v3805 = vmul.f32 %v3789, %v3695
        %v3806 = vmul.f32 %v3790, %v3700
        %v3807 = vmul.f32 %v3791, %v3705
        %v3808 = vmul.f32 %v3792, %v3710
        %v3809 = vmul.f32 %v3793, %v3715
        %v3810 = vmul.f32 %v3794, %v3720
        %v3811 = vmul.f32 %v3795, %v3725
        %v3812 = vmul.f32 %v3796, %v3730
        %v3813 = vmul.f32 %v3797, %v3735
        %v3814 = vmul.f32 %v3798, %v3740
        %v3815 = vmul.f32 %v3799, %v3745
        %v3816 = vmul.f32 %v3800, %v3750
        %v3817 = vadd.f32 %v3675, %v3801
        %v3818 = vadd.f32 %v3680, %v3802
        %v3819 = vadd.f32 %v3685, %v3803
        %v3820 = vadd.f32 %v3690, %v3804
        %v3821 = vadd.f32 %v3695, %v3805
        %v3822 = vadd.f32 %v3700, %v3806
        %v3823 = vadd.f32 %v3705, %v3807
        %v3824 = vadd.f32 %v3710, %v3808
        %v3825 = vadd.f32 %v3715, %v3809
        %v3826 = vadd.f32 %v3720, %v3810
        %v3827 = vadd.f32 %v3725, %v3811
        %v3828 = vadd.f32 %v3730, %v3812
        %v3829 = vadd.f32 %v3735, %v3813
        %v3830 = vadd.f32 %v3740, %v3814
        %v3831 = vadd.f32 %v3745, %v3815
        %v3832 = vadd.f32 %v3750, %v3816
        %v3833 = vmul.f32 %v3817, 0.7978846
        %v3834 = vmul.f32 %v3818, 0.7978846
        %v3835 = vmul.f32 %v3819, 0.7978846
        %v3836 = vmul.f32 %v3820, 0.7978846
        %v3837 = vmul.f32 %v3821, 0.7978846
        %v3838 = vmul.f32 %v3822, 0.7978846
        %v3839 = vmul.f32 %v3823, 0.7978846
        %v3840 = vmul.f32 %v3824, 0.7978846
        %v3841 = vmul.f32 %v3825, 0.7978846
        %v3842 = vmul.f32 %v3826, 0.7978846
        %v3843 = vmul.f32 %v3827, 0.7978846
        %v3844 = vmul.f32 %v3828, 0.7978846
        %v3845 = vmul.f32 %v3829, 0.7978846
        %v3846 = vmul.f32 %v3830, 0.7978846
        %v3847 = vmul.f32 %v3831, 0.7978846
        %v3848 = vmul.f32 %v3832, 0.7978846
        %v3849 = vtanh.pop %v3833
        %v3850 = vtanh.pop %v3834
        %v3851 = vtanh.pop %v3835
        %v3852 = vtanh.pop %v3836
        %v3853 = vtanh.pop %v3837
        %v3854 = vtanh.pop %v3838
        %v3855 = vtanh.pop %v3839
        %v3856 = vtanh.pop %v3840
        %v3857 = vtanh.pop %v3841
        %v3858 = vtanh.pop %v3842
        %v3859 = vtanh.pop %v3843
        %v3860 = vtanh.pop %v3844
        %v3861 = vtanh.pop %v3845
        %v3862 = vtanh.pop %v3846
        %v3863 = vtanh.pop %v3847
        %v3864 = vtanh.pop %v3848
        %v3865 = vadd.f32 %v3849, 1.0
        %v3866 = vadd.f32 %v3850, 1.0
        %v3867 = vadd.f32 %v3851, 1.0
        %v3868 = vadd.f32 %v3852, 1.0
        %v3869 = vadd.f32 %v3853, 1.0
        %v3870 = vadd.f32 %v3854, 1.0
        %v3871 = vadd.f32 %v3855, 1.0
        %v3872 = vadd.f32 %v3856, 1.0
        %v3873 = vadd.f32 %v3857, 1.0
        %v3874 = vadd.f32 %v3858, 1.0
        %v3875 = vadd.f32 %v3859, 1.0
        %v3876 = vadd.f32 %v3860, 1.0
        %v3877 = vadd.f32 %v3861, 1.0
        %v3878 = vadd.f32 %v3862, 1.0
        %v3879 = vadd.f32 %v3863, 1.0
        %v3880 = vadd.f32 %v3864, 1.0
        %v3881 = vmul.f32 %v3753, %v3865
        %v3882 = vmul.f32 %v3754, %v3866
        %v3883 = vmul.f32 %v3755, %v3867
        %v3884 = vmul.f32 %v3756, %v3868
        %v3885 = vmul.f32 %v3757, %v3869
        %v3886 = vmul.f32 %v3758, %v3870
        %v3887 = vmul.f32 %v3759, %v3871
        %v3888 = vmul.f32 %v3760, %v3872
        %v3889 = vmul.f32 %v3761, %v3873
        %v3890 = vmul.f32 %v3762, %v3874
        %v3891 = vmul.f32 %v3763, %v3875
        %v3892 = vmul.f32 %v3764, %v3876
        %v3893 = vmul.f32 %v3765, %v3877
        %v3894 = vmul.f32 %v3766, %v3878
        %v3895 = vmul.f32 %v3767, %v3879
        %v3896 = vmul.f32 %v3768, %v3880
        %v3897 = vlaneseq
        %v3898 = vshrl.u32 %v3897, 7
        %v3899 = vsub.s32 5, %v3898
        %v3900 = vrot.slane %v1297, %v3899
        %v3902 = vsel %vm1023, %v3881, 0
        %v3905 = vsel %vm1023, %v3882, 0
        %v3908 = vsel %vm1023, %v3883, 0
        %v3911 = vsel %vm1023, %v3884, 0
        %v3914 = vsel %vm1023, %v3885, 0
        %v3917 = vsel %vm1023, %v3886, 0
        %v3920 = vsel %vm1023, %v3887, 0
        %v3923 = vsel %vm1023, %v3888, 0
        %v3926 = vsel %vm1023, %v3889, 0
        %v3929 = vsel %vm1023, %v3890, 0
        %v3932 = vsel %vm1023, %v3891, 0
        %v3935 = vsel %vm1023, %v3892, 0
        %v3938 = vsel %vm1023, %v3893, 0
        %v3941 = vsel %vm1023, %v3894, 0
        %v3944 = vsel %vm1023, %v3895, 0
        %v3947 = vsel %vm1023, %v3896, 0
        %3949 = vmatprep.subr.mxu0 0.0
        %3950 = vmatpush1.msra.mxu0 %v1293
        %3951 = vmatprep.subr.mxu0 0.0
        %3952 = vmatpush1.msra.mxu0 %v1294
        %3953 = vmatprep.subr.mxu0 0.0
        %3954 = vmatpush1.msra.mxu0 %v1295
        %3955 = vmatprep.subr.mxu0 0.0
        %3956 = vmatpush1.msra.mxu0 %v1296
        %3957 = vmatprep.subr.mxu0 0.0
        %3958 = vmatpush1.msra.mxu0 0.0
        %3959 = vmatprep.subr.mxu0 0.0
        %3960 = vmatpush1.msra.mxu0 0.0
        %3961 = vmatprep.subr.mxu0 0.0
        %3962 = vmatpush1.msra.mxu0 0.0
        %3963 = vmatprep.subr.mxu0 0.0
        %3964 = vmatpush1.msra.mxu0 0.0
        %3965 = vmatprep.subr.mxu0 0.0
        %3966 = vmatpush1.msra.mxu0 0.0
        %3967 = vmatprep.subr.mxu0 0.0
        %3968 = vmatpush1.msra.mxu0 0.0
        %3969 = vmatprep.subr.mxu0 0.0
        %3970 = vmatpush1.msra.mxu0 0.0
        %3971 = vmatprep.subr.mxu0 0.0
        %3972 = vmatpush1.msra.mxu0 0.0
        %3973 = vmatprep.subr.mxu0 0.0
        %3974 = vmatpush1.msra.mxu0 0.0
        %3975 = vmatprep.subr.mxu0 0.0
        %3976 = vmatpush1.msra.mxu0 0.0
        %3977 = vmatprep.subr.mxu0 0.0
        %3978 = vmatpush1.msra.mxu0 0.0
        %3979 = vmatprep.subr.mxu0 0.0
        %3980 = vmatpush1.msra.mxu0 0.0
        %3981 = vmatprep.subr.mxu0 0.0
        %3982 = vmatpush1.msra.mxu0 0.0
        %3983 = vmatprep.subr.mxu0 0.0
        %3984 = vmatpush1.msra.mxu0 0.0
        %3985 = vmatprep.subr.mxu0 0.0
        %3986 = vmatpush1.msra.mxu0 0.0
        %3987 = vmatprep.subr.mxu0 0.0
        %3988 = vmatpush1.msra.mxu0 0.0
        %3989 = vmatprep.subr.mxu0 0.0
        %3990 = vmatpush1.msra.mxu0 0.0
        %3991 = vmatprep.subr.mxu0 0.0
        %3992 = vmatpush1.msra.mxu0 0.0
        %3993 = vmatprep.subr.mxu0 0.0
        %3994 = vmatpush1.msra.mxu0 0.0
        %3995 = vmatprep.subr.mxu0 0.0
        %3996 = vmatpush1.msra.mxu0 0.0
        %3997 = vmatprep.subr.mxu0 0.0
        %3998 = vmatpush1.msra.mxu0 0.0
        %3999 = vmatprep.subr.mxu0 0.0
        %4000 = vmatpush1.msra.mxu0 0.0
        %4001 = vmatprep.subr.mxu0 0.0
        %4002 = vmatpush1.msra.mxu0 0.0
        %4003 = vmatprep.subr.mxu0 0.0
        %4004 = vmatpush1.msra.mxu0 0.0
        %4005 = vmatprep.subr.mxu0 0.0
        %4006 = vmatpush1.msra.mxu0 0.0
        %4007 = vmatprep.subr.mxu0 0.0
        %4008 = vmatpush1.msra.mxu0 0.0
        %4009 = vmatprep.subr.mxu0 0.0
        %4010 = vmatpush1.msra.mxu0 0.0
        %4011 = vmatprep.subr.mxu0 0.0
        %4012 = vmatpush1.msra.mxu0 0.0
        %4013 = vmatprep.mubr.f32.mxu0 0.0
        %4014 = vmatmul.mubr.f32.gmra.mrb[0].mxu0 %v3902
        %v4015 = vpop.f32.mrb[0].mxu0
        %v4016 = vadd.f32 %v3900, %v4015
        %v4017 = vpop.f32.mrb[0].mxu0
        %4018 = vmatprep.mubr.f32.mxu0 0.0
        %4019 = vmatmul.mubr.f32.gmra.mrb[0].mxu0 %v3905
        %v4020 = vpop.f32.mrb[0].mxu0
        %v4021 = vadd.f32 %v3900, %v4020
        %v4022 = vpop.f32.mrb[0].mxu0
        %4023 = vmatprep.mubr.f32.mxu0 0.0
        %4024 = vmatmul.mubr.f32.gmra.mrb[0].mxu0 %v3908
        %v4025 = vpop.f32.mrb[0].mxu0
        %v4026 = vadd.f32 %v3900, %v4025
        %v4027 = vpop.f32.mrb[0].mxu0
        %4028 = vmatprep.mubr.f32.mxu0 0.0
        %4029 = vmatmul.mubr.f32.gmra.mrb[0].mxu0 %v3911
        %v4030 = vpop.f32.mrb[0].mxu0
        %v4031 = vadd.f32 %v3900, %v4030
        %v4032 = vpop.f32.mrb[0].mxu0
        %4033 = vmatprep.mubr.f32.mxu0 0.0
        %4034 = vmatmul.mubr.f32.gmra.mrb[0].mxu0 %v3914
        %v4035 = vpop.f32.mrb[0].mxu0
        %v4036 = vadd.f32 %v3900, %v4035
        %v4037 = vpop.f32.mrb[0].mxu0
        %4038 = vmatprep.mubr.f32.mxu0 0.0
        %4039 = vmatmul.mubr.f32.gmra.mrb[0].mxu0 %v3917
        %v4040 = vpop.f32.mrb[0].mxu0
        %v4041 = vadd.f32 %v3900, %v4040
        %v4042 = vpop.f32.mrb[0].mxu0
        %4043 = vmatprep.mubr.f32.mxu0 0.0
        %4044 = vmatmul.mubr.f32.gmra.mrb[0].mxu0 %v3920
        %v4045 = vpop.f32.mrb[0].mxu0
        %v4046 = vadd.f32 %v3900, %v4045
        %v4047 = vpop.f32.mrb[0].mxu0
        %4048 = vmatprep.mubr.f32.mxu0 0.0
        %4049 = vmatmul.mubr.f32.gmra.mrb[0].mxu0 %v3923
        %v4050 = vpop.f32.mrb[0].mxu0
        %v4051 = vadd.f32 %v3900, %v4050
        %v4052 = vpop.f32.mrb[0].mxu0
        %4053 = vmatprep.mubr.f32.mxu0 0.0
        %4054 = vmatmul.mubr.f32.gmra.mrb[0].mxu0 %v3926
        %v4055 = vpop.f32.mrb[0].mxu0
        %v4056 = vadd.f32 %v3900, %v4055
        %v4057 = vpop.f32.mrb[0].mxu0
        %4058 = vmatprep.mubr.f32.mxu0 0.0
        %4059 = vmatmul.mubr.f32.gmra.mrb[0].mxu0 %v3929
        %v4060 = vpop.f32.mrb[0].mxu0
        %v4061 = vadd.f32 %v3900, %v4060
        %v4062 = vpop.f32.mrb[0].mxu0
        %4063 = vmatprep.mubr.f32.mxu0 0.0
        %4064 = vmatmul.mubr.f32.gmra.mrb[0].mxu0 %v3932
        %v4065 = vpop.f32.mrb[0].mxu0
        %v4066 = vadd.f32 %v3900, %v4065
        %v4067 = vpop.f32.mrb[0].mxu0
        %4068 = vmatprep.mubr.f32.mxu0 0.0
        %4069 = vmatmul.mubr.f32.gmra.mrb[0].mxu0 %v3935
        %v4070 = vpop.f32.mrb[0].mxu0
        %v4071 = vadd.f32 %v3900, %v4070
        %v4072 = vpop.f32.mrb[0].mxu0
        %4073 = vmatprep.mubr.f32.mxu0 0.0
        %4074 = vmatmul.mubr.f32.gmra.mrb[0].mxu0 %v3938
        %v4075 = vpop.f32.mrb[0].mxu0
        %v4076 = vadd.f32 %v3900, %v4075
        %v4077 = vpop.f32.mrb[0].mxu0
        %4078 = vmatprep.mubr.f32.mxu0 0.0
        %4079 = vmatmul.mubr.f32.gmra.mrb[0].mxu0 %v3941
        %v4080 = vpop.f32.mrb[0].mxu0
        %v4081 = vadd.f32 %v3900, %v4080
        %v4082 = vpop.f32.mrb[0].mxu0
        %4083 = vmatprep.mubr.f32.mxu0 0.0
        %4084 = vmatmul.mubr.f32.gmra.mrb[0].mxu0 %v3944
        %v4085 = vpop.f32.mrb[0].mxu0
        %v4086 = vadd.f32 %v3900, %v4085
        %v4087 = vpop.f32.mrb[0].mxu0
        %4088 = vmatprep.mubr.f32.mxu0 0.0
        %4089 = vmatmul.mubr.f32.gmra.mrb[0].mxu0 %v3947
        %v4090 = vpop.f32.mrb[0].mxu0
        %v4091 = vadd.f32 %v3900, %v4090
        %v4092 = vpop.f32.mrb[0].mxu0
        %4093 = vdwg.mxu0
        %v4094 = vadd.f32 %v3540, %v4016
        %v4095 = vadd.f32 %v3541, %v4021
        %v4096 = vadd.f32 %v3542, %v4026
        %v4097 = vadd.f32 %v3543, %v4031
        %v4098 = vadd.f32 %v3544, %v4036
        %v4099 = vadd.f32 %v3545, %v4041
        %v4100 = vadd.f32 %v3546, %v4046
        %v4101 = vadd.f32 %v3547, %v4051
        %v4102 = vadd.f32 %v3548, %v4056
        %v4103 = vadd.f32 %v3549, %v4061
        %v4104 = vadd.f32 %v3550, %v4066
        %v4105 = vadd.f32 %v3551, %v4071
        %v4106 = vadd.f32 %v3552, %v4076
        %v4107 = vadd.f32 %v3553, %v4081
        %v4108 = vadd.f32 %v3554, %v4086
        %v4109 = vadd.f32 %v3555, %v4091
        %v4110 = vsel %vm1023, %v4094, 0.0
        %4111 = vadd.xlane.f32.xlu0 %v4110
        %v4112 = vpop.xlane.xlu0 %4111
        %v4113 = vsel %vm1023, %v4095, 0.0
        %4114 = vadd.xlane.f32.xlu0 %v4113
        %v4115 = vpop.xlane.xlu0 %4114
        %v4116 = vsel %vm1023, %v4096, 0.0
        %4117 = vadd.xlane.f32.xlu0 %v4116
        %v4118 = vpop.xlane.xlu0 %4117
        %v4119 = vsel %vm1023, %v4097, 0.0
        %4120 = vadd.xlane.f32.xlu0 %v4119
        %v4121 = vpop.xlane.xlu0 %4120
        %v4122 = vsel %vm1023, %v4098, 0.0
        %4123 = vadd.xlane.f32.xlu0 %v4122
        %v4124 = vpop.xlane.xlu0 %4123
        %v4125 = vsel %vm1023, %v4099, 0.0
        %4126 = vadd.xlane.f32.xlu0 %v4125
        %v4127 = vpop.xlane.xlu0 %4126
        %v4128 = vsel %vm1023, %v4100, 0.0
        %4129 = vadd.xlane.f32.xlu0 %v4128
        %v4130 = vpop.xlane.xlu0 %4129
        %v4131 = vsel %vm1023, %v4101, 0.0
        %4132 = vadd.xlane.f32.xlu0 %v4131
        %v4133 = vpop.xlane.xlu0 %4132
        %v4134 = vsel %vm1023, %v4102, 0.0
        %4135 = vadd.xlane.f32.xlu0 %v4134
        %v4136 = vpop.xlane.xlu0 %4135
        %v4137 = vsel %vm1023, %v4103, 0.0
        %4138 = vadd.xlane.f32.xlu0 %v4137
        %v4139 = vpop.xlane.xlu0 %4138
        %v4140 = vsel %vm1023, %v4104, 0.0
        %4141 = vadd.xlane.f32.xlu0 %v4140
        %v4142 = vpop.xlane.xlu0 %4141
        %v4143 = vsel %vm1023, %v4105, 0.0
        %4144 = vadd.xlane.f32.xlu0 %v4143
        %v4145 = vpop.xlane.xlu0 %4144
        %v4146 = vsel %vm1023, %v4106, 0.0
        %4147 = vadd.xlane.f32.xlu0 %v4146
        %v4148 = vpop.xlane.xlu0 %4147
        %v4149 = vsel %vm1023, %v4107, 0.0
        %4150 = vadd.xlane.f32.xlu0 %v4149
        %v4151 = vpop.xlane.xlu0 %4150
        %v4152 = vsel %vm1023, %v4108, 0.0
        %4153 = vadd.xlane.f32.xlu0 %v4152
        %v4154 = vpop.xlane.xlu0 %4153
        %v4155 = vsel %vm1023, %v4109, 0.0
        %4156 = vadd.xlane.f32.xlu0 %v4155
        %v4157 = vpop.xlane.xlu0 %4156
        %v4158 = vmul.f32 %v4112, %v1072
        %v4159 = vmul.f32 %v4115, %v1072
        %v4160 = vmul.f32 %v4118, %v1072
        %v4161 = vmul.f32 %v4121, %v1072
        %v4162 = vmul.f32 %v4124, %v1072
        %v4163 = vmul.f32 %v4127, %v1072
        %v4164 = vmul.f32 %v4130, %v1072
        %v4165 = vmul.f32 %v4133, %v1072
        %v4166 = vmul.f32 %v4136, %v1072
        %v4167 = vmul.f32 %v4139, %v1072
        %v4168 = vmul.f32 %v4142, %v1072
        %v4169 = vmul.f32 %v4145, %v1072
        %v4170 = vmul.f32 %v4148, %v1072
        %v4171 = vmul.f32 %v4151, %v1072
        %v4172 = vmul.f32 %v4154, %v1072
        %v4173 = vmul.f32 %v4157, %v1072
        %v4174 = vsub.f32 %v4094, %v4158
        %v4175 = vsub.f32 %v4095, %v4159
        %v4176 = vsub.f32 %v4096, %v4160
        %v4177 = vsub.f32 %v4097, %v4161
        %v4178 = vsub.f32 %v4098, %v4162
        %v4179 = vsub.f32 %v4099, %v4163
        %v4180 = vsub.f32 %v4100, %v4164
        %v4181 = vsub.f32 %v4101, %v4165
        %v4182 = vsub.f32 %v4102, %v4166
        %v4183 = vsub.f32 %v4103, %v4167
        %v4184 = vsub.f32 %v4104, %v4168
        %v4185 = vsub.f32 %v4105, %v4169
        %v4186 = vsub.f32 %v4106, %v4170
        %v4187 = vsub.f32 %v4107, %v4171
        %v4188 = vsub.f32 %v4108, %v4172
        %v4189 = vsub.f32 %v4109, %v4173
        %v4190 = vmul.f32 %v4174, %v4174
        %v4191 = vmul.f32 %v4175, %v4175
        %v4192 = vmul.f32 %v4176, %v4176
        %v4193 = vmul.f32 %v4177, %v4177
        %v4194 = vmul.f32 %v4178, %v4178
        %v4195 = vmul.f32 %v4179, %v4179
        %v4196 = vmul.f32 %v4180, %v4180
        %v4197 = vmul.f32 %v4181, %v4181
        %v4198 = vmul.f32 %v4182, %v4182
        %v4199 = vmul.f32 %v4183, %v4183
        %v4200 = vmul.f32 %v4184, %v4184
        %v4201 = vmul.f32 %v4185, %v4185
        %v4202 = vmul.f32 %v4186, %v4186
        %v4203 = vmul.f32 %v4187, %v4187
        %v4204 = vmul.f32 %v4188, %v4188
        %v4205 = vmul.f32 %v4189, %v4189
        %v4206 = vsel %vm1023, %v4190, 0.0
        %4207 = vadd.xlane.f32.xlu0 %v4206
        %v4208 = vpop.xlane.xlu0 %4207
        %v4209 = vsel %vm1023, %v4191, 0.0
        %4210 = vadd.xlane.f32.xlu0 %v4209
        %v4211 = vpop.xlane.xlu0 %4210
        %v4212 = vsel %vm1023, %v4192, 0.0
        %4213 = vadd.xlane.f32.xlu0 %v4212
        %v4214 = vpop.xlane.xlu0 %4213
        %v4215 = vsel %vm1023, %v4193, 0.0
        %4216 = vadd.xlane.f32.xlu0 %v4215
        %v4217 = vpop.xlane.xlu0 %4216
        %v4218 = vsel %vm1023, %v4194, 0.0
        %4219 = vadd.xlane.f32.xlu0 %v4218
        %v4220 = vpop.xlane.xlu0 %4219
        %v4221 = vsel %vm1023, %v4195, 0.0
        %4222 = vadd.xlane.f32.xlu0 %v4221
        %v4223 = vpop.xlane.xlu0 %4222
        %v4224 = vsel %vm1023, %v4196, 0.0
        %4225 = vadd.xlane.f32.xlu0 %v4224
        %v4226 = vpop.xlane.xlu0 %4225
        %v4227 = vsel %vm1023, %v4197, 0.0
        %4228 = vadd.xlane.f32.xlu0 %v4227
        %v4229 = vpop.xlane.xlu0 %4228
        %v4230 = vsel %vm1023, %v4198, 0.0
        %4231 = vadd.xlane.f32.xlu0 %v4230
        %v4232 = vpop.xlane.xlu0 %4231
        %v4233 = vsel %vm1023, %v4199, 0.0
        %4234 = vadd.xlane.f32.xlu0 %v4233
        %v4235 = vpop.xlane.xlu0 %4234
        %v4236 = vsel %vm1023, %v4200, 0.0
        %4237 = vadd.xlane.f32.xlu0 %v4236
        %v4238 = vpop.xlane.xlu0 %4237
        %v4239 = vsel %vm1023, %v4201, 0.0
        %4240 = vadd.xlane.f32.xlu0 %v4239
        %v4241 = vpop.xlane.xlu0 %4240
        %v4242 = vsel %vm1023, %v4202, 0.0
        %4243 = vadd.xlane.f32.xlu0 %v4242
        %v4244 = vpop.xlane.xlu0 %4243
        %v4245 = vsel %vm1023, %v4203, 0.0
        %4246 = vadd.xlane.f32.xlu0 %v4245
        %v4247 = vpop.xlane.xlu0 %4246
        %v4248 = vsel %vm1023, %v4204, 0.0
        %4249 = vadd.xlane.f32.xlu0 %v4248
        %v4250 = vpop.xlane.xlu0 %4249
        %v4251 = vsel %vm1023, %v4205, 0.0
        %4252 = vadd.xlane.f32.xlu0 %v4251
        %v4253 = vpop.xlane.xlu0 %4252
        %v4254 = vmul.f32 %v4208, %v1072
        %v4255 = vmul.f32 %v4211, %v1072
        %v4256 = vmul.f32 %v4214, %v1072
        %v4257 = vmul.f32 %v4217, %v1072
        %v4258 = vmul.f32 %v4220, %v1072
        %v4259 = vmul.f32 %v4223, %v1072
        %v4260 = vmul.f32 %v4226, %v1072
        %v4261 = vmul.f32 %v4229, %v1072
        %v4262 = vmul.f32 %v4232, %v1072
        %v4263 = vmul.f32 %v4235, %v1072
        %v4264 = vmul.f32 %v4238, %v1072
        %v4265 = vmul.f32 %v4241, %v1072
        %v4266 = vmul.f32 %v4244, %v1072
        %v4267 = vmul.f32 %v4247, %v1072
        %v4268 = vmul.f32 %v4250, %v1072
        %v4269 = vmul.f32 %v4253, %v1072
        %v4270 = vadd.f32 %v4254, 1e-05
        %v4271 = vadd.f32 %v4255, 1e-05
        %v4272 = vadd.f32 %v4256, 1e-05
        %v4273 = vadd.f32 %v4257, 1e-05
        %v4274 = vadd.f32 %v4258, 1e-05
        %v4275 = vadd.f32 %v4259, 1e-05
        %v4276 = vadd.f32 %v4260, 1e-05
        %v4277 = vadd.f32 %v4261, 1e-05
        %v4278 = vadd.f32 %v4262, 1e-05
        %v4279 = vadd.f32 %v4263, 1e-05
        %v4280 = vadd.f32 %v4264, 1e-05
        %v4281 = vadd.f32 %v4265, 1e-05
        %v4282 = vadd.f32 %v4266, 1e-05
        %v4283 = vadd.f32 %v4267, 1e-05
        %v4284 = vadd.f32 %v4268, 1e-05
        %v4285 = vadd.f32 %v4269, 1e-05
        %v4286 = vrsqrt.pop %v4270
        %v4287 = vrsqrt.pop %v4271
        %v4288 = vrsqrt.pop %v4272
        %v4289 = vrsqrt.pop %v4273
        %v4290 = vrsqrt.pop %v4274
        %v4291 = vrsqrt.pop %v4275
        %v4292 = vrsqrt.pop %v4276
        %v4293 = vrsqrt.pop %v4277
        %v4294 = vrsqrt.pop %v4278
        %v4295 = vrsqrt.pop %v4279
        %v4296 = vrsqrt.pop %v4280
        %v4297 = vrsqrt.pop %v4281
        %v4298 = vrsqrt.pop %v4282
        %v4299 = vrsqrt.pop %v4283
        %v4300 = vrsqrt.pop %v4284
        %v4301 = vrsqrt.pop %v4285
        %v4302 = vmul.f32 %v4174, %v4286
        %v4303 = vmul.f32 %v4175, %v4287
        %v4304 = vmul.f32 %v4176, %v4288
        %v4305 = vmul.f32 %v4177, %v4289
        %v4306 = vmul.f32 %v4178, %v4290
        %v4307 = vmul.f32 %v4179, %v4291
        %v4308 = vmul.f32 %v4180, %v4292
        %v4309 = vmul.f32 %v4181, %v4293
        %v4310 = vmul.f32 %v4182, %v4294
        %v4311 = vmul.f32 %v4183, %v4295
        %v4312 = vmul.f32 %v4184, %v4296
        %v4313 = vmul.f32 %v4185, %v4297
        %v4314 = vmul.f32 %v4186, %v4298
        %v4315 = vmul.f32 %v4187, %v4299
        %v4316 = vmul.f32 %v4188, %v4300
        %v4317 = vmul.f32 %v4189, %v4301
        %v4318 = vlaneseq
        %v4319 = vshrl.u32 %v4318, 7
        %v4320 = vsub.s32 0, %v4319
        %v4321 = vrot.slane %v1298, %v4320
        %v4322 = vmul.f32 %v4302, %v4321
        %v4323 = vmul.f32 %v4303, %v4321
        %v4324 = vmul.f32 %v4304, %v4321
        %v4325 = vmul.f32 %v4305, %v4321
        %v4326 = vmul.f32 %v4306, %v4321
        %v4327 = vmul.f32 %v4307, %v4321
        %v4328 = vmul.f32 %v4308, %v4321
        %v4329 = vmul.f32 %v4309, %v4321
        %v4330 = vmul.f32 %v4310, %v4321
        %v4331 = vmul.f32 %v4311, %v4321
        %v4332 = vmul.f32 %v4312, %v4321
        %v4333 = vmul.f32 %v4313, %v4321
        %v4334 = vmul.f32 %v4314, %v4321
        %v4335 = vmul.f32 %v4315, %v4321
        %v4336 = vmul.f32 %v4316, %v4321
        %v4337 = vmul.f32 %v4317, %v4321
        %v4338 = vlaneseq
        %v4339 = vshrl.u32 %v4338, 7
        %v4340 = vsub.s32 1, %v4339
        %v4341 = vrot.slane %v1298, %v4340
        %v4342 = vadd.f32 %v4322, %v4341
        %v4343 = vadd.f32 %v4323, %v4341
        %v4344 = vadd.f32 %v4324, %v4341
        %v4345 = vadd.f32 %v4325, %v4341
        %v4346 = vadd.f32 %v4326, %v4341
        %v4347 = vadd.f32 %v4327, %v4341
        %v4348 = vadd.f32 %v4328, %v4341
        %v4349 = vadd.f32 %v4329, %v4341
        %v4350 = vadd.f32 %v4330, %v4341
        %v4351 = vadd.f32 %v4331, %v4341
        %v4352 = vadd.f32 %v4332, %v4341
        %v4353 = vadd.f32 %v4333, %v4341
        %v4354 = vadd.f32 %v4334, %v4341
        %v4355 = vadd.f32 %v4335, %v4341
        %v4356 = vadd.f32 %v4336, %v4341
        %v4357 = vadd.f32 %v4337, %v4341
        %s4358 = scalar_lea.vmem [#allocation2], 192
        %v4359 = vld [vmem:[%s4358] sm:$0xff]
        %v4360 = vld [vmem:[%s4358 + $0x8] sm:$0xff]
        %v4361 = vld [vmem:[%s4358 + $0x10] sm:$0xff]
        %v4362 = vld [vmem:[%s4358 + $0x18] sm:$0xff]
        %v4363 = vld [vmem:[%s4358 + $0x20] sm:$0xff]
        %v4364 = vld [vmem:[%s4358 + $0x28] sm:$0xff]
        %v4365 = vld [vmem:[%s4358 + $0x30] sm:$0xff]
        %v4366 = vld [vmem:[%s4358 + $0x38] sm:$0xff]
        %v4367 = vld [vmem:[%s4358 + $0x40] sm:$0xff]
        %v4368 = vld [vmem:[%s4358 + $0x48] sm:$0xff]
        %v4369 = vld [vmem:[%s4358 + $0x50] sm:$0xff]
        %v4370 = vld [vmem:[%s4358 + $0x58] sm:$0xff]
        %v4371 = vld [vmem:[%s4358 + $0x60] sm:$0xff]
        %v4372 = vld [vmem:[%s4358 + $0x68] sm:$0xff]
        %v4373 = vld [vmem:[%s4358 + $0x70] sm:$0xff]
        %v4374 = vld [vmem:[%s4358 + $0x78] sm:$0xff]
        %v4375 = vld [vmem:[%s4358 + $0x80] sm:$0xff]
        %v4376 = vld [vmem:[%s4358 + $0x88] sm:$0xff]
        %v4377 = vld [vmem:[%s4358 + $0x90] sm:$0xff]
        %v4378 = vld [vmem:[%s4358 + $0x98] sm:$0xff]
        %v4379 = vld [vmem:[%s4358 + $0xa0] sm:$0xff]
        %v4380 = vld [vmem:[%s4358 + $0xa8] sm:$0xff]
        %v4381 = vld [vmem:[%s4358 + $0xb0] sm:$0xff]
        %v4382 = vld [vmem:[%s4358 + $0xb8] sm:$0xff]
        %s4383 = scalar_lea.vmem %s5, 16
        %v4384 = vld [vmem:[%s4383] sm:$0xff]
        %v4385 = vld [vmem:[%s4383 + $0x8] sm:$0x3]
        %v4386 = vlaneseq
        %v4387 = vshrl.u32 %v4386, 7
        %v4388 = vsub.s32 0, %v4387
        %v4389 = vrot.slane %v4384, %v4388
        %v4391 = vsel %vm1023, %v4342, 0
        %v4394 = vsel %vm1023, %v4343, 0
        %v4397 = vsel %vm1023, %v4344, 0
        %v4400 = vsel %vm1023, %v4345, 0
        %v4403 = vsel %vm1023, %v4346, 0
        %v4406 = vsel %vm1023, %v4347, 0
        %v4409 = vsel %vm1023, %v4348, 0
        %v4412 = vsel %vm1023, %v4349, 0
        %v4415 = vsel %vm1023, %v4350, 0
        %v4418 = vsel %vm1023, %v4351, 0
        %v4421 = vsel %vm1023, %v4352, 0
        %v4424 = vsel %vm1023, %v4353, 0
        %v4427 = vsel %vm1023, %v4354, 0
        %v4430 = vsel %vm1023, %v4355, 0
        %v4433 = vsel %vm1023, %v4356, 0
        %v4436 = vsel %vm1023, %v4357, 0
        %4438 = vmatprep.subr.mxu0 0.0
        %4439 = vmatpush1.msra.mxu0 %v4359
        %4440 = vmatprep.subr.mxu0 0.0
        %4441 = vmatpush1.msra.mxu0 %v4360
        %4442 = vmatprep.subr.mxu0 0.0
        %4443 = vmatpush1.msra.mxu0 %v4361
        %4444 = vmatprep.subr.mxu0 0.0
        %4445 = vmatpush1.msra.mxu0 %v4362
        %4446 = vmatprep.subr.mxu0 0.0
        %4447 = vmatpush1.msra.mxu0 0.0
        %4448 = vmatprep.subr.mxu0 0.0
        %4449 = vmatpush1.msra.mxu0 0.0
        %4450 = vmatprep.subr.mxu0 0.0
        %4451 = vmatpush1.msra.mxu0 0.0
        %4452 = vmatprep.subr.mxu0 0.0
        %4453 = vmatpush1.msra.mxu0 0.0
        %4454 = vmatprep.subr.mxu0 0.0
        %4455 = vmatpush1.msra.mxu0 0.0
        %4456 = vmatprep.subr.mxu0 0.0
        %4457 = vmatpush1.msra.mxu0 0.0
        %4458 = vmatprep.subr.mxu0 0.0
        %4459 = vmatpush1.msra.mxu0 0.0
        %4460 = vmatprep.subr.mxu0 0.0
        %4461 = vmatpush1.msra.mxu0 0.0
        %4462 = vmatprep.subr.mxu0 0.0
        %4463 = vmatpush1.msra.mxu0 0.0
        %4464 = vmatprep.subr.mxu0 0.0
        %4465 = vmatpush1.msra.mxu0 0.0
        %4466 = vmatprep.subr.mxu0 0.0
        %4467 = vmatpush1.msra.mxu0 0.0
        %4468 = vmatprep.subr.mxu0 0.0
        %4469 = vmatpush1.msra.mxu0 0.0
        %4470 = vmatprep.subr.mxu0 0.0
        %4471 = vmatpush1.msra.mxu0 0.0
        %4472 = vmatprep.subr.mxu0 0.0
        %4473 = vmatpush1.msra.mxu0 0.0
        %4474 = vmatprep.subr.mxu0 0.0
        %4475 = vmatpush1.msra.mxu0 0.0
        %4476 = vmatprep.subr.mxu0 0.0
        %4477 = vmatpush1.msra.mxu0 0.0
        %4478 = vmatprep.subr.mxu0 0.0
        %4479 = vmatpush1.msra.mxu0 0.0
        %4480 = vmatprep.subr.mxu0 0.0
        %4481 = vmatpush1.msra.mxu0 0.0
        %4482 = vmatprep.subr.mxu0 0.0
        %4483 = vmatpush1.msra.mxu0 0.0
        %4484 = vmatprep.subr.mxu0 0.0
        %4485 = vmatpush1.msra.mxu0 0.0
        %4486 = vmatprep.subr.mxu0 0.0
        %4487 = vmatpush1.msra.mxu0 0.0
        %4488 = vmatprep.subr.mxu0 0.0
        %4489 = vmatpush1.msra.mxu0 0.0
        %4490 = vmatprep.subr.mxu0 0.0
        %4491 = vmatpush1.msra.mxu0 0.0
        %4492 = vmatprep.subr.mxu0 0.0
        %4493 = vmatpush1.msra.mxu0 0.0
        %4494 = vmatprep.subr.mxu0 0.0
        %4495 = vmatpush1.msra.mxu0 0.0
        %4496 = vmatprep.subr.mxu0 0.0
        %4497 = vmatpush1.msra.mxu0 0.0
        %4498 = vmatprep.subr.mxu0 0.0
        %4499 = vmatpush1.msra.mxu0 0.0
        %4500 = vmatprep.subr.mxu0 0.0
        %4501 = vmatpush1.msra.mxu0 0.0
        %4502 = vmatprep.mubr.f32.mxu0 0.0
        %4503 = vmatmul.mubr.f32.gmra.mrb[0].mxu0 %v4391
        %v4504 = vpop.f32.mrb[0].mxu0
        %v4505 = vadd.f32 %v4389, %v4504
        %v4506 = vpop.f32.mrb[0].mxu0
        %4507 = vmatprep.mubr.f32.mxu0 0.0
        %4508 = vmatmul.mubr.f32.gmra.mrb[0].mxu0 %v4394
        %v4509 = vpop.f32.mrb[0].mxu0
        %v4510 = vadd.f32 %v4389, %v4509
        %v4511 = vpop.f32.mrb[0].mxu0
        %4512 = vmatprep.mubr.f32.mxu0 0.0
        %4513 = vmatmul.mubr.f32.gmra.mrb[0].mxu0 %v4397
        %v4514 = vpop.f32.mrb[0].mxu0
        %v4515 = vadd.f32 %v4389, %v4514
        %v4516 = vpop.f32.mrb[0].mxu0
        %4517 = vmatprep.mubr.f32.mxu0 0.0
        %4518 = vmatmul.mubr.f32.gmra.mrb[0].mxu0 %v4400
        %v4519 = vpop.f32.mrb[0].mxu0
        %v4520 = vadd.f32 %v4389, %v4519
        %v4521 = vpop.f32.mrb[0].mxu0
        %4522 = vmatprep.mubr.f32.mxu0 0.0
        %4523 = vmatmul.mubr.f32.gmra.mrb[0].mxu0 %v4403
        %v4524 = vpop.f32.mrb[0].mxu0
        %v4525 = vadd.f32 %v4389, %v4524
        %v4526 = vpop.f32.mrb[0].mxu0
        %4527 = vmatprep.mubr.f32.mxu0 0.0
        %4528 = vmatmul.mubr.f32.gmra.mrb[0].mxu0 %v4406
        %v4529 = vpop.f32.mrb[0].mxu0
        %v4530 = vadd.f32 %v4389, %v4529
        %v4531 = vpop.f32.mrb[0].mxu0
        %4532 = vmatprep.mubr.f32.mxu0 0.0
        %4533 = vmatmul.mubr.f32.gmra.mrb[0].mxu0 %v4409
        %v4534 = vpop.f32.mrb[0].mxu0
        %v4535 = vadd.f32 %v4389, %v4534
        %v4536 = vpop.f32.mrb[0].mxu0
        %4537 = vmatprep.mubr.f32.mxu0 0.0
        %4538 = vmatmul.mubr.f32.gmra.mrb[0].mxu0 %v4412
        %v4539 = vpop.f32.mrb[0].mxu0
        %v4540 = vadd.f32 %v4389, %v4539
        %v4541 = vpop.f32.mrb[0].mxu0
        %4542 = vmatprep.mubr.f32.mxu0 0.0
        %4543 = vmatmul.mubr.f32.gmra.mrb[0].mxu0 %v4415
        %v4544 = vpop.f32.mrb[0].mxu0
        %v4545 = vadd.f32 %v4389, %v4544
        %v4546 = vpop.f32.mrb[0].mxu0
        %4547 = vmatprep.mubr.f32.mxu0 0.0
        %4548 = vmatmul.mubr.f32.gmra.mrb[0].mxu0 %v4418
        %v4549 = vpop.f32.mrb[0].mxu0
        %v4550 = vadd.f32 %v4389, %v4549
        %v4551 = vpop.f32.mrb[0].mxu0
        %4552 = vmatprep.mubr.f32.mxu0 0.0
        %4553 = vmatmul.mubr.f32.gmra.mrb[0].mxu0 %v4421
        %v4554 = vpop.f32.mrb[0].mxu0
        %v4555 = vadd.f32 %v4389, %v4554
        %v4556 = vpop.f32.mrb[0].mxu0
        %4557 = vmatprep.mubr.f32.mxu0 0.0
        %4558 = vmatmul.mubr.f32.gmra.mrb[0].mxu0 %v4424
        %v4559 = vpop.f32.mrb[0].mxu0
        %v4560 = vadd.f32 %v4389, %v4559
        %v4561 = vpop.f32.mrb[0].mxu0
        %4562 = vmatprep.mubr.f32.mxu0 0.0
        %4563 = vmatmul.mubr.f32.gmra.mrb[0].mxu0 %v4427
        %v4564 = vpop.f32.mrb[0].mxu0
        %v4565 = vadd.f32 %v4389, %v4564
        %v4566 = vpop.f32.mrb[0].mxu0
        %4567 = vmatprep.mubr.f32.mxu0 0.0
        %4568 = vmatmul.mubr.f32.gmra.mrb[0].mxu0 %v4430
        %v4569 = vpop.f32.mrb[0].mxu0
        %v4570 = vadd.f32 %v4389, %v4569
        %v4571 = vpop.f32.mrb[0].mxu0
        %4572 = vmatprep.mubr.f32.mxu0 0.0
        %4573 = vmatmul.mubr.f32.gmra.mrb[0].mxu0 %v4433
        %v4574 = vpop.f32.mrb[0].mxu0
        %v4575 = vadd.f32 %v4389, %v4574
        %v4576 = vpop.f32.mrb[0].mxu0
        %4577 = vmatprep.mubr.f32.mxu0 0.0
        %4578 = vmatmul.mubr.f32.gmra.mrb[0].mxu0 %v4436
        %v4579 = vpop.f32.mrb[0].mxu0
        %v4580 = vadd.f32 %v4389, %v4579
        %v4581 = vpop.f32.mrb[0].mxu0
        %4582 = vdwg.mxu0
        %v4583 = vlaneseq
        %v4584 = vshrl.u32 %v4583, 7
        %v4585 = vsub.s32 1, %v4584
        %v4586 = vrot.slane %v4384, %v4585
        %4587 = vmatprep.subr.mxu0 0.0
        %4588 = vmatpush1.msra.mxu0 %v4363
        %4589 = vmatprep.subr.mxu0 0.0
        %4590 = vmatpush1.msra.mxu0 %v4364
        %4591 = vmatprep.subr.mxu0 0.0
        %4592 = vmatpush1.msra.mxu0 %v4365
        %4593 = vmatprep.subr.mxu0 0.0
        %4594 = vmatpush1.msra.mxu0 %v4366
        %4595 = vmatprep.subr.mxu0 0.0
        %4596 = vmatpush1.msra.mxu0 0.0
        %4597 = vmatprep.subr.mxu0 0.0
        %4598 = vmatpush1.msra.mxu0 0.0
        %4599 = vmatprep.subr.mxu0 0.0
        %4600 = vmatpush1.msra.mxu0 0.0
        %4601 = vmatprep.subr.mxu0 0.0
        %4602 = vmatpush1.msra.mxu0 0.0
        %4603 = vmatprep.subr.mxu0 0.0
        %4604 = vmatpush1.msra.mxu0 0.0
        %4605 = vmatprep.subr.mxu0 0.0
        %4606 = vmatpush1.msra.mxu0 0.0
        %4607 = vmatprep.subr.mxu0 0.0
        %4608 = vmatpush1.msra.mxu0 0.0
        %4609 = vmatprep.subr.mxu0 0.0
        %4610 = vmatpush1.msra.mxu0 0.0
        %4611 = vmatprep.subr.mxu0 0.0
        %4612 = vmatpush1.msra.mxu0 0.0
        %4613 = vmatprep.subr.mxu0 0.0
        %4614 = vmatpush1.msra.mxu0 0.0
        %4615 = vmatprep.subr.mxu0 0.0
        %4616 = vmatpush1.msra.mxu0 0.0
        %4617 = vmatprep.subr.mxu0 0.0
        %4618 = vmatpush1.msra.mxu0 0.0
        %4619 = vmatprep.subr.mxu0 0.0
        %4620 = vmatpush1.msra.mxu0 0.0
        %4621 = vmatprep.subr.mxu0 0.0
        %4622 = vmatpush1.msra.mxu0 0.0
        %4623 = vmatprep.subr.mxu0 0.0
        %4624 = vmatpush1.msra.mxu0 0.0
        %4625 = vmatprep.subr.mxu0 0.0
        %4626 = vmatpush1.msra.mxu0 0.0
        %4627 = vmatprep.subr.mxu0 0.0
        %4628 = vmatpush1.msra.mxu0 0.0
        %4629 = vmatprep.subr.mxu0 0.0
        %4630 = vmatpush1.msra.mxu0 0.0
        %4631 = vmatprep.subr.mxu0 0.0
        %4632 = vmatpush1.msra.mxu0 0.0
        %4633 = vmatprep.subr.mxu0 0.0
        %4634 = vmatpush1.msra.mxu0 0.0
        %4635 = vmatprep.subr.mxu0 0.0
        %4636 = vmatpush1.msra.mxu0 0.0
        %4637 = vmatprep.subr.mxu0 0.0
        %4638 = vmatpush1.msra.mxu0 0.0
        %4639 = vmatprep.subr.mxu0 0.0
        %4640 = vmatpush1.msra.mxu0 0.0
        %4641 = vmatprep.subr.mxu0 0.0
        %4642 = vmatpush1.msra.mxu0 0.0
        %4643 = vmatprep.subr.mxu0 0.0
        %4644 = vmatpush1.msra.mxu0 0.0
        %4645 = vmatprep.subr.mxu0 0.0
        %4646 = vmatpush1.msra.mxu0 0.0
        %4647 = vmatprep.subr.mxu0 0.0
        %4648 = vmatpush1.msra.mxu0 0.0
        %4649 = vmatprep.subr.mxu0 0.0
        %4650 = vmatpush1.msra.mxu0 0.0
        %4651 = vmatprep.mubr.f32.mxu0 0.0
        %4652 = vmatmul.mubr.f32.gmra.mrb[0].mxu0 %v4391
        %v4653 = vpop.f32.mrb[0].mxu0
        %v4654 = vadd.f32 %v4586, %v4653
        %v4655 = vpop.f32.mrb[0].mxu0
        %4656 = vmatprep.mubr.f32.mxu0 0.0
        %4657 = vmatmul.mubr.f32.gmra.mrb[0].mxu0 %v4394
        %v4658 = vpop.f32.mrb[0].mxu0
        %v4659 = vadd.f32 %v4586, %v4658
        %v4660 = vpop.f32.mrb[0].mxu0
        %4661 = vmatprep.mubr.f32.mxu0 0.0
        %4662 = vmatmul.mubr.f32.gmra.mrb[0].mxu0 %v4397
        %v4663 = vpop.f32.mrb[0].mxu0
        %v4664 = vadd.f32 %v4586, %v4663
        %v4665 = vpop.f32.mrb[0].mxu0
        %4666 = vmatprep.mubr.f32.mxu0 0.0
        %4667 = vmatmul.mubr.f32.gmra.mrb[0].mxu0 %v4400
        %v4668 = vpop.f32.mrb[0].mxu0
        %v4669 = vadd.f32 %v4586, %v4668
        %v4670 = vpop.f32.mrb[0].mxu0
        %4671 = vmatprep.mubr.f32.mxu0 0.0
        %4672 = vmatmul.mubr.f32.gmra.mrb[0].mxu0 %v4403
        %v4673 = vpop.f32.mrb[0].mxu0
        %v4674 = vadd.f32 %v4586, %v4673
        %v4675 = vpop.f32.mrb[0].mxu0
        %4676 = vmatprep.mubr.f32.mxu0 0.0
        %4677 = vmatmul.mubr.f32.gmra.mrb[0].mxu0 %v4406
        %v4678 = vpop.f32.mrb[0].mxu0
        %v4679 = vadd.f32 %v4586, %v4678
        %v4680 = vpop.f32.mrb[0].mxu0
        %4681 = vmatprep.mubr.f32.mxu0 0.0
        %4682 = vmatmul.mubr.f32.gmra.mrb[0].mxu0 %v4409
        %v4683 = vpop.f32.mrb[0].mxu0
        %v4684 = vadd.f32 %v4586, %v4683
        %v4685 = vpop.f32.mrb[0].mxu0
        %4686 = vmatprep.mubr.f32.mxu0 0.0
        %4687 = vmatmul.mubr.f32.gmra.mrb[0].mxu0 %v4412
        %v4688 = vpop.f32.mrb[0].mxu0
        %v4689 = vadd.f32 %v4586, %v4688
        %v4690 = vpop.f32.mrb[0].mxu0
        %4691 = vmatprep.mubr.f32.mxu0 0.0
        %4692 = vmatmul.mubr.f32.gmra.mrb[0].mxu0 %v4415
        %v4693 = vpop.f32.mrb[0].mxu0
        %v4694 = vadd.f32 %v4586, %v4693
        %v4695 = vpop.f32.mrb[0].mxu0
        %4696 = vmatprep.mubr.f32.mxu0 0.0
        %4697 = vmatmul.mubr.f32.gmra.mrb[0].mxu0 %v4418
        %v4698 = vpop.f32.mrb[0].mxu0
        %v4699 = vadd.f32 %v4586, %v4698
        %v4700 = vpop.f32.mrb[0].mxu0
        %4701 = vmatprep.mubr.f32.mxu0 0.0
        %4702 = vmatmul.mubr.f32.gmra.mrb[0].mxu0 %v4421
        %v4703 = vpop.f32.mrb[0].mxu0
        %v4704 = vadd.f32 %v4586, %v4703
        %v4705 = vpop.f32.mrb[0].mxu0
        %4706 = vmatprep.mubr.f32.mxu0 0.0
        %4707 = vmatmul.mubr.f32.gmra.mrb[0].mxu0 %v4424
        %v4708 = vpop.f32.mrb[0].mxu0
        %v4709 = vadd.f32 %v4586, %v4708
        %v4710 = vpop.f32.mrb[0].mxu0
        %4711 = vmatprep.mubr.f32.mxu0 0.0
        %4712 = vmatmul.mubr.f32.gmra.mrb[0].mxu0 %v4427
        %v4713 = vpop.f32.mrb[0].mxu0
        %v4714 = vadd.f32 %v4586, %v4713
        %v4715 = vpop.f32.mrb[0].mxu0
        %4716 = vmatprep.mubr.f32.mxu0 0.0
        %4717 = vmatmul.mubr.f32.gmra.mrb[0].mxu0 %v4430
        %v4718 = vpop.f32.mrb[0].mxu0
        %v4719 = vadd.f32 %v4586, %v4718
        %v4720 = vpop.f32.mrb[0].mxu0
        %4721 = vmatprep.mubr.f32.mxu0 0.0
        %4722 = vmatmul.mubr.f32.gmra.mrb[0].mxu0 %v4433
        %v4723 = vpop.f32.mrb[0].mxu0
        %v4724 = vadd.f32 %v4586, %v4723
        %v4725 = vpop.f32.mrb[0].mxu0
        %4726 = vmatprep.mubr.f32.mxu0 0.0
        %4727 = vmatmul.mubr.f32.gmra.mrb[0].mxu0 %v4436
        %v4728 = vpop.f32.mrb[0].mxu0
        %v4729 = vadd.f32 %v4586, %v4728
        %v4730 = vpop.f32.mrb[0].mxu0
        %4731 = vdwg.mxu0
        %v4732 = vlaneseq
        %v4733 = vshrl.u32 %v4732, 7
        %v4734 = vsub.s32 2, %v4733
        %v4735 = vrot.slane %v4384, %v4734
        %4736 = vmatprep.subr.mxu0 0.0
        %4737 = vmatpush1.msra.mxu0 %v4367
        %4738 = vmatprep.subr.mxu0 0.0
        %4739 = vmatpush1.msra.mxu0 %v4368
        %4740 = vmatprep.subr.mxu0 0.0
        %4741 = vmatpush1.msra.mxu0 %v4369
        %4742 = vmatprep.subr.mxu0 0.0
        %4743 = vmatpush1.msra.mxu0 %v4370
        %4744 = vmatprep.subr.mxu0 0.0
        %4745 = vmatpush1.msra.mxu0 0.0
        %4746 = vmatprep.subr.mxu0 0.0
        %4747 = vmatpush1.msra.mxu0 0.0
        %4748 = vmatprep.subr.mxu0 0.0
        %4749 = vmatpush1.msra.mxu0 0.0
        %4750 = vmatprep.subr.mxu0 0.0
        %4751 = vmatpush1.msra.mxu0 0.0
        %4752 = vmatprep.subr.mxu0 0.0
        %4753 = vmatpush1.msra.mxu0 0.0
        %4754 = vmatprep.subr.mxu0 0.0
        %4755 = vmatpush1.msra.mxu0 0.0
        %4756 = vmatprep.subr.mxu0 0.0
        %4757 = vmatpush1.msra.mxu0 0.0
        %4758 = vmatprep.subr.mxu0 0.0
        %4759 = vmatpush1.msra.mxu0 0.0
        %4760 = vmatprep.subr.mxu0 0.0
        %4761 = vmatpush1.msra.mxu0 0.0
        %4762 = vmatprep.subr.mxu0 0.0
        %4763 = vmatpush1.msra.mxu0 0.0
        %4764 = vmatprep.subr.mxu0 0.0
        %4765 = vmatpush1.msra.mxu0 0.0
        %4766 = vmatprep.subr.mxu0 0.0
        %4767 = vmatpush1.msra.mxu0 0.0
        %4768 = vmatprep.subr.mxu0 0.0
        %4769 = vmatpush1.msra.mxu0 0.0
        %4770 = vmatprep.subr.mxu0 0.0
        %4771 = vmatpush1.msra.mxu0 0.0
        %4772 = vmatprep.subr.mxu0 0.0
        %4773 = vmatpush1.msra.mxu0 0.0
        %4774 = vmatprep.subr.mxu0 0.0
        %4775 = vmatpush1.msra.mxu0 0.0
        %4776 = vmatprep.subr.mxu0 0.0
        %4777 = vmatpush1.msra.mxu0 0.0
        %4778 = vmatprep.subr.mxu0 0.0
        %4779 = vmatpush1.msra.mxu0 0.0
        %4780 = vmatprep.subr.mxu0 0.0
        %4781 = vmatpush1.msra.mxu0 0.0
        %4782 = vmatprep.subr.mxu0 0.0
        %4783 = vmatpush1.msra.mxu0 0.0
        %4784 = vmatprep.subr.mxu0 0.0
        %4785 = vmatpush1.msra.mxu0 0.0
        %4786 = vmatprep.subr.mxu0 0.0
        %4787 = vmatpush1.msra.mxu0 0.0
        %4788 = vmatprep.subr.mxu0 0.0
        %4789 = vmatpush1.msra.mxu0 0.0
        %4790 = vmatprep.subr.mxu0 0.0
        %4791 = vmatpush1.msra.mxu0 0.0
        %4792 = vmatprep.subr.mxu0 0.0
        %4793 = vmatpush1.msra.mxu0 0.0
        %4794 = vmatprep.subr.mxu0 0.0
        %4795 = vmatpush1.msra.mxu0 0.0
        %4796 = vmatprep.subr.mxu0 0.0
        %4797 = vmatpush1.msra.mxu0 0.0
        %4798 = vmatprep.subr.mxu0 0.0
        %4799 = vmatpush1.msra.mxu0 0.0
        %4800 = vmatprep.mubr.f32.mxu0 0.0
        %4801 = vmatmul.mubr.f32.gmra.mrb[0].mxu0 %v4391
        %v4802 = vpop.f32.mrb[0].mxu0
        %v4803 = vadd.f32 %v4735, %v4802
        %v4804 = vpop.f32.mrb[0].mxu0
        %4805 = vmatprep.mubr.f32.mxu0 0.0
        %4806 = vmatmul.mubr.f32.gmra.mrb[0].mxu0 %v4394
        %v4807 = vpop.f32.mrb[0].mxu0
        %v4808 = vadd.f32 %v4735, %v4807
        %v4809 = vpop.f32.mrb[0].mxu0
        %4810 = vmatprep.mubr.f32.mxu0 0.0
        %4811 = vmatmul.mubr.f32.gmra.mrb[0].mxu0 %v4397
        %v4812 = vpop.f32.mrb[0].mxu0
        %v4813 = vadd.f32 %v4735, %v4812
        %v4814 = vpop.f32.mrb[0].mxu0
        %4815 = vmatprep.mubr.f32.mxu0 0.0
        %4816 = vmatmul.mubr.f32.gmra.mrb[0].mxu0 %v4400
        %v4817 = vpop.f32.mrb[0].mxu0
        %v4818 = vadd.f32 %v4735, %v4817
        %v4819 = vpop.f32.mrb[0].mxu0
        %4820 = vmatprep.mubr.f32.mxu0 0.0
        %4821 = vmatmul.mubr.f32.gmra.mrb[0].mxu0 %v4403
        %v4822 = vpop.f32.mrb[0].mxu0
        %v4823 = vadd.f32 %v4735, %v4822
        %v4824 = vpop.f32.mrb[0].mxu0
        %4825 = vmatprep.mubr.f32.mxu0 0.0
        %4826 = vmatmul.mubr.f32.gmra.mrb[0].mxu0 %v4406
        %v4827 = vpop.f32.mrb[0].mxu0
        %v4828 = vadd.f32 %v4735, %v4827
        %v4829 = vpop.f32.mrb[0].mxu0
        %4830 = vmatprep.mubr.f32.mxu0 0.0
        %4831 = vmatmul.mubr.f32.gmra.mrb[0].mxu0 %v4409
        %v4832 = vpop.f32.mrb[0].mxu0
        %v4833 = vadd.f32 %v4735, %v4832
        %v4834 = vpop.f32.mrb[0].mxu0
        %4835 = vmatprep.mubr.f32.mxu0 0.0
        %4836 = vmatmul.mubr.f32.gmra.mrb[0].mxu0 %v4412
        %v4837 = vpop.f32.mrb[0].mxu0
        %v4838 = vadd.f32 %v4735, %v4837
        %v4839 = vpop.f32.mrb[0].mxu0
        %4840 = vmatprep.mubr.f32.mxu0 0.0
        %4841 = vmatmul.mubr.f32.gmra.mrb[0].mxu0 %v4415
        %v4842 = vpop.f32.mrb[0].mxu0
        %v4843 = vadd.f32 %v4735, %v4842
        %v4844 = vpop.f32.mrb[0].mxu0
        %4845 = vmatprep.mubr.f32.mxu0 0.0
        %4846 = vmatmul.mubr.f32.gmra.mrb[0].mxu0 %v4418
        %v4847 = vpop.f32.mrb[0].mxu0
        %v4848 = vadd.f32 %v4735, %v4847
        %v4849 = vpop.f32.mrb[0].mxu0
        %4850 = vmatprep.mubr.f32.mxu0 0.0
        %4851 = vmatmul.mubr.f32.gmra.mrb[0].mxu0 %v4421
        %v4852 = vpop.f32.mrb[0].mxu0
        %v4853 = vadd.f32 %v4735, %v4852
        %v4854 = vpop.f32.mrb[0].mxu0
        %4855 = vmatprep.mubr.f32.mxu0 0.0
        %4856 = vmatmul.mubr.f32.gmra.mrb[0].mxu0 %v4424
        %v4857 = vpop.f32.mrb[0].mxu0
        %v4858 = vadd.f32 %v4735, %v4857
        %v4859 = vpop.f32.mrb[0].mxu0
        %4860 = vmatprep.mubr.f32.mxu0 0.0
        %4861 = vmatmul.mubr.f32.gmra.mrb[0].mxu0 %v4427
        %v4862 = vpop.f32.mrb[0].mxu0
        %v4863 = vadd.f32 %v4735, %v4862
        %v4864 = vpop.f32.mrb[0].mxu0
        %4865 = vmatprep.mubr.f32.mxu0 0.0
        %4866 = vmatmul.mubr.f32.gmra.mrb[0].mxu0 %v4430
        %v4867 = vpop.f32.mrb[0].mxu0
        %v4868 = vadd.f32 %v4735, %v4867
        %v4869 = vpop.f32.mrb[0].mxu0
        %4870 = vmatprep.mubr.f32.mxu0 0.0
        %4871 = vmatmul.mubr.f32.gmra.mrb[0].mxu0 %v4433
        %v4872 = vpop.f32.mrb[0].mxu0
        %v4873 = vadd.f32 %v4735, %v4872
        %v4874 = vpop.f32.mrb[0].mxu0
        %4875 = vmatprep.mubr.f32.mxu0 0.0
        %4876 = vmatmul.mubr.f32.gmra.mrb[0].mxu0 %v4436
        %v4877 = vpop.f32.mrb[0].mxu0
        %v4878 = vadd.f32 %v4735, %v4877
        %v4879 = vpop.f32.mrb[0].mxu0
        %4880 = vdwg.mxu0
        %v4882 = vsel %vm1794, %v4505, 0
        %v4885 = vsel %vm1794, %v4510, 0
        %v4888 = vsel %vm1794, %v4515, 0
        %v4891 = vsel %vm1794, %v4520, 0
        %v4894 = vsel %vm1794, %v4525, 0
        %v4897 = vsel %vm1794, %v4530, 0
        %v4900 = vsel %vm1794, %v4535, 0
        %v4903 = vsel %vm1794, %v4540, 0
        %v4906 = vsel %vm1794, %v4545, 0
        %v4909 = vsel %vm1794, %v4550, 0
        %v4912 = vsel %vm1794, %v4555, 0
        %v4915 = vsel %vm1794, %v4560, 0
        %v4918 = vsel %vm1794, %v4565, 0
        %v4921 = vsel %vm1794, %v4570, 0
        %v4924 = vsel %vm1794, %v4575, 0
        %v4927 = vsel %vm1794, %v4580, 0
        %v4930 = vsel %vm1794, %v4654, 0
        %v4933 = vsel %vm1794, %v4659, 0
        %v4936 = vsel %vm1794, %v4664, 0
        %v4939 = vsel %vm1794, %v4669, 0
        %v4942 = vsel %vm1794, %v4674, 0
        %v4945 = vsel %vm1794, %v4679, 0
        %v4948 = vsel %vm1794, %v4684, 0
        %v4951 = vsel %vm1794, %v4689, 0
        %v4954 = vsel %vm1794, %v4694, 0
        %v4957 = vsel %vm1794, %v4699, 0
        %v4960 = vsel %vm1794, %v4704, 0
        %v4963 = vsel %vm1794, %v4709, 0
        %v4966 = vsel %vm1794, %v4714, 0
        %v4969 = vsel %vm1794, %v4719, 0
        %v4972 = vsel %vm1794, %v4724, 0
        %v4975 = vsel %vm1794, %v4729, 0
        %4977 = vmatprep.subr.mxu0 0.0
        %4978 = vmatpush1.xpose.msra.mxu0 %v4930
        %4979 = vmatprep.subr.mxu0 0.0
        %4980 = vmatpush1.xpose.msra.mxu0 %v4933
        %4981 = vmatprep.subr.mxu0 0.0
        %4982 = vmatpush1.xpose.msra.mxu0 %v4936
        %4983 = vmatprep.subr.mxu0 0.0
        %4984 = vmatpush1.xpose.msra.mxu0 %v4939
        %4985 = vmatprep.subr.mxu0 0.0
        %4986 = vmatpush1.xpose.msra.mxu0 %v4942
        %4987 = vmatprep.subr.mxu0 0.0
        %4988 = vmatpush1.xpose.msra.mxu0 %v4945
        %4989 = vmatprep.subr.mxu0 0.0
        %4990 = vmatpush1.xpose.msra.mxu0 %v4948
        %4991 = vmatprep.subr.mxu0 0.0
        %4992 = vmatpush1.xpose.msra.mxu0 %v4951
        %4993 = vmatprep.subr.mxu0 0.0
        %4994 = vmatpush1.xpose.msra.mxu0 %v4954
        %4995 = vmatprep.subr.mxu0 0.0
        %4996 = vmatpush1.xpose.msra.mxu0 %v4957
        %4997 = vmatprep.subr.mxu0 0.0
        %4998 = vmatpush1.xpose.msra.mxu0 %v4960
        %4999 = vmatprep.subr.mxu0 0.0
        %5000 = vmatpush1.xpose.msra.mxu0 %v4963
        %5001 = vmatprep.subr.mxu0 0.0
        %5002 = vmatpush1.xpose.msra.mxu0 %v4966
        %5003 = vmatprep.subr.mxu0 0.0
        %5004 = vmatpush1.xpose.msra.mxu0 %v4969
        %5005 = vmatprep.subr.mxu0 0.0
        %5006 = vmatpush1.xpose.msra.mxu0 %v4972
        %5007 = vmatprep.subr.mxu0 0.0
        %5008 = vmatpush1.xpose.msra.mxu0 %v4975
        %5009 = vmatprep.subr.mxu0 0.0
        %5010 = vmatpush1.xpose.msra.mxu0 0.0
        %5011 = vmatprep.subr.mxu0 0.0
        %5012 = vmatpush1.xpose.msra.mxu0 0.0
        %5013 = vmatprep.subr.mxu0 0.0
        %5014 = vmatpush1.xpose.msra.mxu0 0.0
        %5015 = vmatprep.subr.mxu0 0.0
        %5016 = vmatpush1.xpose.msra.mxu0 0.0
        %5017 = vmatprep.subr.mxu0 0.0
        %5018 = vmatpush1.xpose.msra.mxu0 0.0
        %5019 = vmatprep.subr.mxu0 0.0
        %5020 = vmatpush1.xpose.msra.mxu0 0.0
        %5021 = vmatprep.subr.mxu0 0.0
        %5022 = vmatpush1.xpose.msra.mxu0 0.0
        %5023 = vmatprep.subr.mxu0 0.0
        %5024 = vmatpush1.xpose.msra.mxu0 0.0
        %5025 = vmatprep.subr.mxu0 0.0
        %5026 = vmatpush1.xpose.msra.mxu0 0.0
        %5027 = vmatprep.subr.mxu0 0.0
        %5028 = vmatpush1.xpose.msra.mxu0 0.0
        %5029 = vmatprep.subr.mxu0 0.0
        %5030 = vmatpush1.xpose.msra.mxu0 0.0
        %5031 = vmatprep.subr.mxu0 0.0
        %5032 = vmatpush1.xpose.msra.mxu0 0.0
        %5033 = vmatprep.subr.mxu0 0.0
        %5034 = vmatpush1.xpose.msra.mxu0 0.0
        %5035 = vmatprep.subr.mxu0 0.0
        %5036 = vmatpush1.xpose.msra.mxu0 0.0
        %5037 = vmatprep.subr.mxu0 0.0
        %5038 = vmatpush1.xpose.msra.mxu0 0.0
        %5039 = vmatprep.subr.mxu0 0.0
        %5040 = vmatpush1.xpose.msra.mxu0 0.0
        %5041 = vmatprep.mubr.f32.mxu0 0.0
        %5042 = vmatmul.mubr.f32.gmra.mrb[0].mxu0 %v4882
        %v5043 = vpop.f32.mrb[0].mxu0
        %v5044 = vadd.f32 0.0, %v5043
        %v5045 = vpop.f32.mrb[0].mxu0
        %5046 = vmatprep.mubr.f32.mxu0 0.0
        %5047 = vmatmul.mubr.f32.gmra.mrb[0].mxu0 %v4885
        %v5048 = vpop.f32.mrb[0].mxu0
        %v5049 = vadd.f32 0.0, %v5048
        %v5050 = vpop.f32.mrb[0].mxu0
        %5051 = vmatprep.mubr.f32.mxu0 0.0
        %5052 = vmatmul.mubr.f32.gmra.mrb[0].mxu0 %v4888
        %v5053 = vpop.f32.mrb[0].mxu0
        %v5054 = vadd.f32 0.0, %v5053
        %v5055 = vpop.f32.mrb[0].mxu0
        %5056 = vmatprep.mubr.f32.mxu0 0.0
        %5057 = vmatmul.mubr.f32.gmra.mrb[0].mxu0 %v4891
        %v5058 = vpop.f32.mrb[0].mxu0
        %v5059 = vadd.f32 0.0, %v5058
        %v5060 = vpop.f32.mrb[0].mxu0
        %5061 = vmatprep.mubr.f32.mxu0 0.0
        %5062 = vmatmul.mubr.f32.gmra.mrb[0].mxu0 %v4894
        %v5063 = vpop.f32.mrb[0].mxu0
        %v5064 = vadd.f32 0.0, %v5063
        %v5065 = vpop.f32.mrb[0].mxu0
        %5066 = vmatprep.mubr.f32.mxu0 0.0
        %5067 = vmatmul.mubr.f32.gmra.mrb[0].mxu0 %v4897
        %v5068 = vpop.f32.mrb[0].mxu0
        %v5069 = vadd.f32 0.0, %v5068
        %v5070 = vpop.f32.mrb[0].mxu0
        %5071 = vmatprep.mubr.f32.mxu0 0.0
        %5072 = vmatmul.mubr.f32.gmra.mrb[0].mxu0 %v4900
        %v5073 = vpop.f32.mrb[0].mxu0
        %v5074 = vadd.f32 0.0, %v5073
        %v5075 = vpop.f32.mrb[0].mxu0
        %5076 = vmatprep.mubr.f32.mxu0 0.0
        %5077 = vmatmul.mubr.f32.gmra.mrb[0].mxu0 %v4903
        %v5078 = vpop.f32.mrb[0].mxu0
        %v5079 = vadd.f32 0.0, %v5078
        %v5080 = vpop.f32.mrb[0].mxu0
        %5081 = vmatprep.mubr.f32.mxu0 0.0
        %5082 = vmatmul.mubr.f32.gmra.mrb[0].mxu0 %v4906
        %v5083 = vpop.f32.mrb[0].mxu0
        %v5084 = vadd.f32 0.0, %v5083
        %v5085 = vpop.f32.mrb[0].mxu0
        %5086 = vmatprep.mubr.f32.mxu0 0.0
        %5087 = vmatmul.mubr.f32.gmra.mrb[0].mxu0 %v4909
        %v5088 = vpop.f32.mrb[0].mxu0
        %v5089 = vadd.f32 0.0, %v5088
        %v5090 = vpop.f32.mrb[0].mxu0
        %5091 = vmatprep.mubr.f32.mxu0 0.0
        %5092 = vmatmul.mubr.f32.gmra.mrb[0].mxu0 %v4912
        %v5093 = vpop.f32.mrb[0].mxu0
        %v5094 = vadd.f32 0.0, %v5093
        %v5095 = vpop.f32.mrb[0].mxu0
        %5096 = vmatprep.mubr.f32.mxu0 0.0
        %5097 = vmatmul.mubr.f32.gmra.mrb[0].mxu0 %v4915
        %v5098 = vpop.f32.mrb[0].mxu0
        %v5099 = vadd.f32 0.0, %v5098
        %v5100 = vpop.f32.mrb[0].mxu0
        %5101 = vmatprep.mubr.f32.mxu0 0.0
        %5102 = vmatmul.mubr.f32.gmra.mrb[0].mxu0 %v4918
        %v5103 = vpop.f32.mrb[0].mxu0
        %v5104 = vadd.f32 0.0, %v5103
        %v5105 = vpop.f32.mrb[0].mxu0
        %5106 = vmatprep.mubr.f32.mxu0 0.0
        %5107 = vmatmul.mubr.f32.gmra.mrb[0].mxu0 %v4921
        %v5108 = vpop.f32.mrb[0].mxu0
        %v5109 = vadd.f32 0.0, %v5108
        %v5110 = vpop.f32.mrb[0].mxu0
        %5111 = vmatprep.mubr.f32.mxu0 0.0
        %5112 = vmatmul.mubr.f32.gmra.mrb[0].mxu0 %v4924
        %v5113 = vpop.f32.mrb[0].mxu0
        %v5114 = vadd.f32 0.0, %v5113
        %v5115 = vpop.f32.mrb[0].mxu0
        %5116 = vmatprep.mubr.f32.mxu0 0.0
        %5117 = vmatmul.mubr.f32.gmra.mrb[0].mxu0 %v4927
        %v5118 = vpop.f32.mrb[0].mxu0
        %v5119 = vadd.f32 0.0, %v5118
        %v5120 = vpop.f32.mrb[0].mxu0
        %5121 = vdwg.mxu0
        %v5122 = vmul.f32 %v5044, 0.25
        %v5123 = vmul.f32 %v5049, 0.25
        %v5124 = vmul.f32 %v5054, 0.25
        %v5125 = vmul.f32 %v5059, 0.25
        %v5126 = vmul.f32 %v5064, 0.25
        %v5127 = vmul.f32 %v5069, 0.25
        %v5128 = vmul.f32 %v5074, 0.25
        %v5129 = vmul.f32 %v5079, 0.25
        %v5130 = vmul.f32 %v5084, 0.25
        %v5131 = vmul.f32 %v5089, 0.25
        %v5132 = vmul.f32 %v5094, 0.25
        %v5133 = vmul.f32 %v5099, 0.25
        %v5134 = vmul.f32 %v5104, 0.25
        %v5135 = vmul.f32 %v5109, 0.25
        %v5136 = vmul.f32 %v5114, 0.25
        %v5137 = vmul.f32 %v5119, 0.25
        %v5138 = vadd.f32 %v5122, %v392
        %v5139 = vadd.f32 %v5123, %v393
        %v5140 = vadd.f32 %v5124, %v394
        %v5141 = vadd.f32 %v5125, %v395
        %v5142 = vadd.f32 %v5126, %v396
        %v5143 = vadd.f32 %v5127, %v397
        %v5144 = vadd.f32 %v5128, %v398
        %v5145 = vadd.f32 %v5129, %v399
        %v5146 = vadd.f32 %v5130, %v400
        %v5147 = vadd.f32 %v5131, %v401
        %v5148 = vadd.f32 %v5132, %v402
        %v5149 = vadd.f32 %v5133, %v403
        %v5150 = vadd.f32 %v5134, %v404
        %v5151 = vadd.f32 %v5135, %v405
        %v5152 = vadd.f32 %v5136, %v406
        %v5153 = vadd.f32 %v5137, %v407
        %5154 = vmax.xlane.f32.xlu0 %v5138
        %v5155 = vpop.xlane.xlu0 %5154
        %5156 = vmax.xlane.f32.xlu0 %v5139
        %v5157 = vpop.xlane.xlu0 %5156
        %5158 = vmax.xlane.f32.xlu0 %v5140
        %v5159 = vpop.xlane.xlu0 %5158
        %5160 = vmax.xlane.f32.xlu0 %v5141
        %v5161 = vpop.xlane.xlu0 %5160
        %5162 = vmax.xlane.f32.xlu0 %v5142
        %v5163 = vpop.xlane.xlu0 %5162
        %5164 = vmax.xlane.f32.xlu0 %v5143
        %v5165 = vpop.xlane.xlu0 %5164
        %5166 = vmax.xlane.f32.xlu0 %v5144
        %v5167 = vpop.xlane.xlu0 %5166
        %5168 = vmax.xlane.f32.xlu0 %v5145
        %v5169 = vpop.xlane.xlu0 %5168
        %5170 = vmax.xlane.f32.xlu0 %v5146
        %v5171 = vpop.xlane.xlu0 %5170
        %5172 = vmax.xlane.f32.xlu0 %v5147
        %v5173 = vpop.xlane.xlu0 %5172
        %5174 = vmax.xlane.f32.xlu0 %v5148
        %v5175 = vpop.xlane.xlu0 %5174
        %5176 = vmax.xlane.f32.xlu0 %v5149
        %v5177 = vpop.xlane.xlu0 %5176
        %5178 = vmax.xlane.f32.xlu0 %v5150
        %v5179 = vpop.xlane.xlu0 %5178
        %5180 = vmax.xlane.f32.xlu0 %v5151
        %v5181 = vpop.xlane.xlu0 %5180
        %5182 = vmax.xlane.f32.xlu0 %v5152
        %v5183 = vpop.xlane.xlu0 %5182
        %5184 = vmax.xlane.f32.xlu0 %v5153
        %v5185 = vpop.xlane.xlu0 %5184
        %v5186 = vsub.f32 %v5138, %v5155
        %v5187 = vsub.f32 %v5139, %v5157
        %v5188 = vsub.f32 %v5140, %v5159
        %v5189 = vsub.f32 %v5141, %v5161
        %v5190 = vsub.f32 %v5142, %v5163
        %v5191 = vsub.f32 %v5143, %v5165
        %v5192 = vsub.f32 %v5144, %v5167
        %v5193 = vsub.f32 %v5145, %v5169
        %v5194 = vsub.f32 %v5146, %v5171
        %v5195 = vsub.f32 %v5147, %v5173
        %v5196 = vsub.f32 %v5148, %v5175
        %v5197 = vsub.f32 %v5149, %v5177
        %v5198 = vsub.f32 %v5150, %v5179
        %v5199 = vsub.f32 %v5151, %v5181
        %v5200 = vsub.f32 %v5152, %v5183
        %v5201 = vsub.f32 %v5153, %v5185
        %v5202 = vmul.f32 %v5186, 1.442695
        %v5203 = vpow.pop %v5202
        %v5204 = vmul.f32 %v5187, 1.442695
        %v5205 = vpow.pop %v5204
        %v5206 = vmul.f32 %v5188, 1.442695
        %v5207 = vpow.pop %v5206
        %v5208 = vmul.f32 %v5189, 1.442695
        %v5209 = vpow.pop %v5208
        %v5210 = vmul.f32 %v5190, 1.442695
        %v5211 = vpow.pop %v5210
        %v5212 = vmul.f32 %v5191, 1.442695
        %v5213 = vpow.pop %v5212
        %v5214 = vmul.f32 %v5192, 1.442695
        %v5215 = vpow.pop %v5214
        %v5216 = vmul.f32 %v5193, 1.442695
        %v5217 = vpow.pop %v5216
        %v5218 = vmul.f32 %v5194, 1.442695
        %v5219 = vpow.pop %v5218
        %v5220 = vmul.f32 %v5195, 1.442695
        %v5221 = vpow.pop %v5220
        %v5222 = vmul.f32 %v5196, 1.442695
        %v5223 = vpow.pop %v5222
        %v5224 = vmul.f32 %v5197, 1.442695
        %v5225 = vpow.pop %v5224
        %v5226 = vmul.f32 %v5198, 1.442695
        %v5227 = vpow.pop %v5226
        %v5228 = vmul.f32 %v5199, 1.442695
        %v5229 = vpow.pop %v5228
        %v5230 = vmul.f32 %v5200, 1.442695
        %v5231 = vpow.pop %v5230
        %v5232 = vmul.f32 %v5201, 1.442695
        %v5233 = vpow.pop %v5232
        %5234 = vadd.xlane.f32.xlu0 %v5203
        %v5235 = vpop.xlane.xlu0 %5234
        %5236 = vadd.xlane.f32.xlu0 %v5205
        %v5237 = vpop.xlane.xlu0 %5236
        %5238 = vadd.xlane.f32.xlu0 %v5207
        %v5239 = vpop.xlane.xlu0 %5238
        %5240 = vadd.xlane.f32.xlu0 %v5209
        %v5241 = vpop.xlane.xlu0 %5240
        %5242 = vadd.xlane.f32.xlu0 %v5211
        %v5243 = vpop.xlane.xlu0 %5242
        %5244 = vadd.xlane.f32.xlu0 %v5213
        %v5245 = vpop.xlane.xlu0 %5244
        %5246 = vadd.xlane.f32.xlu0 %v5215
        %v5247 = vpop.xlane.xlu0 %5246
        %5248 = vadd.xlane.f32.xlu0 %v5217
        %v5249 = vpop.xlane.xlu0 %5248
        %5250 = vadd.xlane.f32.xlu0 %v5219
        %v5251 = vpop.xlane.xlu0 %5250
        %5252 = vadd.xlane.f32.xlu0 %v5221
        %v5253 = vpop.xlane.xlu0 %5252
        %5254 = vadd.xlane.f32.xlu0 %v5223
        %v5255 = vpop.xlane.xlu0 %5254
        %5256 = vadd.xlane.f32.xlu0 %v5225
        %v5257 = vpop.xlane.xlu0 %5256
        %5258 = vadd.xlane.f32.xlu0 %v5227
        %v5259 = vpop.xlane.xlu0 %5258
        %5260 = vadd.xlane.f32.xlu0 %v5229
        %v5261 = vpop.xlane.xlu0 %5260
        %5262 = vadd.xlane.f32.xlu0 %v5231
        %v5263 = vpop.xlane.xlu0 %5262
        %5264 = vadd.xlane.f32.xlu0 %v5233
        %v5265 = vpop.xlane.xlu0 %5264
        %v5266 = vrcp.pop %v5235
        %v5267 = vrcp.pop %v5237
        %v5268 = vrcp.pop %v5239
        %v5269 = vrcp.pop %v5241
        %v5270 = vrcp.pop %v5243
        %v5271 = vrcp.pop %v5245
        %v5272 = vrcp.pop %v5247
        %v5273 = vrcp.pop %v5249
        %v5274 = vrcp.pop %v5251
        %v5275 = vrcp.pop %v5253
        %v5276 = vrcp.pop %v5255
        %v5277 = vrcp.pop %v5257
        %v5278 = vrcp.pop %v5259
        %v5279 = vrcp.pop %v5261
        %v5280 = vrcp.pop %v5263
        %v5281 = vrcp.pop %v5265
        %v5282 = vmul.f32 %v5203, %v5266
        %v5283 = vmul.f32 %v5205, %v5267
        %v5284 = vmul.f32 %v5207, %v5268
        %v5285 = vmul.f32 %v5209, %v5269
        %v5286 = vmul.f32 %v5211, %v5270
        %v5287 = vmul.f32 %v5213, %v5271
        %v5288 = vmul.f32 %v5215, %v5272
        %v5289 = vmul.f32 %v5217, %v5273
        %v5290 = vmul.f32 %v5219, %v5274
        %v5291 = vmul.f32 %v5221, %v5275
        %v5292 = vmul.f32 %v5223, %v5276
        %v5293 = vmul.f32 %v5225, %v5277
        %v5294 = vmul.f32 %v5227, %v5278
        %v5295 = vmul.f32 %v5229, %v5279
        %v5296 = vmul.f32 %v5231, %v5280
        %v5297 = vmul.f32 %v5233, %v5281
        %5298 = vmatprep.subr.mxu0 0.0
        %5299 = vmatpush1.msra.mxu0 %v4803
        %5300 = vmatprep.subr.mxu0 0.0
        %5301 = vmatpush1.msra.mxu0 %v4808
        %5302 = vmatprep.subr.mxu0 0.0
        %5303 = vmatpush1.msra.mxu0 %v4813
        %5304 = vmatprep.subr.mxu0 0.0
        %5305 = vmatpush1.msra.mxu0 %v4818
        %5306 = vmatprep.subr.mxu0 0.0
        %5307 = vmatpush1.msra.mxu0 %v4823
        %5308 = vmatprep.subr.mxu0 0.0
        %5309 = vmatpush1.msra.mxu0 %v4828
        %5310 = vmatprep.subr.mxu0 0.0
        %5311 = vmatpush1.msra.mxu0 %v4833
        %5312 = vmatprep.subr.mxu0 0.0
        %5313 = vmatpush1.msra.mxu0 %v4838
        %5314 = vmatprep.subr.mxu0 0.0
        %5315 = vmatpush1.msra.mxu0 %v4843
        %5316 = vmatprep.subr.mxu0 0.0
        %5317 = vmatpush1.msra.mxu0 %v4848
        %5318 = vmatprep.subr.mxu0 0.0
        %5319 = vmatpush1.msra.mxu0 %v4853
        %5320 = vmatprep.subr.mxu0 0.0
        %5321 = vmatpush1.msra.mxu0 %v4858
        %5322 = vmatprep.subr.mxu0 0.0
        %5323 = vmatpush1.msra.mxu0 %v4863
        %5324 = vmatprep.subr.mxu0 0.0
        %5325 = vmatpush1.msra.mxu0 %v4868
        %5326 = vmatprep.subr.mxu0 0.0
        %5327 = vmatpush1.msra.mxu0 %v4873
        %5328 = vmatprep.subr.mxu0 0.0
        %5329 = vmatpush1.msra.mxu0 %v4878
        %5330 = vmatprep.subr.mxu0 0.0
        %5331 = vmatpush1.msra.mxu0 0.0
        %5332 = vmatprep.subr.mxu0 0.0
        %5333 = vmatpush1.msra.mxu0 0.0
        %5334 = vmatprep.subr.mxu0 0.0
        %5335 = vmatpush1.msra.mxu0 0.0
        %5336 = vmatprep.subr.mxu0 0.0
        %5337 = vmatpush1.msra.mxu0 0.0
        %5338 = vmatprep.subr.mxu0 0.0
        %5339 = vmatpush1.msra.mxu0 0.0
        %5340 = vmatprep.subr.mxu0 0.0
        %5341 = vmatpush1.msra.mxu0 0.0
        %5342 = vmatprep.subr.mxu0 0.0
        %5343 = vmatpush1.msra.mxu0 0.0
        %5344 = vmatprep.subr.mxu0 0.0
        %5345 = vmatpush1.msra.mxu0 0.0
        %5346 = vmatprep.subr.mxu0 0.0
        %5347 = vmatpush1.msra.mxu0 0.0
        %5348 = vmatprep.subr.mxu0 0.0
        %5349 = vmatpush1.msra.mxu0 0.0
        %5350 = vmatprep.subr.mxu0 0.0
        %5351 = vmatpush1.msra.mxu0 0.0
        %5352 = vmatprep.subr.mxu0 0.0
        %5353 = vmatpush1.msra.mxu0 0.0
        %5354 = vmatprep.subr.mxu0 0.0
        %5355 = vmatpush1.msra.mxu0 0.0
        %5356 = vmatprep.subr.mxu0 0.0
        %5357 = vmatpush1.msra.mxu0 0.0
        %5358 = vmatprep.subr.mxu0 0.0
        %5359 = vmatpush1.msra.mxu0 0.0
        %5360 = vmatprep.subr.mxu0 0.0
        %5361 = vmatpush1.msra.mxu0 0.0
        %5362 = vmatprep.mubr.f32.mxu0 0.0
        %5363 = vmatmul.mubr.f32.gmra.mrb[0].mxu0 %v5282
        %v5364 = vpop.f32.mrb[0].mxu0
        %v5365 = vadd.f32 0.0, %v5364
        %v5366 = vpop.f32.mrb[0].mxu0
        %5367 = vmatprep.mubr.f32.mxu0 0.0
        %5368 = vmatmul.mubr.f32.gmra.mrb[0].mxu0 %v5283
        %v5369 = vpop.f32.mrb[0].mxu0
        %v5370 = vadd.f32 0.0, %v5369
        %v5371 = vpop.f32.mrb[0].mxu0
        %5372 = vmatprep.mubr.f32.mxu0 0.0
        %5373 = vmatmul.mubr.f32.gmra.mrb[0].mxu0 %v5284
        %v5374 = vpop.f32.mrb[0].mxu0
        %v5375 = vadd.f32 0.0, %v5374
        %v5376 = vpop.f32.mrb[0].mxu0
        %5377 = vmatprep.mubr.f32.mxu0 0.0
        %5378 = vmatmul.mubr.f32.gmra.mrb[0].mxu0 %v5285
        %v5379 = vpop.f32.mrb[0].mxu0
        %v5380 = vadd.f32 0.0, %v5379
        %v5381 = vpop.f32.mrb[0].mxu0
        %5382 = vmatprep.mubr.f32.mxu0 0.0
        %5383 = vmatmul.mubr.f32.gmra.mrb[0].mxu0 %v5286
        %v5384 = vpop.f32.mrb[0].mxu0
        %v5385 = vadd.f32 0.0, %v5384
        %v5386 = vpop.f32.mrb[0].mxu0
        %5387 = vmatprep.mubr.f32.mxu0 0.0
        %5388 = vmatmul.mubr.f32.gmra.mrb[0].mxu0 %v5287
        %v5389 = vpop.f32.mrb[0].mxu0
        %v5390 = vadd.f32 0.0, %v5389
        %v5391 = vpop.f32.mrb[0].mxu0
        %5392 = vmatprep.mubr.f32.mxu0 0.0
        %5393 = vmatmul.mubr.f32.gmra.mrb[0].mxu0 %v5288
        %v5394 = vpop.f32.mrb[0].mxu0
        %v5395 = vadd.f32 0.0, %v5394
        %v5396 = vpop.f32.mrb[0].mxu0
        %5397 = vmatprep.mubr.f32.mxu0 0.0
        %5398 = vmatmul.mubr.f32.gmra.mrb[0].mxu0 %v5289
        %v5399 = vpop.f32.mrb[0].mxu0
        %v5400 = vadd.f32 0.0, %v5399
        %v5401 = vpop.f32.mrb[0].mxu0
        %5402 = vmatprep.mubr.f32.mxu0 0.0
        %5403 = vmatmul.mubr.f32.gmra.mrb[0].mxu0 %v5290
        %v5404 = vpop.f32.mrb[0].mxu0
        %v5405 = vadd.f32 0.0, %v5404
        %v5406 = vpop.f32.mrb[0].mxu0
        %5407 = vmatprep.mubr.f32.mxu0 0.0
        %5408 = vmatmul.mubr.f32.gmra.mrb[0].mxu0 %v5291
        %v5409 = vpop.f32.mrb[0].mxu0
        %v5410 = vadd.f32 0.0, %v5409
        %v5411 = vpop.f32.mrb[0].mxu0
        %5412 = vmatprep.mubr.f32.mxu0 0.0
        %5413 = vmatmul.mubr.f32.gmra.mrb[0].mxu0 %v5292
        %v5414 = vpop.f32.mrb[0].mxu0
        %v5415 = vadd.f32 0.0, %v5414
        %v5416 = vpop.f32.mrb[0].mxu0
        %5417 = vmatprep.mubr.f32.mxu0 0.0
        %5418 = vmatmul.mubr.f32.gmra.mrb[0].mxu0 %v5293
        %v5419 = vpop.f32.mrb[0].mxu0
        %v5420 = vadd.f32 0.0, %v5419
        %v5421 = vpop.f32.mrb[0].mxu0
        %5422 = vmatprep.mubr.f32.mxu0 0.0
        %5423 = vmatmul.mubr.f32.gmra.mrb[0].mxu0 %v5294
        %v5424 = vpop.f32.mrb[0].mxu0
        %v5425 = vadd.f32 0.0, %v5424
        %v5426 = vpop.f32.mrb[0].mxu0
        %5427 = vmatprep.mubr.f32.mxu0 0.0
        %5428 = vmatmul.mubr.f32.gmra.mrb[0].mxu0 %v5295
        %v5429 = vpop.f32.mrb[0].mxu0
        %v5430 = vadd.f32 0.0, %v5429
        %v5431 = vpop.f32.mrb[0].mxu0
        %5432 = vmatprep.mubr.f32.mxu0 0.0
        %5433 = vmatmul.mubr.f32.gmra.mrb[0].mxu0 %v5296
        %v5434 = vpop.f32.mrb[0].mxu0
        %v5435 = vadd.f32 0.0, %v5434
        %v5436 = vpop.f32.mrb[0].mxu0
        %5437 = vmatprep.mubr.f32.mxu0 0.0
        %5438 = vmatmul.mubr.f32.gmra.mrb[0].mxu0 %v5297
        %v5439 = vpop.f32.mrb[0].mxu0
        %v5440 = vadd.f32 0.0, %v5439
        %v5441 = vpop.f32.mrb[0].mxu0
        %5442 = vdwg.mxu0
        %5443 = vrot.lane.b32.xlu0 %v4505, 112
        %v5444 = vpop.permute.xlu0 %5443
        %5445 = vrot.lane.b32.xlu0 %v4510, 112
        %v5446 = vpop.permute.xlu0 %5445
        %5447 = vrot.lane.b32.xlu0 %v4515, 112
        %v5448 = vpop.permute.xlu0 %5447
        %5449 = vrot.lane.b32.xlu0 %v4520, 112
        %v5450 = vpop.permute.xlu0 %5449
        %5451 = vrot.lane.b32.xlu0 %v4525, 112
        %v5452 = vpop.permute.xlu0 %5451
        %5453 = vrot.lane.b32.xlu0 %v4530, 112
        %v5454 = vpop.permute.xlu0 %5453
        %5455 = vrot.lane.b32.xlu0 %v4535, 112
        %v5456 = vpop.permute.xlu0 %5455
        %5457 = vrot.lane.b32.xlu0 %v4540, 112
        %v5458 = vpop.permute.xlu0 %5457
        %5459 = vrot.lane.b32.xlu0 %v4545, 112
        %v5460 = vpop.permute.xlu0 %5459
        %5461 = vrot.lane.b32.xlu0 %v4550, 112
        %v5462 = vpop.permute.xlu0 %5461
        %5463 = vrot.lane.b32.xlu0 %v4555, 112
        %v5464 = vpop.permute.xlu0 %5463
        %5465 = vrot.lane.b32.xlu0 %v4560, 112
        %v5466 = vpop.permute.xlu0 %5465
        %5467 = vrot.lane.b32.xlu0 %v4565, 112
        %v5468 = vpop.permute.xlu0 %5467
        %5469 = vrot.lane.b32.xlu0 %v4570, 112
        %v5470 = vpop.permute.xlu0 %5469
        %5471 = vrot.lane.b32.xlu0 %v4575, 112
        %v5472 = vpop.permute.xlu0 %5471
        %5473 = vrot.lane.b32.xlu0 %v4580, 112
        %v5474 = vpop.permute.xlu0 %5473
        %5475 = vrot.lane.b32.xlu0 %v4654, 112
        %v5476 = vpop.permute.xlu0 %5475
        %5477 = vrot.lane.b32.xlu0 %v4659, 112
        %v5478 = vpop.permute.xlu0 %5477
        %5479 = vrot.lane.b32.xlu0 %v4664, 112
        %v5480 = vpop.permute.xlu0 %5479
        %5481 = vrot.lane.b32.xlu0 %v4669, 112
        %v5482 = vpop.permute.xlu0 %5481
        %5483 = vrot.lane.b32.xlu0 %v4674, 112
        %v5484 = vpop.permute.xlu0 %5483
        %5485 = vrot.lane.b32.xlu0 %v4679, 112
        %v5486 = vpop.permute.xlu0 %5485
        %5487 = vrot.lane.b32.xlu0 %v4684, 112
        %v5488 = vpop.permute.xlu0 %5487
        %5489 = vrot.lane.b32.xlu0 %v4689, 112
        %v5490 = vpop.permute.xlu0 %5489
        %5491 = vrot.lane.b32.xlu0 %v4694, 112
        %v5492 = vpop.permute.xlu0 %5491
        %5493 = vrot.lane.b32.xlu0 %v4699, 112
        %v5494 = vpop.permute.xlu0 %5493
        %5495 = vrot.lane.b32.xlu0 %v4704, 112
        %v5496 = vpop.permute.xlu0 %5495
        %5497 = vrot.lane.b32.xlu0 %v4709, 112
        %v5498 = vpop.permute.xlu0 %5497
        %5499 = vrot.lane.b32.xlu0 %v4714, 112
        %v5500 = vpop.permute.xlu0 %5499
        %5501 = vrot.lane.b32.xlu0 %v4719, 112
        %v5502 = vpop.permute.xlu0 %5501
        %5503 = vrot.lane.b32.xlu0 %v4724, 112
        %v5504 = vpop.permute.xlu0 %5503
        %5505 = vrot.lane.b32.xlu0 %v4729, 112
        %v5506 = vpop.permute.xlu0 %5505
        %v5507 = vsel %vm1794, %v5444, 0
        %v5509 = vsel %vm1794, %v5446, 0
        %v5511 = vsel %vm1794, %v5448, 0
        %v5513 = vsel %vm1794, %v5450, 0
        %v5515 = vsel %vm1794, %v5452, 0
        %v5517 = vsel %vm1794, %v5454, 0
        %v5519 = vsel %vm1794, %v5456, 0
        %v5521 = vsel %vm1794, %v5458, 0
        %v5523 = vsel %vm1794, %v5460, 0
        %v5525 = vsel %vm1794, %v5462, 0
        %v5527 = vsel %vm1794, %v5464, 0
        %v5529 = vsel %vm1794, %v5466, 0
        %v5531 = vsel %vm1794, %v5468, 0
        %v5533 = vsel %vm1794, %v5470, 0
        %v5535 = vsel %vm1794, %v5472, 0
        %v5537 = vsel %vm1794, %v5474, 0
        %v5539 = vsel %vm1794, %v5476, 0
        %v5541 = vsel %vm1794, %v5478, 0
        %v5543 = vsel %vm1794, %v5480, 0
        %v5545 = vsel %vm1794, %v5482, 0
        %v5547 = vsel %vm1794, %v5484, 0
        %v5549 = vsel %vm1794, %v5486, 0
        %v5551 = vsel %vm1794, %v5488, 0
        %v5553 = vsel %vm1794, %v5490, 0
        %v5555 = vsel %vm1794, %v5492, 0
        %v5557 = vsel %vm1794, %v5494, 0
        %v5559 = vsel %vm1794, %v5496, 0
        %v5561 = vsel %vm1794, %v5498, 0
        %v5563 = vsel %vm1794, %v5500, 0
        %v5565 = vsel %vm1794, %v5502, 0
        %v5567 = vsel %vm1794, %v5504, 0
        %v5569 = vsel %vm1794, %v5506, 0
        %5571 = vmatprep.subr.mxu0 0.0
        %5572 = vmatpush1.xpose.msra.mxu0 %v5539
        %5573 = vmatprep.subr.mxu0 0.0
        %5574 = vmatpush1.xpose.msra.mxu0 %v5541
        %5575 = vmatprep.subr.mxu0 0.0
        %5576 = vmatpush1.xpose.msra.mxu0 %v5543
        %5577 = vmatprep.subr.mxu0 0.0
        %5578 = vmatpush1.xpose.msra.mxu0 %v5545
        %5579 = vmatprep.subr.mxu0 0.0
        %5580 = vmatpush1.xpose.msra.mxu0 %v5547
        %5581 = vmatprep.subr.mxu0 0.0
        %5582 = vmatpush1.xpose.msra.mxu0 %v5549
        %5583 = vmatprep.subr.mxu0 0.0
        %5584 = vmatpush1.xpose.msra.mxu0 %v5551
        %5585 = vmatprep.subr.mxu0 0.0
        %5586 = vmatpush1.xpose.msra.mxu0 %v5553
        %5587 = vmatprep.subr.mxu0 0.0
        %5588 = vmatpush1.xpose.msra.mxu0 %v5555
        %5589 = vmatprep.subr.mxu0 0.0
        %5590 = vmatpush1.xpose.msra.mxu0 %v5557
        %5591 = vmatprep.subr.mxu0 0.0
        %5592 = vmatpush1.xpose.msra.mxu0 %v5559
        %5593 = vmatprep.subr.mxu0 0.0
        %5594 = vmatpush1.xpose.msra.mxu0 %v5561
        %5595 = vmatprep.subr.mxu0 0.0
        %5596 = vmatpush1.xpose.msra.mxu0 %v5563
        %5597 = vmatprep.subr.mxu0 0.0
        %5598 = vmatpush1.xpose.msra.mxu0 %v5565
        %5599 = vmatprep.subr.mxu0 0.0
        %5600 = vmatpush1.xpose.msra.mxu0 %v5567
        %5601 = vmatprep.subr.mxu0 0.0
        %5602 = vmatpush1.xpose.msra.mxu0 %v5569
        %5603 = vmatprep.subr.mxu0 0.0
        %5604 = vmatpush1.xpose.msra.mxu0 0.0
        %5605 = vmatprep.subr.mxu0 0.0
        %5606 = vmatpush1.xpose.msra.mxu0 0.0
        %5607 = vmatprep.subr.mxu0 0.0
        %5608 = vmatpush1.xpose.msra.mxu0 0.0
        %5609 = vmatprep.subr.mxu0 0.0
        %5610 = vmatpush1.xpose.msra.mxu0 0.0
        %5611 = vmatprep.subr.mxu0 0.0
        %5612 = vmatpush1.xpose.msra.mxu0 0.0
        %5613 = vmatprep.subr.mxu0 0.0
        %5614 = vmatpush1.xpose.msra.mxu0 0.0
        %5615 = vmatprep.subr.mxu0 0.0
        %5616 = vmatpush1.xpose.msra.mxu0 0.0
        %5617 = vmatprep.subr.mxu0 0.0
        %5618 = vmatpush1.xpose.msra.mxu0 0.0
        %5619 = vmatprep.subr.mxu0 0.0
        %5620 = vmatpush1.xpose.msra.mxu0 0.0
        %5621 = vmatprep.subr.mxu0 0.0
        %5622 = vmatpush1.xpose.msra.mxu0 0.0
        %5623 = vmatprep.subr.mxu0 0.0
        %5624 = vmatpush1.xpose.msra.mxu0 0.0
        %5625 = vmatprep.subr.mxu0 0.0
        %5626 = vmatpush1.xpose.msra.mxu0 0.0
        %5627 = vmatprep.subr.mxu0 0.0
        %5628 = vmatpush1.xpose.msra.mxu0 0.0
        %5629 = vmatprep.subr.mxu0 0.0
        %5630 = vmatpush1.xpose.msra.mxu0 0.0
        %5631 = vmatprep.subr.mxu0 0.0
        %5632 = vmatpush1.xpose.msra.mxu0 0.0
        %5633 = vmatprep.subr.mxu0 0.0
        %5634 = vmatpush1.xpose.msra.mxu0 0.0
        %5635 = vmatprep.mubr.f32.mxu0 0.0
        %5636 = vmatmul.mubr.f32.gmra.mrb[0].mxu0 %v5507
        %v5637 = vpop.f32.mrb[0].mxu0
        %v5638 = vadd.f32 0.0, %v5637
        %v5639 = vpop.f32.mrb[0].mxu0
        %5640 = vmatprep.mubr.f32.mxu0 0.0
        %5641 = vmatmul.mubr.f32.gmra.mrb[0].mxu0 %v5509
        %v5642 = vpop.f32.mrb[0].mxu0
        %v5643 = vadd.f32 0.0, %v5642
        %v5644 = vpop.f32.mrb[0].mxu0
        %5645 = vmatprep.mubr.f32.mxu0 0.0
        %5646 = vmatmul.mubr.f32.gmra.mrb[0].mxu0 %v5511
        %v5647 = vpop.f32.mrb[0].mxu0
        %v5648 = vadd.f32 0.0, %v5647
        %v5649 = vpop.f32.mrb[0].mxu0
        %5650 = vmatprep.mubr.f32.mxu0 0.0
        %5651 = vmatmul.mubr.f32.gmra.mrb[0].mxu0 %v5513
        %v5652 = vpop.f32.mrb[0].mxu0
        %v5653 = vadd.f32 0.0, %v5652
        %v5654 = vpop.f32.mrb[0].mxu0
        %5655 = vmatprep.mubr.f32.mxu0 0.0
        %5656 = vmatmul.mubr.f32.gmra.mrb[0].mxu0 %v5515
        %v5657 = vpop.f32.mrb[0].mxu0
        %v5658 = vadd.f32 0.0, %v5657
        %v5659 = vpop.f32.mrb[0].mxu0
        %5660 = vmatprep.mubr.f32.mxu0 0.0
        %5661 = vmatmul.mubr.f32.gmra.mrb[0].mxu0 %v5517
        %v5662 = vpop.f32.mrb[0].mxu0
        %v5663 = vadd.f32 0.0, %v5662
        %v5664 = vpop.f32.mrb[0].mxu0
        %5665 = vmatprep.mubr.f32.mxu0 0.0
        %5666 = vmatmul.mubr.f32.gmra.mrb[0].mxu0 %v5519
        %v5667 = vpop.f32.mrb[0].mxu0
        %v5668 = vadd.f32 0.0, %v5667
        %v5669 = vpop.f32.mrb[0].mxu0
        %5670 = vmatprep.mubr.f32.mxu0 0.0
        %5671 = vmatmul.mubr.f32.gmra.mrb[0].mxu0 %v5521
        %v5672 = vpop.f32.mrb[0].mxu0
        %v5673 = vadd.f32 0.0, %v5672
        %v5674 = vpop.f32.mrb[0].mxu0
        %5675 = vmatprep.mubr.f32.mxu0 0.0
        %5676 = vmatmul.mubr.f32.gmra.mrb[0].mxu0 %v5523
        %v5677 = vpop.f32.mrb[0].mxu0
        %v5678 = vadd.f32 0.0, %v5677
        %v5679 = vpop.f32.mrb[0].mxu0
        %5680 = vmatprep.mubr.f32.mxu0 0.0
        %5681 = vmatmul.mubr.f32.gmra.mrb[0].mxu0 %v5525
        %v5682 = vpop.f32.mrb[0].mxu0
        %v5683 = vadd.f32 0.0, %v5682
        %v5684 = vpop.f32.mrb[0].mxu0
        %5685 = vmatprep.mubr.f32.mxu0 0.0
        %5686 = vmatmul.mubr.f32.gmra.mrb[0].mxu0 %v5527
        %v5687 = vpop.f32.mrb[0].mxu0
        %v5688 = vadd.f32 0.0, %v5687
        %v5689 = vpop.f32.mrb[0].mxu0
        %5690 = vmatprep.mubr.f32.mxu0 0.0
        %5691 = vmatmul.mubr.f32.gmra.mrb[0].mxu0 %v5529
        %v5692 = vpop.f32.mrb[0].mxu0
        %v5693 = vadd.f32 0.0, %v5692
        %v5694 = vpop.f32.mrb[0].mxu0
        %5695 = vmatprep.mubr.f32.mxu0 0.0
        %5696 = vmatmul.mubr.f32.gmra.mrb[0].mxu0 %v5531
        %v5697 = vpop.f32.mrb[0].mxu0
        %v5698 = vadd.f32 0.0, %v5697
        %v5699 = vpop.f32.mrb[0].mxu0
        %5700 = vmatprep.mubr.f32.mxu0 0.0
        %5701 = vmatmul.mubr.f32.gmra.mrb[0].mxu0 %v5533
        %v5702 = vpop.f32.mrb[0].mxu0
        %v5703 = vadd.f32 0.0, %v5702
        %v5704 = vpop.f32.mrb[0].mxu0
        %5705 = vmatprep.mubr.f32.mxu0 0.0
        %5706 = vmatmul.mubr.f32.gmra.mrb[0].mxu0 %v5535
        %v5707 = vpop.f32.mrb[0].mxu0
        %v5708 = vadd.f32 0.0, %v5707
        %v5709 = vpop.f32.mrb[0].mxu0
        %5710 = vmatprep.mubr.f32.mxu0 0.0
        %5711 = vmatmul.mubr.f32.gmra.mrb[0].mxu0 %v5537
        %v5712 = vpop.f32.mrb[0].mxu0
        %v5713 = vadd.f32 0.0, %v5712
        %v5714 = vpop.f32.mrb[0].mxu0
        %5715 = vdwg.mxu0
        %v5716 = vmul.f32 %v5638, 0.25
        %v5717 = vmul.f32 %v5643, 0.25
        %v5718 = vmul.f32 %v5648, 0.25
        %v5719 = vmul.f32 %v5653, 0.25
        %v5720 = vmul.f32 %v5658, 0.25
        %v5721 = vmul.f32 %v5663, 0.25
        %v5722 = vmul.f32 %v5668, 0.25
        %v5723 = vmul.f32 %v5673, 0.25
        %v5724 = vmul.f32 %v5678, 0.25
        %v5725 = vmul.f32 %v5683, 0.25
        %v5726 = vmul.f32 %v5688, 0.25
        %v5727 = vmul.f32 %v5693, 0.25
        %v5728 = vmul.f32 %v5698, 0.25
        %v5729 = vmul.f32 %v5703, 0.25
        %v5730 = vmul.f32 %v5708, 0.25
        %v5731 = vmul.f32 %v5713, 0.25
        %v5732 = vadd.f32 %v5716, %v392
        %v5733 = vadd.f32 %v5717, %v393
        %v5734 = vadd.f32 %v5718, %v394
        %v5735 = vadd.f32 %v5719, %v395
        %v5736 = vadd.f32 %v5720, %v396
        %v5737 = vadd.f32 %v5721, %v397
        %v5738 = vadd.f32 %v5722, %v398
        %v5739 = vadd.f32 %v5723, %v399
        %v5740 = vadd.f32 %v5724, %v400
        %v5741 = vadd.f32 %v5725, %v401
        %v5742 = vadd.f32 %v5726, %v402
        %v5743 = vadd.f32 %v5727, %v403
        %v5744 = vadd.f32 %v5728, %v404
        %v5745 = vadd.f32 %v5729, %v405
        %v5746 = vadd.f32 %v5730, %v406
        %v5747 = vadd.f32 %v5731, %v407
        %5748 = vmax.xlane.f32.xlu0 %v5732
        %v5749 = vpop.xlane.xlu0 %5748
        %5750 = vmax.xlane.f32.xlu0 %v5733
        %v5751 = vpop.xlane.xlu0 %5750
        %5752 = vmax.xlane.f32.xlu0 %v5734
        %v5753 = vpop.xlane.xlu0 %5752
        %5754 = vmax.xlane.f32.xlu0 %v5735
        %v5755 = vpop.xlane.xlu0 %5754
        %5756 = vmax.xlane.f32.xlu0 %v5736
        %v5757 = vpop.xlane.xlu0 %5756
        %5758 = vmax.xlane.f32.xlu0 %v5737
        %v5759 = vpop.xlane.xlu0 %5758
        %5760 = vmax.xlane.f32.xlu0 %v5738
        %v5761 = vpop.xlane.xlu0 %5760
        %5762 = vmax.xlane.f32.xlu0 %v5739
        %v5763 = vpop.xlane.xlu0 %5762
        %5764 = vmax.xlane.f32.xlu0 %v5740
        %v5765 = vpop.xlane.xlu0 %5764
        %5766 = vmax.xlane.f32.xlu0 %v5741
        %v5767 = vpop.xlane.xlu0 %5766
        %5768 = vmax.xlane.f32.xlu0 %v5742
        %v5769 = vpop.xlane.xlu0 %5768
        %5770 = vmax.xlane.f32.xlu0 %v5743
        %v5771 = vpop.xlane.xlu0 %5770
        %5772 = vmax.xlane.f32.xlu0 %v5744
        %v5773 = vpop.xlane.xlu0 %5772
        %5774 = vmax.xlane.f32.xlu0 %v5745
        %v5775 = vpop.xlane.xlu0 %5774
        %5776 = vmax.xlane.f32.xlu0 %v5746
        %v5777 = vpop.xlane.xlu0 %5776
        %5778 = vmax.xlane.f32.xlu0 %v5747
        %v5779 = vpop.xlane.xlu0 %5778
        %v5780 = vsub.f32 %v5732, %v5749
        %v5781 = vsub.f32 %v5733, %v5751
        %v5782 = vsub.f32 %v5734, %v5753
        %v5783 = vsub.f32 %v5735, %v5755
        %v5784 = vsub.f32 %v5736, %v5757
        %v5785 = vsub.f32 %v5737, %v5759
        %v5786 = vsub.f32 %v5738, %v5761
        %v5787 = vsub.f32 %v5739, %v5763
        %v5788 = vsub.f32 %v5740, %v5765
        %v5789 = vsub.f32 %v5741, %v5767
        %v5790 = vsub.f32 %v5742, %v5769
        %v5791 = vsub.f32 %v5743, %v5771
        %v5792 = vsub.f32 %v5744, %v5773
        %v5793 = vsub.f32 %v5745, %v5775
        %v5794 = vsub.f32 %v5746, %v5777
        %v5795 = vsub.f32 %v5747, %v5779
        %v5796 = vmul.f32 %v5780, 1.442695
        %v5797 = vpow.pop %v5796
        %v5798 = vmul.f32 %v5781, 1.442695
        %v5799 = vpow.pop %v5798
        %v5800 = vmul.f32 %v5782, 1.442695
        %v5801 = vpow.pop %v5800
        %v5802 = vmul.f32 %v5783, 1.442695
        %v5803 = vpow.pop %v5802
        %v5804 = vmul.f32 %v5784, 1.442695
        %v5805 = vpow.pop %v5804
        %v5806 = vmul.f32 %v5785, 1.442695
        %v5807 = vpow.pop %v5806
        %v5808 = vmul.f32 %v5786, 1.442695
        %v5809 = vpow.pop %v5808
        %v5810 = vmul.f32 %v5787, 1.442695
        %v5811 = vpow.pop %v5810
        %v5812 = vmul.f32 %v5788, 1.442695
        %v5813 = vpow.pop %v5812
        %v5814 = vmul.f32 %v5789, 1.442695
        %v5815 = vpow.pop %v5814
        %v5816 = vmul.f32 %v5790, 1.442695
        %v5817 = vpow.pop %v5816
        %v5818 = vmul.f32 %v5791, 1.442695
        %v5819 = vpow.pop %v5818
        %v5820 = vmul.f32 %v5792, 1.442695
        %v5821 = vpow.pop %v5820
        %v5822 = vmul.f32 %v5793, 1.442695
        %v5823 = vpow.pop %v5822
        %v5824 = vmul.f32 %v5794, 1.442695
        %v5825 = vpow.pop %v5824
        %v5826 = vmul.f32 %v5795, 1.442695
        %v5827 = vpow.pop %v5826
        %5828 = vadd.xlane.f32.xlu0 %v5797
        %v5829 = vpop.xlane.xlu0 %5828
        %5830 = vadd.xlane.f32.xlu0 %v5799
        %v5831 = vpop.xlane.xlu0 %5830
        %5832 = vadd.xlane.f32.xlu0 %v5801
        %v5833 = vpop.xlane.xlu0 %5832
        %5834 = vadd.xlane.f32.xlu0 %v5803
        %v5835 = vpop.xlane.xlu0 %5834
        %5836 = vadd.xlane.f32.xlu0 %v5805
        %v5837 = vpop.xlane.xlu0 %5836
        %5838 = vadd.xlane.f32.xlu0 %v5807
        %v5839 = vpop.xlane.xlu0 %5838
        %5840 = vadd.xlane.f32.xlu0 %v5809
        %v5841 = vpop.xlane.xlu0 %5840
        %5842 = vadd.xlane.f32.xlu0 %v5811
        %v5843 = vpop.xlane.xlu0 %5842
        %5844 = vadd.xlane.f32.xlu0 %v5813
        %v5845 = vpop.xlane.xlu0 %5844
        %5846 = vadd.xlane.f32.xlu0 %v5815
        %v5847 = vpop.xlane.xlu0 %5846
        %5848 = vadd.xlane.f32.xlu0 %v5817
        %v5849 = vpop.xlane.xlu0 %5848
        %5850 = vadd.xlane.f32.xlu0 %v5819
        %v5851 = vpop.xlane.xlu0 %5850
        %5852 = vadd.xlane.f32.xlu0 %v5821
        %v5853 = vpop.xlane.xlu0 %5852
        %5854 = vadd.xlane.f32.xlu0 %v5823
        %v5855 = vpop.xlane.xlu0 %5854
        %5856 = vadd.xlane.f32.xlu0 %v5825
        %v5857 = vpop.xlane.xlu0 %5856
        %5858 = vadd.xlane.f32.xlu0 %v5827
        %v5859 = vpop.xlane.xlu0 %5858
        %v5860 = vrcp.pop %v5829
        %v5861 = vrcp.pop %v5831
        %v5862 = vrcp.pop %v5833
        %v5863 = vrcp.pop %v5835
        %v5864 = vrcp.pop %v5837
        %v5865 = vrcp.pop %v5839
        %v5866 = vrcp.pop %v5841
        %v5867 = vrcp.pop %v5843
        %v5868 = vrcp.pop %v5845
        %v5869 = vrcp.pop %v5847
        %v5870 = vrcp.pop %v5849
        %v5871 = vrcp.pop %v5851
        %v5872 = vrcp.pop %v5853
        %v5873 = vrcp.pop %v5855
        %v5874 = vrcp.pop %v5857
        %v5875 = vrcp.pop %v5859
        %v5876 = vmul.f32 %v5797, %v5860
        %v5877 = vmul.f32 %v5799, %v5861
        %v5878 = vmul.f32 %v5801, %v5862
        %v5879 = vmul.f32 %v5803, %v5863
        %v5880 = vmul.f32 %v5805, %v5864
        %v5881 = vmul.f32 %v5807, %v5865
        %v5882 = vmul.f32 %v5809, %v5866
        %v5883 = vmul.f32 %v5811, %v5867
        %v5884 = vmul.f32 %v5813, %v5868
        %v5885 = vmul.f32 %v5815, %v5869
        %v5886 = vmul.f32 %v5817, %v5870
        %v5887 = vmul.f32 %v5819, %v5871
        %v5888 = vmul.f32 %v5821, %v5872
        %v5889 = vmul.f32 %v5823, %v5873
        %v5890 = vmul.f32 %v5825, %v5874
        %v5891 = vmul.f32 %v5827, %v5875
        %5908 = vrot.lane.b32.xlu0 %v4803, 112
        %v5909 = vpop.permute.xlu0 %5908
        %5910 = vrot.lane.b32.xlu0 %v4808, 112
        %v5911 = vpop.permute.xlu0 %5910
        %5912 = vrot.lane.b32.xlu0 %v4813, 112
        %v5913 = vpop.permute.xlu0 %5912
        %5914 = vrot.lane.b32.xlu0 %v4818, 112
        %v5915 = vpop.permute.xlu0 %5914
        %5916 = vrot.lane.b32.xlu0 %v4823, 112
        %v5917 = vpop.permute.xlu0 %5916
        %5918 = vrot.lane.b32.xlu0 %v4828, 112
        %v5919 = vpop.permute.xlu0 %5918
        %5920 = vrot.lane.b32.xlu0 %v4833, 112
        %v5921 = vpop.permute.xlu0 %5920
        %5922 = vrot.lane.b32.xlu0 %v4838, 112
        %v5923 = vpop.permute.xlu0 %5922
        %5924 = vrot.lane.b32.xlu0 %v4843, 112
        %v5925 = vpop.permute.xlu0 %5924
        %5926 = vrot.lane.b32.xlu0 %v4848, 112
        %v5927 = vpop.permute.xlu0 %5926
        %5928 = vrot.lane.b32.xlu0 %v4853, 112
        %v5929 = vpop.permute.xlu0 %5928
        %5930 = vrot.lane.b32.xlu0 %v4858, 112
        %v5931 = vpop.permute.xlu0 %5930
        %5932 = vrot.lane.b32.xlu0 %v4863, 112
        %v5933 = vpop.permute.xlu0 %5932
        %5934 = vrot.lane.b32.xlu0 %v4868, 112
        %v5935 = vpop.permute.xlu0 %5934
        %5936 = vrot.lane.b32.xlu0 %v4873, 112
        %v5937 = vpop.permute.xlu0 %5936
        %5938 = vrot.lane.b32.xlu0 %v4878, 112
        %v5939 = vpop.permute.xlu0 %5938
        %5956 = vmatprep.subr.mxu0 0.0
        %5957 = vmatpush1.msra.mxu0 %v5909
        %5958 = vmatprep.subr.mxu0 0.0
        %5959 = vmatpush1.msra.mxu0 %v5911
        %5960 = vmatprep.subr.mxu0 0.0
        %5961 = vmatpush1.msra.mxu0 %v5913
        %5962 = vmatprep.subr.mxu0 0.0
        %5963 = vmatpush1.msra.mxu0 %v5915
        %5964 = vmatprep.subr.mxu0 0.0
        %5965 = vmatpush1.msra.mxu0 %v5917
        %5966 = vmatprep.subr.mxu0 0.0
        %5967 = vmatpush1.msra.mxu0 %v5919
        %5968 = vmatprep.subr.mxu0 0.0
        %5969 = vmatpush1.msra.mxu0 %v5921
        %5970 = vmatprep.subr.mxu0 0.0
        %5971 = vmatpush1.msra.mxu0 %v5923
        %5972 = vmatprep.subr.mxu0 0.0
        %5973 = vmatpush1.msra.mxu0 %v5925
        %5974 = vmatprep.subr.mxu0 0.0
        %5975 = vmatpush1.msra.mxu0 %v5927
        %5976 = vmatprep.subr.mxu0 0.0
        %5977 = vmatpush1.msra.mxu0 %v5929
        %5978 = vmatprep.subr.mxu0 0.0
        %5979 = vmatpush1.msra.mxu0 %v5931
        %5980 = vmatprep.subr.mxu0 0.0
        %5981 = vmatpush1.msra.mxu0 %v5933
        %5982 = vmatprep.subr.mxu0 0.0
        %5983 = vmatpush1.msra.mxu0 %v5935
        %5984 = vmatprep.subr.mxu0 0.0
        %5985 = vmatpush1.msra.mxu0 %v5937
        %5986 = vmatprep.subr.mxu0 0.0
        %5987 = vmatpush1.msra.mxu0 %v5939
        %5988 = vmatprep.subr.mxu0 0.0
        %5989 = vmatpush1.msra.mxu0 0.0
        %5990 = vmatprep.subr.mxu0 0.0
        %5991 = vmatpush1.msra.mxu0 0.0
        %5992 = vmatprep.subr.mxu0 0.0
        %5993 = vmatpush1.msra.mxu0 0.0
        %5994 = vmatprep.subr.mxu0 0.0
        %5995 = vmatpush1.msra.mxu0 0.0
        %5996 = vmatprep.subr.mxu0 0.0
        %5997 = vmatpush1.msra.mxu0 0.0
        %5998 = vmatprep.subr.mxu0 0.0
        %5999 = vmatpush1.msra.mxu0 0.0
        %6000 = vmatprep.subr.mxu0 0.0
        %6001 = vmatpush1.msra.mxu0 0.0
        %6002 = vmatprep.subr.mxu0 0.0
        %6003 = vmatpush1.msra.mxu0 0.0
        %6004 = vmatprep.subr.mxu0 0.0
        %6005 = vmatpush1.msra.mxu0 0.0
        %6006 = vmatprep.subr.mxu0 0.0
        %6007 = vmatpush1.msra.mxu0 0.0
        %6008 = vmatprep.subr.mxu0 0.0
        %6009 = vmatpush1.msra.mxu0 0.0
        %6010 = vmatprep.subr.mxu0 0.0
        %6011 = vmatpush1.msra.mxu0 0.0
        %6012 = vmatprep.subr.mxu0 0.0
        %6013 = vmatpush1.msra.mxu0 0.0
        %6014 = vmatprep.subr.mxu0 0.0
        %6015 = vmatpush1.msra.mxu0 0.0
        %6016 = vmatprep.subr.mxu0 0.0
        %6017 = vmatpush1.msra.mxu0 0.0
        %6018 = vmatprep.subr.mxu0 0.0
        %6019 = vmatpush1.msra.mxu0 0.0
        %6020 = vmatprep.mubr.f32.mxu0 0.0
        %6021 = vmatmul.mubr.f32.gmra.mrb[0].mxu0 %v5876
        %v6022 = vpop.f32.mrb[0].mxu0
        %v6023 = vadd.f32 0.0, %v6022
        %v6024 = vpop.f32.mrb[0].mxu0
        %6025 = vmatprep.mubr.f32.mxu0 0.0
        %6026 = vmatmul.mubr.f32.gmra.mrb[0].mxu0 %v5877
        %v6027 = vpop.f32.mrb[0].mxu0
        %v6028 = vadd.f32 0.0, %v6027
        %v6029 = vpop.f32.mrb[0].mxu0
        %6030 = vmatprep.mubr.f32.mxu0 0.0
        %6031 = vmatmul.mubr.f32.gmra.mrb[0].mxu0 %v5878
        %v6032 = vpop.f32.mrb[0].mxu0
        %v6033 = vadd.f32 0.0, %v6032
        %v6034 = vpop.f32.mrb[0].mxu0
        %6035 = vmatprep.mubr.f32.mxu0 0.0
        %6036 = vmatmul.mubr.f32.gmra.mrb[0].mxu0 %v5879
        %v6037 = vpop.f32.mrb[0].mxu0
        %v6038 = vadd.f32 0.0, %v6037
        %v6039 = vpop.f32.mrb[0].mxu0
        %6040 = vmatprep.mubr.f32.mxu0 0.0
        %6041 = vmatmul.mubr.f32.gmra.mrb[0].mxu0 %v5880
        %v6042 = vpop.f32.mrb[0].mxu0
        %v6043 = vadd.f32 0.0, %v6042
        %v6044 = vpop.f32.mrb[0].mxu0
        %6045 = vmatprep.mubr.f32.mxu0 0.0
        %6046 = vmatmul.mubr.f32.gmra.mrb[0].mxu0 %v5881
        %v6047 = vpop.f32.mrb[0].mxu0
        %v6048 = vadd.f32 0.0, %v6047
        %v6049 = vpop.f32.mrb[0].mxu0
        %6050 = vmatprep.mubr.f32.mxu0 0.0
        %6051 = vmatmul.mubr.f32.gmra.mrb[0].mxu0 %v5882
        %v6052 = vpop.f32.mrb[0].mxu0
        %v6053 = vadd.f32 0.0, %v6052
        %v6054 = vpop.f32.mrb[0].mxu0
        %6055 = vmatprep.mubr.f32.mxu0 0.0
        %6056 = vmatmul.mubr.f32.gmra.mrb[0].mxu0 %v5883
        %v6057 = vpop.f32.mrb[0].mxu0
        %v6058 = vadd.f32 0.0, %v6057
        %v6059 = vpop.f32.mrb[0].mxu0
        %6060 = vmatprep.mubr.f32.mxu0 0.0
        %6061 = vmatmul.mubr.f32.gmra.mrb[0].mxu0 %v5884
        %v6062 = vpop.f32.mrb[0].mxu0
        %v6063 = vadd.f32 0.0, %v6062
        %v6064 = vpop.f32.mrb[0].mxu0
        %6065 = vmatprep.mubr.f32.mxu0 0.0
        %6066 = vmatmul.mubr.f32.gmra.mrb[0].mxu0 %v5885
        %v6067 = vpop.f32.mrb[0].mxu0
        %v6068 = vadd.f32 0.0, %v6067
        %v6069 = vpop.f32.mrb[0].mxu0
        %6070 = vmatprep.mubr.f32.mxu0 0.0
        %6071 = vmatmul.mubr.f32.gmra.mrb[0].mxu0 %v5886
        %v6072 = vpop.f32.mrb[0].mxu0
        %v6073 = vadd.f32 0.0, %v6072
        %v6074 = vpop.f32.mrb[0].mxu0
        %6075 = vmatprep.mubr.f32.mxu0 0.0
        %6076 = vmatmul.mubr.f32.gmra.mrb[0].mxu0 %v5887
        %v6077 = vpop.f32.mrb[0].mxu0
        %v6078 = vadd.f32 0.0, %v6077
        %v6079 = vpop.f32.mrb[0].mxu0
        %6080 = vmatprep.mubr.f32.mxu0 0.0
        %6081 = vmatmul.mubr.f32.gmra.mrb[0].mxu0 %v5888
        %v6082 = vpop.f32.mrb[0].mxu0
        %v6083 = vadd.f32 0.0, %v6082
        %v6084 = vpop.f32.mrb[0].mxu0
        %6085 = vmatprep.mubr.f32.mxu0 0.0
        %6086 = vmatmul.mubr.f32.gmra.mrb[0].mxu0 %v5889
        %v6087 = vpop.f32.mrb[0].mxu0
        %v6088 = vadd.f32 0.0, %v6087
        %v6089 = vpop.f32.mrb[0].mxu0
        %6090 = vmatprep.mubr.f32.mxu0 0.0
        %6091 = vmatmul.mubr.f32.gmra.mrb[0].mxu0 %v5890
        %v6092 = vpop.f32.mrb[0].mxu0
        %v6093 = vadd.f32 0.0, %v6092
        %v6094 = vpop.f32.mrb[0].mxu0
        %6095 = vmatprep.mubr.f32.mxu0 0.0
        %6096 = vmatmul.mubr.f32.gmra.mrb[0].mxu0 %v5891
        %v6097 = vpop.f32.mrb[0].mxu0
        %v6098 = vadd.f32 0.0, %v6097
        %v6099 = vpop.f32.mrb[0].mxu0
        %6100 = vdwg.mxu0
        %6117 = vrot.lane.b32.xlu0 %v6023, 16
        %v6118 = vpop.permute.xlu0 %6117
        %6119 = vrot.lane.b32.xlu0 %v6028, 16
        %v6120 = vpop.permute.xlu0 %6119
        %6121 = vrot.lane.b32.xlu0 %v6033, 16
        %v6122 = vpop.permute.xlu0 %6121
        %6123 = vrot.lane.b32.xlu0 %v6038, 16
        %v6124 = vpop.permute.xlu0 %6123
        %6125 = vrot.lane.b32.xlu0 %v6043, 16
        %v6126 = vpop.permute.xlu0 %6125
        %6127 = vrot.lane.b32.xlu0 %v6048, 16
        %v6128 = vpop.permute.xlu0 %6127
        %6129 = vrot.lane.b32.xlu0 %v6053, 16
        %v6130 = vpop.permute.xlu0 %6129
        %6131 = vrot.lane.b32.xlu0 %v6058, 16
        %v6132 = vpop.permute.xlu0 %6131
        %6133 = vrot.lane.b32.xlu0 %v6063, 16
        %v6134 = vpop.permute.xlu0 %6133
        %6135 = vrot.lane.b32.xlu0 %v6068, 16
        %v6136 = vpop.permute.xlu0 %6135
        %6137 = vrot.lane.b32.xlu0 %v6073, 16
        %v6138 = vpop.permute.xlu0 %6137
        %6139 = vrot.lane.b32.xlu0 %v6078, 16
        %v6140 = vpop.permute.xlu0 %6139
        %6141 = vrot.lane.b32.xlu0 %v6083, 16
        %v6142 = vpop.permute.xlu0 %6141
        %6143 = vrot.lane.b32.xlu0 %v6088, 16
        %v6144 = vpop.permute.xlu0 %6143
        %6145 = vrot.lane.b32.xlu0 %v6093, 16
        %v6146 = vpop.permute.xlu0 %6145
        %6147 = vrot.lane.b32.xlu0 %v6098, 16
        %v6148 = vpop.permute.xlu0 %6147
        %v6165 = vsel %vm1794, %v5365, %v6118
        %v6166 = vsel %vm1794, %v5370, %v6120
        %v6167 = vsel %vm1794, %v5375, %v6122
        %v6168 = vsel %vm1794, %v5380, %v6124
        %v6169 = vsel %vm1794, %v5385, %v6126
        %v6170 = vsel %vm1794, %v5390, %v6128
        %v6171 = vsel %vm1794, %v5395, %v6130
        %v6172 = vsel %vm1794, %v5400, %v6132
        %v6173 = vsel %vm1794, %v5405, %v6134
        %v6174 = vsel %vm1794, %v5410, %v6136
        %v6175 = vsel %vm1794, %v5415, %v6138
        %v6176 = vsel %vm1794, %v5420, %v6140
        %v6177 = vsel %vm1794, %v5425, %v6142
        %v6178 = vsel %vm1794, %v5430, %v6144
        %v6179 = vsel %vm1794, %v5435, %v6146
        %v6180 = vsel %vm1794, %v5440, %v6148
        %v6181 = vlaneseq
        %v6182 = vshrl.u32 %v6181, 7
        %v6183 = vsub.s32 3, %v6182
        %v6184 = vrot.slane %v4384, %v6183
        %v6186 = vsel %vm1023, %v6165, 0
        %v6189 = vsel %vm1023, %v6166, 0
        %v6192 = vsel %vm1023, %v6167, 0
        %v6195 = vsel %vm1023, %v6168, 0
        %v6198 = vsel %vm1023, %v6169, 0
        %v6201 = vsel %vm1023, %v6170, 0
        %v6204 = vsel %vm1023, %v6171, 0
        %v6207 = vsel %vm1023, %v6172, 0
        %v6210 = vsel %vm1023, %v6173, 0
        %v6213 = vsel %vm1023, %v6174, 0
        %v6216 = vsel %vm1023, %v6175, 0
        %v6219 = vsel %vm1023, %v6176, 0
        %v6222 = vsel %vm1023, %v6177, 0
        %v6225 = vsel %vm1023, %v6178, 0
        %v6228 = vsel %vm1023, %v6179, 0
        %v6231 = vsel %vm1023, %v6180, 0
        %6233 = vmatprep.subr.mxu0 0.0
        %6234 = vmatpush1.msra.mxu0 %v4371
        %6235 = vmatprep.subr.mxu0 0.0
        %6236 = vmatpush1.msra.mxu0 %v4372
        %6237 = vmatprep.subr.mxu0 0.0
        %6238 = vmatpush1.msra.mxu0 %v4373
        %6239 = vmatprep.subr.mxu0 0.0
        %6240 = vmatpush1.msra.mxu0 %v4374
        %6241 = vmatprep.subr.mxu0 0.0
        %6242 = vmatpush1.msra.mxu0 0.0
        %6243 = vmatprep.subr.mxu0 0.0
        %6244 = vmatpush1.msra.mxu0 0.0
        %6245 = vmatprep.subr.mxu0 0.0
        %6246 = vmatpush1.msra.mxu0 0.0
        %6247 = vmatprep.subr.mxu0 0.0
        %6248 = vmatpush1.msra.mxu0 0.0
        %6249 = vmatprep.subr.mxu0 0.0
        %6250 = vmatpush1.msra.mxu0 0.0
        %6251 = vmatprep.subr.mxu0 0.0
        %6252 = vmatpush1.msra.mxu0 0.0
        %6253 = vmatprep.subr.mxu0 0.0
        %6254 = vmatpush1.msra.mxu0 0.0
        %6255 = vmatprep.subr.mxu0 0.0
        %6256 = vmatpush1.msra.mxu0 0.0
        %6257 = vmatprep.subr.mxu0 0.0
        %6258 = vmatpush1.msra.mxu0 0.0
        %6259 = vmatprep.subr.mxu0 0.0
        %6260 = vmatpush1.msra.mxu0 0.0
        %6261 = vmatprep.subr.mxu0 0.0
        %6262 = vmatpush1.msra.mxu0 0.0
        %6263 = vmatprep.subr.mxu0 0.0
        %6264 = vmatpush1.msra.mxu0 0.0
        %6265 = vmatprep.subr.mxu0 0.0
        %6266 = vmatpush1.msra.mxu0 0.0
        %6267 = vmatprep.subr.mxu0 0.0
        %6268 = vmatpush1.msra.mxu0 0.0
        %6269 = vmatprep.subr.mxu0 0.0
        %6270 = vmatpush1.msra.mxu0 0.0
        %6271 = vmatprep.subr.mxu0 0.0
        %6272 = vmatpush1.msra.mxu0 0.0
        %6273 = vmatprep.subr.mxu0 0.0
        %6274 = vmatpush1.msra.mxu0 0.0
        %6275 = vmatprep.subr.mxu0 0.0
        %6276 = vmatpush1.msra.mxu0 0.0
        %6277 = vmatprep.subr.mxu0 0.0
        %6278 = vmatpush1.msra.mxu0 0.0
        %6279 = vmatprep.subr.mxu0 0.0
        %6280 = vmatpush1.msra.mxu0 0.0
        %6281 = vmatprep.subr.mxu0 0.0
        %6282 = vmatpush1.msra.mxu0 0.0
        %6283 = vmatprep.subr.mxu0 0.0
        %6284 = vmatpush1.msra.mxu0 0.0
        %6285 = vmatprep.subr.mxu0 0.0
        %6286 = vmatpush1.msra.mxu0 0.0
        %6287 = vmatprep.subr.mxu0 0.0
        %6288 = vmatpush1.msra.mxu0 0.0
        %6289 = vmatprep.subr.mxu0 0.0
        %6290 = vmatpush1.msra.mxu0 0.0
        %6291 = vmatprep.subr.mxu0 0.0
        %6292 = vmatpush1.msra.mxu0 0.0
        %6293 = vmatprep.subr.mxu0 0.0
        %6294 = vmatpush1.msra.mxu0 0.0
        %6295 = vmatprep.subr.mxu0 0.0
        %6296 = vmatpush1.msra.mxu0 0.0
        %6297 = vmatprep.mubr.f32.mxu0 0.0
        %6298 = vmatmul.mubr.f32.gmra.mrb[0].mxu0 %v6186
        %v6299 = vpop.f32.mrb[0].mxu0
        %v6300 = vadd.f32 %v6184, %v6299
        %v6301 = vpop.f32.mrb[0].mxu0
        %6302 = vmatprep.mubr.f32.mxu0 0.0
        %6303 = vmatmul.mubr.f32.gmra.mrb[0].mxu0 %v6189
        %v6304 = vpop.f32.mrb[0].mxu0
        %v6305 = vadd.f32 %v6184, %v6304
        %v6306 = vpop.f32.mrb[0].mxu0
        %6307 = vmatprep.mubr.f32.mxu0 0.0
        %6308 = vmatmul.mubr.f32.gmra.mrb[0].mxu0 %v6192
        %v6309 = vpop.f32.mrb[0].mxu0
        %v6310 = vadd.f32 %v6184, %v6309
        %v6311 = vpop.f32.mrb[0].mxu0
        %6312 = vmatprep.mubr.f32.mxu0 0.0
        %6313 = vmatmul.mubr.f32.gmra.mrb[0].mxu0 %v6195
        %v6314 = vpop.f32.mrb[0].mxu0
        %v6315 = vadd.f32 %v6184, %v6314
        %v6316 = vpop.f32.mrb[0].mxu0
        %6317 = vmatprep.mubr.f32.mxu0 0.0
        %6318 = vmatmul.mubr.f32.gmra.mrb[0].mxu0 %v6198
        %v6319 = vpop.f32.mrb[0].mxu0
        %v6320 = vadd.f32 %v6184, %v6319
        %v6321 = vpop.f32.mrb[0].mxu0
        %6322 = vmatprep.mubr.f32.mxu0 0.0
        %6323 = vmatmul.mubr.f32.gmra.mrb[0].mxu0 %v6201
        %v6324 = vpop.f32.mrb[0].mxu0
        %v6325 = vadd.f32 %v6184, %v6324
        %v6326 = vpop.f32.mrb[0].mxu0
        %6327 = vmatprep.mubr.f32.mxu0 0.0
        %6328 = vmatmul.mubr.f32.gmra.mrb[0].mxu0 %v6204
        %v6329 = vpop.f32.mrb[0].mxu0
        %v6330 = vadd.f32 %v6184, %v6329
        %v6331 = vpop.f32.mrb[0].mxu0
        %6332 = vmatprep.mubr.f32.mxu0 0.0
        %6333 = vmatmul.mubr.f32.gmra.mrb[0].mxu0 %v6207
        %v6334 = vpop.f32.mrb[0].mxu0
        %v6335 = vadd.f32 %v6184, %v6334
        %v6336 = vpop.f32.mrb[0].mxu0
        %6337 = vmatprep.mubr.f32.mxu0 0.0
        %6338 = vmatmul.mubr.f32.gmra.mrb[0].mxu0 %v6210
        %v6339 = vpop.f32.mrb[0].mxu0
        %v6340 = vadd.f32 %v6184, %v6339
        %v6341 = vpop.f32.mrb[0].mxu0
        %6342 = vmatprep.mubr.f32.mxu0 0.0
        %6343 = vmatmul.mubr.f32.gmra.mrb[0].mxu0 %v6213
        %v6344 = vpop.f32.mrb[0].mxu0
        %v6345 = vadd.f32 %v6184, %v6344
        %v6346 = vpop.f32.mrb[0].mxu0
        %6347 = vmatprep.mubr.f32.mxu0 0.0
        %6348 = vmatmul.mubr.f32.gmra.mrb[0].mxu0 %v6216
        %v6349 = vpop.f32.mrb[0].mxu0
        %v6350 = vadd.f32 %v6184, %v6349
        %v6351 = vpop.f32.mrb[0].mxu0
        %6352 = vmatprep.mubr.f32.mxu0 0.0
        %6353 = vmatmul.mubr.f32.gmra.mrb[0].mxu0 %v6219
        %v6354 = vpop.f32.mrb[0].mxu0
        %v6355 = vadd.f32 %v6184, %v6354
        %v6356 = vpop.f32.mrb[0].mxu0
        %6357 = vmatprep.mubr.f32.mxu0 0.0
        %6358 = vmatmul.mubr.f32.gmra.mrb[0].mxu0 %v6222
        %v6359 = vpop.f32.mrb[0].mxu0
        %v6360 = vadd.f32 %v6184, %v6359
        %v6361 = vpop.f32.mrb[0].mxu0
        %6362 = vmatprep.mubr.f32.mxu0 0.0
        %6363 = vmatmul.mubr.f32.gmra.mrb[0].mxu0 %v6225
        %v6364 = vpop.f32.mrb[0].mxu0
        %v6365 = vadd.f32 %v6184, %v6364
        %v6366 = vpop.f32.mrb[0].mxu0
        %6367 = vmatprep.mubr.f32.mxu0 0.0
        %6368 = vmatmul.mubr.f32.gmra.mrb[0].mxu0 %v6228
        %v6369 = vpop.f32.mrb[0].mxu0
        %v6370 = vadd.f32 %v6184, %v6369
        %v6371 = vpop.f32.mrb[0].mxu0
        %6372 = vmatprep.mubr.f32.mxu0 0.0
        %6373 = vmatmul.mubr.f32.gmra.mrb[0].mxu0 %v6231
        %v6374 = vpop.f32.mrb[0].mxu0
        %v6375 = vadd.f32 %v6184, %v6374
        %v6376 = vpop.f32.mrb[0].mxu0
        %6377 = vdwg.mxu0
        %v6378 = vadd.f32 %v4342, %v6300
        %v6379 = vadd.f32 %v4343, %v6305
        %v6380 = vadd.f32 %v4344, %v6310
        %v6381 = vadd.f32 %v4345, %v6315
        %v6382 = vadd.f32 %v4346, %v6320
        %v6383 = vadd.f32 %v4347, %v6325
        %v6384 = vadd.f32 %v4348, %v6330
        %v6385 = vadd.f32 %v4349, %v6335
        %v6386 = vadd.f32 %v4350, %v6340
        %v6387 = vadd.f32 %v4351, %v6345
        %v6388 = vadd.f32 %v4352, %v6350
        %v6389 = vadd.f32 %v4353, %v6355
        %v6390 = vadd.f32 %v4354, %v6360
        %v6391 = vadd.f32 %v4355, %v6365
        %v6392 = vadd.f32 %v4356, %v6370
        %v6393 = vadd.f32 %v4357, %v6375
        %v6394 = vsel %vm1023, %v6378, 0.0
        %6395 = vadd.xlane.f32.xlu0 %v6394
        %v6396 = vpop.xlane.xlu0 %6395
        %v6397 = vsel %vm1023, %v6379, 0.0
        %6398 = vadd.xlane.f32.xlu0 %v6397
        %v6399 = vpop.xlane.xlu0 %6398
        %v6400 = vsel %vm1023, %v6380, 0.0
        %6401 = vadd.xlane.f32.xlu0 %v6400
        %v6402 = vpop.xlane.xlu0 %6401
        %v6403 = vsel %vm1023, %v6381, 0.0
        %6404 = vadd.xlane.f32.xlu0 %v6403
        %v6405 = vpop.xlane.xlu0 %6404
        %v6406 = vsel %vm1023, %v6382, 0.0
        %6407 = vadd.xlane.f32.xlu0 %v6406
        %v6408 = vpop.xlane.xlu0 %6407
        %v6409 = vsel %vm1023, %v6383, 0.0
        %6410 = vadd.xlane.f32.xlu0 %v6409
        %v6411 = vpop.xlane.xlu0 %6410
        %v6412 = vsel %vm1023, %v6384, 0.0
        %6413 = vadd.xlane.f32.xlu0 %v6412
        %v6414 = vpop.xlane.xlu0 %6413
        %v6415 = vsel %vm1023, %v6385, 0.0
        %6416 = vadd.xlane.f32.xlu0 %v6415
        %v6417 = vpop.xlane.xlu0 %6416
        %v6418 = vsel %vm1023, %v6386, 0.0
        %6419 = vadd.xlane.f32.xlu0 %v6418
        %v6420 = vpop.xlane.xlu0 %6419
        %v6421 = vsel %vm1023, %v6387, 0.0
        %6422 = vadd.xlane.f32.xlu0 %v6421
        %v6423 = vpop.xlane.xlu0 %6422
        %v6424 = vsel %vm1023, %v6388, 0.0
        %6425 = vadd.xlane.f32.xlu0 %v6424
        %v6426 = vpop.xlane.xlu0 %6425
        %v6427 = vsel %vm1023, %v6389, 0.0
        %6428 = vadd.xlane.f32.xlu0 %v6427
        %v6429 = vpop.xlane.xlu0 %6428
        %v6430 = vsel %vm1023, %v6390, 0.0
        %6431 = vadd.xlane.f32.xlu0 %v6430
        %v6432 = vpop.xlane.xlu0 %6431
        %v6433 = vsel %vm1023, %v6391, 0.0
        %6434 = vadd.xlane.f32.xlu0 %v6433
        %v6435 = vpop.xlane.xlu0 %6434
        %v6436 = vsel %vm1023, %v6392, 0.0
        %6437 = vadd.xlane.f32.xlu0 %v6436
        %v6438 = vpop.xlane.xlu0 %6437
        %v6439 = vsel %vm1023, %v6393, 0.0
        %6440 = vadd.xlane.f32.xlu0 %v6439
        %v6441 = vpop.xlane.xlu0 %6440
        %v6442 = vmul.f32 %v6396, %v1072
        %v6443 = vmul.f32 %v6399, %v1072
        %v6444 = vmul.f32 %v6402, %v1072
        %v6445 = vmul.f32 %v6405, %v1072
        %v6446 = vmul.f32 %v6408, %v1072
        %v6447 = vmul.f32 %v6411, %v1072
        %v6448 = vmul.f32 %v6414, %v1072
        %v6449 = vmul.f32 %v6417, %v1072
        %v6450 = vmul.f32 %v6420, %v1072
        %v6451 = vmul.f32 %v6423, %v1072
        %v6452 = vmul.f32 %v6426, %v1072
        %v6453 = vmul.f32 %v6429, %v1072
        %v6454 = vmul.f32 %v6432, %v1072
        %v6455 = vmul.f32 %v6435, %v1072
        %v6456 = vmul.f32 %v6438, %v1072
        %v6457 = vmul.f32 %v6441, %v1072
        %v6458 = vsub.f32 %v6378, %v6442
        %v6459 = vsub.f32 %v6379, %v6443
        %v6460 = vsub.f32 %v6380, %v6444
        %v6461 = vsub.f32 %v6381, %v6445
        %v6462 = vsub.f32 %v6382, %v6446
        %v6463 = vsub.f32 %v6383, %v6447
        %v6464 = vsub.f32 %v6384, %v6448
        %v6465 = vsub.f32 %v6385, %v6449
        %v6466 = vsub.f32 %v6386, %v6450
        %v6467 = vsub.f32 %v6387, %v6451
        %v6468 = vsub.f32 %v6388, %v6452
        %v6469 = vsub.f32 %v6389, %v6453
        %v6470 = vsub.f32 %v6390, %v6454
        %v6471 = vsub.f32 %v6391, %v6455
        %v6472 = vsub.f32 %v6392, %v6456
        %v6473 = vsub.f32 %v6393, %v6457
        %v6474 = vmul.f32 %v6458, %v6458
        %v6475 = vmul.f32 %v6459, %v6459
        %v6476 = vmul.f32 %v6460, %v6460
        %v6477 = vmul.f32 %v6461, %v6461
        %v6478 = vmul.f32 %v6462, %v6462
        %v6479 = vmul.f32 %v6463, %v6463
        %v6480 = vmul.f32 %v6464, %v6464
        %v6481 = vmul.f32 %v6465, %v6465
        %v6482 = vmul.f32 %v6466, %v6466
        %v6483 = vmul.f32 %v6467, %v6467
        %v6484 = vmul.f32 %v6468, %v6468
        %v6485 = vmul.f32 %v6469, %v6469
        %v6486 = vmul.f32 %v6470, %v6470
        %v6487 = vmul.f32 %v6471, %v6471
        %v6488 = vmul.f32 %v6472, %v6472
        %v6489 = vmul.f32 %v6473, %v6473
        %v6490 = vsel %vm1023, %v6474, 0.0
        %6491 = vadd.xlane.f32.xlu0 %v6490
        %v6492 = vpop.xlane.xlu0 %6491
        %v6493 = vsel %vm1023, %v6475, 0.0
        %6494 = vadd.xlane.f32.xlu0 %v6493
        %v6495 = vpop.xlane.xlu0 %6494
        %v6496 = vsel %vm1023, %v6476, 0.0
        %6497 = vadd.xlane.f32.xlu0 %v6496
        %v6498 = vpop.xlane.xlu0 %6497
        %v6499 = vsel %vm1023, %v6477, 0.0
        %6500 = vadd.xlane.f32.xlu0 %v6499
        %v6501 = vpop.xlane.xlu0 %6500
        %v6502 = vsel %vm1023, %v6478, 0.0
        %6503 = vadd.xlane.f32.xlu0 %v6502
        %v6504 = vpop.xlane.xlu0 %6503
        %v6505 = vsel %vm1023, %v6479, 0.0
        %6506 = vadd.xlane.f32.xlu0 %v6505
        %v6507 = vpop.xlane.xlu0 %6506
        %v6508 = vsel %vm1023, %v6480, 0.0
        %6509 = vadd.xlane.f32.xlu0 %v6508
        %v6510 = vpop.xlane.xlu0 %6509
        %v6511 = vsel %vm1023, %v6481, 0.0
        %6512 = vadd.xlane.f32.xlu0 %v6511
        %v6513 = vpop.xlane.xlu0 %6512
        %v6514 = vsel %vm1023, %v6482, 0.0
        %6515 = vadd.xlane.f32.xlu0 %v6514
        %v6516 = vpop.xlane.xlu0 %6515
        %v6517 = vsel %vm1023, %v6483, 0.0
        %6518 = vadd.xlane.f32.xlu0 %v6517
        %v6519 = vpop.xlane.xlu0 %6518
        %v6520 = vsel %vm1023, %v6484, 0.0
        %6521 = vadd.xlane.f32.xlu0 %v6520
        %v6522 = vpop.xlane.xlu0 %6521
        %v6523 = vsel %vm1023, %v6485, 0.0
        %6524 = vadd.xlane.f32.xlu0 %v6523
        %v6525 = vpop.xlane.xlu0 %6524
        %v6526 = vsel %vm1023, %v6486, 0.0
        %6527 = vadd.xlane.f32.xlu0 %v6526
        %v6528 = vpop.xlane.xlu0 %6527
        %v6529 = vsel %vm1023, %v6487, 0.0
        %6530 = vadd.xlane.f32.xlu0 %v6529
        %v6531 = vpop.xlane.xlu0 %6530
        %v6532 = vsel %vm1023, %v6488, 0.0
        %6533 = vadd.xlane.f32.xlu0 %v6532
        %v6534 = vpop.xlane.xlu0 %6533
        %v6535 = vsel %vm1023, %v6489, 0.0
        %6536 = vadd.xlane.f32.xlu0 %v6535
        %v6537 = vpop.xlane.xlu0 %6536
        %v6538 = vmul.f32 %v6492, %v1072
        %v6539 = vmul.f32 %v6495, %v1072
        %v6540 = vmul.f32 %v6498, %v1072
        %v6541 = vmul.f32 %v6501, %v1072
        %v6542 = vmul.f32 %v6504, %v1072
        %v6543 = vmul.f32 %v6507, %v1072
        %v6544 = vmul.f32 %v6510, %v1072
        %v6545 = vmul.f32 %v6513, %v1072
        %v6546 = vmul.f32 %v6516, %v1072
        %v6547 = vmul.f32 %v6519, %v1072
        %v6548 = vmul.f32 %v6522, %v1072
        %v6549 = vmul.f32 %v6525, %v1072
        %v6550 = vmul.f32 %v6528, %v1072
        %v6551 = vmul.f32 %v6531, %v1072
        %v6552 = vmul.f32 %v6534, %v1072
        %v6553 = vmul.f32 %v6537, %v1072
        %v6554 = vadd.f32 %v6538, 1e-05
        %v6555 = vadd.f32 %v6539, 1e-05
        %v6556 = vadd.f32 %v6540, 1e-05
        %v6557 = vadd.f32 %v6541, 1e-05
        %v6558 = vadd.f32 %v6542, 1e-05
        %v6559 = vadd.f32 %v6543, 1e-05
        %v6560 = vadd.f32 %v6544, 1e-05
        %v6561 = vadd.f32 %v6545, 1e-05
        %v6562 = vadd.f32 %v6546, 1e-05
        %v6563 = vadd.f32 %v6547, 1e-05
        %v6564 = vadd.f32 %v6548, 1e-05
        %v6565 = vadd.f32 %v6549, 1e-05
        %v6566 = vadd.f32 %v6550, 1e-05
        %v6567 = vadd.f32 %v6551, 1e-05
        %v6568 = vadd.f32 %v6552, 1e-05
        %v6569 = vadd.f32 %v6553, 1e-05
        %v6570 = vrsqrt.pop %v6554
        %v6571 = vrsqrt.pop %v6555
        %v6572 = vrsqrt.pop %v6556
        %v6573 = vrsqrt.pop %v6557
        %v6574 = vrsqrt.pop %v6558
        %v6575 = vrsqrt.pop %v6559
        %v6576 = vrsqrt.pop %v6560
        %v6577 = vrsqrt.pop %v6561
        %v6578 = vrsqrt.pop %v6562
        %v6579 = vrsqrt.pop %v6563
        %v6580 = vrsqrt.pop %v6564
        %v6581 = vrsqrt.pop %v6565
        %v6582 = vrsqrt.pop %v6566
        %v6583 = vrsqrt.pop %v6567
        %v6584 = vrsqrt.pop %v6568
        %v6585 = vrsqrt.pop %v6569
        %v6586 = vmul.f32 %v6458, %v6570
        %v6587 = vmul.f32 %v6459, %v6571
        %v6588 = vmul.f32 %v6460, %v6572
        %v6589 = vmul.f32 %v6461, %v6573
        %v6590 = vmul.f32 %v6462, %v6574
        %v6591 = vmul.f32 %v6463, %v6575
        %v6592 = vmul.f32 %v6464, %v6576
        %v6593 = vmul.f32 %v6465, %v6577
        %v6594 = vmul.f32 %v6466, %v6578
        %v6595 = vmul.f32 %v6467, %v6579
        %v6596 = vmul.f32 %v6468, %v6580
        %v6597 = vmul.f32 %v6469, %v6581
        %v6598 = vmul.f32 %v6470, %v6582
        %v6599 = vmul.f32 %v6471, %v6583
        %v6600 = vmul.f32 %v6472, %v6584
        %v6601 = vmul.f32 %v6473, %v6585
        %v6602 = vlaneseq
        %v6603 = vshrl.u32 %v6602, 7
        %v6604 = vsub.s32 6, %v6603
        %v6605 = vrot.slane %v4384, %v6604
        %v6606 = vmul.f32 %v6586, %v6605
        %v6607 = vmul.f32 %v6587, %v6605
        %v6608 = vmul.f32 %v6588, %v6605
        %v6609 = vmul.f32 %v6589, %v6605
        %v6610 = vmul.f32 %v6590, %v6605
        %v6611 = vmul.f32 %v6591, %v6605
        %v6612 = vmul.f32 %v6592, %v6605
        %v6613 = vmul.f32 %v6593, %v6605
        %v6614 = vmul.f32 %v6594, %v6605
        %v6615 = vmul.f32 %v6595, %v6605
        %v6616 = vmul.f32 %v6596, %v6605
        %v6617 = vmul.f32 %v6597, %v6605
        %v6618 = vmul.f32 %v6598, %v6605
        %v6619 = vmul.f32 %v6599, %v6605
        %v6620 = vmul.f32 %v6600, %v6605
        %v6621 = vmul.f32 %v6601, %v6605
        %v6622 = vlaneseq
        %v6623 = vshrl.u32 %v6622, 7
        %v6624 = vsub.s32 7, %v6623
        %v6625 = vrot.slane %v4384, %v6624
        %v6626 = vadd.f32 %v6606, %v6625
        %v6627 = vadd.f32 %v6607, %v6625
        %v6628 = vadd.f32 %v6608, %v6625
        %v6629 = vadd.f32 %v6609, %v6625
        %v6630 = vadd.f32 %v6610, %v6625
        %v6631 = vadd.f32 %v6611, %v6625
        %v6632 = vadd.f32 %v6612, %v6625
        %v6633 = vadd.f32 %v6613, %v6625
        %v6634 = vadd.f32 %v6614, %v6625
        %v6635 = vadd.f32 %v6615, %v6625
        %v6636 = vadd.f32 %v6616, %v6625
        %v6637 = vadd.f32 %v6617, %v6625
        %v6638 = vadd.f32 %v6618, %v6625
        %v6639 = vadd.f32 %v6619, %v6625
        %v6640 = vadd.f32 %v6620, %v6625
        %v6641 = vadd.f32 %v6621, %v6625
        %v6642 = vlaneseq
        %v6643 = vshrl.u32 %v6642, 7
        %v6644 = vsub.s32 4, %v6643
        %v6645 = vrot.slane %v4384, %v6644
        %v6647 = vsel %vm1023, %v6626, 0
        %v6650 = vsel %vm1023, %v6627, 0
        %v6653 = vsel %vm1023, %v6628, 0
        %v6656 = vsel %vm1023, %v6629, 0
        %v6659 = vsel %vm1023, %v6630, 0
        %v6662 = vsel %vm1023, %v6631, 0
        %v6665 = vsel %vm1023, %v6632, 0
        %v6668 = vsel %vm1023, %v6633, 0
        %v6671 = vsel %vm1023, %v6634, 0
        %v6674 = vsel %vm1023, %v6635, 0
        %v6677 = vsel %vm1023, %v6636, 0
        %v6680 = vsel %vm1023, %v6637, 0
        %v6683 = vsel %vm1023, %v6638, 0
        %v6686 = vsel %vm1023, %v6639, 0
        %v6689 = vsel %vm1023, %v6640, 0
        %v6692 = vsel %vm1023, %v6641, 0
        %6694 = vmatprep.subr.mxu0 0.0
        %6695 = vmatpush1.msra.mxu0 %v4375
        %6696 = vmatprep.subr.mxu0 0.0
        %6697 = vmatpush1.msra.mxu0 %v4376
        %6698 = vmatprep.subr.mxu0 0.0
        %6699 = vmatpush1.msra.mxu0 %v4377
        %6700 = vmatprep.subr.mxu0 0.0
        %6701 = vmatpush1.msra.mxu0 %v4378
        %6702 = vmatprep.subr.mxu0 0.0
        %6703 = vmatpush1.msra.mxu0 0.0
        %6704 = vmatprep.subr.mxu0 0.0
        %6705 = vmatpush1.msra.mxu0 0.0
        %6706 = vmatprep.subr.mxu0 0.0
        %6707 = vmatpush1.msra.mxu0 0.0
        %6708 = vmatprep.subr.mxu0 0.0
        %6709 = vmatpush1.msra.mxu0 0.0
        %6710 = vmatprep.subr.mxu0 0.0
        %6711 = vmatpush1.msra.mxu0 0.0
        %6712 = vmatprep.subr.mxu0 0.0
        %6713 = vmatpush1.msra.mxu0 0.0
        %6714 = vmatprep.subr.mxu0 0.0
        %6715 = vmatpush1.msra.mxu0 0.0
        %6716 = vmatprep.subr.mxu0 0.0
        %6717 = vmatpush1.msra.mxu0 0.0
        %6718 = vmatprep.subr.mxu0 0.0
        %6719 = vmatpush1.msra.mxu0 0.0
        %6720 = vmatprep.subr.mxu0 0.0
        %6721 = vmatpush1.msra.mxu0 0.0
        %6722 = vmatprep.subr.mxu0 0.0
        %6723 = vmatpush1.msra.mxu0 0.0
        %6724 = vmatprep.subr.mxu0 0.0
        %6725 = vmatpush1.msra.mxu0 0.0
        %6726 = vmatprep.subr.mxu0 0.0
        %6727 = vmatpush1.msra.mxu0 0.0
        %6728 = vmatprep.subr.mxu0 0.0
        %6729 = vmatpush1.msra.mxu0 0.0
        %6730 = vmatprep.subr.mxu0 0.0
        %6731 = vmatpush1.msra.mxu0 0.0
        %6732 = vmatprep.subr.mxu0 0.0
        %6733 = vmatpush1.msra.mxu0 0.0
        %6734 = vmatprep.subr.mxu0 0.0
        %6735 = vmatpush1.msra.mxu0 0.0
        %6736 = vmatprep.subr.mxu0 0.0
        %6737 = vmatpush1.msra.mxu0 0.0
        %6738 = vmatprep.subr.mxu0 0.0
        %6739 = vmatpush1.msra.mxu0 0.0
        %6740 = vmatprep.subr.mxu0 0.0
        %6741 = vmatpush1.msra.mxu0 0.0
        %6742 = vmatprep.subr.mxu0 0.0
        %6743 = vmatpush1.msra.mxu0 0.0
        %6744 = vmatprep.subr.mxu0 0.0
        %6745 = vmatpush1.msra.mxu0 0.0
        %6746 = vmatprep.subr.mxu0 0.0
        %6747 = vmatpush1.msra.mxu0 0.0
        %6748 = vmatprep.subr.mxu0 0.0
        %6749 = vmatpush1.msra.mxu0 0.0
        %6750 = vmatprep.subr.mxu0 0.0
        %6751 = vmatpush1.msra.mxu0 0.0
        %6752 = vmatprep.subr.mxu0 0.0
        %6753 = vmatpush1.msra.mxu0 0.0
        %6754 = vmatprep.subr.mxu0 0.0
        %6755 = vmatpush1.msra.mxu0 0.0
        %6756 = vmatprep.subr.mxu0 0.0
        %6757 = vmatpush1.msra.mxu0 0.0
        %6758 = vmatprep.mubr.f32.mxu0 0.0
        %6759 = vmatmul.mubr.f32.gmra.mrb[0].mxu0 %v6647
        %v6760 = vpop.f32.mrb[0].mxu0
        %v6761 = vadd.f32 %v6645, %v6760
        %v6762 = vpop.f32.mrb[0].mxu0
        %6763 = vmatprep.mubr.f32.mxu0 0.0
        %6764 = vmatmul.mubr.f32.gmra.mrb[0].mxu0 %v6650
        %v6765 = vpop.f32.mrb[0].mxu0
        %v6766 = vadd.f32 %v6645, %v6765
        %v6767 = vpop.f32.mrb[0].mxu0
        %6768 = vmatprep.mubr.f32.mxu0 0.0
        %6769 = vmatmul.mubr.f32.gmra.mrb[0].mxu0 %v6653
        %v6770 = vpop.f32.mrb[0].mxu0
        %v6771 = vadd.f32 %v6645, %v6770
        %v6772 = vpop.f32.mrb[0].mxu0
        %6773 = vmatprep.mubr.f32.mxu0 0.0
        %6774 = vmatmul.mubr.f32.gmra.mrb[0].mxu0 %v6656
        %v6775 = vpop.f32.mrb[0].mxu0
        %v6776 = vadd.f32 %v6645, %v6775
        %v6777 = vpop.f32.mrb[0].mxu0
        %6778 = vmatprep.mubr.f32.mxu0 0.0
        %6779 = vmatmul.mubr.f32.gmra.mrb[0].mxu0 %v6659
        %v6780 = vpop.f32.mrb[0].mxu0
        %v6781 = vadd.f32 %v6645, %v6780
        %v6782 = vpop.f32.mrb[0].mxu0
        %6783 = vmatprep.mubr.f32.mxu0 0.0
        %6784 = vmatmul.mubr.f32.gmra.mrb[0].mxu0 %v6662
        %v6785 = vpop.f32.mrb[0].mxu0
        %v6786 = vadd.f32 %v6645, %v6785
        %v6787 = vpop.f32.mrb[0].mxu0
        %6788 = vmatprep.mubr.f32.mxu0 0.0
        %6789 = vmatmul.mubr.f32.gmra.mrb[0].mxu0 %v6665
        %v6790 = vpop.f32.mrb[0].mxu0
        %v6791 = vadd.f32 %v6645, %v6790
        %v6792 = vpop.f32.mrb[0].mxu0
        %6793 = vmatprep.mubr.f32.mxu0 0.0
        %6794 = vmatmul.mubr.f32.gmra.mrb[0].mxu0 %v6668
        %v6795 = vpop.f32.mrb[0].mxu0
        %v6796 = vadd.f32 %v6645, %v6795
        %v6797 = vpop.f32.mrb[0].mxu0
        %6798 = vmatprep.mubr.f32.mxu0 0.0
        %6799 = vmatmul.mubr.f32.gmra.mrb[0].mxu0 %v6671
        %v6800 = vpop.f32.mrb[0].mxu0
        %v6801 = vadd.f32 %v6645, %v6800
        %v6802 = vpop.f32.mrb[0].mxu0
        %6803 = vmatprep.mubr.f32.mxu0 0.0
        %6804 = vmatmul.mubr.f32.gmra.mrb[0].mxu0 %v6674
        %v6805 = vpop.f32.mrb[0].mxu0
        %v6806 = vadd.f32 %v6645, %v6805
        %v6807 = vpop.f32.mrb[0].mxu0
        %6808 = vmatprep.mubr.f32.mxu0 0.0
        %6809 = vmatmul.mubr.f32.gmra.mrb[0].mxu0 %v6677
        %v6810 = vpop.f32.mrb[0].mxu0
        %v6811 = vadd.f32 %v6645, %v6810
        %v6812 = vpop.f32.mrb[0].mxu0
        %6813 = vmatprep.mubr.f32.mxu0 0.0
        %6814 = vmatmul.mubr.f32.gmra.mrb[0].mxu0 %v6680
        %v6815 = vpop.f32.mrb[0].mxu0
        %v6816 = vadd.f32 %v6645, %v6815
        %v6817 = vpop.f32.mrb[0].mxu0
        %6818 = vmatprep.mubr.f32.mxu0 0.0
        %6819 = vmatmul.mubr.f32.gmra.mrb[0].mxu0 %v6683
        %v6820 = vpop.f32.mrb[0].mxu0
        %v6821 = vadd.f32 %v6645, %v6820
        %v6822 = vpop.f32.mrb[0].mxu0
        %6823 = vmatprep.mubr.f32.mxu0 0.0
        %6824 = vmatmul.mubr.f32.gmra.mrb[0].mxu0 %v6686
        %v6825 = vpop.f32.mrb[0].mxu0
        %v6826 = vadd.f32 %v6645, %v6825
        %v6827 = vpop.f32.mrb[0].mxu0
        %6828 = vmatprep.mubr.f32.mxu0 0.0
        %6829 = vmatmul.mubr.f32.gmra.mrb[0].mxu0 %v6689
        %v6830 = vpop.f32.mrb[0].mxu0
        %v6831 = vadd.f32 %v6645, %v6830
        %v6832 = vpop.f32.mrb[0].mxu0
        %6833 = vmatprep.mubr.f32.mxu0 0.0
        %6834 = vmatmul.mubr.f32.gmra.mrb[0].mxu0 %v6692
        %v6835 = vpop.f32.mrb[0].mxu0
        %v6836 = vadd.f32 %v6645, %v6835
        %v6837 = vpop.f32.mrb[0].mxu0
        %6838 = vdwg.mxu0
        %v6839 = vmul.f32 %v6761, 0.5
        %v6840 = vmul.f32 %v6766, 0.5
        %v6841 = vmul.f32 %v6771, 0.5
        %v6842 = vmul.f32 %v6776, 0.5
        %v6843 = vmul.f32 %v6781, 0.5
        %v6844 = vmul.f32 %v6786, 0.5
        %v6845 = vmul.f32 %v6791, 0.5
        %v6846 = vmul.f32 %v6796, 0.5
        %v6847 = vmul.f32 %v6801, 0.5
        %v6848 = vmul.f32 %v6806, 0.5
        %v6849 = vmul.f32 %v6811, 0.5
        %v6850 = vmul.f32 %v6816, 0.5
        %v6851 = vmul.f32 %v6821, 0.5
        %v6852 = vmul.f32 %v6826, 0.5
        %v6853 = vmul.f32 %v6831, 0.5
        %v6854 = vmul.f32 %v6836, 0.5
        %v6855 = vmul.f32 %v6761, 0.044715
        %v6856 = vmul.f32 %v6766, 0.044715
        %v6857 = vmul.f32 %v6771, 0.044715
        %v6858 = vmul.f32 %v6776, 0.044715
        %v6859 = vmul.f32 %v6781, 0.044715
        %v6860 = vmul.f32 %v6786, 0.044715
        %v6861 = vmul.f32 %v6791, 0.044715
        %v6862 = vmul.f32 %v6796, 0.044715
        %v6863 = vmul.f32 %v6801, 0.044715
        %v6864 = vmul.f32 %v6806, 0.044715
        %v6865 = vmul.f32 %v6811, 0.044715
        %v6866 = vmul.f32 %v6816, 0.044715
        %v6867 = vmul.f32 %v6821, 0.044715
        %v6868 = vmul.f32 %v6826, 0.044715
        %v6869 = vmul.f32 %v6831, 0.044715
        %v6870 = vmul.f32 %v6836, 0.044715
        %v6871 = vmul.f32 %v6855, %v6761
        %v6872 = vmul.f32 %v6856, %v6766
        %v6873 = vmul.f32 %v6857, %v6771
        %v6874 = vmul.f32 %v6858, %v6776
        %v6875 = vmul.f32 %v6859, %v6781
        %v6876 = vmul.f32 %v6860, %v6786
        %v6877 = vmul.f32 %v6861, %v6791
        %v6878 = vmul.f32 %v6862, %v6796
        %v6879 = vmul.f32 %v6863, %v6801
        %v6880 = vmul.f32 %v6864, %v6806
        %v6881 = vmul.f32 %v6865, %v6811
        %v6882 = vmul.f32 %v6866, %v6816
        %v6883 = vmul.f32 %v6867, %v6821
        %v6884 = vmul.f32 %v6868, %v6826
        %v6885 = vmul.f32 %v6869, %v6831
        %v6886 = vmul.f32 %v6870, %v6836
        %v6887 = vmul.f32 %v6871, %v6761
        %v6888 = vmul.f32 %v6872, %v6766
        %v6889 = vmul.f32 %v6873, %v6771
        %v6890 = vmul.f32 %v6874, %v6776
        %v6891 = vmul.f32 %v6875, %v6781
        %v6892 = vmul.f32 %v6876, %v6786
        %v6893 = vmul.f32 %v6877, %v6791
        %v6894 = vmul.f32 %v6878, %v6796
        %v6895 = vmul.f32 %v6879, %v6801
        %v6896 = vmul.f32 %v6880, %v6806
        %v6897 = vmul.f32 %v6881, %v6811
        %v6898 = vmul.f32 %v6882, %v6816
        %v6899 = vmul.f32 %v6883, %v6821
        %v6900 = vmul.f32 %v6884, %v6826
        %v6901 = vmul.f32 %v6885, %v6831
        %v6902 = vmul.f32 %v6886, %v6836
        %v6903 = vadd.f32 %v6761, %v6887
        %v6904 = vadd.f32 %v6766, %v6888
        %v6905 = vadd.f32 %v6771, %v6889
        %v6906 = vadd.f32 %v6776, %v6890
        %v6907 = vadd.f32 %v6781, %v6891
        %v6908 = vadd.f32 %v6786, %v6892
        %v6909 = vadd.f32 %v6791, %v6893
        %v6910 = vadd.f32 %v6796, %v6894
        %v6911 = vadd.f32 %v6801, %v6895
        %v6912 = vadd.f32 %v6806, %v6896
        %v6913 = vadd.f32 %v6811, %v6897
        %v6914 = vadd.f32 %v6816, %v6898
        %v6915 = vadd.f32 %v6821, %v6899
        %v6916 = vadd.f32 %v6826, %v6900
        %v6917 = vadd.f32 %v6831, %v6901
        %v6918 = vadd.f32 %v6836, %v6902
        %v6919 = vmul.f32 %v6903, 0.7978846
        %v6920 = vmul.f32 %v6904, 0.7978846
        %v6921 = vmul.f32 %v6905, 0.7978846
        %v6922 = vmul.f32 %v6906, 0.7978846
        %v6923 = vmul.f32 %v6907, 0.7978846
        %v6924 = vmul.f32 %v6908, 0.7978846
        %v6925 = vmul.f32 %v6909, 0.7978846
        %v6926 = vmul.f32 %v6910, 0.7978846
        %v6927 = vmul.f32 %v6911, 0.7978846
        %v6928 = vmul.f32 %v6912, 0.7978846
        %v6929 = vmul.f32 %v6913, 0.7978846
        %v6930 = vmul.f32 %v6914, 0.7978846
        %v6931 = vmul.f32 %v6915, 0.7978846
        %v6932 = vmul.f32 %v6916, 0.7978846
        %v6933 = vmul.f32 %v6917, 0.7978846
        %v6934 = vmul.f32 %v6918, 0.7978846
        %v6935 = vtanh.pop %v6919
        %v6936 = vtanh.pop %v6920
        %v6937 = vtanh.pop %v6921
        %v6938 = vtanh.pop %v6922
        %v6939 = vtanh.pop %v6923
        %v6940 = vtanh.pop %v6924
        %v6941 = vtanh.pop %v6925
        %v6942 = vtanh.pop %v6926
        %v6943 = vtanh.pop %v6927
        %v6944 = vtanh.pop %v6928
        %v6945 = vtanh.pop %v6929
        %v6946 = vtanh.pop %v6930
        %v6947 = vtanh.pop %v6931
        %v6948 = vtanh.pop %v6932
        %v6949 = vtanh.pop %v6933
        %v6950 = vtanh.pop %v6934
        %v6951 = vadd.f32 %v6935, 1.0
        %v6952 = vadd.f32 %v6936, 1.0
        %v6953 = vadd.f32 %v6937, 1.0
        %v6954 = vadd.f32 %v6938, 1.0
        %v6955 = vadd.f32 %v6939, 1.0
        %v6956 = vadd.f32 %v6940, 1.0
        %v6957 = vadd.f32 %v6941, 1.0
        %v6958 = vadd.f32 %v6942, 1.0
        %v6959 = vadd.f32 %v6943, 1.0
        %v6960 = vadd.f32 %v6944, 1.0
        %v6961 = vadd.f32 %v6945, 1.0
        %v6962 = vadd.f32 %v6946, 1.0
        %v6963 = vadd.f32 %v6947, 1.0
        %v6964 = vadd.f32 %v6948, 1.0
        %v6965 = vadd.f32 %v6949, 1.0
        %v6966 = vadd.f32 %v6950, 1.0
        %v6967 = vmul.f32 %v6839, %v6951
        %v6968 = vmul.f32 %v6840, %v6952
        %v6969 = vmul.f32 %v6841, %v6953
        %v6970 = vmul.f32 %v6842, %v6954
        %v6971 = vmul.f32 %v6843, %v6955
        %v6972 = vmul.f32 %v6844, %v6956
        %v6973 = vmul.f32 %v6845, %v6957
        %v6974 = vmul.f32 %v6846, %v6958
        %v6975 = vmul.f32 %v6847, %v6959
        %v6976 = vmul.f32 %v6848, %v6960
        %v6977 = vmul.f32 %v6849, %v6961
        %v6978 = vmul.f32 %v6850, %v6962
        %v6979 = vmul.f32 %v6851, %v6963
        %v6980 = vmul.f32 %v6852, %v6964
        %v6981 = vmul.f32 %v6853, %v6965
        %v6982 = vmul.f32 %v6854, %v6966
        %v6983 = vlaneseq
        %v6984 = vshrl.u32 %v6983, 7
        %v6985 = vsub.s32 5, %v6984
        %v6986 = vrot.slane %v4384, %v6985
        %v6988 = vsel %vm1023, %v6967, 0
        %v6991 = vsel %vm1023, %v6968, 0
        %v6994 = vsel %vm1023, %v6969, 0
        %v6997 = vsel %vm1023, %v6970, 0
        %v7000 = vsel %vm1023, %v6971, 0
        %v7003 = vsel %vm1023, %v6972, 0
        %v7006 = vsel %vm1023, %v6973, 0
        %v7009 = vsel %vm1023, %v6974, 0
        %v7012 = vsel %vm1023, %v6975, 0
        %v7015 = vsel %vm1023, %v6976, 0
        %v7018 = vsel %vm1023, %v6977, 0
        %v7021 = vsel %vm1023, %v6978, 0
        %v7024 = vsel %vm1023, %v6979, 0
        %v7027 = vsel %vm1023, %v6980, 0
        %v7030 = vsel %vm1023, %v6981, 0
        %v7033 = vsel %vm1023, %v6982, 0
        %7035 = vmatprep.subr.mxu0 0.0
        %7036 = vmatpush1.msra.mxu0 %v4379
        %7037 = vmatprep.subr.mxu0 0.0
        %7038 = vmatpush1.msra.mxu0 %v4380
        %7039 = vmatprep.subr.mxu0 0.0
        %7040 = vmatpush1.msra.mxu0 %v4381
        %7041 = vmatprep.subr.mxu0 0.0
        %7042 = vmatpush1.msra.mxu0 %v4382
        %7043 = vmatprep.subr.mxu0 0.0
        %7044 = vmatpush1.msra.mxu0 0.0
        %7045 = vmatprep.subr.mxu0 0.0
        %7046 = vmatpush1.msra.mxu0 0.0
        %7047 = vmatprep.subr.mxu0 0.0
        %7048 = vmatpush1.msra.mxu0 0.0
        %7049 = vmatprep.subr.mxu0 0.0
        %7050 = vmatpush1.msra.mxu0 0.0
        %7051 = vmatprep.subr.mxu0 0.0
        %7052 = vmatpush1.msra.mxu0 0.0
        %7053 = vmatprep.subr.mxu0 0.0
        %7054 = vmatpush1.msra.mxu0 0.0
        %7055 = vmatprep.subr.mxu0 0.0
        %7056 = vmatpush1.msra.mxu0 0.0
        %7057 = vmatprep.subr.mxu0 0.0
        %7058 = vmatpush1.msra.mxu0 0.0
        %7059 = vmatprep.subr.mxu0 0.0
        %7060 = vmatpush1.msra.mxu0 0.0
        %7061 = vmatprep.subr.mxu0 0.0
        %7062 = vmatpush1.msra.mxu0 0.0
        %7063 = vmatprep.subr.mxu0 0.0
        %7064 = vmatpush1.msra.mxu0 0.0
        %7065 = vmatprep.subr.mxu0 0.0
        %7066 = vmatpush1.msra.mxu0 0.0
        %7067 = vmatprep.subr.mxu0 0.0
        %7068 = vmatpush1.msra.mxu0 0.0
        %7069 = vmatprep.subr.mxu0 0.0
        %7070 = vmatpush1.msra.mxu0 0.0
        %7071 = vmatprep.subr.mxu0 0.0
        %7072 = vmatpush1.msra.mxu0 0.0
        %7073 = vmatprep.subr.mxu0 0.0
        %7074 = vmatpush1.msra.mxu0 0.0
        %7075 = vmatprep.subr.mxu0 0.0
        %7076 = vmatpush1.msra.mxu0 0.0
        %7077 = vmatprep.subr.mxu0 0.0
        %7078 = vmatpush1.msra.mxu0 0.0
        %7079 = vmatprep.subr.mxu0 0.0
        %7080 = vmatpush1.msra.mxu0 0.0
        %7081 = vmatprep.subr.mxu0 0.0
        %7082 = vmatpush1.msra.mxu0 0.0
        %7083 = vmatprep.subr.mxu0 0.0
        %7084 = vmatpush1.msra.mxu0 0.0
        %7085 = vmatprep.subr.mxu0 0.0
        %7086 = vmatpush1.msra.mxu0 0.0
        %7087 = vmatprep.subr.mxu0 0.0
        %7088 = vmatpush1.msra.mxu0 0.0
        %7089 = vmatprep.subr.mxu0 0.0
        %7090 = vmatpush1.msra.mxu0 0.0
        %7091 = vmatprep.subr.mxu0 0.0
        %7092 = vmatpush1.msra.mxu0 0.0
        %7093 = vmatprep.subr.mxu0 0.0
        %7094 = vmatpush1.msra.mxu0 0.0
        %7095 = vmatprep.subr.mxu0 0.0
        %7096 = vmatpush1.msra.mxu0 0.0
        %7097 = vmatprep.subr.mxu0 0.0
        %7098 = vmatpush1.msra.mxu0 0.0
        %7099 = vmatprep.mubr.f32.mxu0 0.0
        %7100 = vmatmul.mubr.f32.gmra.mrb[0].mxu0 %v6988
        %v7101 = vpop.f32.mrb[0].mxu0
        %v7102 = vadd.f32 %v6986, %v7101
        %v7103 = vpop.f32.mrb[0].mxu0
        %7104 = vmatprep.mubr.f32.mxu0 0.0
        %7105 = vmatmul.mubr.f32.gmra.mrb[0].mxu0 %v6991
        %v7106 = vpop.f32.mrb[0].mxu0
        %v7107 = vadd.f32 %v6986, %v7106
        %v7108 = vpop.f32.mrb[0].mxu0
        %7109 = vmatprep.mubr.f32.mxu0 0.0
        %7110 = vmatmul.mubr.f32.gmra.mrb[0].mxu0 %v6994
        %v7111 = vpop.f32.mrb[0].mxu0
        %v7112 = vadd.f32 %v6986, %v7111
        %v7113 = vpop.f32.mrb[0].mxu0
        %7114 = vmatprep.mubr.f32.mxu0 0.0
        %7115 = vmatmul.mubr.f32.gmra.mrb[0].mxu0 %v6997
        %v7116 = vpop.f32.mrb[0].mxu0
        %v7117 = vadd.f32 %v6986, %v7116
        %v7118 = vpop.f32.mrb[0].mxu0
        %7119 = vmatprep.mubr.f32.mxu0 0.0
        %7120 = vmatmul.mubr.f32.gmra.mrb[0].mxu0 %v7000
        %v7121 = vpop.f32.mrb[0].mxu0
        %v7122 = vadd.f32 %v6986, %v7121
        %v7123 = vpop.f32.mrb[0].mxu0
        %7124 = vmatprep.mubr.f32.mxu0 0.0
        %7125 = vmatmul.mubr.f32.gmra.mrb[0].mxu0 %v7003
        %v7126 = vpop.f32.mrb[0].mxu0
        %v7127 = vadd.f32 %v6986, %v7126
        %v7128 = vpop.f32.mrb[0].mxu0
        %7129 = vmatprep.mubr.f32.mxu0 0.0
        %7130 = vmatmul.mubr.f32.gmra.mrb[0].mxu0 %v7006
        %v7131 = vpop.f32.mrb[0].mxu0
        %v7132 = vadd.f32 %v6986, %v7131
        %v7133 = vpop.f32.mrb[0].mxu0
        %7134 = vmatprep.mubr.f32.mxu0 0.0
        %7135 = vmatmul.mubr.f32.gmra.mrb[0].mxu0 %v7009
        %v7136 = vpop.f32.mrb[0].mxu0
        %v7137 = vadd.f32 %v6986, %v7136
        %v7138 = vpop.f32.mrb[0].mxu0
        %7139 = vmatprep.mubr.f32.mxu0 0.0
        %7140 = vmatmul.mubr.f32.gmra.mrb[0].mxu0 %v7012
        %v7141 = vpop.f32.mrb[0].mxu0
        %v7142 = vadd.f32 %v6986, %v7141
        %v7143 = vpop.f32.mrb[0].mxu0
        %7144 = vmatprep.mubr.f32.mxu0 0.0
        %7145 = vmatmul.mubr.f32.gmra.mrb[0].mxu0 %v7015
        %v7146 = vpop.f32.mrb[0].mxu0
        %v7147 = vadd.f32 %v6986, %v7146
        %v7148 = vpop.f32.mrb[0].mxu0
        %7149 = vmatprep.mubr.f32.mxu0 0.0
        %7150 = vmatmul.mubr.f32.gmra.mrb[0].mxu0 %v7018
        %v7151 = vpop.f32.mrb[0].mxu0
        %v7152 = vadd.f32 %v6986, %v7151
        %v7153 = vpop.f32.mrb[0].mxu0
        %7154 = vmatprep.mubr.f32.mxu0 0.0
        %7155 = vmatmul.mubr.f32.gmra.mrb[0].mxu0 %v7021
        %v7156 = vpop.f32.mrb[0].mxu0
        %v7157 = vadd.f32 %v6986, %v7156
        %v7158 = vpop.f32.mrb[0].mxu0
        %7159 = vmatprep.mubr.f32.mxu0 0.0
        %7160 = vmatmul.mubr.f32.gmra.mrb[0].mxu0 %v7024
        %v7161 = vpop.f32.mrb[0].mxu0
        %v7162 = vadd.f32 %v6986, %v7161
        %v7163 = vpop.f32.mrb[0].mxu0
        %7164 = vmatprep.mubr.f32.mxu0 0.0
        %7165 = vmatmul.mubr.f32.gmra.mrb[0].mxu0 %v7027
        %v7166 = vpop.f32.mrb[0].mxu0
        %v7167 = vadd.f32 %v6986, %v7166
        %v7168 = vpop.f32.mrb[0].mxu0
        %7169 = vmatprep.mubr.f32.mxu0 0.0
        %7170 = vmatmul.mubr.f32.gmra.mrb[0].mxu0 %v7030
        %v7171 = vpop.f32.mrb[0].mxu0
        %v7172 = vadd.f32 %v6986, %v7171
        %v7173 = vpop.f32.mrb[0].mxu0
        %7174 = vmatprep.mubr.f32.mxu0 0.0
        %7175 = vmatmul.mubr.f32.gmra.mrb[0].mxu0 %v7033
        %v7176 = vpop.f32.mrb[0].mxu0
        %v7177 = vadd.f32 %v6986, %v7176
        %v7178 = vpop.f32.mrb[0].mxu0
        %7179 = vdwg.mxu0
        %v7180 = vadd.f32 %v6626, %v7102
        %v7181 = vadd.f32 %v6627, %v7107
        %v7182 = vadd.f32 %v6628, %v7112
        %v7183 = vadd.f32 %v6629, %v7117
        %v7184 = vadd.f32 %v6630, %v7122
        %v7185 = vadd.f32 %v6631, %v7127
        %v7186 = vadd.f32 %v6632, %v7132
        %v7187 = vadd.f32 %v6633, %v7137
        %v7188 = vadd.f32 %v6634, %v7142
        %v7189 = vadd.f32 %v6635, %v7147
        %v7190 = vadd.f32 %v6636, %v7152
        %v7191 = vadd.f32 %v6637, %v7157
        %v7192 = vadd.f32 %v6638, %v7162
        %v7193 = vadd.f32 %v6639, %v7167
        %v7194 = vadd.f32 %v6640, %v7172
        %v7195 = vadd.f32 %v6641, %v7177
        %v7196 = vsel %vm1023, %v7180, 0.0
        %7197 = vadd.xlane.f32.xlu0 %v7196
        %v7198 = vpop.xlane.xlu0 %7197
        %v7199 = vsel %vm1023, %v7181, 0.0
        %7200 = vadd.xlane.f32.xlu0 %v7199
        %v7201 = vpop.xlane.xlu0 %7200
        %v7202 = vsel %vm1023, %v7182, 0.0
        %7203 = vadd.xlane.f32.xlu0 %v7202
        %v7204 = vpop.xlane.xlu0 %7203
        %v7205 = vsel %vm1023, %v7183, 0.0
        %7206 = vadd.xlane.f32.xlu0 %v7205
        %v7207 = vpop.xlane.xlu0 %7206
        %v7208 = vsel %vm1023, %v7184, 0.0
        %7209 = vadd.xlane.f32.xlu0 %v7208
        %v7210 = vpop.xlane.xlu0 %7209
        %v7211 = vsel %vm1023, %v7185, 0.0
        %7212 = vadd.xlane.f32.xlu0 %v7211
        %v7213 = vpop.xlane.xlu0 %7212
        %v7214 = vsel %vm1023, %v7186, 0.0
        %7215 = vadd.xlane.f32.xlu0 %v7214
        %v7216 = vpop.xlane.xlu0 %7215
        %v7217 = vsel %vm1023, %v7187, 0.0
        %7218 = vadd.xlane.f32.xlu0 %v7217
        %v7219 = vpop.xlane.xlu0 %7218
        %v7220 = vsel %vm1023, %v7188, 0.0
        %7221 = vadd.xlane.f32.xlu0 %v7220
        %v7222 = vpop.xlane.xlu0 %7221
        %v7223 = vsel %vm1023, %v7189, 0.0
        %7224 = vadd.xlane.f32.xlu0 %v7223
        %v7225 = vpop.xlane.xlu0 %7224
        %v7226 = vsel %vm1023, %v7190, 0.0
        %7227 = vadd.xlane.f32.xlu0 %v7226
        %v7228 = vpop.xlane.xlu0 %7227
        %v7229 = vsel %vm1023, %v7191, 0.0
        %7230 = vadd.xlane.f32.xlu0 %v7229
        %v7231 = vpop.xlane.xlu0 %7230
        %v7232 = vsel %vm1023, %v7192, 0.0
        %7233 = vadd.xlane.f32.xlu0 %v7232
        %v7234 = vpop.xlane.xlu0 %7233
        %v7235 = vsel %vm1023, %v7193, 0.0
        %7236 = vadd.xlane.f32.xlu0 %v7235
        %v7237 = vpop.xlane.xlu0 %7236
        %v7238 = vsel %vm1023, %v7194, 0.0
        %7239 = vadd.xlane.f32.xlu0 %v7238
        %v7240 = vpop.xlane.xlu0 %7239
        %v7241 = vsel %vm1023, %v7195, 0.0
        %7242 = vadd.xlane.f32.xlu0 %v7241
        %v7243 = vpop.xlane.xlu0 %7242
        %v7244 = vmul.f32 %v7198, %v1072
        %v7245 = vmul.f32 %v7201, %v1072
        %v7246 = vmul.f32 %v7204, %v1072
        %v7247 = vmul.f32 %v7207, %v1072
        %v7248 = vmul.f32 %v7210, %v1072
        %v7249 = vmul.f32 %v7213, %v1072
        %v7250 = vmul.f32 %v7216, %v1072
        %v7251 = vmul.f32 %v7219, %v1072
        %v7252 = vmul.f32 %v7222, %v1072
        %v7253 = vmul.f32 %v7225, %v1072
        %v7254 = vmul.f32 %v7228, %v1072
        %v7255 = vmul.f32 %v7231, %v1072
        %v7256 = vmul.f32 %v7234, %v1072
        %v7257 = vmul.f32 %v7237, %v1072
        %v7258 = vmul.f32 %v7240, %v1072
        %v7259 = vmul.f32 %v7243, %v1072
        %v7260 = vsub.f32 %v7180, %v7244
        %v7261 = vsub.f32 %v7181, %v7245
        %v7262 = vsub.f32 %v7182, %v7246
        %v7263 = vsub.f32 %v7183, %v7247
        %v7264 = vsub.f32 %v7184, %v7248
        %v7265 = vsub.f32 %v7185, %v7249
        %v7266 = vsub.f32 %v7186, %v7250
        %v7267 = vsub.f32 %v7187, %v7251
        %v7268 = vsub.f32 %v7188, %v7252
        %v7269 = vsub.f32 %v7189, %v7253
        %v7270 = vsub.f32 %v7190, %v7254
        %v7271 = vsub.f32 %v7191, %v7255
        %v7272 = vsub.f32 %v7192, %v7256
        %v7273 = vsub.f32 %v7193, %v7257
        %v7274 = vsub.f32 %v7194, %v7258
        %v7275 = vsub.f32 %v7195, %v7259
        %v7276 = vmul.f32 %v7260, %v7260
        %v7277 = vmul.f32 %v7261, %v7261
        %v7278 = vmul.f32 %v7262, %v7262
        %v7279 = vmul.f32 %v7263, %v7263
        %v7280 = vmul.f32 %v7264, %v7264
        %v7281 = vmul.f32 %v7265, %v7265
        %v7282 = vmul.f32 %v7266, %v7266
        %v7283 = vmul.f32 %v7267, %v7267
        %v7284 = vmul.f32 %v7268, %v7268
        %v7285 = vmul.f32 %v7269, %v7269
        %v7286 = vmul.f32 %v7270, %v7270
        %v7287 = vmul.f32 %v7271, %v7271
        %v7288 = vmul.f32 %v7272, %v7272
        %v7289 = vmul.f32 %v7273, %v7273
        %v7290 = vmul.f32 %v7274, %v7274
        %v7291 = vmul.f32 %v7275, %v7275
        %v7292 = vsel %vm1023, %v7276, 0.0
        %7293 = vadd.xlane.f32.xlu0 %v7292
        %v7294 = vpop.xlane.xlu0 %7293
        %v7295 = vsel %vm1023, %v7277, 0.0
        %7296 = vadd.xlane.f32.xlu0 %v7295
        %v7297 = vpop.xlane.xlu0 %7296
        %v7298 = vsel %vm1023, %v7278, 0.0
        %7299 = vadd.xlane.f32.xlu0 %v7298
        %v7300 = vpop.xlane.xlu0 %7299
        %v7301 = vsel %vm1023, %v7279, 0.0
        %7302 = vadd.xlane.f32.xlu0 %v7301
        %v7303 = vpop.xlane.xlu0 %7302
        %v7304 = vsel %vm1023, %v7280, 0.0
        %7305 = vadd.xlane.f32.xlu0 %v7304
        %v7306 = vpop.xlane.xlu0 %7305
        %v7307 = vsel %vm1023, %v7281, 0.0
        %7308 = vadd.xlane.f32.xlu0 %v7307
        %v7309 = vpop.xlane.xlu0 %7308
        %v7310 = vsel %vm1023, %v7282, 0.0
        %7311 = vadd.xlane.f32.xlu0 %v7310
        %v7312 = vpop.xlane.xlu0 %7311
        %v7313 = vsel %vm1023, %v7283, 0.0
        %7314 = vadd.xlane.f32.xlu0 %v7313
        %v7315 = vpop.xlane.xlu0 %7314
        %v7316 = vsel %vm1023, %v7284, 0.0
        %7317 = vadd.xlane.f32.xlu0 %v7316
        %v7318 = vpop.xlane.xlu0 %7317
        %v7319 = vsel %vm1023, %v7285, 0.0
        %7320 = vadd.xlane.f32.xlu0 %v7319
        %v7321 = vpop.xlane.xlu0 %7320
        %v7322 = vsel %vm1023, %v7286, 0.0
        %7323 = vadd.xlane.f32.xlu0 %v7322
        %v7324 = vpop.xlane.xlu0 %7323
        %v7325 = vsel %vm1023, %v7287, 0.0
        %7326 = vadd.xlane.f32.xlu0 %v7325
        %v7327 = vpop.xlane.xlu0 %7326
        %v7328 = vsel %vm1023, %v7288, 0.0
        %7329 = vadd.xlane.f32.xlu0 %v7328
        %v7330 = vpop.xlane.xlu0 %7329
        %v7331 = vsel %vm1023, %v7289, 0.0
        %7332 = vadd.xlane.f32.xlu0 %v7331
        %v7333 = vpop.xlane.xlu0 %7332
        %v7334 = vsel %vm1023, %v7290, 0.0
        %7335 = vadd.xlane.f32.xlu0 %v7334
        %v7336 = vpop.xlane.xlu0 %7335
        %v7337 = vsel %vm1023, %v7291, 0.0
        %7338 = vadd.xlane.f32.xlu0 %v7337
        %v7339 = vpop.xlane.xlu0 %7338
        %v7340 = vmul.f32 %v7294, %v1072
        %v7341 = vmul.f32 %v7297, %v1072
        %v7342 = vmul.f32 %v7300, %v1072
        %v7343 = vmul.f32 %v7303, %v1072
        %v7344 = vmul.f32 %v7306, %v1072
        %v7345 = vmul.f32 %v7309, %v1072
        %v7346 = vmul.f32 %v7312, %v1072
        %v7347 = vmul.f32 %v7315, %v1072
        %v7348 = vmul.f32 %v7318, %v1072
        %v7349 = vmul.f32 %v7321, %v1072
        %v7350 = vmul.f32 %v7324, %v1072
        %v7351 = vmul.f32 %v7327, %v1072
        %v7352 = vmul.f32 %v7330, %v1072
        %v7353 = vmul.f32 %v7333, %v1072
        %v7354 = vmul.f32 %v7336, %v1072
        %v7355 = vmul.f32 %v7339, %v1072
        %v7356 = vadd.f32 %v7340, 1e-05
        %v7357 = vadd.f32 %v7341, 1e-05
        %v7358 = vadd.f32 %v7342, 1e-05
        %v7359 = vadd.f32 %v7343, 1e-05
        %v7360 = vadd.f32 %v7344, 1e-05
        %v7361 = vadd.f32 %v7345, 1e-05
        %v7362 = vadd.f32 %v7346, 1e-05
        %v7363 = vadd.f32 %v7347, 1e-05
        %v7364 = vadd.f32 %v7348, 1e-05
        %v7365 = vadd.f32 %v7349, 1e-05
        %v7366 = vadd.f32 %v7350, 1e-05
        %v7367 = vadd.f32 %v7351, 1e-05
        %v7368 = vadd.f32 %v7352, 1e-05
        %v7369 = vadd.f32 %v7353, 1e-05
        %v7370 = vadd.f32 %v7354, 1e-05
        %v7371 = vadd.f32 %v7355, 1e-05
        %v7372 = vrsqrt.pop %v7356
        %v7373 = vrsqrt.pop %v7357
        %v7374 = vrsqrt.pop %v7358
        %v7375 = vrsqrt.pop %v7359
        %v7376 = vrsqrt.pop %v7360
        %v7377 = vrsqrt.pop %v7361
        %v7378 = vrsqrt.pop %v7362
        %v7379 = vrsqrt.pop %v7363
        %v7380 = vrsqrt.pop %v7364
        %v7381 = vrsqrt.pop %v7365
        %v7382 = vrsqrt.pop %v7366
        %v7383 = vrsqrt.pop %v7367
        %v7384 = vrsqrt.pop %v7368
        %v7385 = vrsqrt.pop %v7369
        %v7386 = vrsqrt.pop %v7370
        %v7387 = vrsqrt.pop %v7371
        %v7388 = vmul.f32 %v7260, %v7372
        %v7389 = vmul.f32 %v7261, %v7373
        %v7390 = vmul.f32 %v7262, %v7374
        %v7391 = vmul.f32 %v7263, %v7375
        %v7392 = vmul.f32 %v7264, %v7376
        %v7393 = vmul.f32 %v7265, %v7377
        %v7394 = vmul.f32 %v7266, %v7378
        %v7395 = vmul.f32 %v7267, %v7379
        %v7396 = vmul.f32 %v7268, %v7380
        %v7397 = vmul.f32 %v7269, %v7381
        %v7398 = vmul.f32 %v7270, %v7382
        %v7399 = vmul.f32 %v7271, %v7383
        %v7400 = vmul.f32 %v7272, %v7384
        %v7401 = vmul.f32 %v7273, %v7385
        %v7402 = vmul.f32 %v7274, %v7386
        %v7403 = vmul.f32 %v7275, %v7387
        %v7404 = vlaneseq
        %v7405 = vshrl.u32 %v7404, 7
        %v7406 = vsub.s32 0, %v7405
        %v7407 = vrot.slane %v4385, %v7406
        %v7408 = vmul.f32 %v7388, %v7407
        %v7409 = vmul.f32 %v7389, %v7407
        %v7410 = vmul.f32 %v7390, %v7407
        %v7411 = vmul.f32 %v7391, %v7407
        %v7412 = vmul.f32 %v7392, %v7407
        %v7413 = vmul.f32 %v7393, %v7407
        %v7414 = vmul.f32 %v7394, %v7407
        %v7415 = vmul.f32 %v7395, %v7407
        %v7416 = vmul.f32 %v7396, %v7407
        %v7417 = vmul.f32 %v7397, %v7407
        %v7418 = vmul.f32 %v7398, %v7407
        %v7419 = vmul.f32 %v7399, %v7407
        %v7420 = vmul.f32 %v7400, %v7407
        %v7421 = vmul.f32 %v7401, %v7407
        %v7422 = vmul.f32 %v7402, %v7407
        %v7423 = vmul.f32 %v7403, %v7407
        %v7424 = vlaneseq
        %v7425 = vshrl.u32 %v7424, 7
        %v7426 = vsub.s32 1, %v7425
        %v7427 = vrot.slane %v4385, %v7426
        %v7428 = vadd.f32 %v7408, %v7427
        %v7429 = vadd.f32 %v7409, %v7427
        %v7430 = vadd.f32 %v7410, %v7427
        %v7431 = vadd.f32 %v7411, %v7427
        %v7432 = vadd.f32 %v7412, %v7427
        %v7433 = vadd.f32 %v7413, %v7427
        %v7434 = vadd.f32 %v7414, %v7427
        %v7435 = vadd.f32 %v7415, %v7427
        %v7436 = vadd.f32 %v7416, %v7427
        %v7437 = vadd.f32 %v7417, %v7427
        %v7438 = vadd.f32 %v7418, %v7427
        %v7439 = vadd.f32 %v7419, %v7427
        %v7440 = vadd.f32 %v7420, %v7427
        %v7441 = vadd.f32 %v7421, %v7427
        %v7442 = vadd.f32 %v7422, %v7427
        %v7443 = vadd.f32 %v7423, %v7427
        %7444 = vst.msk [vmem:[%s390] sm:$0xff] %vm1023, %v7428
        %7445 = vst.msk [vmem:[%s390 + $0x8] sm:$0xff] %vm1023, %v7429
        %7446 = vst.msk [vmem:[%s390 + $0x10] sm:$0xff] %vm1023, %v7430
        %7447 = vst.msk [vmem:[%s390 + $0x18] sm:$0xff] %vm1023, %v7431
        %7448 = vst.msk [vmem:[%s390 + $0x20] sm:$0xff] %vm1023, %v7432
        %7449 = vst.msk [vmem:[%s390 + $0x28] sm:$0xff] %vm1023, %v7433
        %7450 = vst.msk [vmem:[%s390 + $0x30] sm:$0xff] %vm1023, %v7434
        %7451 = vst.msk [vmem:[%s390 + $0x38] sm:$0xff] %vm1023, %v7435
        %7452 = vst.msk [vmem:[%s390 + $0x40] sm:$0xff] %vm1023, %v7436
        %7453 = vst.msk [vmem:[%s390 + $0x48] sm:$0xff] %vm1023, %v7437
        %7454 = vst.msk [vmem:[%s390 + $0x50] sm:$0xff] %vm1023, %v7438
        %7455 = vst.msk [vmem:[%s390 + $0x58] sm:$0xff] %vm1023, %v7439
        %7456 = vst.msk [vmem:[%s390 + $0x60] sm:$0xff] %vm1023, %v7440
        %7457 = vst.msk [vmem:[%s390 + $0x68] sm:$0xff] %vm1023, %v7441
        %7458 = vst.msk [vmem:[%s390 + $0x70] sm:$0xff] %vm1023, %v7442
        %7459 = vst.msk [vmem:[%s390 + $0x78] sm:$0xff] %vm1023, %v7443
        %v7460 = vld [vmem:[%s7] sm:$0xff]
        %v7461 = vld [vmem:[%s7 + $0x8] sm:$0xff]
        %v7462 = vld [vmem:[%s7 + $0x10] sm:$0xff]
        %v7463 = vld [vmem:[%s7 + $0x18] sm:$0xff]
        %v7464 = vld [vmem:[%s6 + $0x3] sm:$0x1]
        %v7465 = vlaneseq
        %v7466 = vshrl.u32 %v7465, 7
        %v7467 = vsub.s32 0, %v7466
        %v7468 = vrot.slane %v7464, %v7467
        %v7470 = vsel %vm1023, %v7428, 0
        %v7473 = vsel %vm1023, %v7429, 0
        %v7476 = vsel %vm1023, %v7430, 0
        %v7479 = vsel %vm1023, %v7431, 0
        %v7482 = vsel %vm1023, %v7432, 0
        %v7485 = vsel %vm1023, %v7433, 0
        %v7488 = vsel %vm1023, %v7434, 0
        %v7491 = vsel %vm1023, %v7435, 0
        %v7494 = vsel %vm1023, %v7436, 0
        %v7497 = vsel %vm1023, %v7437, 0
        %v7500 = vsel %vm1023, %v7438, 0
        %v7503 = vsel %vm1023, %v7439, 0
        %v7506 = vsel %vm1023, %v7440, 0
        %v7509 = vsel %vm1023, %v7441, 0
        %v7512 = vsel %vm1023, %v7442, 0
        %v7515 = vsel %vm1023, %v7443, 0
        %7517 = vmatprep.subr.mxu0 0.0
        %7518 = vmatpush1.msra.mxu0 %v7460
        %7519 = vmatprep.subr.mxu0 0.0
        %7520 = vmatpush1.msra.mxu0 %v7461
        %7521 = vmatprep.subr.mxu0 0.0
        %7522 = vmatpush1.msra.mxu0 %v7462
        %7523 = vmatprep.subr.mxu0 0.0
        %7524 = vmatpush1.msra.mxu0 %v7463
        %7525 = vmatprep.subr.mxu0 0.0
        %7526 = vmatpush1.msra.mxu0 0.0
        %7527 = vmatprep.subr.mxu0 0.0
        %7528 = vmatpush1.msra.mxu0 0.0
        %7529 = vmatprep.subr.mxu0 0.0
        %7530 = vmatpush1.msra.mxu0 0.0
        %7531 = vmatprep.subr.mxu0 0.0
        %7532 = vmatpush1.msra.mxu0 0.0
        %7533 = vmatprep.subr.mxu0 0.0
        %7534 = vmatpush1.msra.mxu0 0.0
        %7535 = vmatprep.subr.mxu0 0.0
        %7536 = vmatpush1.msra.mxu0 0.0
        %7537 = vmatprep.subr.mxu0 0.0
        %7538 = vmatpush1.msra.mxu0 0.0
        %7539 = vmatprep.subr.mxu0 0.0
        %7540 = vmatpush1.msra.mxu0 0.0
        %7541 = vmatprep.subr.mxu0 0.0
        %7542 = vmatpush1.msra.mxu0 0.0
        %7543 = vmatprep.subr.mxu0 0.0
        %7544 = vmatpush1.msra.mxu0 0.0
        %7545 = vmatprep.subr.mxu0 0.0
        %7546 = vmatpush1.msra.mxu0 0.0
        %7547 = vmatprep.subr.mxu0 0.0
        %7548 = vmatpush1.msra.mxu0 0.0
        %7549 = vmatprep.subr.mxu0 0.0
        %7550 = vmatpush1.msra.mxu0 0.0
        %7551 = vmatprep.subr.mxu0 0.0
        %7552 = vmatpush1.msra.mxu0 0.0
        %7553 = vmatprep.subr.mxu0 0.0
        %7554 = vmatpush1.msra.mxu0 0.0
        %7555 = vmatprep.subr.mxu0 0.0
        %7556 = vmatpush1.msra.mxu0 0.0
        %7557 = vmatprep.subr.mxu0 0.0
        %7558 = vmatpush1.msra.mxu0 0.0
        %7559 = vmatprep.subr.mxu0 0.0
        %7560 = vmatpush1.msra.mxu0 0.0
        %7561 = vmatprep.subr.mxu0 0.0
        %7562 = vmatpush1.msra.mxu0 0.0
        %7563 = vmatprep.subr.mxu0 0.0
        %7564 = vmatpush1.msra.mxu0 0.0
        %7565 = vmatprep.subr.mxu0 0.0
        %7566 = vmatpush1.msra.mxu0 0.0
        %7567 = vmatprep.subr.mxu0 0.0
        %7568 = vmatpush1.msra.mxu0 0.0
        %7569 = vmatprep.subr.mxu0 0.0
        %7570 = vmatpush1.msra.mxu0 0.0
        %7571 = vmatprep.subr.mxu0 0.0
        %7572 = vmatpush1.msra.mxu0 0.0
        %7573 = vmatprep.subr.mxu0 0.0
        %7574 = vmatpush1.msra.mxu0 0.0
        %7575 = vmatprep.subr.mxu0 0.0
        %7576 = vmatpush1.msra.mxu0 0.0
        %7577 = vmatprep.subr.mxu0 0.0
        %7578 = vmatpush1.msra.mxu0 0.0
        %7579 = vmatprep.subr.mxu0 0.0
        %7580 = vmatpush1.msra.mxu0 0.0
        %7581 = vmatprep.mubr.f32.mxu0 0.0
        %7582 = vmatmul.mubr.f32.gmra.mrb[0].mxu0 %v7470
        %v7583 = vpop.f32.mrb[0].mxu0
        %v7584 = vadd.f32 %v7468, %v7583
        %v7585 = vpop.f32.mrb[0].mxu0
        %7586 = vmatprep.mubr.f32.mxu0 0.0
        %7587 = vmatmul.mubr.f32.gmra.mrb[0].mxu0 %v7473
        %v7588 = vpop.f32.mrb[0].mxu0
        %v7589 = vadd.f32 %v7468, %v7588
        %v7590 = vpop.f32.mrb[0].mxu0
        %7591 = vmatprep.mubr.f32.mxu0 0.0
        %7592 = vmatmul.mubr.f32.gmra.mrb[0].mxu0 %v7476
        %v7593 = vpop.f32.mrb[0].mxu0
        %v7594 = vadd.f32 %v7468, %v7593
        %v7595 = vpop.f32.mrb[0].mxu0
        %7596 = vmatprep.mubr.f32.mxu0 0.0
        %7597 = vmatmul.mubr.f32.gmra.mrb[0].mxu0 %v7479
        %v7598 = vpop.f32.mrb[0].mxu0
        %v7599 = vadd.f32 %v7468, %v7598
        %v7600 = vpop.f32.mrb[0].mxu0
        %7601 = vmatprep.mubr.f32.mxu0 0.0
        %7602 = vmatmul.mubr.f32.gmra.mrb[0].mxu0 %v7482
        %v7603 = vpop.f32.mrb[0].mxu0
        %v7604 = vadd.f32 %v7468, %v7603
        %v7605 = vpop.f32.mrb[0].mxu0
        %7606 = vmatprep.mubr.f32.mxu0 0.0
        %7607 = vmatmul.mubr.f32.gmra.mrb[0].mxu0 %v7485
        %v7608 = vpop.f32.mrb[0].mxu0
        %v7609 = vadd.f32 %v7468, %v7608
        %v7610 = vpop.f32.mrb[0].mxu0
        %7611 = vmatprep.mubr.f32.mxu0 0.0
        %7612 = vmatmul.mubr.f32.gmra.mrb[0].mxu0 %v7488
        %v7613 = vpop.f32.mrb[0].mxu0
        %v7614 = vadd.f32 %v7468, %v7613
        %v7615 = vpop.f32.mrb[0].mxu0
        %7616 = vmatprep.mubr.f32.mxu0 0.0
        %7617 = vmatmul.mubr.f32.gmra.mrb[0].mxu0 %v7491
        %v7618 = vpop.f32.mrb[0].mxu0
        %v7619 = vadd.f32 %v7468, %v7618
        %v7620 = vpop.f32.mrb[0].mxu0
        %7621 = vmatprep.mubr.f32.mxu0 0.0
        %7622 = vmatmul.mubr.f32.gmra.mrb[0].mxu0 %v7494
        %v7623 = vpop.f32.mrb[0].mxu0
        %v7624 = vadd.f32 %v7468, %v7623
        %v7625 = vpop.f32.mrb[0].mxu0
        %7626 = vmatprep.mubr.f32.mxu0 0.0
        %7627 = vmatmul.mubr.f32.gmra.mrb[0].mxu0 %v7497
        %v7628 = vpop.f32.mrb[0].mxu0
        %v7629 = vadd.f32 %v7468, %v7628
        %v7630 = vpop.f32.mrb[0].mxu0
        %7631 = vmatprep.mubr.f32.mxu0 0.0
        %7632 = vmatmul.mubr.f32.gmra.mrb[0].mxu0 %v7500
        %v7633 = vpop.f32.mrb[0].mxu0
        %v7634 = vadd.f32 %v7468, %v7633
        %v7635 = vpop.f32.mrb[0].mxu0
        %7636 = vmatprep.mubr.f32.mxu0 0.0
        %7637 = vmatmul.mubr.f32.gmra.mrb[0].mxu0 %v7503
        %v7638 = vpop.f32.mrb[0].mxu0
        %v7639 = vadd.f32 %v7468, %v7638
        %v7640 = vpop.f32.mrb[0].mxu0
        %7641 = vmatprep.mubr.f32.mxu0 0.0
        %7642 = vmatmul.mubr.f32.gmra.mrb[0].mxu0 %v7506
        %v7643 = vpop.f32.mrb[0].mxu0
        %v7644 = vadd.f32 %v7468, %v7643
        %v7645 = vpop.f32.mrb[0].mxu0
        %7646 = vmatprep.mubr.f32.mxu0 0.0
        %7647 = vmatmul.mubr.f32.gmra.mrb[0].mxu0 %v7509
        %v7648 = vpop.f32.mrb[0].mxu0
        %v7649 = vadd.f32 %v7468, %v7648
        %v7650 = vpop.f32.mrb[0].mxu0
        %7651 = vmatprep.mubr.f32.mxu0 0.0
        %7652 = vmatmul.mubr.f32.gmra.mrb[0].mxu0 %v7512
        %v7653 = vpop.f32.mrb[0].mxu0
        %v7654 = vadd.f32 %v7468, %v7653
        %v7655 = vpop.f32.mrb[0].mxu0
        %7656 = vmatprep.mubr.f32.mxu0 0.0
        %7657 = vmatmul.mubr.f32.gmra.mrb[0].mxu0 %v7515
        %v7658 = vpop.f32.mrb[0].mxu0
        %v7659 = vadd.f32 %v7468, %v7658
        %v7660 = vpop.f32.mrb[0].mxu0
        %7661 = vdwg.mxu0
        %v7662 = vmul.f32 %v7584, 0.5
        %v7663 = vmul.f32 %v7589, 0.5
        %v7664 = vmul.f32 %v7594, 0.5
        %v7665 = vmul.f32 %v7599, 0.5
        %v7666 = vmul.f32 %v7604, 0.5
        %v7667 = vmul.f32 %v7609, 0.5
        %v7668 = vmul.f32 %v7614, 0.5
        %v7669 = vmul.f32 %v7619, 0.5
        %v7670 = vmul.f32 %v7624, 0.5
        %v7671 = vmul.f32 %v7629, 0.5
        %v7672 = vmul.f32 %v7634, 0.5
        %v7673 = vmul.f32 %v7639, 0.5
        %v7674 = vmul.f32 %v7644, 0.5
        %v7675 = vmul.f32 %v7649, 0.5
        %v7676 = vmul.f32 %v7654, 0.5
        %v7677 = vmul.f32 %v7659, 0.5
        %v7678 = vmul.f32 %v7584, 0.044715
        %v7679 = vmul.f32 %v7589, 0.044715
        %v7680 = vmul.f32 %v7594, 0.044715
        %v7681 = vmul.f32 %v7599, 0.044715
        %v7682 = vmul.f32 %v7604, 0.044715
        %v7683 = vmul.f32 %v7609, 0.044715
        %v7684 = vmul.f32 %v7614, 0.044715
        %v7685 = vmul.f32 %v7619, 0.044715
        %v7686 = vmul.f32 %v7624, 0.044715
        %v7687 = vmul.f32 %v7629, 0.044715
        %v7688 = vmul.f32 %v7634, 0.044715
        %v7689 = vmul.f32 %v7639, 0.044715
        %v7690 = vmul.f32 %v7644, 0.044715
        %v7691 = vmul.f32 %v7649, 0.044715
        %v7692 = vmul.f32 %v7654, 0.044715
        %v7693 = vmul.f32 %v7659, 0.044715
        %v7694 = vmul.f32 %v7678, %v7584
        %v7695 = vmul.f32 %v7679, %v7589
        %v7696 = vmul.f32 %v7680, %v7594
        %v7697 = vmul.f32 %v7681, %v7599
        %v7698 = vmul.f32 %v7682, %v7604
        %v7699 = vmul.f32 %v7683, %v7609
        %v7700 = vmul.f32 %v7684, %v7614
        %v7701 = vmul.f32 %v7685, %v7619
        %v7702 = vmul.f32 %v7686, %v7624
        %v7703 = vmul.f32 %v7687, %v7629
        %v7704 = vmul.f32 %v7688, %v7634
        %v7705 = vmul.f32 %v7689, %v7639
        %v7706 = vmul.f32 %v7690, %v7644
        %v7707 = vmul.f32 %v7691, %v7649
        %v7708 = vmul.f32 %v7692, %v7654
        %v7709 = vmul.f32 %v7693, %v7659
        %v7710 = vmul.f32 %v7694, %v7584
        %v7711 = vmul.f32 %v7695, %v7589
        %v7712 = vmul.f32 %v7696, %v7594
        %v7713 = vmul.f32 %v7697, %v7599
        %v7714 = vmul.f32 %v7698, %v7604
        %v7715 = vmul.f32 %v7699, %v7609
        %v7716 = vmul.f32 %v7700, %v7614
        %v7717 = vmul.f32 %v7701, %v7619
        %v7718 = vmul.f32 %v7702, %v7624
        %v7719 = vmul.f32 %v7703, %v7629
        %v7720 = vmul.f32 %v7704, %v7634
        %v7721 = vmul.f32 %v7705, %v7639
        %v7722 = vmul.f32 %v7706, %v7644
        %v7723 = vmul.f32 %v7707, %v7649
        %v7724 = vmul.f32 %v7708, %v7654
        %v7725 = vmul.f32 %v7709, %v7659
        %v7726 = vadd.f32 %v7584, %v7710
        %v7727 = vadd.f32 %v7589, %v7711
        %v7728 = vadd.f32 %v7594, %v7712
        %v7729 = vadd.f32 %v7599, %v7713
        %v7730 = vadd.f32 %v7604, %v7714
        %v7731 = vadd.f32 %v7609, %v7715
        %v7732 = vadd.f32 %v7614, %v7716
        %v7733 = vadd.f32 %v7619, %v7717
        %v7734 = vadd.f32 %v7624, %v7718
        %v7735 = vadd.f32 %v7629, %v7719
        %v7736 = vadd.f32 %v7634, %v7720
        %v7737 = vadd.f32 %v7639, %v7721
        %v7738 = vadd.f32 %v7644, %v7722
        %v7739 = vadd.f32 %v7649, %v7723
        %v7740 = vadd.f32 %v7654, %v7724
        %v7741 = vadd.f32 %v7659, %v7725
        %v7742 = vmul.f32 %v7726, 0.7978846
        %v7743 = vmul.f32 %v7727, 0.7978846
        %v7744 = vmul.f32 %v7728, 0.7978846
        %v7745 = vmul.f32 %v7729, 0.7978846
        %v7746 = vmul.f32 %v7730, 0.7978846
        %v7747 = vmul.f32 %v7731, 0.7978846
        %v7748 = vmul.f32 %v7732, 0.7978846
        %v7749 = vmul.f32 %v7733, 0.7978846
        %v7750 = vmul.f32 %v7734, 0.7978846
        %v7751 = vmul.f32 %v7735, 0.7978846
        %v7752 = vmul.f32 %v7736, 0.7978846
        %v7753 = vmul.f32 %v7737, 0.7978846
        %v7754 = vmul.f32 %v7738, 0.7978846
        %v7755 = vmul.f32 %v7739, 0.7978846
        %v7756 = vmul.f32 %v7740, 0.7978846
        %v7757 = vmul.f32 %v7741, 0.7978846
        %v7758 = vtanh.pop %v7742
        %v7759 = vtanh.pop %v7743
        %v7760 = vtanh.pop %v7744
        %v7761 = vtanh.pop %v7745
        %v7762 = vtanh.pop %v7746
        %v7763 = vtanh.pop %v7747
        %v7764 = vtanh.pop %v7748
        %v7765 = vtanh.pop %v7749
        %v7766 = vtanh.pop %v7750
        %v7767 = vtanh.pop %v7751
        %v7768 = vtanh.pop %v7752
        %v7769 = vtanh.pop %v7753
        %v7770 = vtanh.pop %v7754
        %v7771 = vtanh.pop %v7755
        %v7772 = vtanh.pop %v7756
        %v7773 = vtanh.pop %v7757
        %v7774 = vadd.f32 %v7758, 1.0
        %v7775 = vadd.f32 %v7759, 1.0
        %v7776 = vadd.f32 %v7760, 1.0
        %v7777 = vadd.f32 %v7761, 1.0
        %v7778 = vadd.f32 %v7762, 1.0
        %v7779 = vadd.f32 %v7763, 1.0
        %v7780 = vadd.f32 %v7764, 1.0
        %v7781 = vadd.f32 %v7765, 1.0
        %v7782 = vadd.f32 %v7766, 1.0
        %v7783 = vadd.f32 %v7767, 1.0
        %v7784 = vadd.f32 %v7768, 1.0
        %v7785 = vadd.f32 %v7769, 1.0
        %v7786 = vadd.f32 %v7770, 1.0
        %v7787 = vadd.f32 %v7771, 1.0
        %v7788 = vadd.f32 %v7772, 1.0
        %v7789 = vadd.f32 %v7773, 1.0
        %v7790 = vmul.f32 %v7662, %v7774
        %v7791 = vmul.f32 %v7663, %v7775
        %v7792 = vmul.f32 %v7664, %v7776
        %v7793 = vmul.f32 %v7665, %v7777
        %v7794 = vmul.f32 %v7666, %v7778
        %v7795 = vmul.f32 %v7667, %v7779
        %v7796 = vmul.f32 %v7668, %v7780
        %v7797 = vmul.f32 %v7669, %v7781
        %v7798 = vmul.f32 %v7670, %v7782
        %v7799 = vmul.f32 %v7671, %v7783
        %v7800 = vmul.f32 %v7672, %v7784
        %v7801 = vmul.f32 %v7673, %v7785
        %v7802 = vmul.f32 %v7674, %v7786
        %v7803 = vmul.f32 %v7675, %v7787
        %v7804 = vmul.f32 %v7676, %v7788
        %v7805 = vmul.f32 %v7677, %v7789
        %v7806 = vld [vmem:[%s6 + $0x4] sm:$0x1]
        %v7807 = vld [vmem:[%s6 + $0x5] sm:$0x1]
        %v7808 = vsel %vm1023, %v7790, 0.0
        %7809 = vadd.xlane.f32.xlu0 %v7808
        %v7810 = vpop.xlane.xlu0 %7809
        %v7811 = vsel %vm1023, %v7791, 0.0
        %7812 = vadd.xlane.f32.xlu0 %v7811
        %v7813 = vpop.xlane.xlu0 %7812
        %v7814 = vsel %vm1023, %v7792, 0.0
        %7815 = vadd.xlane.f32.xlu0 %v7814
        %v7816 = vpop.xlane.xlu0 %7815
        %v7817 = vsel %vm1023, %v7793, 0.0
        %7818 = vadd.xlane.f32.xlu0 %v7817
        %v7819 = vpop.xlane.xlu0 %7818
        %v7820 = vsel %vm1023, %v7794, 0.0
        %7821 = vadd.xlane.f32.xlu0 %v7820
        %v7822 = vpop.xlane.xlu0 %7821
        %v7823 = vsel %vm1023, %v7795, 0.0
        %7824 = vadd.xlane.f32.xlu0 %v7823
        %v7825 = vpop.xlane.xlu0 %7824
        %v7826 = vsel %vm1023, %v7796, 0.0
        %7827 = vadd.xlane.f32.xlu0 %v7826
        %v7828 = vpop.xlane.xlu0 %7827
        %v7829 = vsel %vm1023, %v7797, 0.0
        %7830 = vadd.xlane.f32.xlu0 %v7829
        %v7831 = vpop.xlane.xlu0 %7830
        %v7832 = vsel %vm1023, %v7798, 0.0
        %7833 = vadd.xlane.f32.xlu0 %v7832
        %v7834 = vpop.xlane.xlu0 %7833
        %v7835 = vsel %vm1023, %v7799, 0.0
        %7836 = vadd.xlane.f32.xlu0 %v7835
        %v7837 = vpop.xlane.xlu0 %7836
        %v7838 = vsel %vm1023, %v7800, 0.0
        %7839 = vadd.xlane.f32.xlu0 %v7838
        %v7840 = vpop.xlane.xlu0 %7839
        %v7841 = vsel %vm1023, %v7801, 0.0
        %7842 = vadd.xlane.f32.xlu0 %v7841
        %v7843 = vpop.xlane.xlu0 %7842
        %v7844 = vsel %vm1023, %v7802, 0.0
        %7845 = vadd.xlane.f32.xlu0 %v7844
        %v7846 = vpop.xlane.xlu0 %7845
        %v7847 = vsel %vm1023, %v7803, 0.0
        %7848 = vadd.xlane.f32.xlu0 %v7847
        %v7849 = vpop.xlane.xlu0 %7848
        %v7850 = vsel %vm1023, %v7804, 0.0
        %7851 = vadd.xlane.f32.xlu0 %v7850
        %v7852 = vpop.xlane.xlu0 %7851
        %v7853 = vsel %vm1023, %v7805, 0.0
        %7854 = vadd.xlane.f32.xlu0 %v7853
        %v7855 = vpop.xlane.xlu0 %7854
        %v7856 = vmul.f32 %v7810, %v1072
        %v7857 = vmul.f32 %v7813, %v1072
        %v7858 = vmul.f32 %v7816, %v1072
        %v7859 = vmul.f32 %v7819, %v1072
        %v7860 = vmul.f32 %v7822, %v1072
        %v7861 = vmul.f32 %v7825, %v1072
        %v7862 = vmul.f32 %v7828, %v1072
        %v7863 = vmul.f32 %v7831, %v1072
        %v7864 = vmul.f32 %v7834, %v1072
        %v7865 = vmul.f32 %v7837, %v1072
        %v7866 = vmul.f32 %v7840, %v1072
        %v7867 = vmul.f32 %v7843, %v1072
        %v7868 = vmul.f32 %v7846, %v1072
        %v7869 = vmul.f32 %v7849, %v1072
        %v7870 = vmul.f32 %v7852, %v1072
        %v7871 = vmul.f32 %v7855, %v1072
        %v7872 = vsub.f32 %v7790, %v7856
        %v7873 = vsub.f32 %v7791, %v7857
        %v7874 = vsub.f32 %v7792, %v7858
        %v7875 = vsub.f32 %v7793, %v7859
        %v7876 = vsub.f32 %v7794, %v7860
        %v7877 = vsub.f32 %v7795, %v7861
        %v7878 = vsub.f32 %v7796, %v7862
        %v7879 = vsub.f32 %v7797, %v7863
        %v7880 = vsub.f32 %v7798, %v7864
        %v7881 = vsub.f32 %v7799, %v7865
        %v7882 = vsub.f32 %v7800, %v7866
        %v7883 = vsub.f32 %v7801, %v7867
        %v7884 = vsub.f32 %v7802, %v7868
        %v7885 = vsub.f32 %v7803, %v7869
        %v7886 = vsub.f32 %v7804, %v7870
        %v7887 = vsub.f32 %v7805, %v7871
        %v7888 = vmul.f32 %v7872, %v7872
        %v7889 = vmul.f32 %v7873, %v7873
        %v7890 = vmul.f32 %v7874, %v7874
        %v7891 = vmul.f32 %v7875, %v7875
        %v7892 = vmul.f32 %v7876, %v7876
        %v7893 = vmul.f32 %v7877, %v7877
        %v7894 = vmul.f32 %v7878, %v7878
        %v7895 = vmul.f32 %v7879, %v7879
        %v7896 = vmul.f32 %v7880, %v7880
        %v7897 = vmul.f32 %v7881, %v7881
        %v7898 = vmul.f32 %v7882, %v7882
        %v7899 = vmul.f32 %v7883, %v7883
        %v7900 = vmul.f32 %v7884, %v7884
        %v7901 = vmul.f32 %v7885, %v7885
        %v7902 = vmul.f32 %v7886, %v7886
        %v7903 = vmul.f32 %v7887, %v7887
        %v7904 = vsel %vm1023, %v7888, 0.0
        %7905 = vadd.xlane.f32.xlu0 %v7904
        %v7906 = vpop.xlane.xlu0 %7905
        %v7907 = vsel %vm1023, %v7889, 0.0
        %7908 = vadd.xlane.f32.xlu0 %v7907
        %v7909 = vpop.xlane.xlu0 %7908
        %v7910 = vsel %vm1023, %v7890, 0.0
        %7911 = vadd.xlane.f32.xlu0 %v7910
        %v7912 = vpop.xlane.xlu0 %7911
        %v7913 = vsel %vm1023, %v7891, 0.0
        %7914 = vadd.xlane.f32.xlu0 %v7913
        %v7915 = vpop.xlane.xlu0 %7914
        %v7916 = vsel %vm1023, %v7892, 0.0
        %7917 = vadd.xlane.f32.xlu0 %v7916
        %v7918 = vpop.xlane.xlu0 %7917
        %v7919 = vsel %vm1023, %v7893, 0.0
        %7920 = vadd.xlane.f32.xlu0 %v7919
        %v7921 = vpop.xlane.xlu0 %7920
        %v7922 = vsel %vm1023, %v7894, 0.0
        %7923 = vadd.xlane.f32.xlu0 %v7922
        %v7924 = vpop.xlane.xlu0 %7923
        %v7925 = vsel %vm1023, %v7895, 0.0
        %7926 = vadd.xlane.f32.xlu0 %v7925
        %v7927 = vpop.xlane.xlu0 %7926
        %v7928 = vsel %vm1023, %v7896, 0.0
        %7929 = vadd.xlane.f32.xlu0 %v7928
        %v7930 = vpop.xlane.xlu0 %7929
        %v7931 = vsel %vm1023, %v7897, 0.0
        %7932 = vadd.xlane.f32.xlu0 %v7931
        %v7933 = vpop.xlane.xlu0 %7932
        %v7934 = vsel %vm1023, %v7898, 0.0
        %7935 = vadd.xlane.f32.xlu0 %v7934
        %v7936 = vpop.xlane.xlu0 %7935
        %v7937 = vsel %vm1023, %v7899, 0.0
        %7938 = vadd.xlane.f32.xlu0 %v7937
        %v7939 = vpop.xlane.xlu0 %7938
        %v7940 = vsel %vm1023, %v7900, 0.0
        %7941 = vadd.xlane.f32.xlu0 %v7940
        %v7942 = vpop.xlane.xlu0 %7941
        %v7943 = vsel %vm1023, %v7901, 0.0
        %7944 = vadd.xlane.f32.xlu0 %v7943
        %v7945 = vpop.xlane.xlu0 %7944
        %v7946 = vsel %vm1023, %v7902, 0.0
        %7947 = vadd.xlane.f32.xlu0 %v7946
        %v7948 = vpop.xlane.xlu0 %7947
        %v7949 = vsel %vm1023, %v7903, 0.0
        %7950 = vadd.xlane.f32.xlu0 %v7949
        %v7951 = vpop.xlane.xlu0 %7950
        %v7952 = vmul.f32 %v7906, %v1072
        %v7953 = vmul.f32 %v7909, %v1072
        %v7954 = vmul.f32 %v7912, %v1072
        %v7955 = vmul.f32 %v7915, %v1072
        %v7956 = vmul.f32 %v7918, %v1072
        %v7957 = vmul.f32 %v7921, %v1072
        %v7958 = vmul.f32 %v7924, %v1072
        %v7959 = vmul.f32 %v7927, %v1072
        %v7960 = vmul.f32 %v7930, %v1072
        %v7961 = vmul.f32 %v7933, %v1072
        %v7962 = vmul.f32 %v7936, %v1072
        %v7963 = vmul.f32 %v7939, %v1072
        %v7964 = vmul.f32 %v7942, %v1072
        %v7965 = vmul.f32 %v7945, %v1072
        %v7966 = vmul.f32 %v7948, %v1072
        %v7967 = vmul.f32 %v7951, %v1072
        %v7968 = vadd.f32 %v7952, 1e-05
        %v7969 = vadd.f32 %v7953, 1e-05
        %v7970 = vadd.f32 %v7954, 1e-05
        %v7971 = vadd.f32 %v7955, 1e-05
        %v7972 = vadd.f32 %v7956, 1e-05
        %v7973 = vadd.f32 %v7957, 1e-05
        %v7974 = vadd.f32 %v7958, 1e-05
        %v7975 = vadd.f32 %v7959, 1e-05
        %v7976 = vadd.f32 %v7960, 1e-05
        %v7977 = vadd.f32 %v7961, 1e-05
        %v7978 = vadd.f32 %v7962, 1e-05
        %v7979 = vadd.f32 %v7963, 1e-05
        %v7980 = vadd.f32 %v7964, 1e-05
        %v7981 = vadd.f32 %v7965, 1e-05
        %v7982 = vadd.f32 %v7966, 1e-05
        %v7983 = vadd.f32 %v7967, 1e-05
        %v7984 = vrsqrt.pop %v7968
        %v7985 = vrsqrt.pop %v7969
        %v7986 = vrsqrt.pop %v7970
        %v7987 = vrsqrt.pop %v7971
        %v7988 = vrsqrt.pop %v7972
        %v7989 = vrsqrt.pop %v7973
        %v7990 = vrsqrt.pop %v7974
        %v7991 = vrsqrt.pop %v7975
        %v7992 = vrsqrt.pop %v7976
        %v7993 = vrsqrt.pop %v7977
        %v7994 = vrsqrt.pop %v7978
        %v7995 = vrsqrt.pop %v7979
        %v7996 = vrsqrt.pop %v7980
        %v7997 = vrsqrt.pop %v7981
        %v7998 = vrsqrt.pop %v7982
        %v7999 = vrsqrt.pop %v7983
        %v8000 = vmul.f32 %v7872, %v7984
        %v8001 = vmul.f32 %v7873, %v7985
        %v8002 = vmul.f32 %v7874, %v7986
        %v8003 = vmul.f32 %v7875, %v7987
        %v8004 = vmul.f32 %v7876, %v7988
        %v8005 = vmul.f32 %v7877, %v7989
        %v8006 = vmul.f32 %v7878, %v7990
        %v8007 = vmul.f32 %v7879, %v7991
        %v8008 = vmul.f32 %v7880, %v7992
        %v8009 = vmul.f32 %v7881, %v7993
        %v8010 = vmul.f32 %v7882, %v7994
        %v8011 = vmul.f32 %v7883, %v7995
        %v8012 = vmul.f32 %v7884, %v7996
        %v8013 = vmul.f32 %v7885, %v7997
        %v8014 = vmul.f32 %v7886, %v7998
        %v8015 = vmul.f32 %v7887, %v7999
        %v8016 = vlaneseq
        %v8017 = vshrl.u32 %v8016, 7
        %v8018 = vsub.s32 0, %v8017
        %v8019 = vrot.slane %v7806, %v8018
        %v8020 = vmul.f32 %v8000, %v8019
        %v8021 = vmul.f32 %v8001, %v8019
        %v8022 = vmul.f32 %v8002, %v8019
        %v8023 = vmul.f32 %v8003, %v8019
        %v8024 = vmul.f32 %v8004, %v8019
        %v8025 = vmul.f32 %v8005, %v8019
        %v8026 = vmul.f32 %v8006, %v8019
        %v8027 = vmul.f32 %v8007, %v8019
        %v8028 = vmul.f32 %v8008, %v8019
        %v8029 = vmul.f32 %v8009, %v8019
        %v8030 = vmul.f32 %v8010, %v8019
        %v8031 = vmul.f32 %v8011, %v8019
        %v8032 = vmul.f32 %v8012, %v8019
        %v8033 = vmul.f32 %v8013, %v8019
        %v8034 = vmul.f32 %v8014, %v8019
        %v8035 = vmul.f32 %v8015, %v8019
        %v8036 = vlaneseq
        %v8037 = vshrl.u32 %v8036, 7
        %v8038 = vsub.s32 0, %v8037
        %v8039 = vrot.slane %v7807, %v8038
        %v8040 = vadd.f32 %v8020, %v8039
        %v8041 = vadd.f32 %v8021, %v8039
        %v8042 = vadd.f32 %v8022, %v8039
        %v8043 = vadd.f32 %v8023, %v8039
        %v8044 = vadd.f32 %v8024, %v8039
        %v8045 = vadd.f32 %v8025, %v8039
        %v8046 = vadd.f32 %v8026, %v8039
        %v8047 = vadd.f32 %v8027, %v8039
        %v8048 = vadd.f32 %v8028, %v8039
        %v8049 = vadd.f32 %v8029, %v8039
        %v8050 = vadd.f32 %v8030, %v8039
        %v8051 = vadd.f32 %v8031, %v8039
        %v8052 = vadd.f32 %v8032, %v8039
        %v8053 = vadd.f32 %v8033, %v8039
        %v8054 = vadd.f32 %v8034, %v8039
        %v8055 = vadd.f32 %v8035, %v8039
        %v8056 = vld [vmem:[%s8] sm:$0xff]
        %v8057 = vld [vmem:[%s8 + $0x8] sm:$0xff]
        %v8058 = vld [vmem:[%s8 + $0x10] sm:$0xff]
        %v8059 = vld [vmem:[%s8 + $0x18] sm:$0xff]
        %v8060 = vld [vmem:[%s6 + $0x6] sm:$0x1]
        %v8061 = vlaneseq
        %v8062 = vshrl.u32 %v8061, 7
        %v8063 = vsub.s32 0, %v8062
        %v8064 = vrot.slane %v8060, %v8063
        %v8066 = vsel %vm1023, %v8040, 0
        %v8069 = vsel %vm1023, %v8041, 0
        %v8072 = vsel %vm1023, %v8042, 0
        %v8075 = vsel %vm1023, %v8043, 0
        %v8078 = vsel %vm1023, %v8044, 0
        %v8081 = vsel %vm1023, %v8045, 0
        %v8084 = vsel %vm1023, %v8046, 0
        %v8087 = vsel %vm1023, %v8047, 0
        %v8090 = vsel %vm1023, %v8048, 0
        %v8093 = vsel %vm1023, %v8049, 0
        %v8096 = vsel %vm1023, %v8050, 0
        %v8099 = vsel %vm1023, %v8051, 0
        %v8102 = vsel %vm1023, %v8052, 0
        %v8105 = vsel %vm1023, %v8053, 0
        %v8108 = vsel %vm1023, %v8054, 0
        %v8111 = vsel %vm1023, %v8055, 0
        %8113 = vmatprep.subr.mxu0 0.0
        %8114 = vmatpush1.msra.mxu0 %v8056
        %8115 = vmatprep.subr.mxu0 0.0
        %8116 = vmatpush1.msra.mxu0 %v8057
        %8117 = vmatprep.subr.mxu0 0.0
        %8118 = vmatpush1.msra.mxu0 %v8058
        %8119 = vmatprep.subr.mxu0 0.0
        %8120 = vmatpush1.msra.mxu0 %v8059
        %8121 = vmatprep.subr.mxu0 0.0
        %8122 = vmatpush1.msra.mxu0 0.0
        %8123 = vmatprep.subr.mxu0 0.0
        %8124 = vmatpush1.msra.mxu0 0.0
        %8125 = vmatprep.subr.mxu0 0.0
        %8126 = vmatpush1.msra.mxu0 0.0
        %8127 = vmatprep.subr.mxu0 0.0
        %8128 = vmatpush1.msra.mxu0 0.0
        %8129 = vmatprep.subr.mxu0 0.0
        %8130 = vmatpush1.msra.mxu0 0.0
        %8131 = vmatprep.subr.mxu0 0.0
        %8132 = vmatpush1.msra.mxu0 0.0
        %8133 = vmatprep.subr.mxu0 0.0
        %8134 = vmatpush1.msra.mxu0 0.0
        %8135 = vmatprep.subr.mxu0 0.0
        %8136 = vmatpush1.msra.mxu0 0.0
        %8137 = vmatprep.subr.mxu0 0.0
        %8138 = vmatpush1.msra.mxu0 0.0
        %8139 = vmatprep.subr.mxu0 0.0
        %8140 = vmatpush1.msra.mxu0 0.0
        %8141 = vmatprep.subr.mxu0 0.0
        %8142 = vmatpush1.msra.mxu0 0.0
        %8143 = vmatprep.subr.mxu0 0.0
        %8144 = vmatpush1.msra.mxu0 0.0
        %8145 = vmatprep.subr.mxu0 0.0
        %8146 = vmatpush1.msra.mxu0 0.0
        %8147 = vmatprep.subr.mxu0 0.0
        %8148 = vmatpush1.msra.mxu0 0.0
        %8149 = vmatprep.subr.mxu0 0.0
        %8150 = vmatpush1.msra.mxu0 0.0
        %8151 = vmatprep.subr.mxu0 0.0
        %8152 = vmatpush1.msra.mxu0 0.0
        %8153 = vmatprep.subr.mxu0 0.0
        %8154 = vmatpush1.msra.mxu0 0.0
        %8155 = vmatprep.subr.mxu0 0.0
        %8156 = vmatpush1.msra.mxu0 0.0
        %8157 = vmatprep.subr.mxu0 0.0
        %8158 = vmatpush1.msra.mxu0 0.0
        %8159 = vmatprep.subr.mxu0 0.0
        %8160 = vmatpush1.msra.mxu0 0.0
        %8161 = vmatprep.subr.mxu0 0.0
        %8162 = vmatpush1.msra.mxu0 0.0
        %8163 = vmatprep.subr.mxu0 0.0
        %8164 = vmatpush1.msra.mxu0 0.0
        %8165 = vmatprep.subr.mxu0 0.0
        %8166 = vmatpush1.msra.mxu0 0.0
        %8167 = vmatprep.subr.mxu0 0.0
        %8168 = vmatpush1.msra.mxu0 0.0
        %8169 = vmatprep.subr.mxu0 0.0
        %8170 = vmatpush1.msra.mxu0 0.0
        %8171 = vmatprep.subr.mxu0 0.0
        %8172 = vmatpush1.msra.mxu0 0.0
        %8173 = vmatprep.subr.mxu0 0.0
        %8174 = vmatpush1.msra.mxu0 0.0
        %8175 = vmatprep.subr.mxu0 0.0
        %8176 = vmatpush1.msra.mxu0 0.0
        %8177 = vmatprep.mubr.f32.mxu0 0.0
        %8178 = vmatmul.mubr.f32.gmra.mrb[0].mxu0 %v8066
        %v8179 = vpop.f32.mrb[0].mxu0
        %v8180 = vadd.f32 %v8064, %v8179
        %v8181 = vpop.f32.mrb[0].mxu0
        %8182 = vmatprep.mubr.f32.mxu0 0.0
        %8183 = vmatmul.mubr.f32.gmra.mrb[0].mxu0 %v8069
        %v8184 = vpop.f32.mrb[0].mxu0
        %v8185 = vadd.f32 %v8064, %v8184
        %v8186 = vpop.f32.mrb[0].mxu0
        %8187 = vmatprep.mubr.f32.mxu0 0.0
        %8188 = vmatmul.mubr.f32.gmra.mrb[0].mxu0 %v8072
        %v8189 = vpop.f32.mrb[0].mxu0
        %v8190 = vadd.f32 %v8064, %v8189
        %v8191 = vpop.f32.mrb[0].mxu0
        %8192 = vmatprep.mubr.f32.mxu0 0.0
        %8193 = vmatmul.mubr.f32.gmra.mrb[0].mxu0 %v8075
        %v8194 = vpop.f32.mrb[0].mxu0
        %v8195 = vadd.f32 %v8064, %v8194
        %v8196 = vpop.f32.mrb[0].mxu0
        %8197 = vmatprep.mubr.f32.mxu0 0.0
        %8198 = vmatmul.mubr.f32.gmra.mrb[0].mxu0 %v8078
        %v8199 = vpop.f32.mrb[0].mxu0
        %v8200 = vadd.f32 %v8064, %v8199
        %v8201 = vpop.f32.mrb[0].mxu0
        %8202 = vmatprep.mubr.f32.mxu0 0.0
        %8203 = vmatmul.mubr.f32.gmra.mrb[0].mxu0 %v8081
        %v8204 = vpop.f32.mrb[0].mxu0
        %v8205 = vadd.f32 %v8064, %v8204
        %v8206 = vpop.f32.mrb[0].mxu0
        %8207 = vmatprep.mubr.f32.mxu0 0.0
        %8208 = vmatmul.mubr.f32.gmra.mrb[0].mxu0 %v8084
        %v8209 = vpop.f32.mrb[0].mxu0
        %v8210 = vadd.f32 %v8064, %v8209
        %v8211 = vpop.f32.mrb[0].mxu0
        %8212 = vmatprep.mubr.f32.mxu0 0.0
        %8213 = vmatmul.mubr.f32.gmra.mrb[0].mxu0 %v8087
        %v8214 = vpop.f32.mrb[0].mxu0
        %v8215 = vadd.f32 %v8064, %v8214
        %v8216 = vpop.f32.mrb[0].mxu0
        %8217 = vmatprep.mubr.f32.mxu0 0.0
        %8218 = vmatmul.mubr.f32.gmra.mrb[0].mxu0 %v8090
        %v8219 = vpop.f32.mrb[0].mxu0
        %v8220 = vadd.f32 %v8064, %v8219
        %v8221 = vpop.f32.mrb[0].mxu0
        %8222 = vmatprep.mubr.f32.mxu0 0.0
        %8223 = vmatmul.mubr.f32.gmra.mrb[0].mxu0 %v8093
        %v8224 = vpop.f32.mrb[0].mxu0
        %v8225 = vadd.f32 %v8064, %v8224
        %v8226 = vpop.f32.mrb[0].mxu0
        %8227 = vmatprep.mubr.f32.mxu0 0.0
        %8228 = vmatmul.mubr.f32.gmra.mrb[0].mxu0 %v8096
        %v8229 = vpop.f32.mrb[0].mxu0
        %v8230 = vadd.f32 %v8064, %v8229
        %v8231 = vpop.f32.mrb[0].mxu0
        %8232 = vmatprep.mubr.f32.mxu0 0.0
        %8233 = vmatmul.mubr.f32.gmra.mrb[0].mxu0 %v8099
        %v8234 = vpop.f32.mrb[0].mxu0
        %v8235 = vadd.f32 %v8064, %v8234
        %v8236 = vpop.f32.mrb[0].mxu0
        %8237 = vmatprep.mubr.f32.mxu0 0.0
        %8238 = vmatmul.mubr.f32.gmra.mrb[0].mxu0 %v8102
        %v8239 = vpop.f32.mrb[0].mxu0
        %v8240 = vadd.f32 %v8064, %v8239
        %v8241 = vpop.f32.mrb[0].mxu0
        %8242 = vmatprep.mubr.f32.mxu0 0.0
        %8243 = vmatmul.mubr.f32.gmra.mrb[0].mxu0 %v8105
        %v8244 = vpop.f32.mrb[0].mxu0
        %v8245 = vadd.f32 %v8064, %v8244
        %v8246 = vpop.f32.mrb[0].mxu0
        %8247 = vmatprep.mubr.f32.mxu0 0.0
        %8248 = vmatmul.mubr.f32.gmra.mrb[0].mxu0 %v8108
        %v8249 = vpop.f32.mrb[0].mxu0
        %v8250 = vadd.f32 %v8064, %v8249
        %v8251 = vpop.f32.mrb[0].mxu0
        %8252 = vmatprep.mubr.f32.mxu0 0.0
        %8253 = vmatmul.mubr.f32.gmra.mrb[0].mxu0 %v8111
        %v8254 = vpop.f32.mrb[0].mxu0
        %v8255 = vadd.f32 %v8064, %v8254
        %v8256 = vpop.f32.mrb[0].mxu0
        %8257 = vdwg.mxu0
        %vm8258 = vcmask 7168
        %8259 = vst.msk [vmem:[%s384] sm:$0xff] %vm8258, %v8180
        %8260 = vst.msk [vmem:[%s384 + $0x8] sm:$0xff] %vm8258, %v8185
        %8261 = vst.msk [vmem:[%s384 + $0x10] sm:$0xff] %vm8258, %v8190
        %8262 = vst.msk [vmem:[%s384 + $0x18] sm:$0xff] %vm8258, %v8195
        %8263 = vst.msk [vmem:[%s384 + $0x20] sm:$0xff] %vm8258, %v8200
        %8264 = vst.msk [vmem:[%s384 + $0x28] sm:$0xff] %vm8258, %v8205
        %8265 = vst.msk [vmem:[%s384 + $0x30] sm:$0xff] %vm8258, %v8210
        %8266 = vst.msk [vmem:[%s384 + $0x38] sm:$0xff] %vm8258, %v8215
        %8267 = vst.msk [vmem:[%s384 + $0x40] sm:$0xff] %vm8258, %v8220
        %8268 = vst.msk [vmem:[%s384 + $0x48] sm:$0xff] %vm8258, %v8225
        %8269 = vst.msk [vmem:[%s384 + $0x50] sm:$0xff] %vm8258, %v8230
        %8270 = vst.msk [vmem:[%s384 + $0x58] sm:$0xff] %vm8258, %v8235
        %8271 = vst.msk [vmem:[%s384 + $0x60] sm:$0xff] %vm8258, %v8240
        %8272 = vst.msk [vmem:[%s384 + $0x68] sm:$0xff] %vm8258, %v8245
        %8273 = vst.msk [vmem:[%s384 + $0x70] sm:$0xff] %vm8258, %v8250
        %8274 = vst.msk [vmem:[%s384 + $0x78] sm:$0xff] %vm8258, %v8255
        %s8275 = smul.u32 16, %s23
        %p8276 = scmp.lt.s32.totalorder %s8275, 31
        %s8277 = scalar_select %p8276, %s8275, 31
        %s8278 = smul.addr %s8277, 8
        %s8279 = scalar_lea.vmem %s9, %s8278
        %s8280 = smul.u32 16, %s23
        %p8281 = scmp.lt.s32.totalorder %s8280, 31
        %s8282 = scalar_select %p8281, %s8280, 31
        %s8283 = smul.addr %s8282, 8
        %s8284 = scalar_lea.vmem %s10, %s8283
        // Predicated region
        $region61: #{tpu_custom_call.1} parent=55 // pred_check
          %p8285 = pneg %p235
        $region62: #{tpu_custom_call.1} parent=55 // pred_check_branch
          %8287 = sbr.rel (%p8285) target = $region64
        $region63: #{tpu_custom_call.1} parent=55 // pred_region
          %s8288 = smul.u32 16, %s23
        $region64: #{tpu_custom_call.1} parent=55 // pred_fallthru
          _
        // Predicated region
        $region65: #{tpu_custom_call.1} parent=55 // pred_check
          %p8289 = pneg %p261
        $region66: #{tpu_custom_call.1} parent=55 // pred_check_branch
          %8291 = sbr.rel (%p8289) target = $region68
        $region67: #{tpu_custom_call.1} parent=55 // pred_region
          %s8292 = smul.u32 16, %s23
        $region68: #{tpu_custom_call.1} parent=55 // pred_fallthru
          _
      $region56: #{tpu_custom_call.1} parent=5 // pred_fallthru
        _
      %p8293 = scmp.le.s32.totalorder 2, %s18
      // Predicated region
      $region69: #{tpu_custom_call.1} parent=5 // pred_check
        %p8294 = pneg %p8293
      $region70: #{tpu_custom_call.1} parent=5 // pred_check_branch
        %8296 = sbr.rel (%p8294) target = $region72
      $region71: #{tpu_custom_call.1} parent=5 // pred_region
        %s8297 = ssub.s32 %s18, 2
        // Predicated region
        $region73: #{tpu_custom_call.1} parent=71 // pred_check
          %p8298 = pneg %p241
        $region74: #{tpu_custom_call.1} parent=71 // pred_check_branch
          %8300 = sbr.rel (%p8298) target = $region76
        $region75: #{tpu_custom_call.1} parent=71 // pred_region
          %s8301 = smul.u32 16, %s24
          %p8302 = scmp.lt.s32.totalorder %s8301, 31
          %s8303 = scalar_select %p8302, %s8301, 31
          %s8304 = smul.addr %s8303, 8
          %s8305 = scalar_lea.vmem %s9, %s8304
        $region76: #{tpu_custom_call.1} parent=71 // pred_fallthru
          _
        // Predicated region
        $region77: #{tpu_custom_call.1} parent=71 // pred_check
          %p8306 = pneg %p267
        $region78: #{tpu_custom_call.1} parent=71 // pred_check_branch
          %8308 = sbr.rel (%p8306) target = $region80
        $region79: #{tpu_custom_call.1} parent=71 // pred_region
          %s8309 = smul.u32 16, %s24
          %p8310 = scmp.lt.s32.totalorder %s8309, 31
          %s8311 = scalar_select %p8310, %s8309, 31
          %s8312 = smul.addr %s8311, 8
          %s8313 = scalar_lea.vmem %s10, %s8312
        $region80: #{tpu_custom_call.1} parent=71 // pred_fallthru
          _
      $region72: #{tpu_custom_call.1} parent=5 // pred_fallthru
        _
    $region6: #{tpu_custom_call.1} parent=1 // loop_footer
      %s22 = sadd.s32 1, %s18
    $region7: #{tpu_custom_call.1} parent=1 // loop_footer_branch
      %17 = sbr.rel target = $region3
    $region8: #{tpu_custom_call.1} parent=1 // loop_exit
      _
    %8314 = vsyncpa [#allocation3], 1
    %s8315 = scalar_lea.sflag [#allocation3], 1
    %8316 = vsyncpa %s8315, 1

</llo_original>
